<compile_context>
chip_gen: v7x
topology: tpu7x:2x2x1
jax: 0.10.0
libtpu: 0.0.40
codegen_flags: <defaults>
</compile_context>

<pallas_src>
import functools

import jax
import jax.numpy as jnp
from jax import lax
from jax.experimental import pallas as pl
from jax.experimental.pallas import tpu as pltpu

LEAKY_SLOPE = 0.2
BN_EPS = 1e-5
PAD_OUT = 128  # layer-3 width padded to a lane-dense 128 (real out_dim = 50)


def _leaky_relu(x, slope=LEAKY_SLOPE):
    return jnp.where(x > 0, x, slope * x)


def _round_up(n, m):
    return ((n + m - 1) // m) * m


def _vmem_limit_bytes():
    """48 MiB on 128-MiB-VMEM chips (v5e/v6e), 32 MiB on v7x (64 MiB physical)."""
    cap = None
    try:
        cap = getattr(pltpu.get_tpu_info(), "vmem_capacity_bytes", None)
    except Exception:
        cap = None
    if cap is None:
        cap = 64 << 20  # assume the smallest generation if unknown
    return int(min(48 << 20, cap // 2))


# ----------------------------------------------------------------------------
# Fused path (whole padded batch in one tile): entire forward in one kernel.
# ----------------------------------------------------------------------------
def _fused_kernel(x_ref, w1_ref, b1_ref, w2_ref, b2_ref, w3_ref, b3_ref,
                  o_ref, *, b_real):
    x = x_ref[...].astype(jnp.bfloat16)  # bf16 MXU operands, f32 accumulate
    h1 = _leaky_relu(
        jnp.dot(x, w1_ref[...], preferred_element_type=jnp.float32) + b1_ref[...])
    h2 = jnp.dot(h1.astype(jnp.bfloat16), w2_ref[...],
                 preferred_element_type=jnp.float32) + b2_ref[...]

    tb = h2.shape[0]
    if b_real == tb:
        h2m = h2
    else:  # exclude batch-padding rows from the BatchNorm statistics
        row = lax.broadcasted_iota(jnp.int32, (tb, 1), 0)
        h2m = jnp.where(row < b_real, h2, 0.0)

    inv_n = jnp.float32(1.0 / b_real)
    mean = jnp.sum(h2m, axis=0, keepdims=True) * inv_n
    var = jnp.maximum(jnp.sum(h2m * h2m, axis=0, keepdims=True) * inv_n
                      - mean * mean, 0.0)  # biased variance
    rstd = lax.rsqrt(var + BN_EPS)

    hn = _leaky_relu((h2 - mean) * rstd)
    h3 = jnp.dot(hn.astype(jnp.bfloat16), w3_ref[...],
                 preferred_element_type=jnp.float32) + b3_ref[...]
    o_ref[...] = jax.nn.sigmoid(h3)


# ----------------------------------------------------------------------------
# Pass 1 (two-pass path): x -> Linear1 -> LeakyReLU -> Linear2.
# Writes bf16 h2 tiles and per-tile f32 partial sum / sum-of-squares.
# ----------------------------------------------------------------------------
def _pass1_kernel(x_ref, w1_ref, b1_ref, w2_ref, b2_ref,
                  h2_ref, psum_ref, psumsq_ref, *, tb, b_real):
    i = pl.program_id(0)

    x = x_ref[...].astype(jnp.bfloat16)
    h1 = _leaky_relu(
        jnp.dot(x, w1_ref[...], preferred_element_type=jnp.float32) + b1_ref[...])
    h2 = jnp.dot(h1.astype(jnp.bfloat16), w2_ref[...],
                 preferred_element_type=jnp.float32) + b2_ref[...]
    h2_ref[...] = h2.astype(jnp.bfloat16)  # bf16 intermediate halves HBM traffic

    # Stats accumulated from the in-register f32 h2 (not the bf16 copy).
    def _unmasked():
        psum_ref[...] = jnp.sum(h2, axis=0, keepdims=True)[None]
        psumsq_ref[...] = jnp.sum(h2 * h2, axis=0, keepdims=True)[None]

    def _masked():  # only the last tile can contain batch-padding rows
        row = i * tb + lax.broadcasted_iota(jnp.int32, (tb, 1), 0)
        h2m = jnp.where(row < b_real, h2, 0.0)
        psum_ref[...] = jnp.sum(h2m, axis=0, keepdims=True)[None]
        psumsq_ref[...] = jnp.sum(h2m * h2m, axis=0, keepdims=True)[None]

    if b_real % tb == 0:
        _unmasked()
    else:
        last = pl.num_programs(0) - 1
        pl.when(i != last)(_unmasked)
        pl.when(i == last)(_masked)


# ----------------------------------------------------------------------------
# Pass 2 (two-pass path): BatchNorm (precomputed mean/rstd) -> LeakyReLU
# -> Linear3 -> Sigmoid.
# ----------------------------------------------------------------------------
def _pass2_kernel(h2_ref, mean_ref, rstd_ref, w3_ref, b3_ref, o_ref):
    hn = _leaky_relu((h2_ref[...].astype(jnp.float32) - mean_ref[...])
                     * rstd_ref[...])
    h3 = jnp.dot(hn.astype(jnp.bfloat16), w3_ref[...],
                 preferred_element_type=jnp.float32) + b3_ref[...]
    o_ref[...] = jax.nn.sigmoid(h3)


# ----------------------------------------------------------------------------
# Wrapper
# ----------------------------------------------------------------------------
def encoder_forward(x, prepped, *, tb=None):
    """x: (B, 784) float32 -> (B, 50) float32."""
    w1, b1, w2, b2, w3p, b3p, out_dim = prepped
    B, d_in = x.shape
    h = w1.shape[1]  # 1024

    if tb is None:
        tb = min(512, _round_up(B, 8))  # large tile: fills MXU, amortizes overhead
    tb = _round_up(tb, 8)
    b_pad = _round_up(B, tb)
    if b_pad != B:
        x = jnp.pad(x, ((0, b_pad - B), (0, 0)))
    n_tiles = b_pad // tb
    vmem_limit = _vmem_limit_bytes()

    def const(a):
        return pl.BlockSpec(a.shape, lambda i, _nd=a.ndim: (0,) * _nd)

    # ---- fused single-tile path (B <= tb): no h2 HBM round-trip -------------
    if n_tiles == 1:
        f_bytes = (b_pad * d_in * 4 + w1.size * 2 + w2.size * 2 + w3p.size * 2
                   + (b1.size + b2.size + b3p.size) * 4 + b_pad * PAD_OUT * 4)
        f_flops = 2 * b_pad * (d_in * h + h * h + h * PAD_OUT) + 8 * b_pad * h
        out = pl.pallas_call(
            functools.partial(_fused_kernel, b_real=B),
            grid=(1,),
            in_specs=[pl.BlockSpec((tb, d_in), lambda i: (0, 0)),
                      const(w1), const(b1), const(w2), const(b2),
                      const(w3p), const(b3p)],
            out_specs=pl.BlockSpec((tb, PAD_OUT), lambda i: (0, 0)),
            out_shape=jax.ShapeDtypeStruct((b_pad, PAD_OUT), jnp.float32),
            compiler_params=pltpu.CompilerParams(
                dimension_semantics=("arbitrary",),
                vmem_limit_bytes=vmem_limit),
            cost_estimate=pl.CostEstimate(
                flops=int(f_flops),
                transcendentals=int(b_pad * PAD_OUT + h),
                bytes_accessed=int(f_bytes)),
        )(x, w1, b1, w2, b2, w3p, b3p)
        return out[:B, :out_dim]

    # ---- pass 1: Linear1 + LeakyReLU + Linear2, bf16 h2 + per-tile stats ----
    p1_bytes = (b_pad * d_in * 4 + w1.size * 2 + w2.size * 2
                + (b1.size + b2.size) * 4 + b_pad * h * 2 + 2 * n_tiles * h * 4)
    h2, psum, psumsq = pl.pallas_call(
        functools.partial(_pass1_kernel, tb=tb, b_real=B),
        grid=(n_tiles,),
        in_specs=[pl.BlockSpec((tb, d_in), lambda i: (i, 0)),
                  const(w1), const(b1), const(w2), const(b2)],
        out_specs=[pl.BlockSpec((tb, h), lambda i: (i, 0)),
                   pl.BlockSpec((1, 1, h), lambda i: (i, 0, 0)),
                   pl.BlockSpec((1, 1, h), lambda i: (i, 0, 0))],
        out_shape=[jax.ShapeDtypeStruct((b_pad, h), jnp.bfloat16),
                   jax.ShapeDtypeStruct((n_tiles, 1, h), jnp.float32),
                   jax.ShapeDtypeStruct((n_tiles, 1, h), jnp.float32)],
        compiler_params=pltpu.CompilerParams(
            dimension_semantics=("parallel",),  # no resident accumulator -> megacore
            vmem_limit_bytes=vmem_limit),
        cost_estimate=pl.CostEstimate(
            flops=int(2 * b_pad * (d_in * h + h * h)),
            transcendentals=0,
            bytes_accessed=int(p1_bytes)),
    )(x, w1, b1, w2, b2)

    # Tiny stats reduction + rsqrt, hoisted out of the per-tile loop (plain XLA).
    s = jnp.sum(psum[:, 0, :], axis=0, keepdims=True)
    ss = jnp.sum(psumsq[:, 0, :], axis=0, keepdims=True)
    inv_n = jnp.float32(1.0 / B)
    mean = s * inv_n
    var = jnp.maximum(ss * inv_n - mean * mean, 0.0)  # biased variance
    rstd = lax.rsqrt(var + BN_EPS)

    # ---- pass 2: BatchNorm -> LeakyReLU -> Linear3 -> Sigmoid ---------------
    p2_bytes = (b_pad * h * 2 + 2 * h * 4 + w3p.size * 2 + b3p.size * 4
                + b_pad * PAD_OUT * 4)
    out = pl.pallas_call(
        _pass2_kernel,
        grid=(n_tiles,),
        in_specs=[pl.BlockSpec((tb, h), lambda i: (i, 0)),
                  const(mean), const(rstd), const(w3p), const(b3p)],
        out_specs=pl.BlockSpec((tb, PAD_OUT), lambda i: (i, 0)),
        out_shape=jax.ShapeDtypeStruct((b_pad, PAD_OUT), jnp.float32),
        compiler_params=pltpu.CompilerParams(
            dimension_semantics=("parallel",),
            vmem_limit_bytes=vmem_limit),
        cost_estimate=pl.CostEstimate(
            flops=int(2 * b_pad * h * PAD_OUT + 6 * b_pad * h),
            transcendentals=int(b_pad * PAD_OUT),
            bytes_accessed=int(p2_bytes)),
    )(h2, mean, rstd, w3p, b3p)

    return out[:B, :out_dim]


# ----------------------------------------------------------------------------
# Parameters
# ----------------------------------------------------------------------------
def init_params(key):
    """PyTorch-style uniform init; weights stored as (in_features, out_features)."""
    dims = [(784, 1024), (1024, 1024), (1024, 50)]
    keys = jax.random.split(key, 2 * len(dims))
    params = []
    for i, (fan_in, fan_out) in enumerate(dims):
        bound = 1.0 / jnp.sqrt(fan_in)
        w = jax.random.uniform(keys[2 * i], (fan_in, fan_out),
                               minval=-bound, maxval=bound, dtype=jnp.float32)
        b = jax.random.uniform(keys[2 * i + 1], (1, fan_out),
                               minval=-bound, maxval=bound, dtype=jnp.float32)
        params += [w, b]
    return tuple(params)


def prep_params(params_f32):
    """Cast matmul weights to bf16; pad layer-3 to a lane-dense 128-wide output."""
    w1, b1, w2, b2, w3, b3 = params_f32
    out_dim = w3.shape[1]
    w3p = jnp.zeros((w3.shape[0], PAD_OUT), jnp.float32).at[:, :out_dim].set(w3)
    b3p = jnp.zeros((1, PAD_OUT), jnp.float32).at[:, :out_dim].set(b3)
    return (w1.astype(jnp.bfloat16), b1,
            w2.astype(jnp.bfloat16), b2,
            w3p.astype(jnp.bfloat16), b3p, out_dim)


def _reference_forward(x, params_f32):
    """Pure-JAX f32 reference matching PyTorch training-mode forward."""
    w1, b1, w2, b2, w3, b3 = params_f32
    h1 = _leaky_relu(x @ w1 + b1)
    h2 = h1 @ w2 + b2
    mean = jnp.mean(h2, axis=0, keepdims=True)
    var = jnp.mean((h2 - mean) ** 2, axis=0, keepdims=True)
    h2 = _leaky_relu((h2 - mean) * lax.rsqrt(var + BN_EPS))
    return jax.nn.sigmoid(h2 @ w3 + b3)


if __name__ == "__main__":
    key = jax.random.PRNGKey(0)
    k_x, k_p = jax.random.split(key)
    params = init_params(k_p)
    prepped = prep_params(params)

    # 1) Small batch -> fused single-tile path. (BatchNorm needs B >= 2.)
    B1 = 8
    x1 = jax.random.normal(k_x, (B1, 784), dtype=jnp.float32)
    out1 = jax.block_until_ready(encoder_forward(x1, prepped))
    assert out1.shape == (B1, 50), out1.shape
    assert bool(jnp.all(jnp.isfinite(out1)))
    assert bool(jnp.all((out1 >= 0.0) & (out1 <= 1.0)))  # sigmoid range
    ref1 = _reference_forward(x1, params)
    err1 = float(jnp.max(jnp.abs(out1 - ref1)))
    assert err1 < 2e-2, err1

    # 2) Multi-tile two-pass path (tb override -> 3 tiles, last tile padded).
    B2 = 40
    x2 = jax.random.normal(jax.random.PRNGKey(1), (B2, 784), dtype=jnp.float32)
    out2 = jax.block_until_ready(encoder_forward(x2, prepped, tb=16))
    assert out2.shape == (B2, 50), out2.shape
    assert bool(jnp.all(jnp.isfinite(out2)))
    assert bool(jnp.all((out2 >= 0.0) & (out2 <= 1.0)))
    ref2 = _reference_forward(x2, params)
    err2 = float(jnp.max(jnp.abs(out2 - ref2)))
    assert err2 < 2e-2, err2

    print("KERNEL_OK")
</pallas_src>

<mosaic_0001>
module attributes {stable_mosaic.version = 11 : i64} {
  func.func @_fused_kernel(%arg0: i32, %arg1: memref<8x784xf32, #tpu.memory_space<vmem>>, %arg2: memref<784x1024xbf16, #tpu.memory_space<vmem>>, %arg3: memref<1x1024xf32, #tpu.memory_space<vmem>>, %arg4: memref<1024x1024xbf16, #tpu.memory_space<vmem>>, %arg5: memref<1x1024xf32, #tpu.memory_space<vmem>>, %arg6: memref<1024x128xbf16, #tpu.memory_space<vmem>>, %arg7: memref<1x128xf32, #tpu.memory_space<vmem>>, %arg8: memref<8x128xf32, #tpu.memory_space<vmem>>) attributes {dimension_semantics = [#tpu.dimension_semantics<arbitrary>], iteration_bounds = array<i64: 1>, scalar_prefetch = 0 : i64, scratch_operands = 0 : i64, tpu.core_type = #tpu.core_type<tc>, window_params = [{pipeline_mode = #tpu.pipeline_mode<synchronous>, transform_indices = @transform_0, window_bounds = array<i64: 8, 784>}, {pipeline_mode = #tpu.pipeline_mode<synchronous>, transform_indices = @transform_1, window_bounds = array<i64: 784, 1024>}, {pipeline_mode = #tpu.pipeline_mode<synchronous>, transform_indices = @transform_2, window_bounds = array<i64: 1, 1024>}, {pipeline_mode = #tpu.pipeline_mode<synchronous>, transform_indices = @transform_3, window_bounds = array<i64: 1024, 1024>}, {pipeline_mode = #tpu.pipeline_mode<synchronous>, transform_indices = @transform_4, window_bounds = array<i64: 1, 1024>}, {pipeline_mode = #tpu.pipeline_mode<synchronous>, transform_indices = @transform_5, window_bounds = array<i64: 1024, 128>}, {pipeline_mode = #tpu.pipeline_mode<synchronous>, transform_indices = @transform_6, window_bounds = array<i64: 1, 128>}, {pipeline_mode = #tpu.pipeline_mode<synchronous>, transform_indices = @transform_7, window_bounds = array<i64: 8, 128>}]} {
    %c0 = arith.constant 0 : index
    %c0_0 = arith.constant 0 : index
    %0 = vector.load %arg1[%c0, %c0_0] : memref<8x784xf32, #tpu.memory_space<vmem>>, vector<8x784xf32>
    %1 = arith.truncf %0 : vector<8x784xf32> to vector<8x784xbf16>
    %c0_1 = arith.constant 0 : index
    %c0_2 = arith.constant 0 : index
    %2 = vector.load %arg2[%c0_1, %c0_2] : memref<784x1024xbf16, #tpu.memory_space<vmem>>, vector<784x1024xbf16>
    %cst = arith.constant dense<0.000000e+00> : vector<8x1024xf32>
    %3 = tpu.matmul %1, %2, %cst {dimension_numbers = #tpu.dot_dimension_numbers<[1], [0], [0], [1], [0, 0, 1, 1], [], []>} : vector<8x784xbf16>, vector<784x1024xbf16>, vector<8x1024xf32> -> vector<8x1024xf32>
    %c0_3 = arith.constant 0 : index
    %c0_4 = arith.constant 0 : index
    %4 = vector.load %arg3[%c0_3, %c0_4] : memref<1x1024xf32, #tpu.memory_space<vmem>>, vector<1x1024xf32>
    %5 = vector.broadcast %4 : vector<1x1024xf32> to vector<8x1024xf32>
    %6 = arith.addf %3, %5 : vector<8x1024xf32>
    %cst_5 = arith.constant 0.000000e+00 : f32
    %7 = vector.broadcast %cst_5 : f32 to vector<8x1024xf32>
    %8 = arith.cmpf ogt, %6, %7 : vector<8x1024xf32>
    %cst_6 = arith.constant 2.000000e-01 : f32
    %9 = vector.broadcast %cst_6 : f32 to vector<8x1024xf32>
    %10 = arith.mulf %9, %6 : vector<8x1024xf32>
    %11 = arith.select %8, %6, %10 : vector<8x1024xi1>, vector<8x1024xf32>
    %12 = arith.truncf %11 : vector<8x1024xf32> to vector<8x1024xbf16>
    %c0_7 = arith.constant 0 : index
    %c0_8 = arith.constant 0 : index
    %13 = vector.load %arg4[%c0_7, %c0_8] : memref<1024x1024xbf16, #tpu.memory_space<vmem>>, vector<1024x1024xbf16>
    %cst_9 = arith.constant dense<0.000000e+00> : vector<8x1024xf32>
    %14 = tpu.matmul %12, %13, %cst_9 {dimension_numbers = #tpu.dot_dimension_numbers<[1], [0], [0], [1], [0, 0, 1, 1], [], []>} : vector<8x1024xbf16>, vector<1024x1024xbf16>, vector<8x1024xf32> -> vector<8x1024xf32>
    %c0_10 = arith.constant 0 : index
    %c0_11 = arith.constant 0 : index
    %15 = vector.load %arg5[%c0_10, %c0_11] : memref<1x1024xf32, #tpu.memory_space<vmem>>, vector<1x1024xf32>
    %16 = vector.broadcast %15 : vector<1x1024xf32> to vector<8x1024xf32>
    %17 = arith.addf %14, %16 : vector<8x1024xf32>
    %cst_12 = arith.constant dense<0.000000e+00> : vector<1024xf32>
    %18 = vector.multi_reduction <add>, %17, %cst_12 [0] : vector<8x1024xf32> to vector<1024xf32>
    %19 = vector.shape_cast %18 : vector<1024xf32> to vector<1x1024xf32>
    %cst_13 = arith.constant 1.250000e-01 : f32
    %20 = vector.broadcast %cst_13 : f32 to vector<1x1024xf32>
    %21 = arith.mulf %19, %20 : vector<1x1024xf32>
    %22 = arith.mulf %17, %17 : vector<8x1024xf32>
    %cst_14 = arith.constant dense<0.000000e+00> : vector<1024xf32>
    %23 = vector.multi_reduction <add>, %22, %cst_14 [0] : vector<8x1024xf32> to vector<1024xf32>
    %24 = vector.shape_cast %23 : vector<1024xf32> to vector<1x1024xf32>
    %cst_15 = arith.constant 1.250000e-01 : f32
    %25 = vector.broadcast %cst_15 : f32 to vector<1x1024xf32>
    %26 = arith.mulf %24, %25 : vector<1x1024xf32>
    %27 = arith.mulf %21, %21 : vector<1x1024xf32>
    %28 = arith.subf %26, %27 : vector<1x1024xf32>
    %cst_16 = arith.constant 0.000000e+00 : f32
    %29 = vector.broadcast %cst_16 : f32 to vector<1x1024xf32>
    %30 = arith.maximumf %28, %29 : vector<1x1024xf32>
    %cst_17 = arith.constant 9.99999974E-6 : f32
    %31 = vector.broadcast %cst_17 : f32 to vector<1x1024xf32>
    %32 = arith.addf %30, %31 : vector<1x1024xf32>
    %33 = math.rsqrt %32 : vector<1x1024xf32>
    %34 = vector.broadcast %21 : vector<1x1024xf32> to vector<8x1024xf32>
    %35 = arith.subf %17, %34 : vector<8x1024xf32>
    %36 = vector.broadcast %33 : vector<1x1024xf32> to vector<8x1024xf32>
    %37 = arith.mulf %35, %36 : vector<8x1024xf32>
    %cst_18 = arith.constant 0.000000e+00 : f32
    %38 = vector.broadcast %cst_18 : f32 to vector<8x1024xf32>
    %39 = arith.cmpf ogt, %37, %38 : vector<8x1024xf32>
    %cst_19 = arith.constant 2.000000e-01 : f32
    %40 = vector.broadcast %cst_19 : f32 to vector<8x1024xf32>
    %41 = arith.mulf %40, %37 : vector<8x1024xf32>
    %42 = arith.select %39, %37, %41 : vector<8x1024xi1>, vector<8x1024xf32>
    %43 = arith.truncf %42 : vector<8x1024xf32> to vector<8x1024xbf16>
    %c0_20 = arith.constant 0 : index
    %c0_21 = arith.constant 0 : index
    %44 = vector.load %arg6[%c0_20, %c0_21] : memref<1024x128xbf16, #tpu.memory_space<vmem>>, vector<1024x128xbf16>
    %cst_22 = arith.constant dense<0.000000e+00> : vector<8x128xf32>
    %45 = tpu.matmul %43, %44, %cst_22 {dimension_numbers = #tpu.dot_dimension_numbers<[1], [0], [0], [1], [0, 0, 1, 1], [], []>} : vector<8x1024xbf16>, vector<1024x128xbf16>, vector<8x128xf32> -> vector<8x128xf32>
    %c0_23 = arith.constant 0 : index
    %c0_24 = arith.constant 0 : index
    %46 = vector.load %arg7[%c0_23, %c0_24] : memref<1x128xf32, #tpu.memory_space<vmem>>, vector<1x128xf32>
    %47 = vector.broadcast %46 : vector<1x128xf32> to vector<8x128xf32>
    %48 = arith.addf %45, %47 : vector<8x128xf32>
    %49 = arith.negf %48 : vector<8x128xf32>
    %50 = math.exp %49 : vector<8x128xf32>
    %cst_25 = arith.constant 1.000000e+00 : f32
    %51 = vector.broadcast %cst_25 : f32 to vector<8x128xf32>
    %52 = arith.addf %51, %50 : vector<8x128xf32>
    %53 = arith.divf %51, %52 : vector<8x128xf32>
    %c0_26 = arith.constant 0 : index
    %c0_27 = arith.constant 0 : index
    %54 = vector.load %arg8[%c0_26, %c0_27] : memref<8x128xf32, #tpu.memory_space<vmem>>, vector<8x128xf32>
    tpu.vector_store %arg8[%c0_26, %c0_27], %53 {strides = array<i32>} : memref<8x128xf32, #tpu.memory_space<vmem>>, vector<8x128xf32>,
    return
  }
  func.func @transform_0(%arg0: i32) -> (i32, i32) {
    %c0_i32 = arith.constant 0 : i32
    %c0_i32_0 = arith.constant 0 : i32
    %c0_i32_1 = arith.constant 0 : i32
    return %c0_i32, %c0_i32_0 : i32, i32
  }
  func.func @transform_1(%arg0: i32) -> (i32, i32) {
    %c0_i32 = arith.constant 0 : i32
    %c0_i32_0 = arith.constant 0 : i32
    %c0_i32_1 = arith.constant 0 : i32
    return %c0_i32, %c0_i32_0 : i32, i32
  }
  func.func @transform_2(%arg0: i32) -> (i32, i32) {
    %c0_i32 = arith.constant 0 : i32
    %c0_i32_0 = arith.constant 0 : i32
    %c0_i32_1 = arith.constant 0 : i32
    return %c0_i32, %c0_i32_0 : i32, i32
  }
  func.func @transform_3(%arg0: i32) -> (i32, i32) {
    %c0_i32 = arith.constant 0 : i32
    %c0_i32_0 = arith.constant 0 : i32
    %c0_i32_1 = arith.constant 0 : i32
    return %c0_i32, %c0_i32_0 : i32, i32
  }
  func.func @transform_4(%arg0: i32) -> (i32, i32) {
    %c0_i32 = arith.constant 0 : i32
    %c0_i32_0 = arith.constant 0 : i32
    %c0_i32_1 = arith.constant 0 : i32
    return %c0_i32, %c0_i32_0 : i32, i32
  }
  func.func @transform_5(%arg0: i32) -> (i32, i32) {
    %c0_i32 = arith.constant 0 : i32
    %c0_i32_0 = arith.constant 0 : i32
    %c0_i32_1 = arith.constant 0 : i32
    return %c0_i32, %c0_i32_0 : i32, i32
  }
  func.func @transform_6(%arg0: i32) -> (i32, i32) {
    %c0_i32 = arith.constant 0 : i32
    %c0_i32_0 = arith.constant 0 : i32
    %c0_i32_1 = arith.constant 0 : i32
    return %c0_i32, %c0_i32_0 : i32, i32
  }
  func.func @transform_7(%arg0: i32) -> (i32, i32) {
    %c0_i32 = arith.constant 0 : i32
    %c0_i32_0 = arith.constant 0 : i32
    %c0_i32_1 = arith.constant 0 : i32
    return %c0_i32, %c0_i32_0 : i32, i32
  }
}

</mosaic_0001>

<llo_original>
// kernel: tpu_custom_call.1
$region0: #{tpu_custom_call.1}
  #allocation0 [shape = 'u32[]', space=smem, size = 0x4, offset = 0x4, fixed_abs, tag = 'smem constant byte address 0x4 - core index']
  #allocation1 [shape = 'u32[144,128]{1,0:T(1,128)}', space=vmem, size = 0x12000, scoped, tag = 'internal scratch']
  %s0 = inlined_call_operand.hbm [shape: f32[8,784], index: 0, kind: input, shape index: {}]
  %s1 = inlined_call_operand.hbm [shape: bf16[784,1024], index: 1, kind: input, shape index: {}]
  %s2 = inlined_call_operand.hbm [shape: f32[1,1024], index: 2, kind: input, shape index: {}]
  %s3 = inlined_call_operand.hbm [shape: bf16[1024,1024], index: 3, kind: input, shape index: {}]
  %s4 = inlined_call_operand.hbm [shape: f32[1,1024], index: 4, kind: input, shape index: {}]
  %s5 = inlined_call_operand.hbm [shape: bf16[1024,128], index: 5, kind: input, shape index: {}]
  %s6 = inlined_call_operand.hbm [shape: f32[1,128], index: 6, kind: input, shape index: {}]
  %s7 = inlined_call_operand.hbm [shape: f32[8,128], index: 7, kind: output, shape index: {}]
  %s8 = sld [smem:[#allocation0]]
  $region66: #{tpu_custom_call.1} parent=0
    _
  %s10 = ssub.s32 1, %s8
  %s11 = scalar_select 0, %s10, %s8
  $region1: #{tpu_custom_call.1} parent=0
    #allocation2 [shape = 'u8[28672]{0}', space=vmem, size = 0x7000, scoped, tag = 'input window, operand 0, single buffered']
    #allocation3 [shape = 's32[1]{0}', space=sflag, size = 0x4, scoped, tag = 'scoped memory for tpu_custom_call.1']
    #allocation4 [shape = 's32[1]{0}', space=sflag, size = 0x4, scoped, tag = 'scoped memory for tpu_custom_call.1']
    #allocation5 [shape = 'u8[1605632]{0}', space=vmem, size = 0x188000, scoped, tag = 'input window, operand 1, single buffered']
    #allocation6 [shape = 's32[1]{0}', space=sflag, size = 0x4, scoped, tag = 'scoped memory for tpu_custom_call.1']
    #allocation7 [shape = 'u8[4096]{0}', space=vmem, size = 0x1000, scoped, tag = 'input window, operand 2, single buffered']
    #allocation8 [shape = 'u8[2097152]{0}', space=vmem, size = 0x200000, scoped, tag = 'input window, operand 3, single buffered']
    #allocation9 [shape = 's32[1]{0}', space=sflag, size = 0x4, scoped, tag = 'scoped memory for tpu_custom_call.1']
    #allocation10 [shape = 'u8[4096]{0}', space=vmem, size = 0x1000, scoped, tag = 'input window, operand 4, single buffered']
    #allocation11 [shape = 'u8[262144]{0}', space=vmem, size = 0x40000, scoped, tag = 'input window, operand 5, single buffered']
    #allocation12 [shape = 's32[1]{0}', space=sflag, size = 0x4, scoped, tag = 'scoped memory for tpu_custom_call.1']
    #allocation13 [shape = 'u8[512]{0}', space=vmem, size = 0x400, scoped, tag = 'input window, operand 6, single buffered']
    #allocation14 [shape = 'u8[4096]{0}', space=vmem, size = 0x1000, scoped, tag = 'output window, operand 0, single buffered']
    %12 = vsyncpa [#allocation3], 0
    %13 = vsyncpa [#allocation6], 0
    %14 = vsyncpa [#allocation9], 0
    %15 = vsyncpa [#allocation12], 0
    %16 = vsyncpa [#allocation4], 0
    // Predicated region
    $region2: #{tpu_custom_call.1} parent=1 // pred_check
      _
    $region3: #{tpu_custom_call.1} parent=1 // pred_check_branch
      %18 = sbr.rel (0) target = $region5
    $region4: #{tpu_custom_call.1} parent=1 // pred_region
      %s20 = ssub.s32 896, 896
      %21 = vsyncadd [#allocation3], %s20
      %s23 = sshll.u32 [#allocation2], 4
      %s24 = int_to_ptr.vmem [resolvable:$true] %s23
      %26 = dma.hbm_to_vmem [thread:$0]  %s0, 896, %s24, [#allocation3]
    $region5: #{tpu_custom_call.1} parent=1 // pred_fallthru
      _
    // Predicated region
    $region6: #{tpu_custom_call.1} parent=1 // pred_check
      _
    $region7: #{tpu_custom_call.1} parent=1 // pred_check_branch
      %28 = sbr.rel (0) target = $region9
    $region8: #{tpu_custom_call.1} parent=1 // pred_region
      %s30 = ssub.s32 50176, 50176
      %31 = vsyncadd [#allocation6], %s30
      %s32 = sshll.u32 [#allocation5], 4
      %s33 = int_to_ptr.vmem [resolvable:$true] %s32
      %38 = dma.hbm_to_vmem [thread:$0]  %s1, 50176, %s33, [#allocation6], 512, 512, 32
    $region9: #{tpu_custom_call.1} parent=1 // pred_fallthru
      _
    // Predicated region
    $region10: #{tpu_custom_call.1} parent=1 // pred_check
      _
    $region11: #{tpu_custom_call.1} parent=1 // pred_check_branch
      %40 = sbr.rel (0) target = $region13
    $region12: #{tpu_custom_call.1} parent=1 // pred_region
      %s42 = ssub.s32 128, 128
      %43 = vsyncadd [#allocation6], %s42
      %s45 = sshll.u32 [#allocation7], 4
      %s46 = int_to_ptr.vmem [resolvable:$true] %s45
      %48 = dma.hbm_to_vmem [thread:$0]  %s2, 128, %s46, [#allocation6]
    $region13: #{tpu_custom_call.1} parent=1 // pred_fallthru
      _
    // Predicated region
    $region14: #{tpu_custom_call.1} parent=1 // pred_check
      _
    $region15: #{tpu_custom_call.1} parent=1 // pred_check_branch
      %50 = sbr.rel (0) target = $region17
    $region16: #{tpu_custom_call.1} parent=1 // pred_region
      %s52 = ssub.s32 65536, 65536
      %53 = vsyncadd [#allocation9], %s52
      %s54 = sshll.u32 [#allocation8], 4
      %s55 = int_to_ptr.vmem [resolvable:$true] %s54
      %60 = dma.hbm_to_vmem [thread:$0]  %s3, 65536, %s55, [#allocation9], 512, 512, 32
    $region17: #{tpu_custom_call.1} parent=1 // pred_fallthru
      _
    // Predicated region
    $region18: #{tpu_custom_call.1} parent=1 // pred_check
      _
    $region19: #{tpu_custom_call.1} parent=1 // pred_check_branch
      %62 = sbr.rel (0) target = $region21
    $region20: #{tpu_custom_call.1} parent=1 // pred_region
      %s64 = ssub.s32 128, 128
      %65 = vsyncadd [#allocation9], %s64
      %s67 = sshll.u32 [#allocation10], 4
      %s68 = int_to_ptr.vmem [resolvable:$true] %s67
      %70 = dma.hbm_to_vmem [thread:$0]  %s4, 128, %s68, [#allocation9]
    $region21: #{tpu_custom_call.1} parent=1 // pred_fallthru
      _
    // Predicated region
    $region22: #{tpu_custom_call.1} parent=1 // pred_check
      _
    $region23: #{tpu_custom_call.1} parent=1 // pred_check_branch
      %72 = sbr.rel (0) target = $region25
    $region24: #{tpu_custom_call.1} parent=1 // pred_region
      %s74 = ssub.s32 8192, 8192
      %75 = vsyncadd [#allocation12], %s74
      %s76 = sshll.u32 [#allocation11], 4
      %s77 = int_to_ptr.vmem [resolvable:$true] %s76
      %82 = dma.hbm_to_vmem [thread:$0]  %s5, 8192, %s77, [#allocation12], 64, 64, 4
    $region25: #{tpu_custom_call.1} parent=1 // pred_fallthru
      _
    // Predicated region
    $region26: #{tpu_custom_call.1} parent=1 // pred_check
      _
    $region27: #{tpu_custom_call.1} parent=1 // pred_check_branch
      %84 = sbr.rel (0) target = $region29
    $region28: #{tpu_custom_call.1} parent=1 // pred_region
      %s86 = ssub.s32 16, 16
      %87 = vsyncadd [#allocation12], %s86
      %s89 = sshll.u32 [#allocation13], 4
      %s90 = int_to_ptr.vmem [resolvable:$true] %s89
      %92 = dma.hbm_to_vmem [thread:$0]  %s6, 16, %s90, [#allocation12]
    $region29: #{tpu_custom_call.1} parent=1 // pred_fallthru
      _
    // Predicated region
    $region30: #{tpu_custom_call.1} parent=1 // pred_check
      _
    $region31: #{tpu_custom_call.1} parent=1 // pred_check_branch
      %94 = sbr.rel (0) target = $region33
    $region32: #{tpu_custom_call.1} parent=1 // pred_region
      %95 = dma.done [#allocation3], 896
    $region33: #{tpu_custom_call.1} parent=1 // pred_fallthru
      _
    // Predicated region
    $region34: #{tpu_custom_call.1} parent=1 // pred_check
      _
    $region35: #{tpu_custom_call.1} parent=1 // pred_check_branch
      %97 = sbr.rel (0) target = $region37
    $region36: #{tpu_custom_call.1} parent=1 // pred_region
      %98 = dma.done [#allocation6], 50176
    $region37: #{tpu_custom_call.1} parent=1 // pred_fallthru
      _
    // Predicated region
    $region38: #{tpu_custom_call.1} parent=1 // pred_check
      _
    $region39: #{tpu_custom_call.1} parent=1 // pred_check_branch
      %100 = sbr.rel (0) target = $region41
    $region40: #{tpu_custom_call.1} parent=1 // pred_region
      %101 = dma.done [#allocation6], 128
    $region41: #{tpu_custom_call.1} parent=1 // pred_fallthru
      _
    // Predicated region
    $region42: #{tpu_custom_call.1} parent=1 // pred_check
      _
    $region43: #{tpu_custom_call.1} parent=1 // pred_check_branch
      %103 = sbr.rel (0) target = $region45
    $region44: #{tpu_custom_call.1} parent=1 // pred_region
      %104 = dma.done [#allocation9], 65536
    $region45: #{tpu_custom_call.1} parent=1 // pred_fallthru
      _
    // Predicated region
    $region46: #{tpu_custom_call.1} parent=1 // pred_check
      _
    $region47: #{tpu_custom_call.1} parent=1 // pred_check_branch
      %106 = sbr.rel (0) target = $region49
    $region48: #{tpu_custom_call.1} parent=1 // pred_region
      %107 = dma.done [#allocation9], 128
    $region49: #{tpu_custom_call.1} parent=1 // pred_fallthru
      _
    // Predicated region
    $region50: #{tpu_custom_call.1} parent=1 // pred_check
      _
    $region51: #{tpu_custom_call.1} parent=1 // pred_check_branch
      %109 = sbr.rel (0) target = $region53
    $region52: #{tpu_custom_call.1} parent=1 // pred_region
      %110 = dma.done [#allocation12], 8192
    $region53: #{tpu_custom_call.1} parent=1 // pred_fallthru
      _
    // Predicated region
    $region54: #{tpu_custom_call.1} parent=1 // pred_check
      _
    $region55: #{tpu_custom_call.1} parent=1 // pred_check_branch
      %112 = sbr.rel (0) target = $region57
    $region56: #{tpu_custom_call.1} parent=1 // pred_region
      %113 = dma.done [#allocation12], 16
    $region57: #{tpu_custom_call.1} parent=1 // pred_fallthru
      _
    %v115 = vld [vmem:[#allocation2] sm:$0xff]
    %v116 = vld [vmem:[#allocation2 + $0x8] sm:$0xff]
    %v117 = vld [vmem:[#allocation2 + $0x10] sm:$0xff]
    %v118 = vld [vmem:[#allocation2 + $0x18] sm:$0xff]
    %v119 = vld [vmem:[#allocation2 + $0x20] sm:$0xff]
    %v120 = vld [vmem:[#allocation2 + $0x28] sm:$0xff]
    %v121 = vld [vmem:[#allocation2 + $0x30] sm:$0xff]
    %v122 = vpack.c.bf16 %v115, %v115
    %v123 = vpack.c.bf16 %v116, %v116
    %v124 = vpack.c.bf16 %v117, %v117
    %v125 = vpack.c.bf16 %v118, %v118
    %v126 = vpack.c.bf16 %v119, %v119
    %v127 = vpack.c.bf16 %v120, %v120
    %v128 = vpack.c.bf16 %v121, %v121
    %v129 = vld [vmem:[#allocation5] sm:$0xff]
    %v130 = vld [vmem:[#allocation5 + $0x8] sm:$0xff]
    %v131 = vld [vmem:[#allocation5 + $0x10] sm:$0xff]
    %v132 = vld [vmem:[#allocation5 + $0x18] sm:$0xff]
    %v133 = vld [vmem:[#allocation5 + $0x20] sm:$0xff]
    %v134 = vld [vmem:[#allocation5 + $0x28] sm:$0xff]
    %v135 = vld [vmem:[#allocation5 + $0x30] sm:$0xff]
    %v136 = vld [vmem:[#allocation5 + $0x38] sm:$0xff]
    %v137 = vld [vmem:[#allocation5 + $0x40] sm:$0xff]
    %v138 = vld [vmem:[#allocation5 + $0x48] sm:$0xff]
    %v139 = vld [vmem:[#allocation5 + $0x50] sm:$0xff]
    %v140 = vld [vmem:[#allocation5 + $0x58] sm:$0xff]
    %v141 = vld [vmem:[#allocation5 + $0x60] sm:$0xff]
    %v142 = vld [vmem:[#allocation5 + $0x68] sm:$0xff]
    %v143 = vld [vmem:[#allocation5 + $0x70] sm:$0xff]
    %v144 = vld [vmem:[#allocation5 + $0x78] sm:$0xff]
    %v145 = vld [vmem:[#allocation5 + $0x80] sm:$0xff]
    %v146 = vld [vmem:[#allocation5 + $0x88] sm:$0xff]
    %v147 = vld [vmem:[#allocation5 + $0x90] sm:$0xff]
    %v148 = vld [vmem:[#allocation5 + $0x98] sm:$0xff]
    %v149 = vld [vmem:[#allocation5 + $0xa0] sm:$0xff]
    %v150 = vld [vmem:[#allocation5 + $0xa8] sm:$0xff]
    %v151 = vld [vmem:[#allocation5 + $0xb0] sm:$0xff]
    %v152 = vld [vmem:[#allocation5 + $0xb8] sm:$0xff]
    %v153 = vld [vmem:[#allocation5 + $0xc0] sm:$0xff]
    %v154 = vld [vmem:[#allocation5 + $0xc8] sm:$0xff]
    %v155 = vld [vmem:[#allocation5 + $0xd0] sm:$0xff]
    %v156 = vld [vmem:[#allocation5 + $0xd8] sm:$0xff]
    %v157 = vld [vmem:[#allocation5 + $0xe0] sm:$0xff]
    %v158 = vld [vmem:[#allocation5 + $0xe8] sm:$0xff]
    %v159 = vld [vmem:[#allocation5 + $0xf0] sm:$0xff]
    %v160 = vld [vmem:[#allocation5 + $0xf8] sm:$0xff]
    %v161 = vld [vmem:[#allocation5 + $0x100] sm:$0xff]
    %v162 = vld [vmem:[#allocation5 + $0x108] sm:$0xff]
    %v163 = vld [vmem:[#allocation5 + $0x110] sm:$0xff]
    %v164 = vld [vmem:[#allocation5 + $0x118] sm:$0xff]
    %v165 = vld [vmem:[#allocation5 + $0x120] sm:$0xff]
    %v166 = vld [vmem:[#allocation5 + $0x128] sm:$0xff]
    %v167 = vld [vmem:[#allocation5 + $0x130] sm:$0xff]
    %v168 = vld [vmem:[#allocation5 + $0x138] sm:$0xff]
    %v169 = vld [vmem:[#allocation5 + $0x140] sm:$0xff]
    %v170 = vld [vmem:[#allocation5 + $0x148] sm:$0xff]
    %v171 = vld [vmem:[#allocation5 + $0x150] sm:$0xff]
    %v172 = vld [vmem:[#allocation5 + $0x158] sm:$0xff]
    %v173 = vld [vmem:[#allocation5 + $0x160] sm:$0xff]
    %v174 = vld [vmem:[#allocation5 + $0x168] sm:$0xff]
    %v175 = vld [vmem:[#allocation5 + $0x170] sm:$0xff]
    %v176 = vld [vmem:[#allocation5 + $0x178] sm:$0xff]
    %v177 = vld [vmem:[#allocation5 + $0x180] sm:$0xff]
    %v178 = vld [vmem:[#allocation5 + $0x188] sm:$0xff]
    %v179 = vld [vmem:[#allocation5 + $0x190] sm:$0xff]
    %v180 = vld [vmem:[#allocation5 + $0x198] sm:$0xff]
    %v181 = vld [vmem:[#allocation5 + $0x1a0] sm:$0xff]
    %v182 = vld [vmem:[#allocation5 + $0x1a8] sm:$0xff]
    %v183 = vld [vmem:[#allocation5 + $0x1b0] sm:$0xff]
    %v184 = vld [vmem:[#allocation5 + $0x1b8] sm:$0xff]
    %v185 = vld [vmem:[#allocation5 + $0x1c0] sm:$0xff]
    %v186 = vld [vmem:[#allocation5 + $0x1c8] sm:$0xff]
    %v187 = vld [vmem:[#allocation5 + $0x1d0] sm:$0xff]
    %v188 = vld [vmem:[#allocation5 + $0x1d8] sm:$0xff]
    %v189 = vld [vmem:[#allocation5 + $0x1e0] sm:$0xff]
    %v190 = vld [vmem:[#allocation5 + $0x1e8] sm:$0xff]
    %v191 = vld [vmem:[#allocation5 + $0x1f0] sm:$0xff]
    %v192 = vld [vmem:[#allocation5 + $0x1f8] sm:$0xff]
    %v193 = vld [vmem:[#allocation5 + $0x200] sm:$0xff]
    %v194 = vld [vmem:[#allocation5 + $0x208] sm:$0xff]
    %v195 = vld [vmem:[#allocation5 + $0x210] sm:$0xff]
    %v196 = vld [vmem:[#allocation5 + $0x218] sm:$0xff]
    %v197 = vld [vmem:[#allocation5 + $0x220] sm:$0xff]
    %v198 = vld [vmem:[#allocation5 + $0x228] sm:$0xff]
    %v199 = vld [vmem:[#allocation5 + $0x230] sm:$0xff]
    %v200 = vld [vmem:[#allocation5 + $0x238] sm:$0xff]
    %v201 = vld [vmem:[#allocation5 + $0x240] sm:$0xff]
    %v202 = vld [vmem:[#allocation5 + $0x248] sm:$0xff]
    %v203 = vld [vmem:[#allocation5 + $0x250] sm:$0xff]
    %v204 = vld [vmem:[#allocation5 + $0x258] sm:$0xff]
    %v205 = vld [vmem:[#allocation5 + $0x260] sm:$0xff]
    %v206 = vld [vmem:[#allocation5 + $0x268] sm:$0xff]
    %v207 = vld [vmem:[#allocation5 + $0x270] sm:$0xff]
    %v208 = vld [vmem:[#allocation5 + $0x278] sm:$0xff]
    %v209 = vld [vmem:[#allocation5 + $0x280] sm:$0xff]
    %v210 = vld [vmem:[#allocation5 + $0x288] sm:$0xff]
    %v211 = vld [vmem:[#allocation5 + $0x290] sm:$0xff]
    %v212 = vld [vmem:[#allocation5 + $0x298] sm:$0xff]
    %v213 = vld [vmem:[#allocation5 + $0x2a0] sm:$0xff]
    %v214 = vld [vmem:[#allocation5 + $0x2a8] sm:$0xff]
    %v215 = vld [vmem:[#allocation5 + $0x2b0] sm:$0xff]
    %v216 = vld [vmem:[#allocation5 + $0x2b8] sm:$0xff]
    %v217 = vld [vmem:[#allocation5 + $0x2c0] sm:$0xff]
    %v218 = vld [vmem:[#allocation5 + $0x2c8] sm:$0xff]
    %v219 = vld [vmem:[#allocation5 + $0x2d0] sm:$0xff]
    %v220 = vld [vmem:[#allocation5 + $0x2d8] sm:$0xff]
    %v221 = vld [vmem:[#allocation5 + $0x2e0] sm:$0xff]
    %v222 = vld [vmem:[#allocation5 + $0x2e8] sm:$0xff]
    %v223 = vld [vmem:[#allocation5 + $0x2f0] sm:$0xff]
    %v224 = vld [vmem:[#allocation5 + $0x2f8] sm:$0xff]
    %v225 = vld [vmem:[#allocation5 + $0x300] sm:$0xff]
    %v226 = vld [vmem:[#allocation5 + $0x308] sm:$0xff]
    %v227 = vld [vmem:[#allocation5 + $0x310] sm:$0xff]
    %v228 = vld [vmem:[#allocation5 + $0x318] sm:$0xff]
    %v229 = vld [vmem:[#allocation5 + $0x320] sm:$0xff]
    %v230 = vld [vmem:[#allocation5 + $0x328] sm:$0xff]
    %v231 = vld [vmem:[#allocation5 + $0x330] sm:$0xff]
    %v232 = vld [vmem:[#allocation5 + $0x338] sm:$0xff]
    %v233 = vld [vmem:[#allocation5 + $0x340] sm:$0xff]
    %v234 = vld [vmem:[#allocation5 + $0x348] sm:$0xff]
    %v235 = vld [vmem:[#allocation5 + $0x350] sm:$0xff]
    %v236 = vld [vmem:[#allocation5 + $0x358] sm:$0xff]
    %v237 = vld [vmem:[#allocation5 + $0x360] sm:$0xff]
    %v238 = vld [vmem:[#allocation5 + $0x368] sm:$0xff]
    %v239 = vld [vmem:[#allocation5 + $0x370] sm:$0xff]
    %v240 = vld [vmem:[#allocation5 + $0x378] sm:$0xff]
    %v241 = vld [vmem:[#allocation5 + $0x380] sm:$0xff]
    %v242 = vld [vmem:[#allocation5 + $0x388] sm:$0xff]
    %v243 = vld [vmem:[#allocation5 + $0x390] sm:$0xff]
    %v244 = vld [vmem:[#allocation5 + $0x398] sm:$0xff]
    %v245 = vld [vmem:[#allocation5 + $0x3a0] sm:$0xff]
    %v246 = vld [vmem:[#allocation5 + $0x3a8] sm:$0xff]
    %v247 = vld [vmem:[#allocation5 + $0x3b0] sm:$0xff]
    %v248 = vld [vmem:[#allocation5 + $0x3b8] sm:$0xff]
    %v249 = vld [vmem:[#allocation5 + $0x3c0] sm:$0xff]
    %v250 = vld [vmem:[#allocation5 + $0x3c8] sm:$0xff]
    %v251 = vld [vmem:[#allocation5 + $0x3d0] sm:$0xff]
    %v252 = vld [vmem:[#allocation5 + $0x3d8] sm:$0xff]
    %v253 = vld [vmem:[#allocation5 + $0x3e0] sm:$0xff]
    %v254 = vld [vmem:[#allocation5 + $0x3e8] sm:$0xff]
    %v255 = vld [vmem:[#allocation5 + $0x3f0] sm:$0xff]
    %v256 = vld [vmem:[#allocation5 + $0x3f8] sm:$0xff]
    %v257 = vld [vmem:[#allocation5 + $0x400] sm:$0xff]
    %v258 = vld [vmem:[#allocation5 + $0x408] sm:$0xff]
    %v259 = vld [vmem:[#allocation5 + $0x410] sm:$0xff]
    %v260 = vld [vmem:[#allocation5 + $0x418] sm:$0xff]
    %v261 = vld [vmem:[#allocation5 + $0x420] sm:$0xff]
    %v262 = vld [vmem:[#allocation5 + $0x428] sm:$0xff]
    %v263 = vld [vmem:[#allocation5 + $0x430] sm:$0xff]
    %v264 = vld [vmem:[#allocation5 + $0x438] sm:$0xff]
    %v265 = vld [vmem:[#allocation5 + $0x440] sm:$0xff]
    %v266 = vld [vmem:[#allocation5 + $0x448] sm:$0xff]
    %v267 = vld [vmem:[#allocation5 + $0x450] sm:$0xff]
    %v268 = vld [vmem:[#allocation5 + $0x458] sm:$0xff]
    %v269 = vld [vmem:[#allocation5 + $0x460] sm:$0xff]
    %v270 = vld [vmem:[#allocation5 + $0x468] sm:$0xff]
    %v271 = vld [vmem:[#allocation5 + $0x470] sm:$0xff]
    %v272 = vld [vmem:[#allocation5 + $0x478] sm:$0xff]
    %v273 = vld [vmem:[#allocation5 + $0x480] sm:$0xff]
    %v274 = vld [vmem:[#allocation5 + $0x488] sm:$0xff]
    %v275 = vld [vmem:[#allocation5 + $0x490] sm:$0xff]
    %v276 = vld [vmem:[#allocation5 + $0x498] sm:$0xff]
    %v277 = vld [vmem:[#allocation5 + $0x4a0] sm:$0xff]
    %v278 = vld [vmem:[#allocation5 + $0x4a8] sm:$0xff]
    %v279 = vld [vmem:[#allocation5 + $0x4b0] sm:$0xff]
    %v280 = vld [vmem:[#allocation5 + $0x4b8] sm:$0xff]
    %v281 = vld [vmem:[#allocation5 + $0x4c0] sm:$0xff]
    %v282 = vld [vmem:[#allocation5 + $0x4c8] sm:$0xff]
    %v283 = vld [vmem:[#allocation5 + $0x4d0] sm:$0xff]
    %v284 = vld [vmem:[#allocation5 + $0x4d8] sm:$0xff]
    %v285 = vld [vmem:[#allocation5 + $0x4e0] sm:$0xff]
    %v286 = vld [vmem:[#allocation5 + $0x4e8] sm:$0xff]
    %v287 = vld [vmem:[#allocation5 + $0x4f0] sm:$0xff]
    %v288 = vld [vmem:[#allocation5 + $0x4f8] sm:$0xff]
    %v289 = vld [vmem:[#allocation5 + $0x500] sm:$0xff]
    %v290 = vld [vmem:[#allocation5 + $0x508] sm:$0xff]
    %v291 = vld [vmem:[#allocation5 + $0x510] sm:$0xff]
    %v292 = vld [vmem:[#allocation5 + $0x518] sm:$0xff]
    %v293 = vld [vmem:[#allocation5 + $0x520] sm:$0xff]
    %v294 = vld [vmem:[#allocation5 + $0x528] sm:$0xff]
    %v295 = vld [vmem:[#allocation5 + $0x530] sm:$0xff]
    %v296 = vld [vmem:[#allocation5 + $0x538] sm:$0xff]
    %v297 = vld [vmem:[#allocation5 + $0x540] sm:$0xff]
    %v298 = vld [vmem:[#allocation5 + $0x548] sm:$0xff]
    %v299 = vld [vmem:[#allocation5 + $0x550] sm:$0xff]
    %v300 = vld [vmem:[#allocation5 + $0x558] sm:$0xff]
    %v301 = vld [vmem:[#allocation5 + $0x560] sm:$0xff]
    %v302 = vld [vmem:[#allocation5 + $0x568] sm:$0xff]
    %v303 = vld [vmem:[#allocation5 + $0x570] sm:$0xff]
    %v304 = vld [vmem:[#allocation5 + $0x578] sm:$0xff]
    %v305 = vld [vmem:[#allocation5 + $0x580] sm:$0xff]
    %v306 = vld [vmem:[#allocation5 + $0x588] sm:$0xff]
    %v307 = vld [vmem:[#allocation5 + $0x590] sm:$0xff]
    %v308 = vld [vmem:[#allocation5 + $0x598] sm:$0xff]
    %v309 = vld [vmem:[#allocation5 + $0x5a0] sm:$0xff]
    %v310 = vld [vmem:[#allocation5 + $0x5a8] sm:$0xff]
    %v311 = vld [vmem:[#allocation5 + $0x5b0] sm:$0xff]
    %v312 = vld [vmem:[#allocation5 + $0x5b8] sm:$0xff]
    %v313 = vld [vmem:[#allocation5 + $0x5c0] sm:$0xff]
    %v314 = vld [vmem:[#allocation5 + $0x5c8] sm:$0xff]
    %v315 = vld [vmem:[#allocation5 + $0x5d0] sm:$0xff]
    %v316 = vld [vmem:[#allocation5 + $0x5d8] sm:$0xff]
    %v317 = vld [vmem:[#allocation5 + $0x5e0] sm:$0xff]
    %v318 = vld [vmem:[#allocation5 + $0x5e8] sm:$0xff]
    %v319 = vld [vmem:[#allocation5 + $0x5f0] sm:$0xff]
    %v320 = vld [vmem:[#allocation5 + $0x5f8] sm:$0xff]
    %v321 = vld [vmem:[#allocation5 + $0x600] sm:$0xff]
    %v322 = vld [vmem:[#allocation5 + $0x608] sm:$0xff]
    %v323 = vld [vmem:[#allocation5 + $0x610] sm:$0xff]
    %v324 = vld [vmem:[#allocation5 + $0x618] sm:$0xff]
    %v325 = vld [vmem:[#allocation5 + $0x620] sm:$0xff]
    %v326 = vld [vmem:[#allocation5 + $0x628] sm:$0xff]
    %v327 = vld [vmem:[#allocation5 + $0x630] sm:$0xff]
    %v328 = vld [vmem:[#allocation5 + $0x638] sm:$0xff]
    %v329 = vld [vmem:[#allocation5 + $0x640] sm:$0xff]
    %v330 = vld [vmem:[#allocation5 + $0x648] sm:$0xff]
    %v331 = vld [vmem:[#allocation5 + $0x650] sm:$0xff]
    %v332 = vld [vmem:[#allocation5 + $0x658] sm:$0xff]
    %v333 = vld [vmem:[#allocation5 + $0x660] sm:$0xff]
    %v334 = vld [vmem:[#allocation5 + $0x668] sm:$0xff]
    %v335 = vld [vmem:[#allocation5 + $0x670] sm:$0xff]
    %v336 = vld [vmem:[#allocation5 + $0x678] sm:$0xff]
    %v337 = vld [vmem:[#allocation5 + $0x680] sm:$0xff]
    %v338 = vld [vmem:[#allocation5 + $0x688] sm:$0xff]
    %v339 = vld [vmem:[#allocation5 + $0x690] sm:$0xff]
    %v340 = vld [vmem:[#allocation5 + $0x698] sm:$0xff]
    %v341 = vld [vmem:[#allocation5 + $0x6a0] sm:$0xff]
    %v342 = vld [vmem:[#allocation5 + $0x6a8] sm:$0xff]
    %v343 = vld [vmem:[#allocation5 + $0x6b0] sm:$0xff]
    %v344 = vld [vmem:[#allocation5 + $0x6b8] sm:$0xff]
    %v345 = vld [vmem:[#allocation5 + $0x6c0] sm:$0xff]
    %v346 = vld [vmem:[#allocation5 + $0x6c8] sm:$0xff]
    %v347 = vld [vmem:[#allocation5 + $0x6d0] sm:$0xff]
    %v348 = vld [vmem:[#allocation5 + $0x6d8] sm:$0xff]
    %v349 = vld [vmem:[#allocation5 + $0x6e0] sm:$0xff]
    %v350 = vld [vmem:[#allocation5 + $0x6e8] sm:$0xff]
    %v351 = vld [vmem:[#allocation5 + $0x6f0] sm:$0xff]
    %v352 = vld [vmem:[#allocation5 + $0x6f8] sm:$0xff]
    %v353 = vld [vmem:[#allocation5 + $0x700] sm:$0xff]
    %v354 = vld [vmem:[#allocation5 + $0x708] sm:$0xff]
    %v355 = vld [vmem:[#allocation5 + $0x710] sm:$0xff]
    %v356 = vld [vmem:[#allocation5 + $0x718] sm:$0xff]
    %v357 = vld [vmem:[#allocation5 + $0x720] sm:$0xff]
    %v358 = vld [vmem:[#allocation5 + $0x728] sm:$0xff]
    %v359 = vld [vmem:[#allocation5 + $0x730] sm:$0xff]
    %v360 = vld [vmem:[#allocation5 + $0x738] sm:$0xff]
    %v361 = vld [vmem:[#allocation5 + $0x740] sm:$0xff]
    %v362 = vld [vmem:[#allocation5 + $0x748] sm:$0xff]
    %v363 = vld [vmem:[#allocation5 + $0x750] sm:$0xff]
    %v364 = vld [vmem:[#allocation5 + $0x758] sm:$0xff]
    %v365 = vld [vmem:[#allocation5 + $0x760] sm:$0xff]
    %v366 = vld [vmem:[#allocation5 + $0x768] sm:$0xff]
    %v367 = vld [vmem:[#allocation5 + $0x770] sm:$0xff]
    %v368 = vld [vmem:[#allocation5 + $0x778] sm:$0xff]
    %v369 = vld [vmem:[#allocation5 + $0x780] sm:$0xff]
    %v370 = vld [vmem:[#allocation5 + $0x788] sm:$0xff]
    %v371 = vld [vmem:[#allocation5 + $0x790] sm:$0xff]
    %v372 = vld [vmem:[#allocation5 + $0x798] sm:$0xff]
    %v373 = vld [vmem:[#allocation5 + $0x7a0] sm:$0xff]
    %v374 = vld [vmem:[#allocation5 + $0x7a8] sm:$0xff]
    %v375 = vld [vmem:[#allocation5 + $0x7b0] sm:$0xff]
    %v376 = vld [vmem:[#allocation5 + $0x7b8] sm:$0xff]
    %v377 = vld [vmem:[#allocation5 + $0x7c0] sm:$0xff]
    %v378 = vld [vmem:[#allocation5 + $0x7c8] sm:$0xff]
    %v379 = vld [vmem:[#allocation5 + $0x7d0] sm:$0xff]
    %v380 = vld [vmem:[#allocation5 + $0x7d8] sm:$0xff]
    %v381 = vld [vmem:[#allocation5 + $0x7e0] sm:$0xff]
    %v382 = vld [vmem:[#allocation5 + $0x7e8] sm:$0xff]
    %v383 = vld [vmem:[#allocation5 + $0x7f0] sm:$0xff]
    %v384 = vld [vmem:[#allocation5 + $0x7f8] sm:$0xff]
    %v385 = vld [vmem:[#allocation5 + $0x800] sm:$0xff]
    %v386 = vld [vmem:[#allocation5 + $0x808] sm:$0xff]
    %v387 = vld [vmem:[#allocation5 + $0x810] sm:$0xff]
    %v388 = vld [vmem:[#allocation5 + $0x818] sm:$0xff]
    %v389 = vld [vmem:[#allocation5 + $0x820] sm:$0xff]
    %v390 = vld [vmem:[#allocation5 + $0x828] sm:$0xff]
    %v391 = vld [vmem:[#allocation5 + $0x830] sm:$0xff]
    %v392 = vld [vmem:[#allocation5 + $0x838] sm:$0xff]
    %v393 = vld [vmem:[#allocation5 + $0x840] sm:$0xff]
    %v394 = vld [vmem:[#allocation5 + $0x848] sm:$0xff]
    %v395 = vld [vmem:[#allocation5 + $0x850] sm:$0xff]
    %v396 = vld [vmem:[#allocation5 + $0x858] sm:$0xff]
    %v397 = vld [vmem:[#allocation5 + $0x860] sm:$0xff]
    %v398 = vld [vmem:[#allocation5 + $0x868] sm:$0xff]
    %v399 = vld [vmem:[#allocation5 + $0x870] sm:$0xff]
    %v400 = vld [vmem:[#allocation5 + $0x878] sm:$0xff]
    %v401 = vld [vmem:[#allocation5 + $0x880] sm:$0xff]
    %v402 = vld [vmem:[#allocation5 + $0x888] sm:$0xff]
    %v403 = vld [vmem:[#allocation5 + $0x890] sm:$0xff]
    %v404 = vld [vmem:[#allocation5 + $0x898] sm:$0xff]
    %v405 = vld [vmem:[#allocation5 + $0x8a0] sm:$0xff]
    %v406 = vld [vmem:[#allocation5 + $0x8a8] sm:$0xff]
    %v407 = vld [vmem:[#allocation5 + $0x8b0] sm:$0xff]
    %v408 = vld [vmem:[#allocation5 + $0x8b8] sm:$0xff]
    %v409 = vld [vmem:[#allocation5 + $0x8c0] sm:$0xff]
    %v410 = vld [vmem:[#allocation5 + $0x8c8] sm:$0xff]
    %v411 = vld [vmem:[#allocation5 + $0x8d0] sm:$0xff]
    %v412 = vld [vmem:[#allocation5 + $0x8d8] sm:$0xff]
    %v413 = vld [vmem:[#allocation5 + $0x8e0] sm:$0xff]
    %v414 = vld [vmem:[#allocation5 + $0x8e8] sm:$0xff]
    %v415 = vld [vmem:[#allocation5 + $0x8f0] sm:$0xff]
    %v416 = vld [vmem:[#allocation5 + $0x8f8] sm:$0xff]
    %v417 = vld [vmem:[#allocation5 + $0x900] sm:$0xff]
    %v418 = vld [vmem:[#allocation5 + $0x908] sm:$0xff]
    %v419 = vld [vmem:[#allocation5 + $0x910] sm:$0xff]
    %v420 = vld [vmem:[#allocation5 + $0x918] sm:$0xff]
    %v421 = vld [vmem:[#allocation5 + $0x920] sm:$0xff]
    %v422 = vld [vmem:[#allocation5 + $0x928] sm:$0xff]
    %v423 = vld [vmem:[#allocation5 + $0x930] sm:$0xff]
    %v424 = vld [vmem:[#allocation5 + $0x938] sm:$0xff]
    %v425 = vld [vmem:[#allocation5 + $0x940] sm:$0xff]
    %v426 = vld [vmem:[#allocation5 + $0x948] sm:$0xff]
    %v427 = vld [vmem:[#allocation5 + $0x950] sm:$0xff]
    %v428 = vld [vmem:[#allocation5 + $0x958] sm:$0xff]
    %v429 = vld [vmem:[#allocation5 + $0x960] sm:$0xff]
    %v430 = vld [vmem:[#allocation5 + $0x968] sm:$0xff]
    %v431 = vld [vmem:[#allocation5 + $0x970] sm:$0xff]
    %v432 = vld [vmem:[#allocation5 + $0x978] sm:$0xff]
    %v433 = vld [vmem:[#allocation5 + $0x980] sm:$0xff]
    %v434 = vld [vmem:[#allocation5 + $0x988] sm:$0xff]
    %v435 = vld [vmem:[#allocation5 + $0x990] sm:$0xff]
    %v436 = vld [vmem:[#allocation5 + $0x998] sm:$0xff]
    %v437 = vld [vmem:[#allocation5 + $0x9a0] sm:$0xff]
    %v438 = vld [vmem:[#allocation5 + $0x9a8] sm:$0xff]
    %v439 = vld [vmem:[#allocation5 + $0x9b0] sm:$0xff]
    %v440 = vld [vmem:[#allocation5 + $0x9b8] sm:$0xff]
    %v441 = vld [vmem:[#allocation5 + $0x9c0] sm:$0xff]
    %v442 = vld [vmem:[#allocation5 + $0x9c8] sm:$0xff]
    %v443 = vld [vmem:[#allocation5 + $0x9d0] sm:$0xff]
    %v444 = vld [vmem:[#allocation5 + $0x9d8] sm:$0xff]
    %v445 = vld [vmem:[#allocation5 + $0x9e0] sm:$0xff]
    %v446 = vld [vmem:[#allocation5 + $0x9e8] sm:$0xff]
    %v447 = vld [vmem:[#allocation5 + $0x9f0] sm:$0xff]
    %v448 = vld [vmem:[#allocation5 + $0x9f8] sm:$0xff]
    %v449 = vld [vmem:[#allocation5 + $0xa00] sm:$0xff]
    %v450 = vld [vmem:[#allocation5 + $0xa08] sm:$0xff]
    %v451 = vld [vmem:[#allocation5 + $0xa10] sm:$0xff]
    %v452 = vld [vmem:[#allocation5 + $0xa18] sm:$0xff]
    %v453 = vld [vmem:[#allocation5 + $0xa20] sm:$0xff]
    %v454 = vld [vmem:[#allocation5 + $0xa28] sm:$0xff]
    %v455 = vld [vmem:[#allocation5 + $0xa30] sm:$0xff]
    %v456 = vld [vmem:[#allocation5 + $0xa38] sm:$0xff]
    %v457 = vld [vmem:[#allocation5 + $0xa40] sm:$0xff]
    %v458 = vld [vmem:[#allocation5 + $0xa48] sm:$0xff]
    %v459 = vld [vmem:[#allocation5 + $0xa50] sm:$0xff]
    %v460 = vld [vmem:[#allocation5 + $0xa58] sm:$0xff]
    %v461 = vld [vmem:[#allocation5 + $0xa60] sm:$0xff]
    %v462 = vld [vmem:[#allocation5 + $0xa68] sm:$0xff]
    %v463 = vld [vmem:[#allocation5 + $0xa70] sm:$0xff]
    %v464 = vld [vmem:[#allocation5 + $0xa78] sm:$0xff]
    %v465 = vld [vmem:[#allocation5 + $0xa80] sm:$0xff]
    %v466 = vld [vmem:[#allocation5 + $0xa88] sm:$0xff]
    %v467 = vld [vmem:[#allocation5 + $0xa90] sm:$0xff]
    %v468 = vld [vmem:[#allocation5 + $0xa98] sm:$0xff]
    %v469 = vld [vmem:[#allocation5 + $0xaa0] sm:$0xff]
    %v470 = vld [vmem:[#allocation5 + $0xaa8] sm:$0xff]
    %v471 = vld [vmem:[#allocation5 + $0xab0] sm:$0xff]
    %v472 = vld [vmem:[#allocation5 + $0xab8] sm:$0xff]
    %v473 = vld [vmem:[#allocation5 + $0xac0] sm:$0xff]
    %v474 = vld [vmem:[#allocation5 + $0xac8] sm:$0xff]
    %v475 = vld [vmem:[#allocation5 + $0xad0] sm:$0xff]
    %v476 = vld [vmem:[#allocation5 + $0xad8] sm:$0xff]
    %v477 = vld [vmem:[#allocation5 + $0xae0] sm:$0xff]
    %v478 = vld [vmem:[#allocation5 + $0xae8] sm:$0xff]
    %v479 = vld [vmem:[#allocation5 + $0xaf0] sm:$0xff]
    %v480 = vld [vmem:[#allocation5 + $0xaf8] sm:$0xff]
    %v481 = vld [vmem:[#allocation5 + $0xb00] sm:$0xff]
    %v482 = vld [vmem:[#allocation5 + $0xb08] sm:$0xff]
    %v483 = vld [vmem:[#allocation5 + $0xb10] sm:$0xff]
    %v484 = vld [vmem:[#allocation5 + $0xb18] sm:$0xff]
    %v485 = vld [vmem:[#allocation5 + $0xb20] sm:$0xff]
    %v486 = vld [vmem:[#allocation5 + $0xb28] sm:$0xff]
    %v487 = vld [vmem:[#allocation5 + $0xb30] sm:$0xff]
    %v488 = vld [vmem:[#allocation5 + $0xb38] sm:$0xff]
    %v489 = vld [vmem:[#allocation5 + $0xb40] sm:$0xff]
    %v490 = vld [vmem:[#allocation5 + $0xb48] sm:$0xff]
    %v491 = vld [vmem:[#allocation5 + $0xb50] sm:$0xff]
    %v492 = vld [vmem:[#allocation5 + $0xb58] sm:$0xff]
    %v493 = vld [vmem:[#allocation5 + $0xb60] sm:$0xff]
    %v494 = vld [vmem:[#allocation5 + $0xb68] sm:$0xff]
    %v495 = vld [vmem:[#allocation5 + $0xb70] sm:$0xff]
    %v496 = vld [vmem:[#allocation5 + $0xb78] sm:$0xff]
    %v497 = vld [vmem:[#allocation5 + $0xb80] sm:$0xff]
    %v498 = vld [vmem:[#allocation5 + $0xb88] sm:$0xff]
    %v499 = vld [vmem:[#allocation5 + $0xb90] sm:$0xff]
    %v500 = vld [vmem:[#allocation5 + $0xb98] sm:$0xff]
    %v501 = vld [vmem:[#allocation5 + $0xba0] sm:$0xff]
    %v502 = vld [vmem:[#allocation5 + $0xba8] sm:$0xff]
    %v503 = vld [vmem:[#allocation5 + $0xbb0] sm:$0xff]
    %v504 = vld [vmem:[#allocation5 + $0xbb8] sm:$0xff]
    %v505 = vld [vmem:[#allocation5 + $0xbc0] sm:$0xff]
    %v506 = vld [vmem:[#allocation5 + $0xbc8] sm:$0xff]
    %v507 = vld [vmem:[#allocation5 + $0xbd0] sm:$0xff]
    %v508 = vld [vmem:[#allocation5 + $0xbd8] sm:$0xff]
    %v509 = vld [vmem:[#allocation5 + $0xbe0] sm:$0xff]
    %v510 = vld [vmem:[#allocation5 + $0xbe8] sm:$0xff]
    %v511 = vld [vmem:[#allocation5 + $0xbf0] sm:$0xff]
    %v512 = vld [vmem:[#allocation5 + $0xbf8] sm:$0xff]
    %v513 = vld [vmem:[#allocation5 + $0xc00] sm:$0xff]
    %v514 = vld [vmem:[#allocation5 + $0xc08] sm:$0xff]
    %v515 = vld [vmem:[#allocation5 + $0xc10] sm:$0xff]
    %v516 = vld [vmem:[#allocation5 + $0xc18] sm:$0xff]
    %v517 = vld [vmem:[#allocation5 + $0xc20] sm:$0xff]
    %v518 = vld [vmem:[#allocation5 + $0xc28] sm:$0xff]
    %v519 = vld [vmem:[#allocation5 + $0xc30] sm:$0xff]
    %v520 = vld [vmem:[#allocation5 + $0xc38] sm:$0xff]
    %v521 = vld [vmem:[#allocation7] sm:$0xff]
    %v523 = vlaneseq
    %v524 = vshrl.u32 %v523, 7
    %v525 = vsub.s32 0, %v524
    %v526 = vrot.slane %v521, %v525
    %v527 = vlaneseq
    %v528 = vshrl.u32 %v527, 7
    %v529 = vsub.s32 1, %v528
    %v530 = vrot.slane %v521, %v529
    %v531 = vlaneseq
    %v532 = vshrl.u32 %v531, 7
    %v533 = vsub.s32 2, %v532
    %v534 = vrot.slane %v521, %v533
    %v535 = vlaneseq
    %v536 = vshrl.u32 %v535, 7
    %v537 = vsub.s32 3, %v536
    %v538 = vrot.slane %v521, %v537
    %v539 = vlaneseq
    %v540 = vshrl.u32 %v539, 7
    %v541 = vsub.s32 4, %v540
    %v542 = vrot.slane %v521, %v541
    %v543 = vlaneseq
    %v544 = vshrl.u32 %v543, 7
    %v545 = vsub.s32 5, %v544
    %v546 = vrot.slane %v521, %v545
    %v547 = vlaneseq
    %v548 = vshrl.u32 %v547, 7
    %v549 = vsub.s32 6, %v548
    %v550 = vrot.slane %v521, %v549
    %v551 = vlaneseq
    %v552 = vshrl.u32 %v551, 7
    %v553 = vsub.s32 7, %v552
    %v554 = vrot.slane %v521, %v553
    %v955 = vunpack.c.l.b16 %v129
    %v956 = vunpack.c.h.b16 %v129
    %v957 = vunpack.c.l.b16 %v130
    %v958 = vunpack.c.h.b16 %v130
    %v959 = vunpack.c.l.b16 %v131
    %v960 = vunpack.c.h.b16 %v131
    %v961 = vunpack.c.l.b16 %v132
    %v962 = vunpack.c.h.b16 %v132
    %v963 = vunpack.c.l.b16 %v133
    %v964 = vunpack.c.h.b16 %v133
    %v965 = vunpack.c.l.b16 %v134
    %v966 = vunpack.c.h.b16 %v134
    %v967 = vunpack.c.l.b16 %v135
    %v968 = vunpack.c.h.b16 %v135
    %v969 = vunpack.c.l.b16 %v136
    %v970 = vunpack.c.h.b16 %v136
    %v971 = vunpack.c.l.b16 %v137
    %v972 = vunpack.c.h.b16 %v137
    %v973 = vunpack.c.l.b16 %v138
    %v974 = vunpack.c.h.b16 %v138
    %v975 = vunpack.c.l.b16 %v139
    %v976 = vunpack.c.h.b16 %v139
    %v977 = vunpack.c.l.b16 %v140
    %v978 = vunpack.c.h.b16 %v140
    %v979 = vunpack.c.l.b16 %v141
    %v980 = vunpack.c.h.b16 %v141
    %v981 = vunpack.c.l.b16 %v142
    %v982 = vunpack.c.h.b16 %v142
    %v983 = vunpack.c.l.b16 %v143
    %v984 = vunpack.c.h.b16 %v143
    %v985 = vunpack.c.l.b16 %v144
    %v986 = vunpack.c.h.b16 %v144
    %v987 = vunpack.c.l.b16 %v145
    %v988 = vunpack.c.h.b16 %v145
    %v989 = vunpack.c.l.b16 %v146
    %v990 = vunpack.c.h.b16 %v146
    %v991 = vunpack.c.l.b16 %v147
    %v992 = vunpack.c.h.b16 %v147
    %v993 = vunpack.c.l.b16 %v148
    %v994 = vunpack.c.h.b16 %v148
    %v995 = vunpack.c.l.b16 %v149
    %v996 = vunpack.c.h.b16 %v149
    %v997 = vunpack.c.l.b16 %v150
    %v998 = vunpack.c.h.b16 %v150
    %v999 = vunpack.c.l.b16 %v151
    %v1000 = vunpack.c.h.b16 %v151
    %v1001 = vunpack.c.l.b16 %v152
    %v1002 = vunpack.c.h.b16 %v152
    %v1003 = vunpack.c.l.b16 %v153
    %v1004 = vunpack.c.h.b16 %v153
    %v1005 = vunpack.c.l.b16 %v154
    %v1006 = vunpack.c.h.b16 %v154
    %v1007 = vunpack.c.l.b16 %v155
    %v1008 = vunpack.c.h.b16 %v155
    %v1009 = vunpack.c.l.b16 %v156
    %v1010 = vunpack.c.h.b16 %v156
    %v1011 = vunpack.c.l.b16 %v157
    %v1012 = vunpack.c.h.b16 %v157
    %v1013 = vunpack.c.l.b16 %v158
    %v1014 = vunpack.c.h.b16 %v158
    %v1015 = vunpack.c.l.b16 %v159
    %v1016 = vunpack.c.h.b16 %v159
    %v1017 = vunpack.c.l.b16 %v160
    %v1018 = vunpack.c.h.b16 %v160
    %v1019 = vunpack.c.l.b16 %v161
    %v1020 = vunpack.c.h.b16 %v161
    %v1021 = vunpack.c.l.b16 %v162
    %v1022 = vunpack.c.h.b16 %v162
    %v1023 = vunpack.c.l.b16 %v163
    %v1024 = vunpack.c.h.b16 %v163
    %v1025 = vunpack.c.l.b16 %v164
    %v1026 = vunpack.c.h.b16 %v164
    %v1027 = vunpack.c.l.b16 %v165
    %v1028 = vunpack.c.h.b16 %v165
    %v1029 = vunpack.c.l.b16 %v166
    %v1030 = vunpack.c.h.b16 %v166
    %v1031 = vunpack.c.l.b16 %v167
    %v1032 = vunpack.c.h.b16 %v167
    %v1033 = vunpack.c.l.b16 %v168
    %v1034 = vunpack.c.h.b16 %v168
    %v1035 = vunpack.c.l.b16 %v169
    %v1036 = vunpack.c.h.b16 %v169
    %v1037 = vunpack.c.l.b16 %v170
    %v1038 = vunpack.c.h.b16 %v170
    %v1039 = vunpack.c.l.b16 %v171
    %v1040 = vunpack.c.h.b16 %v171
    %v1041 = vunpack.c.l.b16 %v172
    %v1042 = vunpack.c.h.b16 %v172
    %v1043 = vunpack.c.l.b16 %v173
    %v1044 = vunpack.c.h.b16 %v173
    %v1045 = vunpack.c.l.b16 %v174
    %v1046 = vunpack.c.h.b16 %v174
    %v1047 = vunpack.c.l.b16 %v175
    %v1048 = vunpack.c.h.b16 %v175
    %v1049 = vunpack.c.l.b16 %v176
    %v1050 = vunpack.c.h.b16 %v176
    %v1051 = vunpack.c.l.b16 %v177
    %v1052 = vunpack.c.h.b16 %v177
    %v1053 = vunpack.c.l.b16 %v178
    %v1054 = vunpack.c.h.b16 %v178
    %v1055 = vunpack.c.l.b16 %v179
    %v1056 = vunpack.c.h.b16 %v179
    %v1057 = vunpack.c.l.b16 %v180
    %v1058 = vunpack.c.h.b16 %v180
    %v1059 = vunpack.c.l.b16 %v181
    %v1060 = vunpack.c.h.b16 %v181
    %v1061 = vunpack.c.l.b16 %v182
    %v1062 = vunpack.c.h.b16 %v182
    %v1063 = vunpack.c.l.b16 %v183
    %v1064 = vunpack.c.h.b16 %v183
    %v1065 = vunpack.c.l.b16 %v184
    %v1066 = vunpack.c.h.b16 %v184
    %v1067 = vunpack.c.l.b16 %v185
    %v1068 = vunpack.c.h.b16 %v185
    %v1069 = vunpack.c.l.b16 %v186
    %v1070 = vunpack.c.h.b16 %v186
    %v1071 = vunpack.c.l.b16 %v187
    %v1072 = vunpack.c.h.b16 %v187
    %v1073 = vunpack.c.l.b16 %v188
    %v1074 = vunpack.c.h.b16 %v188
    %v1075 = vunpack.c.l.b16 %v189
    %v1076 = vunpack.c.h.b16 %v189
    %v1077 = vunpack.c.l.b16 %v190
    %v1078 = vunpack.c.h.b16 %v190
    %v1079 = vunpack.c.l.b16 %v191
    %v1080 = vunpack.c.h.b16 %v191
    %v1081 = vunpack.c.l.b16 %v192
    %v1082 = vunpack.c.h.b16 %v192
    %v1083 = vunpack.c.l.b16 %v193
    %v1084 = vunpack.c.h.b16 %v193
    %v1085 = vunpack.c.l.b16 %v194
    %v1086 = vunpack.c.h.b16 %v194
    %v1087 = vunpack.c.l.b16 %v195
    %v1088 = vunpack.c.h.b16 %v195
    %v1089 = vunpack.c.l.b16 %v196
    %v1090 = vunpack.c.h.b16 %v196
    %v1091 = vunpack.c.l.b16 %v197
    %v1092 = vunpack.c.h.b16 %v197
    %v1093 = vunpack.c.l.b16 %v198
    %v1094 = vunpack.c.h.b16 %v198
    %v1095 = vunpack.c.l.b16 %v199
    %v1096 = vunpack.c.h.b16 %v199
    %v1097 = vunpack.c.l.b16 %v200
    %v1098 = vunpack.c.h.b16 %v200
    %v1099 = vunpack.c.l.b16 %v201
    %v1100 = vunpack.c.h.b16 %v201
    %v1101 = vunpack.c.l.b16 %v202
    %v1102 = vunpack.c.h.b16 %v202
    %v1103 = vunpack.c.l.b16 %v203
    %v1104 = vunpack.c.h.b16 %v203
    %v1105 = vunpack.c.l.b16 %v204
    %v1106 = vunpack.c.h.b16 %v204
    %v1107 = vunpack.c.l.b16 %v205
    %v1108 = vunpack.c.h.b16 %v205
    %v1109 = vunpack.c.l.b16 %v206
    %v1110 = vunpack.c.h.b16 %v206
    %v1111 = vunpack.c.l.b16 %v207
    %v1112 = vunpack.c.h.b16 %v207
    %v1113 = vunpack.c.l.b16 %v208
    %v1114 = vunpack.c.h.b16 %v208
    %v1115 = vunpack.c.l.b16 %v209
    %v1116 = vunpack.c.h.b16 %v209
    %v1117 = vunpack.c.l.b16 %v210
    %v1118 = vunpack.c.h.b16 %v210
    %v1119 = vunpack.c.l.b16 %v211
    %v1120 = vunpack.c.h.b16 %v211
    %v1121 = vunpack.c.l.b16 %v212
    %v1122 = vunpack.c.h.b16 %v212
    %v1123 = vunpack.c.l.b16 %v213
    %v1124 = vunpack.c.h.b16 %v213
    %v1125 = vunpack.c.l.b16 %v214
    %v1126 = vunpack.c.h.b16 %v214
    %v1127 = vunpack.c.l.b16 %v215
    %v1128 = vunpack.c.h.b16 %v215
    %v1129 = vunpack.c.l.b16 %v216
    %v1130 = vunpack.c.h.b16 %v216
    %v1131 = vunpack.c.l.b16 %v217
    %v1132 = vunpack.c.h.b16 %v217
    %v1133 = vunpack.c.l.b16 %v218
    %v1134 = vunpack.c.h.b16 %v218
    %v1135 = vunpack.c.l.b16 %v219
    %v1136 = vunpack.c.h.b16 %v219
    %v1137 = vunpack.c.l.b16 %v220
    %v1138 = vunpack.c.h.b16 %v220
    %v1139 = vunpack.c.l.b16 %v221
    %v1140 = vunpack.c.h.b16 %v221
    %v1141 = vunpack.c.l.b16 %v222
    %v1142 = vunpack.c.h.b16 %v222
    %v1143 = vunpack.c.l.b16 %v223
    %v1144 = vunpack.c.h.b16 %v223
    %v1145 = vunpack.c.l.b16 %v224
    %v1146 = vunpack.c.h.b16 %v224
    %v1147 = vunpack.c.l.b16 %v225
    %v1148 = vunpack.c.h.b16 %v225
    %v1149 = vunpack.c.l.b16 %v226
    %v1150 = vunpack.c.h.b16 %v226
    %v1151 = vunpack.c.l.b16 %v227
    %v1152 = vunpack.c.h.b16 %v227
    %v1153 = vunpack.c.l.b16 %v228
    %v1154 = vunpack.c.h.b16 %v228
    %v1155 = vunpack.c.l.b16 %v229
    %v1156 = vunpack.c.h.b16 %v229
    %v1157 = vunpack.c.l.b16 %v230
    %v1158 = vunpack.c.h.b16 %v230
    %v1159 = vunpack.c.l.b16 %v231
    %v1160 = vunpack.c.h.b16 %v231
    %v1161 = vunpack.c.l.b16 %v232
    %v1162 = vunpack.c.h.b16 %v232
    %v1163 = vunpack.c.l.b16 %v233
    %v1164 = vunpack.c.h.b16 %v233
    %v1165 = vunpack.c.l.b16 %v234
    %v1166 = vunpack.c.h.b16 %v234
    %v1167 = vunpack.c.l.b16 %v235
    %v1168 = vunpack.c.h.b16 %v235
    %v1169 = vunpack.c.l.b16 %v236
    %v1170 = vunpack.c.h.b16 %v236
    %v1171 = vunpack.c.l.b16 %v237
    %v1172 = vunpack.c.h.b16 %v237
    %v1173 = vunpack.c.l.b16 %v238
    %v1174 = vunpack.c.h.b16 %v238
    %v1175 = vunpack.c.l.b16 %v239
    %v1176 = vunpack.c.h.b16 %v239
    %v1177 = vunpack.c.l.b16 %v240
    %v1178 = vunpack.c.h.b16 %v240
    %v1179 = vunpack.c.l.b16 %v241
    %v1180 = vunpack.c.h.b16 %v241
    %v1181 = vunpack.c.l.b16 %v242
    %v1182 = vunpack.c.h.b16 %v242
    %v1183 = vunpack.c.l.b16 %v243
    %v1184 = vunpack.c.h.b16 %v243
    %v1185 = vunpack.c.l.b16 %v244
    %v1186 = vunpack.c.h.b16 %v244
    %v1187 = vunpack.c.l.b16 %v245
    %v1188 = vunpack.c.h.b16 %v245
    %v1189 = vunpack.c.l.b16 %v246
    %v1190 = vunpack.c.h.b16 %v246
    %v1191 = vunpack.c.l.b16 %v247
    %v1192 = vunpack.c.h.b16 %v247
    %v1193 = vunpack.c.l.b16 %v248
    %v1194 = vunpack.c.h.b16 %v248
    %v1195 = vunpack.c.l.b16 %v249
    %v1196 = vunpack.c.h.b16 %v249
    %v1197 = vunpack.c.l.b16 %v250
    %v1198 = vunpack.c.h.b16 %v250
    %v1199 = vunpack.c.l.b16 %v251
    %v1200 = vunpack.c.h.b16 %v251
    %v1201 = vunpack.c.l.b16 %v252
    %v1202 = vunpack.c.h.b16 %v252
    %v1203 = vunpack.c.l.b16 %v253
    %v1204 = vunpack.c.h.b16 %v253
    %v1205 = vunpack.c.l.b16 %v254
    %v1206 = vunpack.c.h.b16 %v254
    %v1207 = vunpack.c.l.b16 %v255
    %v1208 = vunpack.c.h.b16 %v255
    %v1209 = vunpack.c.l.b16 %v256
    %v1210 = vunpack.c.h.b16 %v256
    %v1211 = vunpack.c.l.b16 %v257
    %v1212 = vunpack.c.h.b16 %v257
    %v1213 = vunpack.c.l.b16 %v258
    %v1214 = vunpack.c.h.b16 %v258
    %v1215 = vunpack.c.l.b16 %v259
    %v1216 = vunpack.c.h.b16 %v259
    %v1217 = vunpack.c.l.b16 %v260
    %v1218 = vunpack.c.h.b16 %v260
    %v1219 = vunpack.c.l.b16 %v261
    %v1220 = vunpack.c.h.b16 %v261
    %v1221 = vunpack.c.l.b16 %v262
    %v1222 = vunpack.c.h.b16 %v262
    %v1223 = vunpack.c.l.b16 %v263
    %v1224 = vunpack.c.h.b16 %v263
    %v1225 = vunpack.c.l.b16 %v264
    %v1226 = vunpack.c.h.b16 %v264
    %v1227 = vunpack.c.l.b16 %v265
    %v1228 = vunpack.c.h.b16 %v265
    %v1229 = vunpack.c.l.b16 %v266
    %v1230 = vunpack.c.h.b16 %v266
    %v1231 = vunpack.c.l.b16 %v267
    %v1232 = vunpack.c.h.b16 %v267
    %v1233 = vunpack.c.l.b16 %v268
    %v1234 = vunpack.c.h.b16 %v268
    %v1235 = vunpack.c.l.b16 %v269
    %v1236 = vunpack.c.h.b16 %v269
    %v1237 = vunpack.c.l.b16 %v270
    %v1238 = vunpack.c.h.b16 %v270
    %v1239 = vunpack.c.l.b16 %v271
    %v1240 = vunpack.c.h.b16 %v271
    %v1241 = vunpack.c.l.b16 %v272
    %v1242 = vunpack.c.h.b16 %v272
    %v1243 = vunpack.c.l.b16 %v273
    %v1244 = vunpack.c.h.b16 %v273
    %v1245 = vunpack.c.l.b16 %v274
    %v1246 = vunpack.c.h.b16 %v274
    %v1247 = vunpack.c.l.b16 %v275
    %v1248 = vunpack.c.h.b16 %v275
    %v1249 = vunpack.c.l.b16 %v276
    %v1250 = vunpack.c.h.b16 %v276
    %v1251 = vunpack.c.l.b16 %v277
    %v1252 = vunpack.c.h.b16 %v277
    %v1253 = vunpack.c.l.b16 %v278
    %v1254 = vunpack.c.h.b16 %v278
    %v1255 = vunpack.c.l.b16 %v279
    %v1256 = vunpack.c.h.b16 %v279
    %v1257 = vunpack.c.l.b16 %v280
    %v1258 = vunpack.c.h.b16 %v280
    %v1259 = vunpack.c.l.b16 %v281
    %v1260 = vunpack.c.h.b16 %v281
    %v1261 = vunpack.c.l.b16 %v282
    %v1262 = vunpack.c.h.b16 %v282
    %v1263 = vunpack.c.l.b16 %v283
    %v1264 = vunpack.c.h.b16 %v283
    %v1265 = vunpack.c.l.b16 %v284
    %v1266 = vunpack.c.h.b16 %v284
    %v1267 = vunpack.c.l.b16 %v285
    %v1268 = vunpack.c.h.b16 %v285
    %v1269 = vunpack.c.l.b16 %v286
    %v1270 = vunpack.c.h.b16 %v286
    %v1271 = vunpack.c.l.b16 %v287
    %v1272 = vunpack.c.h.b16 %v287
    %v1273 = vunpack.c.l.b16 %v288
    %v1274 = vunpack.c.h.b16 %v288
    %v1275 = vunpack.c.l.b16 %v289
    %v1276 = vunpack.c.h.b16 %v289
    %v1277 = vunpack.c.l.b16 %v290
    %v1278 = vunpack.c.h.b16 %v290
    %v1279 = vunpack.c.l.b16 %v291
    %v1280 = vunpack.c.h.b16 %v291
    %v1281 = vunpack.c.l.b16 %v292
    %v1282 = vunpack.c.h.b16 %v292
    %v1283 = vunpack.c.l.b16 %v293
    %v1284 = vunpack.c.h.b16 %v293
    %v1285 = vunpack.c.l.b16 %v294
    %v1286 = vunpack.c.h.b16 %v294
    %v1287 = vunpack.c.l.b16 %v295
    %v1288 = vunpack.c.h.b16 %v295
    %v1289 = vunpack.c.l.b16 %v296
    %v1290 = vunpack.c.h.b16 %v296
    %v1291 = vunpack.c.l.b16 %v297
    %v1292 = vunpack.c.h.b16 %v297
    %v1293 = vunpack.c.l.b16 %v298
    %v1294 = vunpack.c.h.b16 %v298
    %v1295 = vunpack.c.l.b16 %v299
    %v1296 = vunpack.c.h.b16 %v299
    %v1297 = vunpack.c.l.b16 %v300
    %v1298 = vunpack.c.h.b16 %v300
    %v1299 = vunpack.c.l.b16 %v301
    %v1300 = vunpack.c.h.b16 %v301
    %v1301 = vunpack.c.l.b16 %v302
    %v1302 = vunpack.c.h.b16 %v302
    %v1303 = vunpack.c.l.b16 %v303
    %v1304 = vunpack.c.h.b16 %v303
    %v1305 = vunpack.c.l.b16 %v304
    %v1306 = vunpack.c.h.b16 %v304
    %v1307 = vunpack.c.l.b16 %v305
    %v1308 = vunpack.c.h.b16 %v305
    %v1309 = vunpack.c.l.b16 %v306
    %v1310 = vunpack.c.h.b16 %v306
    %v1311 = vunpack.c.l.b16 %v307
    %v1312 = vunpack.c.h.b16 %v307
    %v1313 = vunpack.c.l.b16 %v308
    %v1314 = vunpack.c.h.b16 %v308
    %v1315 = vunpack.c.l.b16 %v309
    %v1316 = vunpack.c.h.b16 %v309
    %v1317 = vunpack.c.l.b16 %v310
    %v1318 = vunpack.c.h.b16 %v310
    %v1319 = vunpack.c.l.b16 %v311
    %v1320 = vunpack.c.h.b16 %v311
    %v1321 = vunpack.c.l.b16 %v312
    %v1322 = vunpack.c.h.b16 %v312
    %v1323 = vunpack.c.l.b16 %v313
    %v1324 = vunpack.c.h.b16 %v313
    %v1325 = vunpack.c.l.b16 %v314
    %v1326 = vunpack.c.h.b16 %v314
    %v1327 = vunpack.c.l.b16 %v315
    %v1328 = vunpack.c.h.b16 %v315
    %v1329 = vunpack.c.l.b16 %v316
    %v1330 = vunpack.c.h.b16 %v316
    %v1331 = vunpack.c.l.b16 %v317
    %v1332 = vunpack.c.h.b16 %v317
    %v1333 = vunpack.c.l.b16 %v318
    %v1334 = vunpack.c.h.b16 %v318
    %v1335 = vunpack.c.l.b16 %v319
    %v1336 = vunpack.c.h.b16 %v319
    %v1337 = vunpack.c.l.b16 %v320
    %v1338 = vunpack.c.h.b16 %v320
    %v1339 = vunpack.c.l.b16 %v321
    %v1340 = vunpack.c.h.b16 %v321
    %v1341 = vunpack.c.l.b16 %v322
    %v1342 = vunpack.c.h.b16 %v322
    %v1343 = vunpack.c.l.b16 %v323
    %v1344 = vunpack.c.h.b16 %v323
    %v1345 = vunpack.c.l.b16 %v324
    %v1346 = vunpack.c.h.b16 %v324
    %v1347 = vunpack.c.l.b16 %v325
    %v1348 = vunpack.c.h.b16 %v325
    %v1349 = vunpack.c.l.b16 %v326
    %v1350 = vunpack.c.h.b16 %v326
    %v1351 = vunpack.c.l.b16 %v327
    %v1352 = vunpack.c.h.b16 %v327
    %v1353 = vunpack.c.l.b16 %v328
    %v1354 = vunpack.c.h.b16 %v328
    %v1355 = vunpack.c.l.b16 %v329
    %v1356 = vunpack.c.h.b16 %v329
    %v1357 = vunpack.c.l.b16 %v330
    %v1358 = vunpack.c.h.b16 %v330
    %v1359 = vunpack.c.l.b16 %v331
    %v1360 = vunpack.c.h.b16 %v331
    %v1361 = vunpack.c.l.b16 %v332
    %v1362 = vunpack.c.h.b16 %v332
    %v1363 = vunpack.c.l.b16 %v333
    %v1364 = vunpack.c.h.b16 %v333
    %v1365 = vunpack.c.l.b16 %v334
    %v1366 = vunpack.c.h.b16 %v334
    %v1367 = vunpack.c.l.b16 %v335
    %v1368 = vunpack.c.h.b16 %v335
    %v1369 = vunpack.c.l.b16 %v336
    %v1370 = vunpack.c.h.b16 %v336
    %v1371 = vunpack.c.l.b16 %v337
    %v1372 = vunpack.c.h.b16 %v337
    %v1373 = vunpack.c.l.b16 %v338
    %v1374 = vunpack.c.h.b16 %v338
    %v1375 = vunpack.c.l.b16 %v339
    %v1376 = vunpack.c.h.b16 %v339
    %v1377 = vunpack.c.l.b16 %v340
    %v1378 = vunpack.c.h.b16 %v340
    %v1379 = vunpack.c.l.b16 %v341
    %v1380 = vunpack.c.h.b16 %v341
    %v1381 = vunpack.c.l.b16 %v342
    %v1382 = vunpack.c.h.b16 %v342
    %v1383 = vunpack.c.l.b16 %v343
    %v1384 = vunpack.c.h.b16 %v343
    %v1385 = vunpack.c.l.b16 %v344
    %v1386 = vunpack.c.h.b16 %v344
    %v1387 = vunpack.c.l.b16 %v345
    %v1388 = vunpack.c.h.b16 %v345
    %v1389 = vunpack.c.l.b16 %v346
    %v1390 = vunpack.c.h.b16 %v346
    %v1391 = vunpack.c.l.b16 %v347
    %v1392 = vunpack.c.h.b16 %v347
    %v1393 = vunpack.c.l.b16 %v348
    %v1394 = vunpack.c.h.b16 %v348
    %v1395 = vunpack.c.l.b16 %v349
    %v1396 = vunpack.c.h.b16 %v349
    %v1397 = vunpack.c.l.b16 %v350
    %v1398 = vunpack.c.h.b16 %v350
    %v1399 = vunpack.c.l.b16 %v351
    %v1400 = vunpack.c.h.b16 %v351
    %v1401 = vunpack.c.l.b16 %v352
    %v1402 = vunpack.c.h.b16 %v352
    %v1403 = vunpack.c.l.b16 %v353
    %v1404 = vunpack.c.h.b16 %v353
    %v1405 = vunpack.c.l.b16 %v354
    %v1406 = vunpack.c.h.b16 %v354
    %v1407 = vunpack.c.l.b16 %v355
    %v1408 = vunpack.c.h.b16 %v355
    %v1409 = vunpack.c.l.b16 %v356
    %v1410 = vunpack.c.h.b16 %v356
    %v1411 = vunpack.c.l.b16 %v357
    %v1412 = vunpack.c.h.b16 %v357
    %v1413 = vunpack.c.l.b16 %v358
    %v1414 = vunpack.c.h.b16 %v358
    %v1415 = vunpack.c.l.b16 %v359
    %v1416 = vunpack.c.h.b16 %v359
    %v1417 = vunpack.c.l.b16 %v360
    %v1418 = vunpack.c.h.b16 %v360
    %v1419 = vunpack.c.l.b16 %v361
    %v1420 = vunpack.c.h.b16 %v361
    %v1421 = vunpack.c.l.b16 %v362
    %v1422 = vunpack.c.h.b16 %v362
    %v1423 = vunpack.c.l.b16 %v363
    %v1424 = vunpack.c.h.b16 %v363
    %v1425 = vunpack.c.l.b16 %v364
    %v1426 = vunpack.c.h.b16 %v364
    %v1427 = vunpack.c.l.b16 %v365
    %v1428 = vunpack.c.h.b16 %v365
    %v1429 = vunpack.c.l.b16 %v366
    %v1430 = vunpack.c.h.b16 %v366
    %v1431 = vunpack.c.l.b16 %v367
    %v1432 = vunpack.c.h.b16 %v367
    %v1433 = vunpack.c.l.b16 %v368
    %v1434 = vunpack.c.h.b16 %v368
    %v1435 = vunpack.c.l.b16 %v369
    %v1436 = vunpack.c.h.b16 %v369
    %v1437 = vunpack.c.l.b16 %v370
    %v1438 = vunpack.c.h.b16 %v370
    %v1439 = vunpack.c.l.b16 %v371
    %v1440 = vunpack.c.h.b16 %v371
    %v1441 = vunpack.c.l.b16 %v372
    %v1442 = vunpack.c.h.b16 %v372
    %v1443 = vunpack.c.l.b16 %v373
    %v1444 = vunpack.c.h.b16 %v373
    %v1445 = vunpack.c.l.b16 %v374
    %v1446 = vunpack.c.h.b16 %v374
    %v1447 = vunpack.c.l.b16 %v375
    %v1448 = vunpack.c.h.b16 %v375
    %v1449 = vunpack.c.l.b16 %v376
    %v1450 = vunpack.c.h.b16 %v376
    %v1451 = vunpack.c.l.b16 %v377
    %v1452 = vunpack.c.h.b16 %v377
    %v1453 = vunpack.c.l.b16 %v378
    %v1454 = vunpack.c.h.b16 %v378
    %v1455 = vunpack.c.l.b16 %v379
    %v1456 = vunpack.c.h.b16 %v379
    %v1457 = vunpack.c.l.b16 %v380
    %v1458 = vunpack.c.h.b16 %v380
    %v1459 = vunpack.c.l.b16 %v381
    %v1460 = vunpack.c.h.b16 %v381
    %v1461 = vunpack.c.l.b16 %v382
    %v1462 = vunpack.c.h.b16 %v382
    %v1463 = vunpack.c.l.b16 %v383
    %v1464 = vunpack.c.h.b16 %v383
    %v1465 = vunpack.c.l.b16 %v384
    %v1466 = vunpack.c.h.b16 %v384
    %v1467 = vunpack.c.l.b16 %v385
    %v1468 = vunpack.c.h.b16 %v385
    %v1469 = vunpack.c.l.b16 %v386
    %v1470 = vunpack.c.h.b16 %v386
    %v1471 = vunpack.c.l.b16 %v387
    %v1472 = vunpack.c.h.b16 %v387
    %v1473 = vunpack.c.l.b16 %v388
    %v1474 = vunpack.c.h.b16 %v388
    %v1475 = vunpack.c.l.b16 %v389
    %v1476 = vunpack.c.h.b16 %v389
    %v1477 = vunpack.c.l.b16 %v390
    %v1478 = vunpack.c.h.b16 %v390
    %v1479 = vunpack.c.l.b16 %v391
    %v1480 = vunpack.c.h.b16 %v391
    %v1481 = vunpack.c.l.b16 %v392
    %v1482 = vunpack.c.h.b16 %v392
    %v1483 = vunpack.c.l.b16 %v393
    %v1484 = vunpack.c.h.b16 %v393
    %v1485 = vunpack.c.l.b16 %v394
    %v1486 = vunpack.c.h.b16 %v394
    %v1487 = vunpack.c.l.b16 %v395
    %v1488 = vunpack.c.h.b16 %v395
    %v1489 = vunpack.c.l.b16 %v396
    %v1490 = vunpack.c.h.b16 %v396
    %v1491 = vunpack.c.l.b16 %v397
    %v1492 = vunpack.c.h.b16 %v397
    %v1493 = vunpack.c.l.b16 %v398
    %v1494 = vunpack.c.h.b16 %v398
    %v1495 = vunpack.c.l.b16 %v399
    %v1496 = vunpack.c.h.b16 %v399
    %v1497 = vunpack.c.l.b16 %v400
    %v1498 = vunpack.c.h.b16 %v400
    %v1499 = vunpack.c.l.b16 %v401
    %v1500 = vunpack.c.h.b16 %v401
    %v1501 = vunpack.c.l.b16 %v402
    %v1502 = vunpack.c.h.b16 %v402
    %v1503 = vunpack.c.l.b16 %v403
    %v1504 = vunpack.c.h.b16 %v403
    %v1505 = vunpack.c.l.b16 %v404
    %v1506 = vunpack.c.h.b16 %v404
    %v1507 = vunpack.c.l.b16 %v405
    %v1508 = vunpack.c.h.b16 %v405
    %v1509 = vunpack.c.l.b16 %v406
    %v1510 = vunpack.c.h.b16 %v406
    %v1511 = vunpack.c.l.b16 %v407
    %v1512 = vunpack.c.h.b16 %v407
    %v1513 = vunpack.c.l.b16 %v408
    %v1514 = vunpack.c.h.b16 %v408
    %v1515 = vunpack.c.l.b16 %v409
    %v1516 = vunpack.c.h.b16 %v409
    %v1517 = vunpack.c.l.b16 %v410
    %v1518 = vunpack.c.h.b16 %v410
    %v1519 = vunpack.c.l.b16 %v411
    %v1520 = vunpack.c.h.b16 %v411
    %v1521 = vunpack.c.l.b16 %v412
    %v1522 = vunpack.c.h.b16 %v412
    %v1523 = vunpack.c.l.b16 %v413
    %v1524 = vunpack.c.h.b16 %v413
    %v1525 = vunpack.c.l.b16 %v414
    %v1526 = vunpack.c.h.b16 %v414
    %v1527 = vunpack.c.l.b16 %v415
    %v1528 = vunpack.c.h.b16 %v415
    %v1529 = vunpack.c.l.b16 %v416
    %v1530 = vunpack.c.h.b16 %v416
    %v1531 = vunpack.c.l.b16 %v417
    %v1532 = vunpack.c.h.b16 %v417
    %v1533 = vunpack.c.l.b16 %v418
    %v1534 = vunpack.c.h.b16 %v418
    %v1535 = vunpack.c.l.b16 %v419
    %v1536 = vunpack.c.h.b16 %v419
    %v1537 = vunpack.c.l.b16 %v420
    %v1538 = vunpack.c.h.b16 %v420
    %v1539 = vunpack.c.l.b16 %v421
    %v1540 = vunpack.c.h.b16 %v421
    %v1541 = vunpack.c.l.b16 %v422
    %v1542 = vunpack.c.h.b16 %v422
    %v1543 = vunpack.c.l.b16 %v423
    %v1544 = vunpack.c.h.b16 %v423
    %v1545 = vunpack.c.l.b16 %v424
    %v1546 = vunpack.c.h.b16 %v424
    %v1547 = vunpack.c.l.b16 %v425
    %v1548 = vunpack.c.h.b16 %v425
    %v1549 = vunpack.c.l.b16 %v426
    %v1550 = vunpack.c.h.b16 %v426
    %v1551 = vunpack.c.l.b16 %v427
    %v1552 = vunpack.c.h.b16 %v427
    %v1553 = vunpack.c.l.b16 %v428
    %v1554 = vunpack.c.h.b16 %v428
    %v1555 = vunpack.c.l.b16 %v429
    %v1556 = vunpack.c.h.b16 %v429
    %v1557 = vunpack.c.l.b16 %v430
    %v1558 = vunpack.c.h.b16 %v430
    %v1559 = vunpack.c.l.b16 %v431
    %v1560 = vunpack.c.h.b16 %v431
    %v1561 = vunpack.c.l.b16 %v432
    %v1562 = vunpack.c.h.b16 %v432
    %v1563 = vunpack.c.l.b16 %v433
    %v1564 = vunpack.c.h.b16 %v433
    %v1565 = vunpack.c.l.b16 %v434
    %v1566 = vunpack.c.h.b16 %v434
    %v1567 = vunpack.c.l.b16 %v435
    %v1568 = vunpack.c.h.b16 %v435
    %v1569 = vunpack.c.l.b16 %v436
    %v1570 = vunpack.c.h.b16 %v436
    %v1571 = vunpack.c.l.b16 %v437
    %v1572 = vunpack.c.h.b16 %v437
    %v1573 = vunpack.c.l.b16 %v438
    %v1574 = vunpack.c.h.b16 %v438
    %v1575 = vunpack.c.l.b16 %v439
    %v1576 = vunpack.c.h.b16 %v439
    %v1577 = vunpack.c.l.b16 %v440
    %v1578 = vunpack.c.h.b16 %v440
    %v1579 = vunpack.c.l.b16 %v441
    %v1580 = vunpack.c.h.b16 %v441
    %v1581 = vunpack.c.l.b16 %v442
    %v1582 = vunpack.c.h.b16 %v442
    %v1583 = vunpack.c.l.b16 %v443
    %v1584 = vunpack.c.h.b16 %v443
    %v1585 = vunpack.c.l.b16 %v444
    %v1586 = vunpack.c.h.b16 %v444
    %v1587 = vunpack.c.l.b16 %v445
    %v1588 = vunpack.c.h.b16 %v445
    %v1589 = vunpack.c.l.b16 %v446
    %v1590 = vunpack.c.h.b16 %v446
    %v1591 = vunpack.c.l.b16 %v447
    %v1592 = vunpack.c.h.b16 %v447
    %v1593 = vunpack.c.l.b16 %v448
    %v1594 = vunpack.c.h.b16 %v448
    %v1595 = vunpack.c.l.b16 %v449
    %v1596 = vunpack.c.h.b16 %v449
    %v1597 = vunpack.c.l.b16 %v450
    %v1598 = vunpack.c.h.b16 %v450
    %v1599 = vunpack.c.l.b16 %v451
    %v1600 = vunpack.c.h.b16 %v451
    %v1601 = vunpack.c.l.b16 %v452
    %v1602 = vunpack.c.h.b16 %v452
    %v1603 = vunpack.c.l.b16 %v453
    %v1604 = vunpack.c.h.b16 %v453
    %v1605 = vunpack.c.l.b16 %v454
    %v1606 = vunpack.c.h.b16 %v454
    %v1607 = vunpack.c.l.b16 %v455
    %v1608 = vunpack.c.h.b16 %v455
    %v1609 = vunpack.c.l.b16 %v456
    %v1610 = vunpack.c.h.b16 %v456
    %v1611 = vunpack.c.l.b16 %v457
    %v1612 = vunpack.c.h.b16 %v457
    %v1613 = vunpack.c.l.b16 %v458
    %v1614 = vunpack.c.h.b16 %v458
    %v1615 = vunpack.c.l.b16 %v459
    %v1616 = vunpack.c.h.b16 %v459
    %v1617 = vunpack.c.l.b16 %v460
    %v1618 = vunpack.c.h.b16 %v460
    %v1619 = vunpack.c.l.b16 %v461
    %v1620 = vunpack.c.h.b16 %v461
    %v1621 = vunpack.c.l.b16 %v462
    %v1622 = vunpack.c.h.b16 %v462
    %v1623 = vunpack.c.l.b16 %v463
    %v1624 = vunpack.c.h.b16 %v463
    %v1625 = vunpack.c.l.b16 %v464
    %v1626 = vunpack.c.h.b16 %v464
    %v1627 = vunpack.c.l.b16 %v465
    %v1628 = vunpack.c.h.b16 %v465
    %v1629 = vunpack.c.l.b16 %v466
    %v1630 = vunpack.c.h.b16 %v466
    %v1631 = vunpack.c.l.b16 %v467
    %v1632 = vunpack.c.h.b16 %v467
    %v1633 = vunpack.c.l.b16 %v468
    %v1634 = vunpack.c.h.b16 %v468
    %v1635 = vunpack.c.l.b16 %v469
    %v1636 = vunpack.c.h.b16 %v469
    %v1637 = vunpack.c.l.b16 %v470
    %v1638 = vunpack.c.h.b16 %v470
    %v1639 = vunpack.c.l.b16 %v471
    %v1640 = vunpack.c.h.b16 %v471
    %v1641 = vunpack.c.l.b16 %v472
    %v1642 = vunpack.c.h.b16 %v472
    %v1643 = vunpack.c.l.b16 %v473
    %v1644 = vunpack.c.h.b16 %v473
    %v1645 = vunpack.c.l.b16 %v474
    %v1646 = vunpack.c.h.b16 %v474
    %v1647 = vunpack.c.l.b16 %v475
    %v1648 = vunpack.c.h.b16 %v475
    %v1649 = vunpack.c.l.b16 %v476
    %v1650 = vunpack.c.h.b16 %v476
    %v1651 = vunpack.c.l.b16 %v477
    %v1652 = vunpack.c.h.b16 %v477
    %v1653 = vunpack.c.l.b16 %v478
    %v1654 = vunpack.c.h.b16 %v478
    %v1655 = vunpack.c.l.b16 %v479
    %v1656 = vunpack.c.h.b16 %v479
    %v1657 = vunpack.c.l.b16 %v480
    %v1658 = vunpack.c.h.b16 %v480
    %v1659 = vunpack.c.l.b16 %v481
    %v1660 = vunpack.c.h.b16 %v481
    %v1661 = vunpack.c.l.b16 %v482
    %v1662 = vunpack.c.h.b16 %v482
    %v1663 = vunpack.c.l.b16 %v483
    %v1664 = vunpack.c.h.b16 %v483
    %v1665 = vunpack.c.l.b16 %v484
    %v1666 = vunpack.c.h.b16 %v484
    %v1667 = vunpack.c.l.b16 %v485
    %v1668 = vunpack.c.h.b16 %v485
    %v1669 = vunpack.c.l.b16 %v486
    %v1670 = vunpack.c.h.b16 %v486
    %v1671 = vunpack.c.l.b16 %v487
    %v1672 = vunpack.c.h.b16 %v487
    %v1673 = vunpack.c.l.b16 %v488
    %v1674 = vunpack.c.h.b16 %v488
    %v1675 = vunpack.c.l.b16 %v489
    %v1676 = vunpack.c.h.b16 %v489
    %v1677 = vunpack.c.l.b16 %v490
    %v1678 = vunpack.c.h.b16 %v490
    %v1679 = vunpack.c.l.b16 %v491
    %v1680 = vunpack.c.h.b16 %v491
    %v1681 = vunpack.c.l.b16 %v492
    %v1682 = vunpack.c.h.b16 %v492
    %v1683 = vunpack.c.l.b16 %v493
    %v1684 = vunpack.c.h.b16 %v493
    %v1685 = vunpack.c.l.b16 %v494
    %v1686 = vunpack.c.h.b16 %v494
    %v1687 = vunpack.c.l.b16 %v495
    %v1688 = vunpack.c.h.b16 %v495
    %v1689 = vunpack.c.l.b16 %v496
    %v1690 = vunpack.c.h.b16 %v496
    %v1691 = vunpack.c.l.b16 %v497
    %v1692 = vunpack.c.h.b16 %v497
    %v1693 = vunpack.c.l.b16 %v498
    %v1694 = vunpack.c.h.b16 %v498
    %v1695 = vunpack.c.l.b16 %v499
    %v1696 = vunpack.c.h.b16 %v499
    %v1697 = vunpack.c.l.b16 %v500
    %v1698 = vunpack.c.h.b16 %v500
    %v1699 = vunpack.c.l.b16 %v501
    %v1700 = vunpack.c.h.b16 %v501
    %v1701 = vunpack.c.l.b16 %v502
    %v1702 = vunpack.c.h.b16 %v502
    %v1703 = vunpack.c.l.b16 %v503
    %v1704 = vunpack.c.h.b16 %v503
    %v1705 = vunpack.c.l.b16 %v504
    %v1706 = vunpack.c.h.b16 %v504
    %v1707 = vunpack.c.l.b16 %v505
    %v1708 = vunpack.c.h.b16 %v505
    %v1709 = vunpack.c.l.b16 %v506
    %v1710 = vunpack.c.h.b16 %v506
    %v1711 = vunpack.c.l.b16 %v507
    %v1712 = vunpack.c.h.b16 %v507
    %v1713 = vunpack.c.l.b16 %v508
    %v1714 = vunpack.c.h.b16 %v508
    %v1715 = vunpack.c.l.b16 %v509
    %v1716 = vunpack.c.h.b16 %v509
    %v1717 = vunpack.c.l.b16 %v510
    %v1718 = vunpack.c.h.b16 %v510
    %v1719 = vunpack.c.l.b16 %v511
    %v1720 = vunpack.c.h.b16 %v511
    %v1721 = vunpack.c.l.b16 %v512
    %v1722 = vunpack.c.h.b16 %v512
    %v1723 = vunpack.c.l.b16 %v513
    %v1724 = vunpack.c.h.b16 %v513
    %v1725 = vunpack.c.l.b16 %v514
    %v1726 = vunpack.c.h.b16 %v514
    %v1727 = vunpack.c.l.b16 %v515
    %v1728 = vunpack.c.h.b16 %v515
    %v1729 = vunpack.c.l.b16 %v516
    %v1730 = vunpack.c.h.b16 %v516
    %v1731 = vunpack.c.l.b16 %v517
    %v1732 = vunpack.c.h.b16 %v517
    %v1733 = vunpack.c.l.b16 %v518
    %v1734 = vunpack.c.h.b16 %v518
    %v1735 = vunpack.c.l.b16 %v519
    %v1736 = vunpack.c.h.b16 %v519
    %v1737 = vunpack.c.l.b16 %v520
    %v1738 = vunpack.c.h.b16 %v520
    %v1739 = vpack.c.b16 %v963, %v955
    %v1740 = vpack.c.b16 %v964, %v956
    %v1741 = vpack.c.b16 %v965, %v957
    %v1742 = vpack.c.b16 %v966, %v958
    %v1743 = vpack.c.b16 %v967, %v959
    %v1744 = vpack.c.b16 %v968, %v960
    %v1745 = vpack.c.b16 %v969, %v961
    %v1746 = vpack.c.b16 %v970, %v962
    %v1747 = vpack.c.b16 %v979, %v971
    %v1748 = vpack.c.b16 %v980, %v972
    %v1749 = vpack.c.b16 %v981, %v973
    %v1750 = vpack.c.b16 %v982, %v974
    %v1751 = vpack.c.b16 %v983, %v975
    %v1752 = vpack.c.b16 %v984, %v976
    %v1753 = vpack.c.b16 %v985, %v977
    %v1754 = vpack.c.b16 %v986, %v978
    %v1755 = vpack.c.b16 %v995, %v987
    %v1756 = vpack.c.b16 %v996, %v988
    %v1757 = vpack.c.b16 %v997, %v989
    %v1758 = vpack.c.b16 %v998, %v990
    %v1759 = vpack.c.b16 %v999, %v991
    %v1760 = vpack.c.b16 %v1000, %v992
    %v1761 = vpack.c.b16 %v1001, %v993
    %v1762 = vpack.c.b16 %v1002, %v994
    %v1763 = vpack.c.b16 %v1011, %v1003
    %v1764 = vpack.c.b16 %v1012, %v1004
    %v1765 = vpack.c.b16 %v1013, %v1005
    %v1766 = vpack.c.b16 %v1014, %v1006
    %v1767 = vpack.c.b16 %v1015, %v1007
    %v1768 = vpack.c.b16 %v1016, %v1008
    %v1769 = vpack.c.b16 %v1017, %v1009
    %v1770 = vpack.c.b16 %v1018, %v1010
    %v1771 = vpack.c.b16 %v1027, %v1019
    %v1772 = vpack.c.b16 %v1028, %v1020
    %v1773 = vpack.c.b16 %v1029, %v1021
    %v1774 = vpack.c.b16 %v1030, %v1022
    %v1775 = vpack.c.b16 %v1031, %v1023
    %v1776 = vpack.c.b16 %v1032, %v1024
    %v1777 = vpack.c.b16 %v1033, %v1025
    %v1778 = vpack.c.b16 %v1034, %v1026
    %v1779 = vpack.c.b16 %v1043, %v1035
    %v1780 = vpack.c.b16 %v1044, %v1036
    %v1781 = vpack.c.b16 %v1045, %v1037
    %v1782 = vpack.c.b16 %v1046, %v1038
    %v1783 = vpack.c.b16 %v1047, %v1039
    %v1784 = vpack.c.b16 %v1048, %v1040
    %v1785 = vpack.c.b16 %v1049, %v1041
    %v1786 = vpack.c.b16 %v1050, %v1042
    %v1787 = vpack.c.b16 %v1059, %v1051
    %v1788 = vpack.c.b16 %v1060, %v1052
    %v1789 = vpack.c.b16 %v1061, %v1053
    %v1790 = vpack.c.b16 %v1062, %v1054
    %v1791 = vpack.c.b16 %v1063, %v1055
    %v1792 = vpack.c.b16 %v1064, %v1056
    %v1793 = vpack.c.b16 %v1065, %v1057
    %v1794 = vpack.c.b16 %v1066, %v1058
    %v1795 = vpack.c.b16 %v1075, %v1067
    %v1796 = vpack.c.b16 %v1076, %v1068
    %v1797 = vpack.c.b16 %v1077, %v1069
    %v1798 = vpack.c.b16 %v1078, %v1070
    %v1799 = vpack.c.b16 %v1079, %v1071
    %v1800 = vpack.c.b16 %v1080, %v1072
    %v1801 = vpack.c.b16 %v1081, %v1073
    %v1802 = vpack.c.b16 %v1082, %v1074
    %v1803 = vpack.c.b16 %v1091, %v1083
    %v1804 = vpack.c.b16 %v1092, %v1084
    %v1805 = vpack.c.b16 %v1093, %v1085
    %v1806 = vpack.c.b16 %v1094, %v1086
    %v1807 = vpack.c.b16 %v1095, %v1087
    %v1808 = vpack.c.b16 %v1096, %v1088
    %v1809 = vpack.c.b16 %v1097, %v1089
    %v1810 = vpack.c.b16 %v1098, %v1090
    %v1811 = vpack.c.b16 %v1107, %v1099
    %v1812 = vpack.c.b16 %v1108, %v1100
    %v1813 = vpack.c.b16 %v1109, %v1101
    %v1814 = vpack.c.b16 %v1110, %v1102
    %v1815 = vpack.c.b16 %v1111, %v1103
    %v1816 = vpack.c.b16 %v1112, %v1104
    %v1817 = vpack.c.b16 %v1113, %v1105
    %v1818 = vpack.c.b16 %v1114, %v1106
    %v1819 = vpack.c.b16 %v1123, %v1115
    %v1820 = vpack.c.b16 %v1124, %v1116
    %v1821 = vpack.c.b16 %v1125, %v1117
    %v1822 = vpack.c.b16 %v1126, %v1118
    %v1823 = vpack.c.b16 %v1127, %v1119
    %v1824 = vpack.c.b16 %v1128, %v1120
    %v1825 = vpack.c.b16 %v1129, %v1121
    %v1826 = vpack.c.b16 %v1130, %v1122
    %v1827 = vpack.c.b16 %v1139, %v1131
    %v1828 = vpack.c.b16 %v1140, %v1132
    %v1829 = vpack.c.b16 %v1141, %v1133
    %v1830 = vpack.c.b16 %v1142, %v1134
    %v1831 = vpack.c.b16 %v1143, %v1135
    %v1832 = vpack.c.b16 %v1144, %v1136
    %v1833 = vpack.c.b16 %v1145, %v1137
    %v1834 = vpack.c.b16 %v1146, %v1138
    %v1835 = vpack.c.b16 %v1155, %v1147
    %v1836 = vpack.c.b16 %v1156, %v1148
    %v1837 = vpack.c.b16 %v1157, %v1149
    %v1838 = vpack.c.b16 %v1158, %v1150
    %v1839 = vpack.c.b16 %v1159, %v1151
    %v1840 = vpack.c.b16 %v1160, %v1152
    %v1841 = vpack.c.b16 %v1161, %v1153
    %v1842 = vpack.c.b16 %v1162, %v1154
    %v1843 = vpack.c.b16 %v1171, %v1163
    %v1844 = vpack.c.b16 %v1172, %v1164
    %v1845 = vpack.c.b16 %v1173, %v1165
    %v1846 = vpack.c.b16 %v1174, %v1166
    %v1847 = vpack.c.b16 %v1175, %v1167
    %v1848 = vpack.c.b16 %v1176, %v1168
    %v1849 = vpack.c.b16 %v1177, %v1169
    %v1850 = vpack.c.b16 %v1178, %v1170
    %v1851 = vpack.c.b16 %v1187, %v1179
    %v1852 = vpack.c.b16 %v1188, %v1180
    %v1853 = vpack.c.b16 %v1189, %v1181
    %v1854 = vpack.c.b16 %v1190, %v1182
    %v1855 = vpack.c.b16 %v1191, %v1183
    %v1856 = vpack.c.b16 %v1192, %v1184
    %v1857 = vpack.c.b16 %v1193, %v1185
    %v1858 = vpack.c.b16 %v1194, %v1186
    %v1859 = vpack.c.b16 %v1203, %v1195
    %v1860 = vpack.c.b16 %v1204, %v1196
    %v1861 = vpack.c.b16 %v1205, %v1197
    %v1862 = vpack.c.b16 %v1206, %v1198
    %v1863 = vpack.c.b16 %v1207, %v1199
    %v1864 = vpack.c.b16 %v1208, %v1200
    %v1865 = vpack.c.b16 %v1209, %v1201
    %v1866 = vpack.c.b16 %v1210, %v1202
    %v1867 = vpack.c.b16 %v1219, %v1211
    %v1868 = vpack.c.b16 %v1220, %v1212
    %v1869 = vpack.c.b16 %v1221, %v1213
    %v1870 = vpack.c.b16 %v1222, %v1214
    %v1871 = vpack.c.b16 %v1223, %v1215
    %v1872 = vpack.c.b16 %v1224, %v1216
    %v1873 = vpack.c.b16 %v1225, %v1217
    %v1874 = vpack.c.b16 %v1226, %v1218
    %v1875 = vpack.c.b16 %v1235, %v1227
    %v1876 = vpack.c.b16 %v1236, %v1228
    %v1877 = vpack.c.b16 %v1237, %v1229
    %v1878 = vpack.c.b16 %v1238, %v1230
    %v1879 = vpack.c.b16 %v1239, %v1231
    %v1880 = vpack.c.b16 %v1240, %v1232
    %v1881 = vpack.c.b16 %v1241, %v1233
    %v1882 = vpack.c.b16 %v1242, %v1234
    %v1883 = vpack.c.b16 %v1251, %v1243
    %v1884 = vpack.c.b16 %v1252, %v1244
    %v1885 = vpack.c.b16 %v1253, %v1245
    %v1886 = vpack.c.b16 %v1254, %v1246
    %v1887 = vpack.c.b16 %v1255, %v1247
    %v1888 = vpack.c.b16 %v1256, %v1248
    %v1889 = vpack.c.b16 %v1257, %v1249
    %v1890 = vpack.c.b16 %v1258, %v1250
    %v1891 = vpack.c.b16 %v1267, %v1259
    %v1892 = vpack.c.b16 %v1268, %v1260
    %v1893 = vpack.c.b16 %v1269, %v1261
    %v1894 = vpack.c.b16 %v1270, %v1262
    %v1895 = vpack.c.b16 %v1271, %v1263
    %v1896 = vpack.c.b16 %v1272, %v1264
    %v1897 = vpack.c.b16 %v1273, %v1265
    %v1898 = vpack.c.b16 %v1274, %v1266
    %v1899 = vpack.c.b16 %v1283, %v1275
    %v1900 = vpack.c.b16 %v1284, %v1276
    %v1901 = vpack.c.b16 %v1285, %v1277
    %v1902 = vpack.c.b16 %v1286, %v1278
    %v1903 = vpack.c.b16 %v1287, %v1279
    %v1904 = vpack.c.b16 %v1288, %v1280
    %v1905 = vpack.c.b16 %v1289, %v1281
    %v1906 = vpack.c.b16 %v1290, %v1282
    %v1907 = vpack.c.b16 %v1299, %v1291
    %v1908 = vpack.c.b16 %v1300, %v1292
    %v1909 = vpack.c.b16 %v1301, %v1293
    %v1910 = vpack.c.b16 %v1302, %v1294
    %v1911 = vpack.c.b16 %v1303, %v1295
    %v1912 = vpack.c.b16 %v1304, %v1296
    %v1913 = vpack.c.b16 %v1305, %v1297
    %v1914 = vpack.c.b16 %v1306, %v1298
    %v1915 = vpack.c.b16 %v1315, %v1307
    %v1916 = vpack.c.b16 %v1316, %v1308
    %v1917 = vpack.c.b16 %v1317, %v1309
    %v1918 = vpack.c.b16 %v1318, %v1310
    %v1919 = vpack.c.b16 %v1319, %v1311
    %v1920 = vpack.c.b16 %v1320, %v1312
    %v1921 = vpack.c.b16 %v1321, %v1313
    %v1922 = vpack.c.b16 %v1322, %v1314
    %v1923 = vpack.c.b16 %v1331, %v1323
    %v1924 = vpack.c.b16 %v1332, %v1324
    %v1925 = vpack.c.b16 %v1333, %v1325
    %v1926 = vpack.c.b16 %v1334, %v1326
    %v1927 = vpack.c.b16 %v1335, %v1327
    %v1928 = vpack.c.b16 %v1336, %v1328
    %v1929 = vpack.c.b16 %v1337, %v1329
    %v1930 = vpack.c.b16 %v1338, %v1330
    %v1931 = vpack.c.b16 %v1347, %v1339
    %v1932 = vpack.c.b16 %v1348, %v1340
    %v1933 = vpack.c.b16 %v1349, %v1341
    %v1934 = vpack.c.b16 %v1350, %v1342
    %v1935 = vpack.c.b16 %v1351, %v1343
    %v1936 = vpack.c.b16 %v1352, %v1344
    %v1937 = vpack.c.b16 %v1353, %v1345
    %v1938 = vpack.c.b16 %v1354, %v1346
    %v1939 = vpack.c.b16 %v1363, %v1355
    %v1940 = vpack.c.b16 %v1364, %v1356
    %v1941 = vpack.c.b16 %v1365, %v1357
    %v1942 = vpack.c.b16 %v1366, %v1358
    %v1943 = vpack.c.b16 %v1367, %v1359
    %v1944 = vpack.c.b16 %v1368, %v1360
    %v1945 = vpack.c.b16 %v1369, %v1361
    %v1946 = vpack.c.b16 %v1370, %v1362
    %v1947 = vpack.c.b16 %v1379, %v1371
    %v1948 = vpack.c.b16 %v1380, %v1372
    %v1949 = vpack.c.b16 %v1381, %v1373
    %v1950 = vpack.c.b16 %v1382, %v1374
    %v1951 = vpack.c.b16 %v1383, %v1375
    %v1952 = vpack.c.b16 %v1384, %v1376
    %v1953 = vpack.c.b16 %v1385, %v1377
    %v1954 = vpack.c.b16 %v1386, %v1378
    %v1955 = vpack.c.b16 %v1395, %v1387
    %v1956 = vpack.c.b16 %v1396, %v1388
    %v1957 = vpack.c.b16 %v1397, %v1389
    %v1958 = vpack.c.b16 %v1398, %v1390
    %v1959 = vpack.c.b16 %v1399, %v1391
    %v1960 = vpack.c.b16 %v1400, %v1392
    %v1961 = vpack.c.b16 %v1401, %v1393
    %v1962 = vpack.c.b16 %v1402, %v1394
    %v1963 = vpack.c.b16 %v1411, %v1403
    %v1964 = vpack.c.b16 %v1412, %v1404
    %v1965 = vpack.c.b16 %v1413, %v1405
    %v1966 = vpack.c.b16 %v1414, %v1406
    %v1967 = vpack.c.b16 %v1415, %v1407
    %v1968 = vpack.c.b16 %v1416, %v1408
    %v1969 = vpack.c.b16 %v1417, %v1409
    %v1970 = vpack.c.b16 %v1418, %v1410
    %v1971 = vpack.c.b16 %v1427, %v1419
    %v1972 = vpack.c.b16 %v1428, %v1420
    %v1973 = vpack.c.b16 %v1429, %v1421
    %v1974 = vpack.c.b16 %v1430, %v1422
    %v1975 = vpack.c.b16 %v1431, %v1423
    %v1976 = vpack.c.b16 %v1432, %v1424
    %v1977 = vpack.c.b16 %v1433, %v1425
    %v1978 = vpack.c.b16 %v1434, %v1426
    %v1979 = vpack.c.b16 %v1443, %v1435
    %v1980 = vpack.c.b16 %v1444, %v1436
    %v1981 = vpack.c.b16 %v1445, %v1437
    %v1982 = vpack.c.b16 %v1446, %v1438
    %v1983 = vpack.c.b16 %v1447, %v1439
    %v1984 = vpack.c.b16 %v1448, %v1440
    %v1985 = vpack.c.b16 %v1449, %v1441
    %v1986 = vpack.c.b16 %v1450, %v1442
    %v1987 = vpack.c.b16 %v1459, %v1451
    %v1988 = vpack.c.b16 %v1460, %v1452
    %v1989 = vpack.c.b16 %v1461, %v1453
    %v1990 = vpack.c.b16 %v1462, %v1454
    %v1991 = vpack.c.b16 %v1463, %v1455
    %v1992 = vpack.c.b16 %v1464, %v1456
    %v1993 = vpack.c.b16 %v1465, %v1457
    %v1994 = vpack.c.b16 %v1466, %v1458
    %v1995 = vpack.c.b16 %v1475, %v1467
    %v1996 = vpack.c.b16 %v1476, %v1468
    %v1997 = vpack.c.b16 %v1477, %v1469
    %v1998 = vpack.c.b16 %v1478, %v1470
    %v1999 = vpack.c.b16 %v1479, %v1471
    %v2000 = vpack.c.b16 %v1480, %v1472
    %v2001 = vpack.c.b16 %v1481, %v1473
    %v2002 = vpack.c.b16 %v1482, %v1474
    %v2003 = vpack.c.b16 %v1491, %v1483
    %v2004 = vpack.c.b16 %v1492, %v1484
    %v2005 = vpack.c.b16 %v1493, %v1485
    %v2006 = vpack.c.b16 %v1494, %v1486
    %v2007 = vpack.c.b16 %v1495, %v1487
    %v2008 = vpack.c.b16 %v1496, %v1488
    %v2009 = vpack.c.b16 %v1497, %v1489
    %v2010 = vpack.c.b16 %v1498, %v1490
    %v2011 = vpack.c.b16 %v1507, %v1499
    %v2012 = vpack.c.b16 %v1508, %v1500
    %v2013 = vpack.c.b16 %v1509, %v1501
    %v2014 = vpack.c.b16 %v1510, %v1502
    %v2015 = vpack.c.b16 %v1511, %v1503
    %v2016 = vpack.c.b16 %v1512, %v1504
    %v2017 = vpack.c.b16 %v1513, %v1505
    %v2018 = vpack.c.b16 %v1514, %v1506
    %v2019 = vpack.c.b16 %v1523, %v1515
    %v2020 = vpack.c.b16 %v1524, %v1516
    %v2021 = vpack.c.b16 %v1525, %v1517
    %v2022 = vpack.c.b16 %v1526, %v1518
    %v2023 = vpack.c.b16 %v1527, %v1519
    %v2024 = vpack.c.b16 %v1528, %v1520
    %v2025 = vpack.c.b16 %v1529, %v1521
    %v2026 = vpack.c.b16 %v1530, %v1522
    %v2027 = vpack.c.b16 %v1539, %v1531
    %v2028 = vpack.c.b16 %v1540, %v1532
    %v2029 = vpack.c.b16 %v1541, %v1533
    %v2030 = vpack.c.b16 %v1542, %v1534
    %v2031 = vpack.c.b16 %v1543, %v1535
    %v2032 = vpack.c.b16 %v1544, %v1536
    %v2033 = vpack.c.b16 %v1545, %v1537
    %v2034 = vpack.c.b16 %v1546, %v1538
    %v2035 = vpack.c.b16 %v1555, %v1547
    %v2036 = vpack.c.b16 %v1556, %v1548
    %v2037 = vpack.c.b16 %v1557, %v1549
    %v2038 = vpack.c.b16 %v1558, %v1550
    %v2039 = vpack.c.b16 %v1559, %v1551
    %v2040 = vpack.c.b16 %v1560, %v1552
    %v2041 = vpack.c.b16 %v1561, %v1553
    %v2042 = vpack.c.b16 %v1562, %v1554
    %v2043 = vpack.c.b16 %v1571, %v1563
    %v2044 = vpack.c.b16 %v1572, %v1564
    %v2045 = vpack.c.b16 %v1573, %v1565
    %v2046 = vpack.c.b16 %v1574, %v1566
    %v2047 = vpack.c.b16 %v1575, %v1567
    %v2048 = vpack.c.b16 %v1576, %v1568
    %v2049 = vpack.c.b16 %v1577, %v1569
    %v2050 = vpack.c.b16 %v1578, %v1570
    %v2051 = vpack.c.b16 %v1587, %v1579
    %v2052 = vpack.c.b16 %v1588, %v1580
    %v2053 = vpack.c.b16 %v1589, %v1581
    %v2054 = vpack.c.b16 %v1590, %v1582
    %v2055 = vpack.c.b16 %v1591, %v1583
    %v2056 = vpack.c.b16 %v1592, %v1584
    %v2057 = vpack.c.b16 %v1593, %v1585
    %v2058 = vpack.c.b16 %v1594, %v1586
    %v2059 = vpack.c.b16 %v1603, %v1595
    %v2060 = vpack.c.b16 %v1604, %v1596
    %v2061 = vpack.c.b16 %v1605, %v1597
    %v2062 = vpack.c.b16 %v1606, %v1598
    %v2063 = vpack.c.b16 %v1607, %v1599
    %v2064 = vpack.c.b16 %v1608, %v1600
    %v2065 = vpack.c.b16 %v1609, %v1601
    %v2066 = vpack.c.b16 %v1610, %v1602
    %v2067 = vpack.c.b16 %v1619, %v1611
    %v2068 = vpack.c.b16 %v1620, %v1612
    %v2069 = vpack.c.b16 %v1621, %v1613
    %v2070 = vpack.c.b16 %v1622, %v1614
    %v2071 = vpack.c.b16 %v1623, %v1615
    %v2072 = vpack.c.b16 %v1624, %v1616
    %v2073 = vpack.c.b16 %v1625, %v1617
    %v2074 = vpack.c.b16 %v1626, %v1618
    %v2075 = vpack.c.b16 %v1635, %v1627
    %v2076 = vpack.c.b16 %v1636, %v1628
    %v2077 = vpack.c.b16 %v1637, %v1629
    %v2078 = vpack.c.b16 %v1638, %v1630
    %v2079 = vpack.c.b16 %v1639, %v1631
    %v2080 = vpack.c.b16 %v1640, %v1632
    %v2081 = vpack.c.b16 %v1641, %v1633
    %v2082 = vpack.c.b16 %v1642, %v1634
    %v2083 = vpack.c.b16 %v1651, %v1643
    %v2084 = vpack.c.b16 %v1652, %v1644
    %v2085 = vpack.c.b16 %v1653, %v1645
    %v2086 = vpack.c.b16 %v1654, %v1646
    %v2087 = vpack.c.b16 %v1655, %v1647
    %v2088 = vpack.c.b16 %v1656, %v1648
    %v2089 = vpack.c.b16 %v1657, %v1649
    %v2090 = vpack.c.b16 %v1658, %v1650
    %v2091 = vpack.c.b16 %v1667, %v1659
    %v2092 = vpack.c.b16 %v1668, %v1660
    %v2093 = vpack.c.b16 %v1669, %v1661
    %v2094 = vpack.c.b16 %v1670, %v1662
    %v2095 = vpack.c.b16 %v1671, %v1663
    %v2096 = vpack.c.b16 %v1672, %v1664
    %v2097 = vpack.c.b16 %v1673, %v1665
    %v2098 = vpack.c.b16 %v1674, %v1666
    %v2099 = vpack.c.b16 %v1683, %v1675
    %v2100 = vpack.c.b16 %v1684, %v1676
    %v2101 = vpack.c.b16 %v1685, %v1677
    %v2102 = vpack.c.b16 %v1686, %v1678
    %v2103 = vpack.c.b16 %v1687, %v1679
    %v2104 = vpack.c.b16 %v1688, %v1680
    %v2105 = vpack.c.b16 %v1689, %v1681
    %v2106 = vpack.c.b16 %v1690, %v1682
    %v2107 = vpack.c.b16 %v1699, %v1691
    %v2108 = vpack.c.b16 %v1700, %v1692
    %v2109 = vpack.c.b16 %v1701, %v1693
    %v2110 = vpack.c.b16 %v1702, %v1694
    %v2111 = vpack.c.b16 %v1703, %v1695
    %v2112 = vpack.c.b16 %v1704, %v1696
    %v2113 = vpack.c.b16 %v1705, %v1697
    %v2114 = vpack.c.b16 %v1706, %v1698
    %v2115 = vpack.c.b16 %v1715, %v1707
    %v2116 = vpack.c.b16 %v1716, %v1708
    %v2117 = vpack.c.b16 %v1717, %v1709
    %v2118 = vpack.c.b16 %v1718, %v1710
    %v2119 = vpack.c.b16 %v1719, %v1711
    %v2120 = vpack.c.b16 %v1720, %v1712
    %v2121 = vpack.c.b16 %v1721, %v1713
    %v2122 = vpack.c.b16 %v1722, %v1714
    %v2123 = vpack.c.b16 %v1731, %v1723
    %v2124 = vpack.c.b16 %v1732, %v1724
    %v2125 = vpack.c.b16 %v1733, %v1725
    %v2126 = vpack.c.b16 %v1734, %v1726
    %v2127 = vpack.c.b16 %v1735, %v1727
    %v2128 = vpack.c.b16 %v1736, %v1728
    %v2129 = vpack.c.b16 %v1737, %v1729
    %v2130 = vpack.c.b16 %v1738, %v1730
    %vm2523 = vcmask 130048
    %v2525 = vsel %vm2523, %v128, 0
    %2527 = vmatprep.subr.bf16.mxu0 %v1740
    %2528 = vmatpush1.bf16.msra.mxu0 %v1739
    %2529 = vmatprep.subr.bf16.mxu0 %v1748
    %2530 = vmatpush1.bf16.msra.mxu0 %v1747
    %2531 = vmatprep.subr.bf16.mxu0 %v1756
    %2532 = vmatpush1.bf16.msra.mxu0 %v1755
    %2533 = vmatprep.subr.bf16.mxu0 %v1764
    %2534 = vmatpush1.bf16.msra.mxu0 %v1763
    %2535 = vmatprep.subr.bf16.mxu0 %v1772
    %2536 = vmatpush1.bf16.msra.mxu0 %v1771
    %2537 = vmatprep.subr.bf16.mxu0 %v1780
    %2538 = vmatpush1.bf16.msra.mxu0 %v1779
    %2539 = vmatprep.subr.bf16.mxu0 %v1788
    %2540 = vmatpush1.bf16.msra.mxu0 %v1787
    %2541 = vmatprep.subr.bf16.mxu0 %v1796
    %2542 = vmatpush1.bf16.msra.mxu0 %v1795
    %2543 = vmatprep.subr.bf16.mxu0 %v1804
    %2544 = vmatpush1.bf16.msra.mxu0 %v1803
    %2545 = vmatprep.subr.bf16.mxu0 %v1812
    %2546 = vmatpush1.bf16.msra.mxu0 %v1811
    %2547 = vmatprep.subr.bf16.mxu0 %v1820
    %2548 = vmatpush1.bf16.msra.mxu0 %v1819
    %2549 = vmatprep.subr.bf16.mxu0 %v1828
    %2550 = vmatpush1.bf16.msra.mxu0 %v1827
    %2551 = vmatprep.subr.bf16.mxu0 %v1836
    %2552 = vmatpush1.bf16.msra.mxu0 %v1835
    %2553 = vmatprep.subr.bf16.mxu0 %v1844
    %2554 = vmatpush1.bf16.msra.mxu0 %v1843
    %2555 = vmatprep.subr.bf16.mxu0 %v1852
    %2556 = vmatpush1.bf16.msra.mxu0 %v1851
    %2557 = vmatprep.subr.bf16.mxu0 %v1860
    %2558 = vmatpush1.bf16.msra.mxu0 %v1859
    %2559 = vmatprep.mubr.bf16.mxu0 %v123
    %2560 = vmatmul.mubr.bf16.gmra.mrb[0].mxu0 %v122
    %v2561 = vpop.f32.mrb[0].mxu0
    %v2562 = vadd.f32 %v526, %v2561
    %v2563 = vpop.f32.mrb[0].mxu0
    %v2564 = vadd.f32 %v530, %v2563
    %v2565 = vpop.f32.mrb[0].mxu0
    %v2566 = vpop.f32.mrb[0].mxu0
    %2567 = vdwg.mxu0
    %2568 = vmatprep.subr.bf16.mxu0 %v1868
    %2569 = vmatpush1.bf16.msra.mxu0 %v1867
    %2570 = vmatprep.subr.bf16.mxu0 %v1876
    %2571 = vmatpush1.bf16.msra.mxu0 %v1875
    %2572 = vmatprep.subr.bf16.mxu0 %v1884
    %2573 = vmatpush1.bf16.msra.mxu0 %v1883
    %2574 = vmatprep.subr.bf16.mxu0 %v1892
    %2575 = vmatpush1.bf16.msra.mxu0 %v1891
    %2576 = vmatprep.subr.bf16.mxu0 %v1900
    %2577 = vmatpush1.bf16.msra.mxu0 %v1899
    %2578 = vmatprep.subr.bf16.mxu0 %v1908
    %2579 = vmatpush1.bf16.msra.mxu0 %v1907
    %2580 = vmatprep.subr.bf16.mxu0 %v1916
    %2581 = vmatpush1.bf16.msra.mxu0 %v1915
    %2582 = vmatprep.subr.bf16.mxu0 %v1924
    %2583 = vmatpush1.bf16.msra.mxu0 %v1923
    %2584 = vmatprep.subr.bf16.mxu0 %v1932
    %2585 = vmatpush1.bf16.msra.mxu0 %v1931
    %2586 = vmatprep.subr.bf16.mxu0 %v1940
    %2587 = vmatpush1.bf16.msra.mxu0 %v1939
    %2588 = vmatprep.subr.bf16.mxu0 %v1948
    %2589 = vmatpush1.bf16.msra.mxu0 %v1947
    %2590 = vmatprep.subr.bf16.mxu0 %v1956
    %2591 = vmatpush1.bf16.msra.mxu0 %v1955
    %2592 = vmatprep.subr.bf16.mxu0 %v1964
    %2593 = vmatpush1.bf16.msra.mxu0 %v1963
    %2594 = vmatprep.subr.bf16.mxu0 %v1972
    %2595 = vmatpush1.bf16.msra.mxu0 %v1971
    %2596 = vmatprep.subr.bf16.mxu0 %v1980
    %2597 = vmatpush1.bf16.msra.mxu0 %v1979
    %2598 = vmatprep.subr.bf16.mxu0 %v1988
    %2599 = vmatpush1.bf16.msra.mxu0 %v1987
    %2600 = vmatprep.mubr.bf16.mxu0 %v125
    %2601 = vmatmul.mubr.bf16.gmra.mrb[0].mxu0 %v124
    %v2602 = vpop.f32.mrb[0].mxu0
    %v2603 = vadd.f32 %v2562, %v2602
    %v2604 = vpop.f32.mrb[0].mxu0
    %v2605 = vadd.f32 %v2564, %v2604
    %v2606 = vpop.f32.mrb[0].mxu0
    %v2607 = vpop.f32.mrb[0].mxu0
    %2608 = vdwg.mxu0
    %2609 = vmatprep.subr.bf16.mxu0 %v1996
    %2610 = vmatpush1.bf16.msra.mxu0 %v1995
    %2611 = vmatprep.subr.bf16.mxu0 %v2004
    %2612 = vmatpush1.bf16.msra.mxu0 %v2003
    %2613 = vmatprep.subr.bf16.mxu0 %v2012
    %2614 = vmatpush1.bf16.msra.mxu0 %v2011
    %2615 = vmatprep.subr.bf16.mxu0 %v2020
    %2616 = vmatpush1.bf16.msra.mxu0 %v2019
    %2617 = vmatprep.subr.bf16.mxu0 %v2028
    %2618 = vmatpush1.bf16.msra.mxu0 %v2027
    %2619 = vmatprep.subr.bf16.mxu0 %v2036
    %2620 = vmatpush1.bf16.msra.mxu0 %v2035
    %2621 = vmatprep.subr.bf16.mxu0 %v2044
    %2622 = vmatpush1.bf16.msra.mxu0 %v2043
    %2623 = vmatprep.subr.bf16.mxu0 %v2052
    %2624 = vmatpush1.bf16.msra.mxu0 %v2051
    %2625 = vmatprep.subr.bf16.mxu0 %v2060
    %2626 = vmatpush1.bf16.msra.mxu0 %v2059
    %2627 = vmatprep.subr.bf16.mxu0 %v2068
    %2628 = vmatpush1.bf16.msra.mxu0 %v2067
    %2629 = vmatprep.subr.bf16.mxu0 %v2076
    %2630 = vmatpush1.bf16.msra.mxu0 %v2075
    %2631 = vmatprep.subr.bf16.mxu0 %v2084
    %2632 = vmatpush1.bf16.msra.mxu0 %v2083
    %2633 = vmatprep.subr.bf16.mxu0 %v2092
    %2634 = vmatpush1.bf16.msra.mxu0 %v2091
    %2635 = vmatprep.subr.bf16.mxu0 %v2100
    %2636 = vmatpush1.bf16.msra.mxu0 %v2099
    %2637 = vmatprep.subr.bf16.mxu0 %v2108
    %2638 = vmatpush1.bf16.msra.mxu0 %v2107
    %2639 = vmatprep.subr.bf16.mxu0 %v2116
    %2640 = vmatpush1.bf16.msra.mxu0 %v2115
    %2641 = vmatprep.mubr.bf16.mxu0 %v127
    %2642 = vmatmul.mubr.bf16.gmra.mrb[0].mxu0 %v126
    %v2643 = vpop.f32.mrb[0].mxu0
    %v2644 = vadd.f32 %v2603, %v2643
    %v2645 = vpop.f32.mrb[0].mxu0
    %v2646 = vadd.f32 %v2605, %v2645
    %v2647 = vpop.f32.mrb[0].mxu0
    %v2648 = vpop.f32.mrb[0].mxu0
    %2649 = vdwg.mxu0
    %2650 = vmatprep.subr.bf16.mxu0 %v2124
    %2651 = vmatpush1.bf16.msra.mxu0 %v2123
    %2652 = vmatprep.subr.bf16.mxu0 0
    %2653 = vmatpush1.bf16.msra.mxu0 0
    %2654 = vmatprep.subr.bf16.mxu0 0
    %2655 = vmatpush1.bf16.msra.mxu0 0
    %2656 = vmatprep.subr.bf16.mxu0 0
    %2657 = vmatpush1.bf16.msra.mxu0 0
    %2658 = vmatprep.subr.bf16.mxu0 0
    %2659 = vmatpush1.bf16.msra.mxu0 0
    %2660 = vmatprep.subr.bf16.mxu0 0
    %2661 = vmatpush1.bf16.msra.mxu0 0
    %2662 = vmatprep.subr.bf16.mxu0 0
    %2663 = vmatpush1.bf16.msra.mxu0 0
    %2664 = vmatprep.subr.bf16.mxu0 0
    %2665 = vmatpush1.bf16.msra.mxu0 0
    %2666 = vmatprep.subr.bf16.mxu0 0
    %2667 = vmatpush1.bf16.msra.mxu0 0
    %2668 = vmatprep.subr.bf16.mxu0 0
    %2669 = vmatpush1.bf16.msra.mxu0 0
    %2670 = vmatprep.subr.bf16.mxu0 0
    %2671 = vmatpush1.bf16.msra.mxu0 0
    %2672 = vmatprep.subr.bf16.mxu0 0
    %2673 = vmatpush1.bf16.msra.mxu0 0
    %2674 = vmatprep.subr.bf16.mxu0 0
    %2675 = vmatpush1.bf16.msra.mxu0 0
    %2676 = vmatprep.subr.bf16.mxu0 0
    %2677 = vmatpush1.bf16.msra.mxu0 0
    %2678 = vmatprep.subr.bf16.mxu0 0
    %2679 = vmatpush1.bf16.msra.mxu0 0
    %2680 = vmatprep.subr.bf16.mxu0 0
    %2681 = vmatpush1.bf16.msra.mxu0 0
    %2682 = vmatprep.mubr.bf16.mxu0 0
    %2683 = vmatmul.mubr.bf16.gmra.mrb[0].mxu0 %v2525
    %v2684 = vpop.f32.mrb[0].mxu0
    %v2685 = vadd.f32 %v2644, %v2684
    %v2686 = vpop.f32.mrb[0].mxu0
    %v2687 = vadd.f32 %v2646, %v2686
    %v2688 = vpop.f32.mrb[0].mxu0
    %v2689 = vpop.f32.mrb[0].mxu0
    %2690 = vdwg.mxu0
    %2691 = vmatprep.subr.bf16.mxu0 %v1742
    %2692 = vmatpush1.bf16.msra.mxu0 %v1741
    %2693 = vmatprep.subr.bf16.mxu0 %v1750
    %2694 = vmatpush1.bf16.msra.mxu0 %v1749
    %2695 = vmatprep.subr.bf16.mxu0 %v1758
    %2696 = vmatpush1.bf16.msra.mxu0 %v1757
    %2697 = vmatprep.subr.bf16.mxu0 %v1766
    %2698 = vmatpush1.bf16.msra.mxu0 %v1765
    %2699 = vmatprep.subr.bf16.mxu0 %v1774
    %2700 = vmatpush1.bf16.msra.mxu0 %v1773
    %2701 = vmatprep.subr.bf16.mxu0 %v1782
    %2702 = vmatpush1.bf16.msra.mxu0 %v1781
    %2703 = vmatprep.subr.bf16.mxu0 %v1790
    %2704 = vmatpush1.bf16.msra.mxu0 %v1789
    %2705 = vmatprep.subr.bf16.mxu0 %v1798
    %2706 = vmatpush1.bf16.msra.mxu0 %v1797
    %2707 = vmatprep.subr.bf16.mxu0 %v1806
    %2708 = vmatpush1.bf16.msra.mxu0 %v1805
    %2709 = vmatprep.subr.bf16.mxu0 %v1814
    %2710 = vmatpush1.bf16.msra.mxu0 %v1813
    %2711 = vmatprep.subr.bf16.mxu0 %v1822
    %2712 = vmatpush1.bf16.msra.mxu0 %v1821
    %2713 = vmatprep.subr.bf16.mxu0 %v1830
    %2714 = vmatpush1.bf16.msra.mxu0 %v1829
    %2715 = vmatprep.subr.bf16.mxu0 %v1838
    %2716 = vmatpush1.bf16.msra.mxu0 %v1837
    %2717 = vmatprep.subr.bf16.mxu0 %v1846
    %2718 = vmatpush1.bf16.msra.mxu0 %v1845
    %2719 = vmatprep.subr.bf16.mxu0 %v1854
    %2720 = vmatpush1.bf16.msra.mxu0 %v1853
    %2721 = vmatprep.subr.bf16.mxu0 %v1862
    %2722 = vmatpush1.bf16.msra.mxu0 %v1861
    %2723 = vmatprep.mubr.bf16.mxu0 %v123
    %2724 = vmatmul.mubr.bf16.gmra.mrb[0].mxu0 %v122
    %v2725 = vpop.f32.mrb[0].mxu0
    %v2726 = vadd.f32 %v534, %v2725
    %v2727 = vpop.f32.mrb[0].mxu0
    %v2728 = vadd.f32 %v538, %v2727
    %v2729 = vpop.f32.mrb[0].mxu0
    %v2730 = vpop.f32.mrb[0].mxu0
    %2731 = vdwg.mxu0
    %2732 = vmatprep.subr.bf16.mxu0 %v1870
    %2733 = vmatpush1.bf16.msra.mxu0 %v1869
    %2734 = vmatprep.subr.bf16.mxu0 %v1878
    %2735 = vmatpush1.bf16.msra.mxu0 %v1877
    %2736 = vmatprep.subr.bf16.mxu0 %v1886
    %2737 = vmatpush1.bf16.msra.mxu0 %v1885
    %2738 = vmatprep.subr.bf16.mxu0 %v1894
    %2739 = vmatpush1.bf16.msra.mxu0 %v1893
    %2740 = vmatprep.subr.bf16.mxu0 %v1902
    %2741 = vmatpush1.bf16.msra.mxu0 %v1901
    %2742 = vmatprep.subr.bf16.mxu0 %v1910
    %2743 = vmatpush1.bf16.msra.mxu0 %v1909
    %2744 = vmatprep.subr.bf16.mxu0 %v1918
    %2745 = vmatpush1.bf16.msra.mxu0 %v1917
    %2746 = vmatprep.subr.bf16.mxu0 %v1926
    %2747 = vmatpush1.bf16.msra.mxu0 %v1925
    %2748 = vmatprep.subr.bf16.mxu0 %v1934
    %2749 = vmatpush1.bf16.msra.mxu0 %v1933
    %2750 = vmatprep.subr.bf16.mxu0 %v1942
    %2751 = vmatpush1.bf16.msra.mxu0 %v1941
    %2752 = vmatprep.subr.bf16.mxu0 %v1950
    %2753 = vmatpush1.bf16.msra.mxu0 %v1949
    %2754 = vmatprep.subr.bf16.mxu0 %v1958
    %2755 = vmatpush1.bf16.msra.mxu0 %v1957
    %2756 = vmatprep.subr.bf16.mxu0 %v1966
    %2757 = vmatpush1.bf16.msra.mxu0 %v1965
    %2758 = vmatprep.subr.bf16.mxu0 %v1974
    %2759 = vmatpush1.bf16.msra.mxu0 %v1973
    %2760 = vmatprep.subr.bf16.mxu0 %v1982
    %2761 = vmatpush1.bf16.msra.mxu0 %v1981
    %2762 = vmatprep.subr.bf16.mxu0 %v1990
    %2763 = vmatpush1.bf16.msra.mxu0 %v1989
    %2764 = vmatprep.mubr.bf16.mxu0 %v125
    %2765 = vmatmul.mubr.bf16.gmra.mrb[0].mxu0 %v124
    %v2766 = vpop.f32.mrb[0].mxu0
    %v2767 = vadd.f32 %v2726, %v2766
    %v2768 = vpop.f32.mrb[0].mxu0
    %v2769 = vadd.f32 %v2728, %v2768
    %v2770 = vpop.f32.mrb[0].mxu0
    %v2771 = vpop.f32.mrb[0].mxu0
    %2772 = vdwg.mxu0
    %2773 = vmatprep.subr.bf16.mxu0 %v1998
    %2774 = vmatpush1.bf16.msra.mxu0 %v1997
    %2775 = vmatprep.subr.bf16.mxu0 %v2006
    %2776 = vmatpush1.bf16.msra.mxu0 %v2005
    %2777 = vmatprep.subr.bf16.mxu0 %v2014
    %2778 = vmatpush1.bf16.msra.mxu0 %v2013
    %2779 = vmatprep.subr.bf16.mxu0 %v2022
    %2780 = vmatpush1.bf16.msra.mxu0 %v2021
    %2781 = vmatprep.subr.bf16.mxu0 %v2030
    %2782 = vmatpush1.bf16.msra.mxu0 %v2029
    %2783 = vmatprep.subr.bf16.mxu0 %v2038
    %2784 = vmatpush1.bf16.msra.mxu0 %v2037
    %2785 = vmatprep.subr.bf16.mxu0 %v2046
    %2786 = vmatpush1.bf16.msra.mxu0 %v2045
    %2787 = vmatprep.subr.bf16.mxu0 %v2054
    %2788 = vmatpush1.bf16.msra.mxu0 %v2053
    %2789 = vmatprep.subr.bf16.mxu0 %v2062
    %2790 = vmatpush1.bf16.msra.mxu0 %v2061
    %2791 = vmatprep.subr.bf16.mxu0 %v2070
    %2792 = vmatpush1.bf16.msra.mxu0 %v2069
    %2793 = vmatprep.subr.bf16.mxu0 %v2078
    %2794 = vmatpush1.bf16.msra.mxu0 %v2077
    %2795 = vmatprep.subr.bf16.mxu0 %v2086
    %2796 = vmatpush1.bf16.msra.mxu0 %v2085
    %2797 = vmatprep.subr.bf16.mxu0 %v2094
    %2798 = vmatpush1.bf16.msra.mxu0 %v2093
    %2799 = vmatprep.subr.bf16.mxu0 %v2102
    %2800 = vmatpush1.bf16.msra.mxu0 %v2101
    %2801 = vmatprep.subr.bf16.mxu0 %v2110
    %2802 = vmatpush1.bf16.msra.mxu0 %v2109
    %2803 = vmatprep.subr.bf16.mxu0 %v2118
    %2804 = vmatpush1.bf16.msra.mxu0 %v2117
    %2805 = vmatprep.mubr.bf16.mxu0 %v127
    %2806 = vmatmul.mubr.bf16.gmra.mrb[0].mxu0 %v126
    %v2807 = vpop.f32.mrb[0].mxu0
    %v2808 = vadd.f32 %v2767, %v2807
    %v2809 = vpop.f32.mrb[0].mxu0
    %v2810 = vadd.f32 %v2769, %v2809
    %v2811 = vpop.f32.mrb[0].mxu0
    %v2812 = vpop.f32.mrb[0].mxu0
    %2813 = vdwg.mxu0
    %2814 = vmatprep.subr.bf16.mxu0 %v2126
    %2815 = vmatpush1.bf16.msra.mxu0 %v2125
    %2816 = vmatprep.subr.bf16.mxu0 0
    %2817 = vmatpush1.bf16.msra.mxu0 0
    %2818 = vmatprep.subr.bf16.mxu0 0
    %2819 = vmatpush1.bf16.msra.mxu0 0
    %2820 = vmatprep.subr.bf16.mxu0 0
    %2821 = vmatpush1.bf16.msra.mxu0 0
    %2822 = vmatprep.subr.bf16.mxu0 0
    %2823 = vmatpush1.bf16.msra.mxu0 0
    %2824 = vmatprep.subr.bf16.mxu0 0
    %2825 = vmatpush1.bf16.msra.mxu0 0
    %2826 = vmatprep.subr.bf16.mxu0 0
    %2827 = vmatpush1.bf16.msra.mxu0 0
    %2828 = vmatprep.subr.bf16.mxu0 0
    %2829 = vmatpush1.bf16.msra.mxu0 0
    %2830 = vmatprep.subr.bf16.mxu0 0
    %2831 = vmatpush1.bf16.msra.mxu0 0
    %2832 = vmatprep.subr.bf16.mxu0 0
    %2833 = vmatpush1.bf16.msra.mxu0 0
    %2834 = vmatprep.subr.bf16.mxu0 0
    %2835 = vmatpush1.bf16.msra.mxu0 0
    %2836 = vmatprep.subr.bf16.mxu0 0
    %2837 = vmatpush1.bf16.msra.mxu0 0
    %2838 = vmatprep.subr.bf16.mxu0 0
    %2839 = vmatpush1.bf16.msra.mxu0 0
    %2840 = vmatprep.subr.bf16.mxu0 0
    %2841 = vmatpush1.bf16.msra.mxu0 0
    %2842 = vmatprep.subr.bf16.mxu0 0
    %2843 = vmatpush1.bf16.msra.mxu0 0
    %2844 = vmatprep.subr.bf16.mxu0 0
    %2845 = vmatpush1.bf16.msra.mxu0 0
    %2846 = vmatprep.mubr.bf16.mxu0 0
    %2847 = vmatmul.mubr.bf16.gmra.mrb[0].mxu0 %v2525
    %v2848 = vpop.f32.mrb[0].mxu0
    %v2849 = vadd.f32 %v2808, %v2848
    %v2850 = vpop.f32.mrb[0].mxu0
    %v2851 = vadd.f32 %v2810, %v2850
    %v2852 = vpop.f32.mrb[0].mxu0
    %v2853 = vpop.f32.mrb[0].mxu0
    %2854 = vdwg.mxu0
    %2855 = vmatprep.subr.bf16.mxu0 %v1744
    %2856 = vmatpush1.bf16.msra.mxu0 %v1743
    %2857 = vmatprep.subr.bf16.mxu0 %v1752
    %2858 = vmatpush1.bf16.msra.mxu0 %v1751
    %2859 = vmatprep.subr.bf16.mxu0 %v1760
    %2860 = vmatpush1.bf16.msra.mxu0 %v1759
    %2861 = vmatprep.subr.bf16.mxu0 %v1768
    %2862 = vmatpush1.bf16.msra.mxu0 %v1767
    %2863 = vmatprep.subr.bf16.mxu0 %v1776
    %2864 = vmatpush1.bf16.msra.mxu0 %v1775
    %2865 = vmatprep.subr.bf16.mxu0 %v1784
    %2866 = vmatpush1.bf16.msra.mxu0 %v1783
    %2867 = vmatprep.subr.bf16.mxu0 %v1792
    %2868 = vmatpush1.bf16.msra.mxu0 %v1791
    %2869 = vmatprep.subr.bf16.mxu0 %v1800
    %2870 = vmatpush1.bf16.msra.mxu0 %v1799
    %2871 = vmatprep.subr.bf16.mxu0 %v1808
    %2872 = vmatpush1.bf16.msra.mxu0 %v1807
    %2873 = vmatprep.subr.bf16.mxu0 %v1816
    %2874 = vmatpush1.bf16.msra.mxu0 %v1815
    %2875 = vmatprep.subr.bf16.mxu0 %v1824
    %2876 = vmatpush1.bf16.msra.mxu0 %v1823
    %2877 = vmatprep.subr.bf16.mxu0 %v1832
    %2878 = vmatpush1.bf16.msra.mxu0 %v1831
    %2879 = vmatprep.subr.bf16.mxu0 %v1840
    %2880 = vmatpush1.bf16.msra.mxu0 %v1839
    %2881 = vmatprep.subr.bf16.mxu0 %v1848
    %2882 = vmatpush1.bf16.msra.mxu0 %v1847
    %2883 = vmatprep.subr.bf16.mxu0 %v1856
    %2884 = vmatpush1.bf16.msra.mxu0 %v1855
    %2885 = vmatprep.subr.bf16.mxu0 %v1864
    %2886 = vmatpush1.bf16.msra.mxu0 %v1863
    %2887 = vmatprep.mubr.bf16.mxu0 %v123
    %2888 = vmatmul.mubr.bf16.gmra.mrb[0].mxu0 %v122
    %v2889 = vpop.f32.mrb[0].mxu0
    %v2890 = vadd.f32 %v542, %v2889
    %v2891 = vpop.f32.mrb[0].mxu0
    %v2892 = vadd.f32 %v546, %v2891
    %v2893 = vpop.f32.mrb[0].mxu0
    %v2894 = vpop.f32.mrb[0].mxu0
    %2895 = vdwg.mxu0
    %2896 = vmatprep.subr.bf16.mxu0 %v1872
    %2897 = vmatpush1.bf16.msra.mxu0 %v1871
    %2898 = vmatprep.subr.bf16.mxu0 %v1880
    %2899 = vmatpush1.bf16.msra.mxu0 %v1879
    %2900 = vmatprep.subr.bf16.mxu0 %v1888
    %2901 = vmatpush1.bf16.msra.mxu0 %v1887
    %2902 = vmatprep.subr.bf16.mxu0 %v1896
    %2903 = vmatpush1.bf16.msra.mxu0 %v1895
    %2904 = vmatprep.subr.bf16.mxu0 %v1904
    %2905 = vmatpush1.bf16.msra.mxu0 %v1903
    %2906 = vmatprep.subr.bf16.mxu0 %v1912
    %2907 = vmatpush1.bf16.msra.mxu0 %v1911
    %2908 = vmatprep.subr.bf16.mxu0 %v1920
    %2909 = vmatpush1.bf16.msra.mxu0 %v1919
    %2910 = vmatprep.subr.bf16.mxu0 %v1928
    %2911 = vmatpush1.bf16.msra.mxu0 %v1927
    %2912 = vmatprep.subr.bf16.mxu0 %v1936
    %2913 = vmatpush1.bf16.msra.mxu0 %v1935
    %2914 = vmatprep.subr.bf16.mxu0 %v1944
    %2915 = vmatpush1.bf16.msra.mxu0 %v1943
    %2916 = vmatprep.subr.bf16.mxu0 %v1952
    %2917 = vmatpush1.bf16.msra.mxu0 %v1951
    %2918 = vmatprep.subr.bf16.mxu0 %v1960
    %2919 = vmatpush1.bf16.msra.mxu0 %v1959
    %2920 = vmatprep.subr.bf16.mxu0 %v1968
    %2921 = vmatpush1.bf16.msra.mxu0 %v1967
    %2922 = vmatprep.subr.bf16.mxu0 %v1976
    %2923 = vmatpush1.bf16.msra.mxu0 %v1975
    %2924 = vmatprep.subr.bf16.mxu0 %v1984
    %2925 = vmatpush1.bf16.msra.mxu0 %v1983
    %2926 = vmatprep.subr.bf16.mxu0 %v1992
    %2927 = vmatpush1.bf16.msra.mxu0 %v1991
    %2928 = vmatprep.mubr.bf16.mxu0 %v125
    %2929 = vmatmul.mubr.bf16.gmra.mrb[0].mxu0 %v124
    %v2930 = vpop.f32.mrb[0].mxu0
    %v2931 = vadd.f32 %v2890, %v2930
    %v2932 = vpop.f32.mrb[0].mxu0
    %v2933 = vadd.f32 %v2892, %v2932
    %v2934 = vpop.f32.mrb[0].mxu0
    %v2935 = vpop.f32.mrb[0].mxu0
    %2936 = vdwg.mxu0
    %2937 = vmatprep.subr.bf16.mxu0 %v2000
    %2938 = vmatpush1.bf16.msra.mxu0 %v1999
    %2939 = vmatprep.subr.bf16.mxu0 %v2008
    %2940 = vmatpush1.bf16.msra.mxu0 %v2007
    %2941 = vmatprep.subr.bf16.mxu0 %v2016
    %2942 = vmatpush1.bf16.msra.mxu0 %v2015
    %2943 = vmatprep.subr.bf16.mxu0 %v2024
    %2944 = vmatpush1.bf16.msra.mxu0 %v2023
    %2945 = vmatprep.subr.bf16.mxu0 %v2032
    %2946 = vmatpush1.bf16.msra.mxu0 %v2031
    %2947 = vmatprep.subr.bf16.mxu0 %v2040
    %2948 = vmatpush1.bf16.msra.mxu0 %v2039
    %2949 = vmatprep.subr.bf16.mxu0 %v2048
    %2950 = vmatpush1.bf16.msra.mxu0 %v2047
    %2951 = vmatprep.subr.bf16.mxu0 %v2056
    %2952 = vmatpush1.bf16.msra.mxu0 %v2055
    %2953 = vmatprep.subr.bf16.mxu0 %v2064
    %2954 = vmatpush1.bf16.msra.mxu0 %v2063
    %2955 = vmatprep.subr.bf16.mxu0 %v2072
    %2956 = vmatpush1.bf16.msra.mxu0 %v2071
    %2957 = vmatprep.subr.bf16.mxu0 %v2080
    %2958 = vmatpush1.bf16.msra.mxu0 %v2079
    %2959 = vmatprep.subr.bf16.mxu0 %v2088
    %2960 = vmatpush1.bf16.msra.mxu0 %v2087
    %2961 = vmatprep.subr.bf16.mxu0 %v2096
    %2962 = vmatpush1.bf16.msra.mxu0 %v2095
    %2963 = vmatprep.subr.bf16.mxu0 %v2104
    %2964 = vmatpush1.bf16.msra.mxu0 %v2103
    %2965 = vmatprep.subr.bf16.mxu0 %v2112
    %2966 = vmatpush1.bf16.msra.mxu0 %v2111
    %2967 = vmatprep.subr.bf16.mxu0 %v2120
    %2968 = vmatpush1.bf16.msra.mxu0 %v2119
    %2969 = vmatprep.mubr.bf16.mxu0 %v127
    %2970 = vmatmul.mubr.bf16.gmra.mrb[0].mxu0 %v126
    %v2971 = vpop.f32.mrb[0].mxu0
    %v2972 = vadd.f32 %v2931, %v2971
    %v2973 = vpop.f32.mrb[0].mxu0
    %v2974 = vadd.f32 %v2933, %v2973
    %v2975 = vpop.f32.mrb[0].mxu0
    %v2976 = vpop.f32.mrb[0].mxu0
    %2977 = vdwg.mxu0
    %2978 = vmatprep.subr.bf16.mxu0 %v2128
    %2979 = vmatpush1.bf16.msra.mxu0 %v2127
    %2980 = vmatprep.subr.bf16.mxu0 0
    %2981 = vmatpush1.bf16.msra.mxu0 0
    %2982 = vmatprep.subr.bf16.mxu0 0
    %2983 = vmatpush1.bf16.msra.mxu0 0
    %2984 = vmatprep.subr.bf16.mxu0 0
    %2985 = vmatpush1.bf16.msra.mxu0 0
    %2986 = vmatprep.subr.bf16.mxu0 0
    %2987 = vmatpush1.bf16.msra.mxu0 0
    %2988 = vmatprep.subr.bf16.mxu0 0
    %2989 = vmatpush1.bf16.msra.mxu0 0
    %2990 = vmatprep.subr.bf16.mxu0 0
    %2991 = vmatpush1.bf16.msra.mxu0 0
    %2992 = vmatprep.subr.bf16.mxu0 0
    %2993 = vmatpush1.bf16.msra.mxu0 0
    %2994 = vmatprep.subr.bf16.mxu0 0
    %2995 = vmatpush1.bf16.msra.mxu0 0
    %2996 = vmatprep.subr.bf16.mxu0 0
    %2997 = vmatpush1.bf16.msra.mxu0 0
    %2998 = vmatprep.subr.bf16.mxu0 0
    %2999 = vmatpush1.bf16.msra.mxu0 0
    %3000 = vmatprep.subr.bf16.mxu0 0
    %3001 = vmatpush1.bf16.msra.mxu0 0
    %3002 = vmatprep.subr.bf16.mxu0 0
    %3003 = vmatpush1.bf16.msra.mxu0 0
    %3004 = vmatprep.subr.bf16.mxu0 0
    %3005 = vmatpush1.bf16.msra.mxu0 0
    %3006 = vmatprep.subr.bf16.mxu0 0
    %3007 = vmatpush1.bf16.msra.mxu0 0
    %3008 = vmatprep.subr.bf16.mxu0 0
    %3009 = vmatpush1.bf16.msra.mxu0 0
    %3010 = vmatprep.mubr.bf16.mxu0 0
    %3011 = vmatmul.mubr.bf16.gmra.mrb[0].mxu0 %v2525
    %v3012 = vpop.f32.mrb[0].mxu0
    %v3013 = vadd.f32 %v2972, %v3012
    %v3014 = vpop.f32.mrb[0].mxu0
    %v3015 = vadd.f32 %v2974, %v3014
    %v3016 = vpop.f32.mrb[0].mxu0
    %v3017 = vpop.f32.mrb[0].mxu0
    %3018 = vdwg.mxu0
    %3019 = vmatprep.subr.bf16.mxu0 %v1746
    %3020 = vmatpush1.bf16.msra.mxu0 %v1745
    %3021 = vmatprep.subr.bf16.mxu0 %v1754
    %3022 = vmatpush1.bf16.msra.mxu0 %v1753
    %3023 = vmatprep.subr.bf16.mxu0 %v1762
    %3024 = vmatpush1.bf16.msra.mxu0 %v1761
    %3025 = vmatprep.subr.bf16.mxu0 %v1770
    %3026 = vmatpush1.bf16.msra.mxu0 %v1769
    %3027 = vmatprep.subr.bf16.mxu0 %v1778
    %3028 = vmatpush1.bf16.msra.mxu0 %v1777
    %3029 = vmatprep.subr.bf16.mxu0 %v1786
    %3030 = vmatpush1.bf16.msra.mxu0 %v1785
    %3031 = vmatprep.subr.bf16.mxu0 %v1794
    %3032 = vmatpush1.bf16.msra.mxu0 %v1793
    %3033 = vmatprep.subr.bf16.mxu0 %v1802
    %3034 = vmatpush1.bf16.msra.mxu0 %v1801
    %3035 = vmatprep.subr.bf16.mxu0 %v1810
    %3036 = vmatpush1.bf16.msra.mxu0 %v1809
    %3037 = vmatprep.subr.bf16.mxu0 %v1818
    %3038 = vmatpush1.bf16.msra.mxu0 %v1817
    %3039 = vmatprep.subr.bf16.mxu0 %v1826
    %3040 = vmatpush1.bf16.msra.mxu0 %v1825
    %3041 = vmatprep.subr.bf16.mxu0 %v1834
    %3042 = vmatpush1.bf16.msra.mxu0 %v1833
    %3043 = vmatprep.subr.bf16.mxu0 %v1842
    %3044 = vmatpush1.bf16.msra.mxu0 %v1841
    %3045 = vmatprep.subr.bf16.mxu0 %v1850
    %3046 = vmatpush1.bf16.msra.mxu0 %v1849
    %3047 = vmatprep.subr.bf16.mxu0 %v1858
    %3048 = vmatpush1.bf16.msra.mxu0 %v1857
    %3049 = vmatprep.subr.bf16.mxu0 %v1866
    %3050 = vmatpush1.bf16.msra.mxu0 %v1865
    %3051 = vmatprep.mubr.bf16.mxu0 %v123
    %3052 = vmatmul.mubr.bf16.gmra.mrb[0].mxu0 %v122
    %v3053 = vpop.f32.mrb[0].mxu0
    %v3054 = vadd.f32 %v550, %v3053
    %v3055 = vpop.f32.mrb[0].mxu0
    %v3056 = vadd.f32 %v554, %v3055
    %v3057 = vpop.f32.mrb[0].mxu0
    %v3058 = vpop.f32.mrb[0].mxu0
    %3059 = vdwg.mxu0
    %3060 = vmatprep.subr.bf16.mxu0 %v1874
    %3061 = vmatpush1.bf16.msra.mxu0 %v1873
    %3062 = vmatprep.subr.bf16.mxu0 %v1882
    %3063 = vmatpush1.bf16.msra.mxu0 %v1881
    %3064 = vmatprep.subr.bf16.mxu0 %v1890
    %3065 = vmatpush1.bf16.msra.mxu0 %v1889
    %3066 = vmatprep.subr.bf16.mxu0 %v1898
    %3067 = vmatpush1.bf16.msra.mxu0 %v1897
    %3068 = vmatprep.subr.bf16.mxu0 %v1906
    %3069 = vmatpush1.bf16.msra.mxu0 %v1905
    %3070 = vmatprep.subr.bf16.mxu0 %v1914
    %3071 = vmatpush1.bf16.msra.mxu0 %v1913
    %3072 = vmatprep.subr.bf16.mxu0 %v1922
    %3073 = vmatpush1.bf16.msra.mxu0 %v1921
    %3074 = vmatprep.subr.bf16.mxu0 %v1930
    %3075 = vmatpush1.bf16.msra.mxu0 %v1929
    %3076 = vmatprep.subr.bf16.mxu0 %v1938
    %3077 = vmatpush1.bf16.msra.mxu0 %v1937
    %3078 = vmatprep.subr.bf16.mxu0 %v1946
    %3079 = vmatpush1.bf16.msra.mxu0 %v1945
    %3080 = vmatprep.subr.bf16.mxu0 %v1954
    %3081 = vmatpush1.bf16.msra.mxu0 %v1953
    %3082 = vmatprep.subr.bf16.mxu0 %v1962
    %3083 = vmatpush1.bf16.msra.mxu0 %v1961
    %3084 = vmatprep.subr.bf16.mxu0 %v1970
    %3085 = vmatpush1.bf16.msra.mxu0 %v1969
    %3086 = vmatprep.subr.bf16.mxu0 %v1978
    %3087 = vmatpush1.bf16.msra.mxu0 %v1977
    %3088 = vmatprep.subr.bf16.mxu0 %v1986
    %3089 = vmatpush1.bf16.msra.mxu0 %v1985
    %3090 = vmatprep.subr.bf16.mxu0 %v1994
    %3091 = vmatpush1.bf16.msra.mxu0 %v1993
    %3092 = vmatprep.mubr.bf16.mxu0 %v125
    %3093 = vmatmul.mubr.bf16.gmra.mrb[0].mxu0 %v124
    %v3094 = vpop.f32.mrb[0].mxu0
    %v3095 = vadd.f32 %v3054, %v3094
    %v3096 = vpop.f32.mrb[0].mxu0
    %v3097 = vadd.f32 %v3056, %v3096
    %v3098 = vpop.f32.mrb[0].mxu0
    %v3099 = vpop.f32.mrb[0].mxu0
    %3100 = vdwg.mxu0
    %3101 = vmatprep.subr.bf16.mxu0 %v2002
    %3102 = vmatpush1.bf16.msra.mxu0 %v2001
    %3103 = vmatprep.subr.bf16.mxu0 %v2010
    %3104 = vmatpush1.bf16.msra.mxu0 %v2009
    %3105 = vmatprep.subr.bf16.mxu0 %v2018
    %3106 = vmatpush1.bf16.msra.mxu0 %v2017
    %3107 = vmatprep.subr.bf16.mxu0 %v2026
    %3108 = vmatpush1.bf16.msra.mxu0 %v2025
    %3109 = vmatprep.subr.bf16.mxu0 %v2034
    %3110 = vmatpush1.bf16.msra.mxu0 %v2033
    %3111 = vmatprep.subr.bf16.mxu0 %v2042
    %3112 = vmatpush1.bf16.msra.mxu0 %v2041
    %3113 = vmatprep.subr.bf16.mxu0 %v2050
    %3114 = vmatpush1.bf16.msra.mxu0 %v2049
    %3115 = vmatprep.subr.bf16.mxu0 %v2058
    %3116 = vmatpush1.bf16.msra.mxu0 %v2057
    %3117 = vmatprep.subr.bf16.mxu0 %v2066
    %3118 = vmatpush1.bf16.msra.mxu0 %v2065
    %3119 = vmatprep.subr.bf16.mxu0 %v2074
    %3120 = vmatpush1.bf16.msra.mxu0 %v2073
    %3121 = vmatprep.subr.bf16.mxu0 %v2082
    %3122 = vmatpush1.bf16.msra.mxu0 %v2081
    %3123 = vmatprep.subr.bf16.mxu0 %v2090
    %3124 = vmatpush1.bf16.msra.mxu0 %v2089
    %3125 = vmatprep.subr.bf16.mxu0 %v2098
    %3126 = vmatpush1.bf16.msra.mxu0 %v2097
    %3127 = vmatprep.subr.bf16.mxu0 %v2106
    %3128 = vmatpush1.bf16.msra.mxu0 %v2105
    %3129 = vmatprep.subr.bf16.mxu0 %v2114
    %3130 = vmatpush1.bf16.msra.mxu0 %v2113
    %3131 = vmatprep.subr.bf16.mxu0 %v2122
    %3132 = vmatpush1.bf16.msra.mxu0 %v2121
    %3133 = vmatprep.mubr.bf16.mxu0 %v127
    %3134 = vmatmul.mubr.bf16.gmra.mrb[0].mxu0 %v126
    %v3135 = vpop.f32.mrb[0].mxu0
    %v3136 = vadd.f32 %v3095, %v3135
    %v3137 = vpop.f32.mrb[0].mxu0
    %v3138 = vadd.f32 %v3097, %v3137
    %v3139 = vpop.f32.mrb[0].mxu0
    %v3140 = vpop.f32.mrb[0].mxu0
    %3141 = vdwg.mxu0
    %3142 = vmatprep.subr.bf16.mxu0 %v2130
    %3143 = vmatpush1.bf16.msra.mxu0 %v2129
    %3144 = vmatprep.subr.bf16.mxu0 0
    %3145 = vmatpush1.bf16.msra.mxu0 0
    %3146 = vmatprep.subr.bf16.mxu0 0
    %3147 = vmatpush1.bf16.msra.mxu0 0
    %3148 = vmatprep.subr.bf16.mxu0 0
    %3149 = vmatpush1.bf16.msra.mxu0 0
    %3150 = vmatprep.subr.bf16.mxu0 0
    %3151 = vmatpush1.bf16.msra.mxu0 0
    %3152 = vmatprep.subr.bf16.mxu0 0
    %3153 = vmatpush1.bf16.msra.mxu0 0
    %3154 = vmatprep.subr.bf16.mxu0 0
    %3155 = vmatpush1.bf16.msra.mxu0 0
    %3156 = vmatprep.subr.bf16.mxu0 0
    %3157 = vmatpush1.bf16.msra.mxu0 0
    %3158 = vmatprep.subr.bf16.mxu0 0
    %3159 = vmatpush1.bf16.msra.mxu0 0
    %3160 = vmatprep.subr.bf16.mxu0 0
    %3161 = vmatpush1.bf16.msra.mxu0 0
    %3162 = vmatprep.subr.bf16.mxu0 0
    %3163 = vmatpush1.bf16.msra.mxu0 0
    %3164 = vmatprep.subr.bf16.mxu0 0
    %3165 = vmatpush1.bf16.msra.mxu0 0
    %3166 = vmatprep.subr.bf16.mxu0 0
    %3167 = vmatpush1.bf16.msra.mxu0 0
    %3168 = vmatprep.subr.bf16.mxu0 0
    %3169 = vmatpush1.bf16.msra.mxu0 0
    %3170 = vmatprep.subr.bf16.mxu0 0
    %3171 = vmatpush1.bf16.msra.mxu0 0
    %3172 = vmatprep.subr.bf16.mxu0 0
    %3173 = vmatpush1.bf16.msra.mxu0 0
    %3174 = vmatprep.mubr.bf16.mxu0 0
    %3175 = vmatmul.mubr.bf16.gmra.mrb[0].mxu0 %v2525
    %v3176 = vpop.f32.mrb[0].mxu0
    %v3177 = vadd.f32 %v3136, %v3176
    %v3178 = vpop.f32.mrb[0].mxu0
    %v3179 = vadd.f32 %v3138, %v3178
    %v3180 = vpop.f32.mrb[0].mxu0
    %v3181 = vpop.f32.mrb[0].mxu0
    %3182 = vdwg.mxu0
    %vm3183 = vcmp.gt.f32.partialorder %v2685, 0.0
    %vm3184 = vcmp.gt.f32.partialorder %v2687, 0.0
    %vm3185 = vcmp.gt.f32.partialorder %v2849, 0.0
    %vm3186 = vcmp.gt.f32.partialorder %v2851, 0.0
    %vm3187 = vcmp.gt.f32.partialorder %v3013, 0.0
    %vm3188 = vcmp.gt.f32.partialorder %v3015, 0.0
    %vm3189 = vcmp.gt.f32.partialorder %v3177, 0.0
    %vm3190 = vcmp.gt.f32.partialorder %v3179, 0.0
    %v3191 = vmul.f32 %v2685, 0.2
    %v3192 = vmul.f32 %v2687, 0.2
    %v3193 = vmul.f32 %v2849, 0.2
    %v3194 = vmul.f32 %v2851, 0.2
    %v3195 = vmul.f32 %v3013, 0.2
    %v3196 = vmul.f32 %v3015, 0.2
    %v3197 = vmul.f32 %v3177, 0.2
    %v3198 = vmul.f32 %v3179, 0.2
    %v3199 = vsel %vm3183, %v2685, %v3191
    %v3200 = vsel %vm3184, %v2687, %v3192
    %v3201 = vsel %vm3185, %v2849, %v3193
    %v3202 = vsel %vm3186, %v2851, %v3194
    %v3203 = vsel %vm3187, %v3013, %v3195
    %v3204 = vsel %vm3188, %v3015, %v3196
    %v3205 = vsel %vm3189, %v3177, %v3197
    %v3206 = vsel %vm3190, %v3179, %v3198
    %v3207 = vpack.c.bf16 %v3199, %v3199
    %v3208 = vpack.c.bf16 %v3200, %v3200
    %v3209 = vpack.c.bf16 %v3201, %v3201
    %v3210 = vpack.c.bf16 %v3202, %v3202
    %v3211 = vpack.c.bf16 %v3203, %v3203
    %v3212 = vpack.c.bf16 %v3204, %v3204
    %v3213 = vpack.c.bf16 %v3205, %v3205
    %v3214 = vpack.c.bf16 %v3206, %v3206
    %v3215 = vld [vmem:[#allocation8] sm:$0xff]
    %v3216 = vld [vmem:[#allocation8 + $0x8] sm:$0xff]
    %v3217 = vld [vmem:[#allocation8 + $0x10] sm:$0xff]
    %v3218 = vld [vmem:[#allocation8 + $0x18] sm:$0xff]
    %v3219 = vld [vmem:[#allocation8 + $0x20] sm:$0xff]
    %v3220 = vld [vmem:[#allocation8 + $0x28] sm:$0xff]
    %v3221 = vld [vmem:[#allocation8 + $0x30] sm:$0xff]
    %v3222 = vld [vmem:[#allocation8 + $0x38] sm:$0xff]
    %v3223 = vld [vmem:[#allocation8 + $0x40] sm:$0xff]
    %v3224 = vld [vmem:[#allocation8 + $0x48] sm:$0xff]
    %v3225 = vld [vmem:[#allocation8 + $0x50] sm:$0xff]
    %v3226 = vld [vmem:[#allocation8 + $0x58] sm:$0xff]
    %v3227 = vld [vmem:[#allocation8 + $0x60] sm:$0xff]
    %v3228 = vld [vmem:[#allocation8 + $0x68] sm:$0xff]
    %v3229 = vld [vmem:[#allocation8 + $0x70] sm:$0xff]
    %v3230 = vld [vmem:[#allocation8 + $0x78] sm:$0xff]
    %v3231 = vld [vmem:[#allocation8 + $0x80] sm:$0xff]
    %v3232 = vld [vmem:[#allocation8 + $0x88] sm:$0xff]
    %v3233 = vld [vmem:[#allocation8 + $0x90] sm:$0xff]
    %v3234 = vld [vmem:[#allocation8 + $0x98] sm:$0xff]
    %v3235 = vld [vmem:[#allocation8 + $0xa0] sm:$0xff]
    %v3236 = vld [vmem:[#allocation8 + $0xa8] sm:$0xff]
    %v3237 = vld [vmem:[#allocation8 + $0xb0] sm:$0xff]
    %v3238 = vld [vmem:[#allocation8 + $0xb8] sm:$0xff]
    %v3239 = vld [vmem:[#allocation8 + $0xc0] sm:$0xff]
    %v3240 = vld [vmem:[#allocation8 + $0xc8] sm:$0xff]
    %v3241 = vld [vmem:[#allocation8 + $0xd0] sm:$0xff]
    %v3242 = vld [vmem:[#allocation8 + $0xd8] sm:$0xff]
    %v3243 = vld [vmem:[#allocation8 + $0xe0] sm:$0xff]
    %v3244 = vld [vmem:[#allocation8 + $0xe8] sm:$0xff]
    %v3245 = vld [vmem:[#allocation8 + $0xf0] sm:$0xff]
    %v3246 = vld [vmem:[#allocation8 + $0xf8] sm:$0xff]
    %v3247 = vld [vmem:[#allocation8 + $0x100] sm:$0xff]
    %v3248 = vld [vmem:[#allocation8 + $0x108] sm:$0xff]
    %v3249 = vld [vmem:[#allocation8 + $0x110] sm:$0xff]
    %v3250 = vld [vmem:[#allocation8 + $0x118] sm:$0xff]
    %v3251 = vld [vmem:[#allocation8 + $0x120] sm:$0xff]
    %v3252 = vld [vmem:[#allocation8 + $0x128] sm:$0xff]
    %v3253 = vld [vmem:[#allocation8 + $0x130] sm:$0xff]
    %v3254 = vld [vmem:[#allocation8 + $0x138] sm:$0xff]
    %v3255 = vld [vmem:[#allocation8 + $0x140] sm:$0xff]
    %v3256 = vld [vmem:[#allocation8 + $0x148] sm:$0xff]
    %v3257 = vld [vmem:[#allocation8 + $0x150] sm:$0xff]
    %v3258 = vld [vmem:[#allocation8 + $0x158] sm:$0xff]
    %v3259 = vld [vmem:[#allocation8 + $0x160] sm:$0xff]
    %v3260 = vld [vmem:[#allocation8 + $0x168] sm:$0xff]
    %v3261 = vld [vmem:[#allocation8 + $0x170] sm:$0xff]
    %v3262 = vld [vmem:[#allocation8 + $0x178] sm:$0xff]
    %v3263 = vld [vmem:[#allocation8 + $0x180] sm:$0xff]
    %v3264 = vld [vmem:[#allocation8 + $0x188] sm:$0xff]
    %v3265 = vld [vmem:[#allocation8 + $0x190] sm:$0xff]
    %v3266 = vld [vmem:[#allocation8 + $0x198] sm:$0xff]
    %v3267 = vld [vmem:[#allocation8 + $0x1a0] sm:$0xff]
    %v3268 = vld [vmem:[#allocation8 + $0x1a8] sm:$0xff]
    %v3269 = vld [vmem:[#allocation8 + $0x1b0] sm:$0xff]
    %v3270 = vld [vmem:[#allocation8 + $0x1b8] sm:$0xff]
    %v3271 = vld [vmem:[#allocation8 + $0x1c0] sm:$0xff]
    %v3272 = vld [vmem:[#allocation8 + $0x1c8] sm:$0xff]
    %v3273 = vld [vmem:[#allocation8 + $0x1d0] sm:$0xff]
    %v3274 = vld [vmem:[#allocation8 + $0x1d8] sm:$0xff]
    %v3275 = vld [vmem:[#allocation8 + $0x1e0] sm:$0xff]
    %v3276 = vld [vmem:[#allocation8 + $0x1e8] sm:$0xff]
    %v3277 = vld [vmem:[#allocation8 + $0x1f0] sm:$0xff]
    %v3278 = vld [vmem:[#allocation8 + $0x1f8] sm:$0xff]
    %v3279 = vld [vmem:[#allocation8 + $0x200] sm:$0xff]
    %v3280 = vld [vmem:[#allocation8 + $0x208] sm:$0xff]
    %v3281 = vld [vmem:[#allocation8 + $0x210] sm:$0xff]
    %v3282 = vld [vmem:[#allocation8 + $0x218] sm:$0xff]
    %v3283 = vld [vmem:[#allocation8 + $0x220] sm:$0xff]
    %v3284 = vld [vmem:[#allocation8 + $0x228] sm:$0xff]
    %v3285 = vld [vmem:[#allocation8 + $0x230] sm:$0xff]
    %v3286 = vld [vmem:[#allocation8 + $0x238] sm:$0xff]
    %v3287 = vld [vmem:[#allocation8 + $0x240] sm:$0xff]
    %v3288 = vld [vmem:[#allocation8 + $0x248] sm:$0xff]
    %v3289 = vld [vmem:[#allocation8 + $0x250] sm:$0xff]
    %v3290 = vld [vmem:[#allocation8 + $0x258] sm:$0xff]
    %v3291 = vld [vmem:[#allocation8 + $0x260] sm:$0xff]
    %v3292 = vld [vmem:[#allocation8 + $0x268] sm:$0xff]
    %v3293 = vld [vmem:[#allocation8 + $0x270] sm:$0xff]
    %v3294 = vld [vmem:[#allocation8 + $0x278] sm:$0xff]
    %v3295 = vld [vmem:[#allocation8 + $0x280] sm:$0xff]
    %v3296 = vld [vmem:[#allocation8 + $0x288] sm:$0xff]
    %v3297 = vld [vmem:[#allocation8 + $0x290] sm:$0xff]
    %v3298 = vld [vmem:[#allocation8 + $0x298] sm:$0xff]
    %v3299 = vld [vmem:[#allocation8 + $0x2a0] sm:$0xff]
    %v3300 = vld [vmem:[#allocation8 + $0x2a8] sm:$0xff]
    %v3301 = vld [vmem:[#allocation8 + $0x2b0] sm:$0xff]
    %v3302 = vld [vmem:[#allocation8 + $0x2b8] sm:$0xff]
    %v3303 = vld [vmem:[#allocation8 + $0x2c0] sm:$0xff]
    %v3304 = vld [vmem:[#allocation8 + $0x2c8] sm:$0xff]
    %v3305 = vld [vmem:[#allocation8 + $0x2d0] sm:$0xff]
    %v3306 = vld [vmem:[#allocation8 + $0x2d8] sm:$0xff]
    %v3307 = vld [vmem:[#allocation8 + $0x2e0] sm:$0xff]
    %v3308 = vld [vmem:[#allocation8 + $0x2e8] sm:$0xff]
    %v3309 = vld [vmem:[#allocation8 + $0x2f0] sm:$0xff]
    %v3310 = vld [vmem:[#allocation8 + $0x2f8] sm:$0xff]
    %v3311 = vld [vmem:[#allocation8 + $0x300] sm:$0xff]
    %v3312 = vld [vmem:[#allocation8 + $0x308] sm:$0xff]
    %v3313 = vld [vmem:[#allocation8 + $0x310] sm:$0xff]
    %v3314 = vld [vmem:[#allocation8 + $0x318] sm:$0xff]
    %v3315 = vld [vmem:[#allocation8 + $0x320] sm:$0xff]
    %v3316 = vld [vmem:[#allocation8 + $0x328] sm:$0xff]
    %v3317 = vld [vmem:[#allocation8 + $0x330] sm:$0xff]
    %v3318 = vld [vmem:[#allocation8 + $0x338] sm:$0xff]
    %v3319 = vld [vmem:[#allocation8 + $0x340] sm:$0xff]
    %v3320 = vld [vmem:[#allocation8 + $0x348] sm:$0xff]
    %v3321 = vld [vmem:[#allocation8 + $0x350] sm:$0xff]
    %v3322 = vld [vmem:[#allocation8 + $0x358] sm:$0xff]
    %v3323 = vld [vmem:[#allocation8 + $0x360] sm:$0xff]
    %v3324 = vld [vmem:[#allocation8 + $0x368] sm:$0xff]
    %v3325 = vld [vmem:[#allocation8 + $0x370] sm:$0xff]
    %v3326 = vld [vmem:[#allocation8 + $0x378] sm:$0xff]
    %v3327 = vld [vmem:[#allocation8 + $0x380] sm:$0xff]
    %v3328 = vld [vmem:[#allocation8 + $0x388] sm:$0xff]
    %v3329 = vld [vmem:[#allocation8 + $0x390] sm:$0xff]
    %v3330 = vld [vmem:[#allocation8 + $0x398] sm:$0xff]
    %v3331 = vld [vmem:[#allocation8 + $0x3a0] sm:$0xff]
    %v3332 = vld [vmem:[#allocation8 + $0x3a8] sm:$0xff]
    %v3333 = vld [vmem:[#allocation8 + $0x3b0] sm:$0xff]
    %v3334 = vld [vmem:[#allocation8 + $0x3b8] sm:$0xff]
    %v3335 = vld [vmem:[#allocation8 + $0x3c0] sm:$0xff]
    %v3336 = vld [vmem:[#allocation8 + $0x3c8] sm:$0xff]
    %v3337 = vld [vmem:[#allocation8 + $0x3d0] sm:$0xff]
    %v3338 = vld [vmem:[#allocation8 + $0x3d8] sm:$0xff]
    %v3339 = vld [vmem:[#allocation8 + $0x3e0] sm:$0xff]
    %v3340 = vld [vmem:[#allocation8 + $0x3e8] sm:$0xff]
    %v3341 = vld [vmem:[#allocation8 + $0x3f0] sm:$0xff]
    %v3342 = vld [vmem:[#allocation8 + $0x3f8] sm:$0xff]
    %v3343 = vld [vmem:[#allocation8 + $0x400] sm:$0xff]
    %v3344 = vld [vmem:[#allocation8 + $0x408] sm:$0xff]
    %v3345 = vld [vmem:[#allocation8 + $0x410] sm:$0xff]
    %v3346 = vld [vmem:[#allocation8 + $0x418] sm:$0xff]
    %v3347 = vld [vmem:[#allocation8 + $0x420] sm:$0xff]
    %v3348 = vld [vmem:[#allocation8 + $0x428] sm:$0xff]
    %v3349 = vld [vmem:[#allocation8 + $0x430] sm:$0xff]
    %v3350 = vld [vmem:[#allocation8 + $0x438] sm:$0xff]
    %v3351 = vld [vmem:[#allocation8 + $0x440] sm:$0xff]
    %v3352 = vld [vmem:[#allocation8 + $0x448] sm:$0xff]
    %v3353 = vld [vmem:[#allocation8 + $0x450] sm:$0xff]
    %v3354 = vld [vmem:[#allocation8 + $0x458] sm:$0xff]
    %v3355 = vld [vmem:[#allocation8 + $0x460] sm:$0xff]
    %v3356 = vld [vmem:[#allocation8 + $0x468] sm:$0xff]
    %v3357 = vld [vmem:[#allocation8 + $0x470] sm:$0xff]
    %v3358 = vld [vmem:[#allocation8 + $0x478] sm:$0xff]
    %v3359 = vld [vmem:[#allocation8 + $0x480] sm:$0xff]
    %v3360 = vld [vmem:[#allocation8 + $0x488] sm:$0xff]
    %v3361 = vld [vmem:[#allocation8 + $0x490] sm:$0xff]
    %v3362 = vld [vmem:[#allocation8 + $0x498] sm:$0xff]
    %v3363 = vld [vmem:[#allocation8 + $0x4a0] sm:$0xff]
    %v3364 = vld [vmem:[#allocation8 + $0x4a8] sm:$0xff]
    %v3365 = vld [vmem:[#allocation8 + $0x4b0] sm:$0xff]
    %v3366 = vld [vmem:[#allocation8 + $0x4b8] sm:$0xff]
    %v3367 = vld [vmem:[#allocation8 + $0x4c0] sm:$0xff]
    %v3368 = vld [vmem:[#allocation8 + $0x4c8] sm:$0xff]
    %v3369 = vld [vmem:[#allocation8 + $0x4d0] sm:$0xff]
    %v3370 = vld [vmem:[#allocation8 + $0x4d8] sm:$0xff]
    %v3371 = vld [vmem:[#allocation8 + $0x4e0] sm:$0xff]
    %v3372 = vld [vmem:[#allocation8 + $0x4e8] sm:$0xff]
    %v3373 = vld [vmem:[#allocation8 + $0x4f0] sm:$0xff]
    %v3374 = vld [vmem:[#allocation8 + $0x4f8] sm:$0xff]
    %v3375 = vld [vmem:[#allocation8 + $0x500] sm:$0xff]
    %v3376 = vld [vmem:[#allocation8 + $0x508] sm:$0xff]
    %v3377 = vld [vmem:[#allocation8 + $0x510] sm:$0xff]
    %v3378 = vld [vmem:[#allocation8 + $0x518] sm:$0xff]
    %v3379 = vld [vmem:[#allocation8 + $0x520] sm:$0xff]
    %v3380 = vld [vmem:[#allocation8 + $0x528] sm:$0xff]
    %v3381 = vld [vmem:[#allocation8 + $0x530] sm:$0xff]
    %v3382 = vld [vmem:[#allocation8 + $0x538] sm:$0xff]
    %v3383 = vld [vmem:[#allocation8 + $0x540] sm:$0xff]
    %v3384 = vld [vmem:[#allocation8 + $0x548] sm:$0xff]
    %v3385 = vld [vmem:[#allocation8 + $0x550] sm:$0xff]
    %v3386 = vld [vmem:[#allocation8 + $0x558] sm:$0xff]
    %v3387 = vld [vmem:[#allocation8 + $0x560] sm:$0xff]
    %v3388 = vld [vmem:[#allocation8 + $0x568] sm:$0xff]
    %v3389 = vld [vmem:[#allocation8 + $0x570] sm:$0xff]
    %v3390 = vld [vmem:[#allocation8 + $0x578] sm:$0xff]
    %v3391 = vld [vmem:[#allocation8 + $0x580] sm:$0xff]
    %v3392 = vld [vmem:[#allocation8 + $0x588] sm:$0xff]
    %v3393 = vld [vmem:[#allocation8 + $0x590] sm:$0xff]
    %v3394 = vld [vmem:[#allocation8 + $0x598] sm:$0xff]
    %v3395 = vld [vmem:[#allocation8 + $0x5a0] sm:$0xff]
    %v3396 = vld [vmem:[#allocation8 + $0x5a8] sm:$0xff]
    %v3397 = vld [vmem:[#allocation8 + $0x5b0] sm:$0xff]
    %v3398 = vld [vmem:[#allocation8 + $0x5b8] sm:$0xff]
    %v3399 = vld [vmem:[#allocation8 + $0x5c0] sm:$0xff]
    %v3400 = vld [vmem:[#allocation8 + $0x5c8] sm:$0xff]
    %v3401 = vld [vmem:[#allocation8 + $0x5d0] sm:$0xff]
    %v3402 = vld [vmem:[#allocation8 + $0x5d8] sm:$0xff]
    %v3403 = vld [vmem:[#allocation8 + $0x5e0] sm:$0xff]
    %v3404 = vld [vmem:[#allocation8 + $0x5e8] sm:$0xff]
    %v3405 = vld [vmem:[#allocation8 + $0x5f0] sm:$0xff]
    %v3406 = vld [vmem:[#allocation8 + $0x5f8] sm:$0xff]
    %v3407 = vld [vmem:[#allocation8 + $0x600] sm:$0xff]
    %v3408 = vld [vmem:[#allocation8 + $0x608] sm:$0xff]
    %v3409 = vld [vmem:[#allocation8 + $0x610] sm:$0xff]
    %v3410 = vld [vmem:[#allocation8 + $0x618] sm:$0xff]
    %v3411 = vld [vmem:[#allocation8 + $0x620] sm:$0xff]
    %v3412 = vld [vmem:[#allocation8 + $0x628] sm:$0xff]
    %v3413 = vld [vmem:[#allocation8 + $0x630] sm:$0xff]
    %v3414 = vld [vmem:[#allocation8 + $0x638] sm:$0xff]
    %v3415 = vld [vmem:[#allocation8 + $0x640] sm:$0xff]
    %v3416 = vld [vmem:[#allocation8 + $0x648] sm:$0xff]
    %v3417 = vld [vmem:[#allocation8 + $0x650] sm:$0xff]
    %v3418 = vld [vmem:[#allocation8 + $0x658] sm:$0xff]
    %v3419 = vld [vmem:[#allocation8 + $0x660] sm:$0xff]
    %v3420 = vld [vmem:[#allocation8 + $0x668] sm:$0xff]
    %v3421 = vld [vmem:[#allocation8 + $0x670] sm:$0xff]
    %v3422 = vld [vmem:[#allocation8 + $0x678] sm:$0xff]
    %v3423 = vld [vmem:[#allocation8 + $0x680] sm:$0xff]
    %v3424 = vld [vmem:[#allocation8 + $0x688] sm:$0xff]
    %v3425 = vld [vmem:[#allocation8 + $0x690] sm:$0xff]
    %v3426 = vld [vmem:[#allocation8 + $0x698] sm:$0xff]
    %v3427 = vld [vmem:[#allocation8 + $0x6a0] sm:$0xff]
    %v3428 = vld [vmem:[#allocation8 + $0x6a8] sm:$0xff]
    %v3429 = vld [vmem:[#allocation8 + $0x6b0] sm:$0xff]
    %v3430 = vld [vmem:[#allocation8 + $0x6b8] sm:$0xff]
    %v3431 = vld [vmem:[#allocation8 + $0x6c0] sm:$0xff]
    %v3432 = vld [vmem:[#allocation8 + $0x6c8] sm:$0xff]
    %v3433 = vld [vmem:[#allocation8 + $0x6d0] sm:$0xff]
    %v3434 = vld [vmem:[#allocation8 + $0x6d8] sm:$0xff]
    %v3435 = vld [vmem:[#allocation8 + $0x6e0] sm:$0xff]
    %v3436 = vld [vmem:[#allocation8 + $0x6e8] sm:$0xff]
    %v3437 = vld [vmem:[#allocation8 + $0x6f0] sm:$0xff]
    %v3438 = vld [vmem:[#allocation8 + $0x6f8] sm:$0xff]
    %v3439 = vld [vmem:[#allocation8 + $0x700] sm:$0xff]
    %v3440 = vld [vmem:[#allocation8 + $0x708] sm:$0xff]
    %v3441 = vld [vmem:[#allocation8 + $0x710] sm:$0xff]
    %v3442 = vld [vmem:[#allocation8 + $0x718] sm:$0xff]
    %v3443 = vld [vmem:[#allocation8 + $0x720] sm:$0xff]
    %v3444 = vld [vmem:[#allocation8 + $0x728] sm:$0xff]
    %v3445 = vld [vmem:[#allocation8 + $0x730] sm:$0xff]
    %v3446 = vld [vmem:[#allocation8 + $0x738] sm:$0xff]
    %v3447 = vld [vmem:[#allocation8 + $0x740] sm:$0xff]
    %v3448 = vld [vmem:[#allocation8 + $0x748] sm:$0xff]
    %v3449 = vld [vmem:[#allocation8 + $0x750] sm:$0xff]
    %v3450 = vld [vmem:[#allocation8 + $0x758] sm:$0xff]
    %v3451 = vld [vmem:[#allocation8 + $0x760] sm:$0xff]
    %v3452 = vld [vmem:[#allocation8 + $0x768] sm:$0xff]
    %v3453 = vld [vmem:[#allocation8 + $0x770] sm:$0xff]
    %v3454 = vld [vmem:[#allocation8 + $0x778] sm:$0xff]
    %v3455 = vld [vmem:[#allocation8 + $0x780] sm:$0xff]
    %v3456 = vld [vmem:[#allocation8 + $0x788] sm:$0xff]
    %v3457 = vld [vmem:[#allocation8 + $0x790] sm:$0xff]
    %v3458 = vld [vmem:[#allocation8 + $0x798] sm:$0xff]
    %v3459 = vld [vmem:[#allocation8 + $0x7a0] sm:$0xff]
    %v3460 = vld [vmem:[#allocation8 + $0x7a8] sm:$0xff]
    %v3461 = vld [vmem:[#allocation8 + $0x7b0] sm:$0xff]
    %v3462 = vld [vmem:[#allocation8 + $0x7b8] sm:$0xff]
    %v3463 = vld [vmem:[#allocation8 + $0x7c0] sm:$0xff]
    %v3464 = vld [vmem:[#allocation8 + $0x7c8] sm:$0xff]
    %v3465 = vld [vmem:[#allocation8 + $0x7d0] sm:$0xff]
    %v3466 = vld [vmem:[#allocation8 + $0x7d8] sm:$0xff]
    %v3467 = vld [vmem:[#allocation8 + $0x7e0] sm:$0xff]
    %v3468 = vld [vmem:[#allocation8 + $0x7e8] sm:$0xff]
    %v3469 = vld [vmem:[#allocation8 + $0x7f0] sm:$0xff]
    %v3470 = vld [vmem:[#allocation8 + $0x7f8] sm:$0xff]
    %v3471 = vld [vmem:[#allocation8 + $0x800] sm:$0xff]
    %v3472 = vld [vmem:[#allocation8 + $0x808] sm:$0xff]
    %v3473 = vld [vmem:[#allocation8 + $0x810] sm:$0xff]
    %v3474 = vld [vmem:[#allocation8 + $0x818] sm:$0xff]
    %v3475 = vld [vmem:[#allocation8 + $0x820] sm:$0xff]
    %v3476 = vld [vmem:[#allocation8 + $0x828] sm:$0xff]
    %v3477 = vld [vmem:[#allocation8 + $0x830] sm:$0xff]
    %v3478 = vld [vmem:[#allocation8 + $0x838] sm:$0xff]
    %v3479 = vld [vmem:[#allocation8 + $0x840] sm:$0xff]
    %v3480 = vld [vmem:[#allocation8 + $0x848] sm:$0xff]
    %v3481 = vld [vmem:[#allocation8 + $0x850] sm:$0xff]
    %v3482 = vld [vmem:[#allocation8 + $0x858] sm:$0xff]
    %v3483 = vld [vmem:[#allocation8 + $0x860] sm:$0xff]
    %v3484 = vld [vmem:[#allocation8 + $0x868] sm:$0xff]
    %v3485 = vld [vmem:[#allocation8 + $0x870] sm:$0xff]
    %v3486 = vld [vmem:[#allocation8 + $0x878] sm:$0xff]
    %v3487 = vld [vmem:[#allocation8 + $0x880] sm:$0xff]
    %v3488 = vld [vmem:[#allocation8 + $0x888] sm:$0xff]
    %v3489 = vld [vmem:[#allocation8 + $0x890] sm:$0xff]
    %v3490 = vld [vmem:[#allocation8 + $0x898] sm:$0xff]
    %v3491 = vld [vmem:[#allocation8 + $0x8a0] sm:$0xff]
    %v3492 = vld [vmem:[#allocation8 + $0x8a8] sm:$0xff]
    %v3493 = vld [vmem:[#allocation8 + $0x8b0] sm:$0xff]
    %v3494 = vld [vmem:[#allocation8 + $0x8b8] sm:$0xff]
    %v3495 = vld [vmem:[#allocation8 + $0x8c0] sm:$0xff]
    %v3496 = vld [vmem:[#allocation8 + $0x8c8] sm:$0xff]
    %v3497 = vld [vmem:[#allocation8 + $0x8d0] sm:$0xff]
    %v3498 = vld [vmem:[#allocation8 + $0x8d8] sm:$0xff]
    %v3499 = vld [vmem:[#allocation8 + $0x8e0] sm:$0xff]
    %v3500 = vld [vmem:[#allocation8 + $0x8e8] sm:$0xff]
    %v3501 = vld [vmem:[#allocation8 + $0x8f0] sm:$0xff]
    %v3502 = vld [vmem:[#allocation8 + $0x8f8] sm:$0xff]
    %v3503 = vld [vmem:[#allocation8 + $0x900] sm:$0xff]
    %v3504 = vld [vmem:[#allocation8 + $0x908] sm:$0xff]
    %v3505 = vld [vmem:[#allocation8 + $0x910] sm:$0xff]
    %v3506 = vld [vmem:[#allocation8 + $0x918] sm:$0xff]
    %v3507 = vld [vmem:[#allocation8 + $0x920] sm:$0xff]
    %v3508 = vld [vmem:[#allocation8 + $0x928] sm:$0xff]
    %v3509 = vld [vmem:[#allocation8 + $0x930] sm:$0xff]
    %v3510 = vld [vmem:[#allocation8 + $0x938] sm:$0xff]
    %v3511 = vld [vmem:[#allocation8 + $0x940] sm:$0xff]
    %v3512 = vld [vmem:[#allocation8 + $0x948] sm:$0xff]
    %v3513 = vld [vmem:[#allocation8 + $0x950] sm:$0xff]
    %v3514 = vld [vmem:[#allocation8 + $0x958] sm:$0xff]
    %v3515 = vld [vmem:[#allocation8 + $0x960] sm:$0xff]
    %v3516 = vld [vmem:[#allocation8 + $0x968] sm:$0xff]
    %v3517 = vld [vmem:[#allocation8 + $0x970] sm:$0xff]
    %v3518 = vld [vmem:[#allocation8 + $0x978] sm:$0xff]
    %v3519 = vld [vmem:[#allocation8 + $0x980] sm:$0xff]
    %v3520 = vld [vmem:[#allocation8 + $0x988] sm:$0xff]
    %v3521 = vld [vmem:[#allocation8 + $0x990] sm:$0xff]
    %v3522 = vld [vmem:[#allocation8 + $0x998] sm:$0xff]
    %v3523 = vld [vmem:[#allocation8 + $0x9a0] sm:$0xff]
    %v3524 = vld [vmem:[#allocation8 + $0x9a8] sm:$0xff]
    %v3525 = vld [vmem:[#allocation8 + $0x9b0] sm:$0xff]
    %v3526 = vld [vmem:[#allocation8 + $0x9b8] sm:$0xff]
    %v3527 = vld [vmem:[#allocation8 + $0x9c0] sm:$0xff]
    %v3528 = vld [vmem:[#allocation8 + $0x9c8] sm:$0xff]
    %v3529 = vld [vmem:[#allocation8 + $0x9d0] sm:$0xff]
    %v3530 = vld [vmem:[#allocation8 + $0x9d8] sm:$0xff]
    %v3531 = vld [vmem:[#allocation8 + $0x9e0] sm:$0xff]
    %v3532 = vld [vmem:[#allocation8 + $0x9e8] sm:$0xff]
    %v3533 = vld [vmem:[#allocation8 + $0x9f0] sm:$0xff]
    %v3534 = vld [vmem:[#allocation8 + $0x9f8] sm:$0xff]
    %v3535 = vld [vmem:[#allocation8 + $0xa00] sm:$0xff]
    %v3536 = vld [vmem:[#allocation8 + $0xa08] sm:$0xff]
    %v3537 = vld [vmem:[#allocation8 + $0xa10] sm:$0xff]
    %v3538 = vld [vmem:[#allocation8 + $0xa18] sm:$0xff]
    %v3539 = vld [vmem:[#allocation8 + $0xa20] sm:$0xff]
    %v3540 = vld [vmem:[#allocation8 + $0xa28] sm:$0xff]
    %v3541 = vld [vmem:[#allocation8 + $0xa30] sm:$0xff]
    %v3542 = vld [vmem:[#allocation8 + $0xa38] sm:$0xff]
    %v3543 = vld [vmem:[#allocation8 + $0xa40] sm:$0xff]
    %v3544 = vld [vmem:[#allocation8 + $0xa48] sm:$0xff]
    %v3545 = vld [vmem:[#allocation8 + $0xa50] sm:$0xff]
    %v3546 = vld [vmem:[#allocation8 + $0xa58] sm:$0xff]
    %v3547 = vld [vmem:[#allocation8 + $0xa60] sm:$0xff]
    %v3548 = vld [vmem:[#allocation8 + $0xa68] sm:$0xff]
    %v3549 = vld [vmem:[#allocation8 + $0xa70] sm:$0xff]
    %v3550 = vld [vmem:[#allocation8 + $0xa78] sm:$0xff]
    %v3551 = vld [vmem:[#allocation8 + $0xa80] sm:$0xff]
    %v3552 = vld [vmem:[#allocation8 + $0xa88] sm:$0xff]
    %v3553 = vld [vmem:[#allocation8 + $0xa90] sm:$0xff]
    %v3554 = vld [vmem:[#allocation8 + $0xa98] sm:$0xff]
    %v3555 = vld [vmem:[#allocation8 + $0xaa0] sm:$0xff]
    %v3556 = vld [vmem:[#allocation8 + $0xaa8] sm:$0xff]
    %v3557 = vld [vmem:[#allocation8 + $0xab0] sm:$0xff]
    %v3558 = vld [vmem:[#allocation8 + $0xab8] sm:$0xff]
    %v3559 = vld [vmem:[#allocation8 + $0xac0] sm:$0xff]
    %v3560 = vld [vmem:[#allocation8 + $0xac8] sm:$0xff]
    %v3561 = vld [vmem:[#allocation8 + $0xad0] sm:$0xff]
    %v3562 = vld [vmem:[#allocation8 + $0xad8] sm:$0xff]
    %v3563 = vld [vmem:[#allocation8 + $0xae0] sm:$0xff]
    %v3564 = vld [vmem:[#allocation8 + $0xae8] sm:$0xff]
    %v3565 = vld [vmem:[#allocation8 + $0xaf0] sm:$0xff]
    %v3566 = vld [vmem:[#allocation8 + $0xaf8] sm:$0xff]
    %v3567 = vld [vmem:[#allocation8 + $0xb00] sm:$0xff]
    %v3568 = vld [vmem:[#allocation8 + $0xb08] sm:$0xff]
    %v3569 = vld [vmem:[#allocation8 + $0xb10] sm:$0xff]
    %v3570 = vld [vmem:[#allocation8 + $0xb18] sm:$0xff]
    %v3571 = vld [vmem:[#allocation8 + $0xb20] sm:$0xff]
    %v3572 = vld [vmem:[#allocation8 + $0xb28] sm:$0xff]
    %v3573 = vld [vmem:[#allocation8 + $0xb30] sm:$0xff]
    %v3574 = vld [vmem:[#allocation8 + $0xb38] sm:$0xff]
    %v3575 = vld [vmem:[#allocation8 + $0xb40] sm:$0xff]
    %v3576 = vld [vmem:[#allocation8 + $0xb48] sm:$0xff]
    %v3577 = vld [vmem:[#allocation8 + $0xb50] sm:$0xff]
    %v3578 = vld [vmem:[#allocation8 + $0xb58] sm:$0xff]
    %v3579 = vld [vmem:[#allocation8 + $0xb60] sm:$0xff]
    %v3580 = vld [vmem:[#allocation8 + $0xb68] sm:$0xff]
    %v3581 = vld [vmem:[#allocation8 + $0xb70] sm:$0xff]
    %v3582 = vld [vmem:[#allocation8 + $0xb78] sm:$0xff]
    %v3583 = vld [vmem:[#allocation8 + $0xb80] sm:$0xff]
    %v3584 = vld [vmem:[#allocation8 + $0xb88] sm:$0xff]
    %v3585 = vld [vmem:[#allocation8 + $0xb90] sm:$0xff]
    %v3586 = vld [vmem:[#allocation8 + $0xb98] sm:$0xff]
    %v3587 = vld [vmem:[#allocation8 + $0xba0] sm:$0xff]
    %v3588 = vld [vmem:[#allocation8 + $0xba8] sm:$0xff]
    %v3589 = vld [vmem:[#allocation8 + $0xbb0] sm:$0xff]
    %v3590 = vld [vmem:[#allocation8 + $0xbb8] sm:$0xff]
    %v3591 = vld [vmem:[#allocation8 + $0xbc0] sm:$0xff]
    %v3592 = vld [vmem:[#allocation8 + $0xbc8] sm:$0xff]
    %v3593 = vld [vmem:[#allocation8 + $0xbd0] sm:$0xff]
    %v3594 = vld [vmem:[#allocation8 + $0xbd8] sm:$0xff]
    %v3595 = vld [vmem:[#allocation8 + $0xbe0] sm:$0xff]
    %v3596 = vld [vmem:[#allocation8 + $0xbe8] sm:$0xff]
    %v3597 = vld [vmem:[#allocation8 + $0xbf0] sm:$0xff]
    %v3598 = vld [vmem:[#allocation8 + $0xbf8] sm:$0xff]
    %v3599 = vld [vmem:[#allocation8 + $0xc00] sm:$0xff]
    %v3600 = vld [vmem:[#allocation8 + $0xc08] sm:$0xff]
    %v3601 = vld [vmem:[#allocation8 + $0xc10] sm:$0xff]
    %v3602 = vld [vmem:[#allocation8 + $0xc18] sm:$0xff]
    %v3603 = vld [vmem:[#allocation8 + $0xc20] sm:$0xff]
    %v3604 = vld [vmem:[#allocation8 + $0xc28] sm:$0xff]
    %v3605 = vld [vmem:[#allocation8 + $0xc30] sm:$0xff]
    %v3606 = vld [vmem:[#allocation8 + $0xc38] sm:$0xff]
    %v3607 = vld [vmem:[#allocation8 + $0xc40] sm:$0xff]
    %v3608 = vld [vmem:[#allocation8 + $0xc48] sm:$0xff]
    %v3609 = vld [vmem:[#allocation8 + $0xc50] sm:$0xff]
    %v3610 = vld [vmem:[#allocation8 + $0xc58] sm:$0xff]
    %v3611 = vld [vmem:[#allocation8 + $0xc60] sm:$0xff]
    %v3612 = vld [vmem:[#allocation8 + $0xc68] sm:$0xff]
    %v3613 = vld [vmem:[#allocation8 + $0xc70] sm:$0xff]
    %v3614 = vld [vmem:[#allocation8 + $0xc78] sm:$0xff]
    %v3615 = vld [vmem:[#allocation8 + $0xc80] sm:$0xff]
    %v3616 = vld [vmem:[#allocation8 + $0xc88] sm:$0xff]
    %v3617 = vld [vmem:[#allocation8 + $0xc90] sm:$0xff]
    %v3618 = vld [vmem:[#allocation8 + $0xc98] sm:$0xff]
    %v3619 = vld [vmem:[#allocation8 + $0xca0] sm:$0xff]
    %v3620 = vld [vmem:[#allocation8 + $0xca8] sm:$0xff]
    %v3621 = vld [vmem:[#allocation8 + $0xcb0] sm:$0xff]
    %v3622 = vld [vmem:[#allocation8 + $0xcb8] sm:$0xff]
    %v3623 = vld [vmem:[#allocation8 + $0xcc0] sm:$0xff]
    %v3624 = vld [vmem:[#allocation8 + $0xcc8] sm:$0xff]
    %v3625 = vld [vmem:[#allocation8 + $0xcd0] sm:$0xff]
    %v3626 = vld [vmem:[#allocation8 + $0xcd8] sm:$0xff]
    %v3627 = vld [vmem:[#allocation8 + $0xce0] sm:$0xff]
    %v3628 = vld [vmem:[#allocation8 + $0xce8] sm:$0xff]
    %v3629 = vld [vmem:[#allocation8 + $0xcf0] sm:$0xff]
    %v3630 = vld [vmem:[#allocation8 + $0xcf8] sm:$0xff]
    %v3631 = vld [vmem:[#allocation8 + $0xd00] sm:$0xff]
    %v3632 = vld [vmem:[#allocation8 + $0xd08] sm:$0xff]
    %v3633 = vld [vmem:[#allocation8 + $0xd10] sm:$0xff]
    %v3634 = vld [vmem:[#allocation8 + $0xd18] sm:$0xff]
    %v3635 = vld [vmem:[#allocation8 + $0xd20] sm:$0xff]
    %v3636 = vld [vmem:[#allocation8 + $0xd28] sm:$0xff]
    %v3637 = vld [vmem:[#allocation8 + $0xd30] sm:$0xff]
    %v3638 = vld [vmem:[#allocation8 + $0xd38] sm:$0xff]
    %v3639 = vld [vmem:[#allocation8 + $0xd40] sm:$0xff]
    %v3640 = vld [vmem:[#allocation8 + $0xd48] sm:$0xff]
    %v3641 = vld [vmem:[#allocation8 + $0xd50] sm:$0xff]
    %v3642 = vld [vmem:[#allocation8 + $0xd58] sm:$0xff]
    %v3643 = vld [vmem:[#allocation8 + $0xd60] sm:$0xff]
    %v3644 = vld [vmem:[#allocation8 + $0xd68] sm:$0xff]
    %v3645 = vld [vmem:[#allocation8 + $0xd70] sm:$0xff]
    %v3646 = vld [vmem:[#allocation8 + $0xd78] sm:$0xff]
    %v3647 = vld [vmem:[#allocation8 + $0xd80] sm:$0xff]
    %v3648 = vld [vmem:[#allocation8 + $0xd88] sm:$0xff]
    %v3649 = vld [vmem:[#allocation8 + $0xd90] sm:$0xff]
    %v3650 = vld [vmem:[#allocation8 + $0xd98] sm:$0xff]
    %v3651 = vld [vmem:[#allocation8 + $0xda0] sm:$0xff]
    %v3652 = vld [vmem:[#allocation8 + $0xda8] sm:$0xff]
    %v3653 = vld [vmem:[#allocation8 + $0xdb0] sm:$0xff]
    %v3654 = vld [vmem:[#allocation8 + $0xdb8] sm:$0xff]
    %v3655 = vld [vmem:[#allocation8 + $0xdc0] sm:$0xff]
    %v3656 = vld [vmem:[#allocation8 + $0xdc8] sm:$0xff]
    %v3657 = vld [vmem:[#allocation8 + $0xdd0] sm:$0xff]
    %v3658 = vld [vmem:[#allocation8 + $0xdd8] sm:$0xff]
    %v3659 = vld [vmem:[#allocation8 + $0xde0] sm:$0xff]
    %v3660 = vld [vmem:[#allocation8 + $0xde8] sm:$0xff]
    %v3661 = vld [vmem:[#allocation8 + $0xdf0] sm:$0xff]
    %v3662 = vld [vmem:[#allocation8 + $0xdf8] sm:$0xff]
    %v3663 = vld [vmem:[#allocation8 + $0xe00] sm:$0xff]
    %v3664 = vld [vmem:[#allocation8 + $0xe08] sm:$0xff]
    %v3665 = vld [vmem:[#allocation8 + $0xe10] sm:$0xff]
    %v3666 = vld [vmem:[#allocation8 + $0xe18] sm:$0xff]
    %v3667 = vld [vmem:[#allocation8 + $0xe20] sm:$0xff]
    %v3668 = vld [vmem:[#allocation8 + $0xe28] sm:$0xff]
    %v3669 = vld [vmem:[#allocation8 + $0xe30] sm:$0xff]
    %v3670 = vld [vmem:[#allocation8 + $0xe38] sm:$0xff]
    %v3671 = vld [vmem:[#allocation8 + $0xe40] sm:$0xff]
    %v3672 = vld [vmem:[#allocation8 + $0xe48] sm:$0xff]
    %v3673 = vld [vmem:[#allocation8 + $0xe50] sm:$0xff]
    %v3674 = vld [vmem:[#allocation8 + $0xe58] sm:$0xff]
    %v3675 = vld [vmem:[#allocation8 + $0xe60] sm:$0xff]
    %v3676 = vld [vmem:[#allocation8 + $0xe68] sm:$0xff]
    %v3677 = vld [vmem:[#allocation8 + $0xe70] sm:$0xff]
    %v3678 = vld [vmem:[#allocation8 + $0xe78] sm:$0xff]
    %v3679 = vld [vmem:[#allocation8 + $0xe80] sm:$0xff]
    %v3680 = vld [vmem:[#allocation8 + $0xe88] sm:$0xff]
    %v3681 = vld [vmem:[#allocation8 + $0xe90] sm:$0xff]
    %v3682 = vld [vmem:[#allocation8 + $0xe98] sm:$0xff]
    %v3683 = vld [vmem:[#allocation8 + $0xea0] sm:$0xff]
    %v3684 = vld [vmem:[#allocation8 + $0xea8] sm:$0xff]
    %v3685 = vld [vmem:[#allocation8 + $0xeb0] sm:$0xff]
    %v3686 = vld [vmem:[#allocation8 + $0xeb8] sm:$0xff]
    %v3687 = vld [vmem:[#allocation8 + $0xec0] sm:$0xff]
    %v3688 = vld [vmem:[#allocation8 + $0xec8] sm:$0xff]
    %v3689 = vld [vmem:[#allocation8 + $0xed0] sm:$0xff]
    %v3690 = vld [vmem:[#allocation8 + $0xed8] sm:$0xff]
    %v3691 = vld [vmem:[#allocation8 + $0xee0] sm:$0xff]
    %v3692 = vld [vmem:[#allocation8 + $0xee8] sm:$0xff]
    %v3693 = vld [vmem:[#allocation8 + $0xef0] sm:$0xff]
    %v3694 = vld [vmem:[#allocation8 + $0xef8] sm:$0xff]
    %v3695 = vld [vmem:[#allocation8 + $0xf00] sm:$0xff]
    %v3696 = vld [vmem:[#allocation8 + $0xf08] sm:$0xff]
    %v3697 = vld [vmem:[#allocation8 + $0xf10] sm:$0xff]
    %v3698 = vld [vmem:[#allocation8 + $0xf18] sm:$0xff]
    %v3699 = vld [vmem:[#allocation8 + $0xf20] sm:$0xff]
    %v3700 = vld [vmem:[#allocation8 + $0xf28] sm:$0xff]
    %v3701 = vld [vmem:[#allocation8 + $0xf30] sm:$0xff]
    %v3702 = vld [vmem:[#allocation8 + $0xf38] sm:$0xff]
    %v3703 = vld [vmem:[#allocation8 + $0xf40] sm:$0xff]
    %v3704 = vld [vmem:[#allocation8 + $0xf48] sm:$0xff]
    %v3705 = vld [vmem:[#allocation8 + $0xf50] sm:$0xff]
    %v3706 = vld [vmem:[#allocation8 + $0xf58] sm:$0xff]
    %v3707 = vld [vmem:[#allocation8 + $0xf60] sm:$0xff]
    %v3708 = vld [vmem:[#allocation8 + $0xf68] sm:$0xff]
    %v3709 = vld [vmem:[#allocation8 + $0xf70] sm:$0xff]
    %v3710 = vld [vmem:[#allocation8 + $0xf78] sm:$0xff]
    %v3711 = vld [vmem:[#allocation8 + $0xf80] sm:$0xff]
    %v3712 = vld [vmem:[#allocation8 + $0xf88] sm:$0xff]
    %v3713 = vld [vmem:[#allocation8 + $0xf90] sm:$0xff]
    %v3714 = vld [vmem:[#allocation8 + $0xf98] sm:$0xff]
    %v3715 = vld [vmem:[#allocation8 + $0xfa0] sm:$0xff]
    %v3716 = vld [vmem:[#allocation8 + $0xfa8] sm:$0xff]
    %v3717 = vld [vmem:[#allocation8 + $0xfb0] sm:$0xff]
    %v3718 = vld [vmem:[#allocation8 + $0xfb8] sm:$0xff]
    %v3719 = vld [vmem:[#allocation8 + $0xfc0] sm:$0xff]
    %v3720 = vld [vmem:[#allocation8 + $0xfc8] sm:$0xff]
    %v3721 = vld [vmem:[#allocation8 + $0xfd0] sm:$0xff]
    %v3722 = vld [vmem:[#allocation8 + $0xfd8] sm:$0xff]
    %v3723 = vld [vmem:[#allocation8 + $0xfe0] sm:$0xff]
    %v3724 = vld [vmem:[#allocation8 + $0xfe8] sm:$0xff]
    %v3725 = vld [vmem:[#allocation8 + $0xff0] sm:$0xff]
    %v3726 = vld [vmem:[#allocation8 + $0xff8] sm:$0xff]
    %v3727 = vld [vmem:[#allocation10] sm:$0xff]
    %v3729 = vlaneseq
    %v3730 = vshrl.u32 %v3729, 7
    %v3731 = vsub.s32 0, %v3730
    %v3732 = vrot.slane %v3727, %v3731
    %v3733 = vlaneseq
    %v3734 = vshrl.u32 %v3733, 7
    %v3735 = vsub.s32 1, %v3734
    %v3736 = vrot.slane %v3727, %v3735
    %v3737 = vlaneseq
    %v3738 = vshrl.u32 %v3737, 7
    %v3739 = vsub.s32 2, %v3738
    %v3740 = vrot.slane %v3727, %v3739
    %v3741 = vlaneseq
    %v3742 = vshrl.u32 %v3741, 7
    %v3743 = vsub.s32 3, %v3742
    %v3744 = vrot.slane %v3727, %v3743
    %v3745 = vlaneseq
    %v3746 = vshrl.u32 %v3745, 7
    %v3747 = vsub.s32 4, %v3746
    %v3748 = vrot.slane %v3727, %v3747
    %v3749 = vlaneseq
    %v3750 = vshrl.u32 %v3749, 7
    %v3751 = vsub.s32 5, %v3750
    %v3752 = vrot.slane %v3727, %v3751
    %v3753 = vlaneseq
    %v3754 = vshrl.u32 %v3753, 7
    %v3755 = vsub.s32 6, %v3754
    %v3756 = vrot.slane %v3727, %v3755
    %v3757 = vlaneseq
    %v3758 = vshrl.u32 %v3757, 7
    %v3759 = vsub.s32 7, %v3758
    %v3760 = vrot.slane %v3727, %v3759
    %v4281 = vunpack.c.l.b16 %v3215
    %v4282 = vunpack.c.h.b16 %v3215
    %v4283 = vunpack.c.l.b16 %v3216
    %v4284 = vunpack.c.h.b16 %v3216
    %v4285 = vunpack.c.l.b16 %v3217
    %v4286 = vunpack.c.h.b16 %v3217
    %v4287 = vunpack.c.l.b16 %v3218
    %v4288 = vunpack.c.h.b16 %v3218
    %v4289 = vunpack.c.l.b16 %v3219
    %v4290 = vunpack.c.h.b16 %v3219
    %v4291 = vunpack.c.l.b16 %v3220
    %v4292 = vunpack.c.h.b16 %v3220
    %v4293 = vunpack.c.l.b16 %v3221
    %v4294 = vunpack.c.h.b16 %v3221
    %v4295 = vunpack.c.l.b16 %v3222
    %v4296 = vunpack.c.h.b16 %v3222
    %v4297 = vunpack.c.l.b16 %v3223
    %v4298 = vunpack.c.h.b16 %v3223
    %v4299 = vunpack.c.l.b16 %v3224
    %v4300 = vunpack.c.h.b16 %v3224
    %v4301 = vunpack.c.l.b16 %v3225
    %v4302 = vunpack.c.h.b16 %v3225
    %v4303 = vunpack.c.l.b16 %v3226
    %v4304 = vunpack.c.h.b16 %v3226
    %v4305 = vunpack.c.l.b16 %v3227
    %v4306 = vunpack.c.h.b16 %v3227
    %v4307 = vunpack.c.l.b16 %v3228
    %v4308 = vunpack.c.h.b16 %v3228
    %v4309 = vunpack.c.l.b16 %v3229
    %v4310 = vunpack.c.h.b16 %v3229
    %v4311 = vunpack.c.l.b16 %v3230
    %v4312 = vunpack.c.h.b16 %v3230
    %v4313 = vunpack.c.l.b16 %v3231
    %v4314 = vunpack.c.h.b16 %v3231
    %v4315 = vunpack.c.l.b16 %v3232
    %v4316 = vunpack.c.h.b16 %v3232
    %v4317 = vunpack.c.l.b16 %v3233
    %v4318 = vunpack.c.h.b16 %v3233
    %v4319 = vunpack.c.l.b16 %v3234
    %v4320 = vunpack.c.h.b16 %v3234
    %v4321 = vunpack.c.l.b16 %v3235
    %v4322 = vunpack.c.h.b16 %v3235
    %v4323 = vunpack.c.l.b16 %v3236
    %v4324 = vunpack.c.h.b16 %v3236
    %v4325 = vunpack.c.l.b16 %v3237
    %v4326 = vunpack.c.h.b16 %v3237
    %v4327 = vunpack.c.l.b16 %v3238
    %v4328 = vunpack.c.h.b16 %v3238
    %v4329 = vunpack.c.l.b16 %v3239
    %v4330 = vunpack.c.h.b16 %v3239
    %v4331 = vunpack.c.l.b16 %v3240
    %v4332 = vunpack.c.h.b16 %v3240
    %v4333 = vunpack.c.l.b16 %v3241
    %v4334 = vunpack.c.h.b16 %v3241
    %v4335 = vunpack.c.l.b16 %v3242
    %v4336 = vunpack.c.h.b16 %v3242
    %v4337 = vunpack.c.l.b16 %v3243
    %v4338 = vunpack.c.h.b16 %v3243
    %v4339 = vunpack.c.l.b16 %v3244
    %v4340 = vunpack.c.h.b16 %v3244
    %v4341 = vunpack.c.l.b16 %v3245
    %v4342 = vunpack.c.h.b16 %v3245
    %v4343 = vunpack.c.l.b16 %v3246
    %v4344 = vunpack.c.h.b16 %v3246
    %v4345 = vunpack.c.l.b16 %v3247
    %v4346 = vunpack.c.h.b16 %v3247
    %v4347 = vunpack.c.l.b16 %v3248
    %v4348 = vunpack.c.h.b16 %v3248
    %v4349 = vunpack.c.l.b16 %v3249
    %v4350 = vunpack.c.h.b16 %v3249
    %v4351 = vunpack.c.l.b16 %v3250
    %v4352 = vunpack.c.h.b16 %v3250
    %v4353 = vunpack.c.l.b16 %v3251
    %v4354 = vunpack.c.h.b16 %v3251
    %v4355 = vunpack.c.l.b16 %v3252
    %v4356 = vunpack.c.h.b16 %v3252
    %v4357 = vunpack.c.l.b16 %v3253
    %v4358 = vunpack.c.h.b16 %v3253
    %v4359 = vunpack.c.l.b16 %v3254
    %v4360 = vunpack.c.h.b16 %v3254
    %v4361 = vunpack.c.l.b16 %v3255
    %v4362 = vunpack.c.h.b16 %v3255
    %v4363 = vunpack.c.l.b16 %v3256
    %v4364 = vunpack.c.h.b16 %v3256
    %v4365 = vunpack.c.l.b16 %v3257
    %v4366 = vunpack.c.h.b16 %v3257
    %v4367 = vunpack.c.l.b16 %v3258
    %v4368 = vunpack.c.h.b16 %v3258
    %v4369 = vunpack.c.l.b16 %v3259
    %v4370 = vunpack.c.h.b16 %v3259
    %v4371 = vunpack.c.l.b16 %v3260
    %v4372 = vunpack.c.h.b16 %v3260
    %v4373 = vunpack.c.l.b16 %v3261
    %v4374 = vunpack.c.h.b16 %v3261
    %v4375 = vunpack.c.l.b16 %v3262
    %v4376 = vunpack.c.h.b16 %v3262
    %v4377 = vunpack.c.l.b16 %v3263
    %v4378 = vunpack.c.h.b16 %v3263
    %v4379 = vunpack.c.l.b16 %v3264
    %v4380 = vunpack.c.h.b16 %v3264
    %v4381 = vunpack.c.l.b16 %v3265
    %v4382 = vunpack.c.h.b16 %v3265
    %v4383 = vunpack.c.l.b16 %v3266
    %v4384 = vunpack.c.h.b16 %v3266
    %v4385 = vunpack.c.l.b16 %v3267
    %v4386 = vunpack.c.h.b16 %v3267
    %v4387 = vunpack.c.l.b16 %v3268
    %v4388 = vunpack.c.h.b16 %v3268
    %v4389 = vunpack.c.l.b16 %v3269
    %v4390 = vunpack.c.h.b16 %v3269
    %v4391 = vunpack.c.l.b16 %v3270
    %v4392 = vunpack.c.h.b16 %v3270
    %v4393 = vunpack.c.l.b16 %v3271
    %v4394 = vunpack.c.h.b16 %v3271
    %v4395 = vunpack.c.l.b16 %v3272
    %v4396 = vunpack.c.h.b16 %v3272
    %v4397 = vunpack.c.l.b16 %v3273
    %v4398 = vunpack.c.h.b16 %v3273
    %v4399 = vunpack.c.l.b16 %v3274
    %v4400 = vunpack.c.h.b16 %v3274
    %v4401 = vunpack.c.l.b16 %v3275
    %v4402 = vunpack.c.h.b16 %v3275
    %v4403 = vunpack.c.l.b16 %v3276
    %v4404 = vunpack.c.h.b16 %v3276
    %v4405 = vunpack.c.l.b16 %v3277
    %v4406 = vunpack.c.h.b16 %v3277
    %v4407 = vunpack.c.l.b16 %v3278
    %v4408 = vunpack.c.h.b16 %v3278
    %v4409 = vunpack.c.l.b16 %v3279
    %v4410 = vunpack.c.h.b16 %v3279
    %v4411 = vunpack.c.l.b16 %v3280
    %v4412 = vunpack.c.h.b16 %v3280
    %v4413 = vunpack.c.l.b16 %v3281
    %v4414 = vunpack.c.h.b16 %v3281
    %v4415 = vunpack.c.l.b16 %v3282
    %v4416 = vunpack.c.h.b16 %v3282
    %v4417 = vunpack.c.l.b16 %v3283
    %v4418 = vunpack.c.h.b16 %v3283
    %v4419 = vunpack.c.l.b16 %v3284
    %v4420 = vunpack.c.h.b16 %v3284
    %v4421 = vunpack.c.l.b16 %v3285
    %v4422 = vunpack.c.h.b16 %v3285
    %v4423 = vunpack.c.l.b16 %v3286
    %v4424 = vunpack.c.h.b16 %v3286
    %v4425 = vunpack.c.l.b16 %v3287
    %v4426 = vunpack.c.h.b16 %v3287
    %v4427 = vunpack.c.l.b16 %v3288
    %v4428 = vunpack.c.h.b16 %v3288
    %v4429 = vunpack.c.l.b16 %v3289
    %v4430 = vunpack.c.h.b16 %v3289
    %v4431 = vunpack.c.l.b16 %v3290
    %v4432 = vunpack.c.h.b16 %v3290
    %v4433 = vunpack.c.l.b16 %v3291
    %v4434 = vunpack.c.h.b16 %v3291
    %v4435 = vunpack.c.l.b16 %v3292
    %v4436 = vunpack.c.h.b16 %v3292
    %v4437 = vunpack.c.l.b16 %v3293
    %v4438 = vunpack.c.h.b16 %v3293
    %v4439 = vunpack.c.l.b16 %v3294
    %v4440 = vunpack.c.h.b16 %v3294
    %v4441 = vunpack.c.l.b16 %v3295
    %v4442 = vunpack.c.h.b16 %v3295
    %v4443 = vunpack.c.l.b16 %v3296
    %v4444 = vunpack.c.h.b16 %v3296
    %v4445 = vunpack.c.l.b16 %v3297
    %v4446 = vunpack.c.h.b16 %v3297
    %v4447 = vunpack.c.l.b16 %v3298
    %v4448 = vunpack.c.h.b16 %v3298
    %v4449 = vunpack.c.l.b16 %v3299
    %v4450 = vunpack.c.h.b16 %v3299
    %v4451 = vunpack.c.l.b16 %v3300
    %v4452 = vunpack.c.h.b16 %v3300
    %v4453 = vunpack.c.l.b16 %v3301
    %v4454 = vunpack.c.h.b16 %v3301
    %v4455 = vunpack.c.l.b16 %v3302
    %v4456 = vunpack.c.h.b16 %v3302
    %v4457 = vunpack.c.l.b16 %v3303
    %v4458 = vunpack.c.h.b16 %v3303
    %v4459 = vunpack.c.l.b16 %v3304
    %v4460 = vunpack.c.h.b16 %v3304
    %v4461 = vunpack.c.l.b16 %v3305
    %v4462 = vunpack.c.h.b16 %v3305
    %v4463 = vunpack.c.l.b16 %v3306
    %v4464 = vunpack.c.h.b16 %v3306
    %v4465 = vunpack.c.l.b16 %v3307
    %v4466 = vunpack.c.h.b16 %v3307
    %v4467 = vunpack.c.l.b16 %v3308
    %v4468 = vunpack.c.h.b16 %v3308
    %v4469 = vunpack.c.l.b16 %v3309
    %v4470 = vunpack.c.h.b16 %v3309
    %v4471 = vunpack.c.l.b16 %v3310
    %v4472 = vunpack.c.h.b16 %v3310
    %v4473 = vunpack.c.l.b16 %v3311
    %v4474 = vunpack.c.h.b16 %v3311
    %v4475 = vunpack.c.l.b16 %v3312
    %v4476 = vunpack.c.h.b16 %v3312
    %v4477 = vunpack.c.l.b16 %v3313
    %v4478 = vunpack.c.h.b16 %v3313
    %v4479 = vunpack.c.l.b16 %v3314
    %v4480 = vunpack.c.h.b16 %v3314
    %v4481 = vunpack.c.l.b16 %v3315
    %v4482 = vunpack.c.h.b16 %v3315
    %v4483 = vunpack.c.l.b16 %v3316
    %v4484 = vunpack.c.h.b16 %v3316
    %v4485 = vunpack.c.l.b16 %v3317
    %v4486 = vunpack.c.h.b16 %v3317
    %v4487 = vunpack.c.l.b16 %v3318
    %v4488 = vunpack.c.h.b16 %v3318
    %v4489 = vunpack.c.l.b16 %v3319
    %v4490 = vunpack.c.h.b16 %v3319
    %v4491 = vunpack.c.l.b16 %v3320
    %v4492 = vunpack.c.h.b16 %v3320
    %v4493 = vunpack.c.l.b16 %v3321
    %v4494 = vunpack.c.h.b16 %v3321
    %v4495 = vunpack.c.l.b16 %v3322
    %v4496 = vunpack.c.h.b16 %v3322
    %v4497 = vunpack.c.l.b16 %v3323
    %v4498 = vunpack.c.h.b16 %v3323
    %v4499 = vunpack.c.l.b16 %v3324
    %v4500 = vunpack.c.h.b16 %v3324
    %v4501 = vunpack.c.l.b16 %v3325
    %v4502 = vunpack.c.h.b16 %v3325
    %v4503 = vunpack.c.l.b16 %v3326
    %v4504 = vunpack.c.h.b16 %v3326
    %v4505 = vunpack.c.l.b16 %v3327
    %v4506 = vunpack.c.h.b16 %v3327
    %v4507 = vunpack.c.l.b16 %v3328
    %v4508 = vunpack.c.h.b16 %v3328
    %v4509 = vunpack.c.l.b16 %v3329
    %v4510 = vunpack.c.h.b16 %v3329
    %v4511 = vunpack.c.l.b16 %v3330
    %v4512 = vunpack.c.h.b16 %v3330
    %v4513 = vunpack.c.l.b16 %v3331
    %v4514 = vunpack.c.h.b16 %v3331
    %v4515 = vunpack.c.l.b16 %v3332
    %v4516 = vunpack.c.h.b16 %v3332
    %v4517 = vunpack.c.l.b16 %v3333
    %v4518 = vunpack.c.h.b16 %v3333
    %v4519 = vunpack.c.l.b16 %v3334
    %v4520 = vunpack.c.h.b16 %v3334
    %v4521 = vunpack.c.l.b16 %v3335
    %v4522 = vunpack.c.h.b16 %v3335
    %v4523 = vunpack.c.l.b16 %v3336
    %v4524 = vunpack.c.h.b16 %v3336
    %v4525 = vunpack.c.l.b16 %v3337
    %v4526 = vunpack.c.h.b16 %v3337
    %v4527 = vunpack.c.l.b16 %v3338
    %v4528 = vunpack.c.h.b16 %v3338
    %v4529 = vunpack.c.l.b16 %v3339
    %v4530 = vunpack.c.h.b16 %v3339
    %v4531 = vunpack.c.l.b16 %v3340
    %v4532 = vunpack.c.h.b16 %v3340
    %v4533 = vunpack.c.l.b16 %v3341
    %v4534 = vunpack.c.h.b16 %v3341
    %v4535 = vunpack.c.l.b16 %v3342
    %v4536 = vunpack.c.h.b16 %v3342
    %v4537 = vunpack.c.l.b16 %v3343
    %v4538 = vunpack.c.h.b16 %v3343
    %v4539 = vunpack.c.l.b16 %v3344
    %v4540 = vunpack.c.h.b16 %v3344
    %v4541 = vunpack.c.l.b16 %v3345
    %v4542 = vunpack.c.h.b16 %v3345
    %v4543 = vunpack.c.l.b16 %v3346
    %v4544 = vunpack.c.h.b16 %v3346
    %v4545 = vunpack.c.l.b16 %v3347
    %v4546 = vunpack.c.h.b16 %v3347
    %v4547 = vunpack.c.l.b16 %v3348
    %v4548 = vunpack.c.h.b16 %v3348
    %v4549 = vunpack.c.l.b16 %v3349
    %v4550 = vunpack.c.h.b16 %v3349
    %v4551 = vunpack.c.l.b16 %v3350
    %v4552 = vunpack.c.h.b16 %v3350
    %v4553 = vunpack.c.l.b16 %v3351
    %v4554 = vunpack.c.h.b16 %v3351
    %v4555 = vunpack.c.l.b16 %v3352
    %v4556 = vunpack.c.h.b16 %v3352
    %v4557 = vunpack.c.l.b16 %v3353
    %v4558 = vunpack.c.h.b16 %v3353
    %v4559 = vunpack.c.l.b16 %v3354
    %v4560 = vunpack.c.h.b16 %v3354
    %v4561 = vunpack.c.l.b16 %v3355
    %v4562 = vunpack.c.h.b16 %v3355
    %v4563 = vunpack.c.l.b16 %v3356
    %v4564 = vunpack.c.h.b16 %v3356
    %v4565 = vunpack.c.l.b16 %v3357
    %v4566 = vunpack.c.h.b16 %v3357
    %v4567 = vunpack.c.l.b16 %v3358
    %v4568 = vunpack.c.h.b16 %v3358
    %v4569 = vunpack.c.l.b16 %v3359
    %v4570 = vunpack.c.h.b16 %v3359
    %v4571 = vunpack.c.l.b16 %v3360
    %v4572 = vunpack.c.h.b16 %v3360
    %v4573 = vunpack.c.l.b16 %v3361
    %v4574 = vunpack.c.h.b16 %v3361
    %v4575 = vunpack.c.l.b16 %v3362
    %v4576 = vunpack.c.h.b16 %v3362
    %v4577 = vunpack.c.l.b16 %v3363
    %v4578 = vunpack.c.h.b16 %v3363
    %v4579 = vunpack.c.l.b16 %v3364
    %v4580 = vunpack.c.h.b16 %v3364
    %v4581 = vunpack.c.l.b16 %v3365
    %v4582 = vunpack.c.h.b16 %v3365
    %v4583 = vunpack.c.l.b16 %v3366
    %v4584 = vunpack.c.h.b16 %v3366
    %v4585 = vunpack.c.l.b16 %v3367
    %v4586 = vunpack.c.h.b16 %v3367
    %v4587 = vunpack.c.l.b16 %v3368
    %v4588 = vunpack.c.h.b16 %v3368
    %v4589 = vunpack.c.l.b16 %v3369
    %v4590 = vunpack.c.h.b16 %v3369
    %v4591 = vunpack.c.l.b16 %v3370
    %v4592 = vunpack.c.h.b16 %v3370
    %v4593 = vunpack.c.l.b16 %v3371
    %v4594 = vunpack.c.h.b16 %v3371
    %v4595 = vunpack.c.l.b16 %v3372
    %v4596 = vunpack.c.h.b16 %v3372
    %v4597 = vunpack.c.l.b16 %v3373
    %v4598 = vunpack.c.h.b16 %v3373
    %v4599 = vunpack.c.l.b16 %v3374
    %v4600 = vunpack.c.h.b16 %v3374
    %v4601 = vunpack.c.l.b16 %v3375
    %v4602 = vunpack.c.h.b16 %v3375
    %v4603 = vunpack.c.l.b16 %v3376
    %v4604 = vunpack.c.h.b16 %v3376
    %v4605 = vunpack.c.l.b16 %v3377
    %v4606 = vunpack.c.h.b16 %v3377
    %v4607 = vunpack.c.l.b16 %v3378
    %v4608 = vunpack.c.h.b16 %v3378
    %v4609 = vunpack.c.l.b16 %v3379
    %v4610 = vunpack.c.h.b16 %v3379
    %v4611 = vunpack.c.l.b16 %v3380
    %v4612 = vunpack.c.h.b16 %v3380
    %v4613 = vunpack.c.l.b16 %v3381
    %v4614 = vunpack.c.h.b16 %v3381
    %v4615 = vunpack.c.l.b16 %v3382
    %v4616 = vunpack.c.h.b16 %v3382
    %v4617 = vunpack.c.l.b16 %v3383
    %v4618 = vunpack.c.h.b16 %v3383
    %v4619 = vunpack.c.l.b16 %v3384
    %v4620 = vunpack.c.h.b16 %v3384
    %v4621 = vunpack.c.l.b16 %v3385
    %v4622 = vunpack.c.h.b16 %v3385
    %v4623 = vunpack.c.l.b16 %v3386
    %v4624 = vunpack.c.h.b16 %v3386
    %v4625 = vunpack.c.l.b16 %v3387
    %v4626 = vunpack.c.h.b16 %v3387
    %v4627 = vunpack.c.l.b16 %v3388
    %v4628 = vunpack.c.h.b16 %v3388
    %v4629 = vunpack.c.l.b16 %v3389
    %v4630 = vunpack.c.h.b16 %v3389
    %v4631 = vunpack.c.l.b16 %v3390
    %v4632 = vunpack.c.h.b16 %v3390
    %v4633 = vunpack.c.l.b16 %v3391
    %v4634 = vunpack.c.h.b16 %v3391
    %v4635 = vunpack.c.l.b16 %v3392
    %v4636 = vunpack.c.h.b16 %v3392
    %v4637 = vunpack.c.l.b16 %v3393
    %v4638 = vunpack.c.h.b16 %v3393
    %v4639 = vunpack.c.l.b16 %v3394
    %v4640 = vunpack.c.h.b16 %v3394
    %v4641 = vunpack.c.l.b16 %v3395
    %v4642 = vunpack.c.h.b16 %v3395
    %v4643 = vunpack.c.l.b16 %v3396
    %v4644 = vunpack.c.h.b16 %v3396
    %v4645 = vunpack.c.l.b16 %v3397
    %v4646 = vunpack.c.h.b16 %v3397
    %v4647 = vunpack.c.l.b16 %v3398
    %v4648 = vunpack.c.h.b16 %v3398
    %v4649 = vunpack.c.l.b16 %v3399
    %v4650 = vunpack.c.h.b16 %v3399
    %v4651 = vunpack.c.l.b16 %v3400
    %v4652 = vunpack.c.h.b16 %v3400
    %v4653 = vunpack.c.l.b16 %v3401
    %v4654 = vunpack.c.h.b16 %v3401
    %v4655 = vunpack.c.l.b16 %v3402
    %v4656 = vunpack.c.h.b16 %v3402
    %v4657 = vunpack.c.l.b16 %v3403
    %v4658 = vunpack.c.h.b16 %v3403
    %v4659 = vunpack.c.l.b16 %v3404
    %v4660 = vunpack.c.h.b16 %v3404
    %v4661 = vunpack.c.l.b16 %v3405
    %v4662 = vunpack.c.h.b16 %v3405
    %v4663 = vunpack.c.l.b16 %v3406
    %v4664 = vunpack.c.h.b16 %v3406
    %v4665 = vunpack.c.l.b16 %v3407
    %v4666 = vunpack.c.h.b16 %v3407
    %v4667 = vunpack.c.l.b16 %v3408
    %v4668 = vunpack.c.h.b16 %v3408
    %v4669 = vunpack.c.l.b16 %v3409
    %v4670 = vunpack.c.h.b16 %v3409
    %v4671 = vunpack.c.l.b16 %v3410
    %v4672 = vunpack.c.h.b16 %v3410
    %v4673 = vunpack.c.l.b16 %v3411
    %v4674 = vunpack.c.h.b16 %v3411
    %v4675 = vunpack.c.l.b16 %v3412
    %v4676 = vunpack.c.h.b16 %v3412
    %v4677 = vunpack.c.l.b16 %v3413
    %v4678 = vunpack.c.h.b16 %v3413
    %v4679 = vunpack.c.l.b16 %v3414
    %v4680 = vunpack.c.h.b16 %v3414
    %v4681 = vunpack.c.l.b16 %v3415
    %v4682 = vunpack.c.h.b16 %v3415
    %v4683 = vunpack.c.l.b16 %v3416
    %v4684 = vunpack.c.h.b16 %v3416
    %v4685 = vunpack.c.l.b16 %v3417
    %v4686 = vunpack.c.h.b16 %v3417
    %v4687 = vunpack.c.l.b16 %v3418
    %v4688 = vunpack.c.h.b16 %v3418
    %v4689 = vunpack.c.l.b16 %v3419
    %v4690 = vunpack.c.h.b16 %v3419
    %v4691 = vunpack.c.l.b16 %v3420
    %v4692 = vunpack.c.h.b16 %v3420
    %v4693 = vunpack.c.l.b16 %v3421
    %v4694 = vunpack.c.h.b16 %v3421
    %v4695 = vunpack.c.l.b16 %v3422
    %v4696 = vunpack.c.h.b16 %v3422
    %v4697 = vunpack.c.l.b16 %v3423
    %v4698 = vunpack.c.h.b16 %v3423
    %v4699 = vunpack.c.l.b16 %v3424
    %v4700 = vunpack.c.h.b16 %v3424
    %v4701 = vunpack.c.l.b16 %v3425
    %v4702 = vunpack.c.h.b16 %v3425
    %v4703 = vunpack.c.l.b16 %v3426
    %v4704 = vunpack.c.h.b16 %v3426
    %v4705 = vunpack.c.l.b16 %v3427
    %v4706 = vunpack.c.h.b16 %v3427
    %v4707 = vunpack.c.l.b16 %v3428
    %v4708 = vunpack.c.h.b16 %v3428
    %v4709 = vunpack.c.l.b16 %v3429
    %v4710 = vunpack.c.h.b16 %v3429
    %v4711 = vunpack.c.l.b16 %v3430
    %v4712 = vunpack.c.h.b16 %v3430
    %v4713 = vunpack.c.l.b16 %v3431
    %v4714 = vunpack.c.h.b16 %v3431
    %v4715 = vunpack.c.l.b16 %v3432
    %v4716 = vunpack.c.h.b16 %v3432
    %v4717 = vunpack.c.l.b16 %v3433
    %v4718 = vunpack.c.h.b16 %v3433
    %v4719 = vunpack.c.l.b16 %v3434
    %v4720 = vunpack.c.h.b16 %v3434
    %v4721 = vunpack.c.l.b16 %v3435
    %v4722 = vunpack.c.h.b16 %v3435
    %v4723 = vunpack.c.l.b16 %v3436
    %v4724 = vunpack.c.h.b16 %v3436
    %v4725 = vunpack.c.l.b16 %v3437
    %v4726 = vunpack.c.h.b16 %v3437
    %v4727 = vunpack.c.l.b16 %v3438
    %v4728 = vunpack.c.h.b16 %v3438
    %v4729 = vunpack.c.l.b16 %v3439
    %v4730 = vunpack.c.h.b16 %v3439
    %v4731 = vunpack.c.l.b16 %v3440
    %v4732 = vunpack.c.h.b16 %v3440
    %v4733 = vunpack.c.l.b16 %v3441
    %v4734 = vunpack.c.h.b16 %v3441
    %v4735 = vunpack.c.l.b16 %v3442
    %v4736 = vunpack.c.h.b16 %v3442
    %v4737 = vunpack.c.l.b16 %v3443
    %v4738 = vunpack.c.h.b16 %v3443
    %v4739 = vunpack.c.l.b16 %v3444
    %v4740 = vunpack.c.h.b16 %v3444
    %v4741 = vunpack.c.l.b16 %v3445
    %v4742 = vunpack.c.h.b16 %v3445
    %v4743 = vunpack.c.l.b16 %v3446
    %v4744 = vunpack.c.h.b16 %v3446
    %v4745 = vunpack.c.l.b16 %v3447
    %v4746 = vunpack.c.h.b16 %v3447
    %v4747 = vunpack.c.l.b16 %v3448
    %v4748 = vunpack.c.h.b16 %v3448
    %v4749 = vunpack.c.l.b16 %v3449
    %v4750 = vunpack.c.h.b16 %v3449
    %v4751 = vunpack.c.l.b16 %v3450
    %v4752 = vunpack.c.h.b16 %v3450
    %v4753 = vunpack.c.l.b16 %v3451
    %v4754 = vunpack.c.h.b16 %v3451
    %v4755 = vunpack.c.l.b16 %v3452
    %v4756 = vunpack.c.h.b16 %v3452
    %v4757 = vunpack.c.l.b16 %v3453
    %v4758 = vunpack.c.h.b16 %v3453
    %v4759 = vunpack.c.l.b16 %v3454
    %v4760 = vunpack.c.h.b16 %v3454
    %v4761 = vunpack.c.l.b16 %v3455
    %v4762 = vunpack.c.h.b16 %v3455
    %v4763 = vunpack.c.l.b16 %v3456
    %v4764 = vunpack.c.h.b16 %v3456
    %v4765 = vunpack.c.l.b16 %v3457
    %v4766 = vunpack.c.h.b16 %v3457
    %v4767 = vunpack.c.l.b16 %v3458
    %v4768 = vunpack.c.h.b16 %v3458
    %v4769 = vunpack.c.l.b16 %v3459
    %v4770 = vunpack.c.h.b16 %v3459
    %v4771 = vunpack.c.l.b16 %v3460
    %v4772 = vunpack.c.h.b16 %v3460
    %v4773 = vunpack.c.l.b16 %v3461
    %v4774 = vunpack.c.h.b16 %v3461
    %v4775 = vunpack.c.l.b16 %v3462
    %v4776 = vunpack.c.h.b16 %v3462
    %v4777 = vunpack.c.l.b16 %v3463
    %v4778 = vunpack.c.h.b16 %v3463
    %v4779 = vunpack.c.l.b16 %v3464
    %v4780 = vunpack.c.h.b16 %v3464
    %v4781 = vunpack.c.l.b16 %v3465
    %v4782 = vunpack.c.h.b16 %v3465
    %v4783 = vunpack.c.l.b16 %v3466
    %v4784 = vunpack.c.h.b16 %v3466
    %v4785 = vunpack.c.l.b16 %v3467
    %v4786 = vunpack.c.h.b16 %v3467
    %v4787 = vunpack.c.l.b16 %v3468
    %v4788 = vunpack.c.h.b16 %v3468
    %v4789 = vunpack.c.l.b16 %v3469
    %v4790 = vunpack.c.h.b16 %v3469
    %v4791 = vunpack.c.l.b16 %v3470
    %v4792 = vunpack.c.h.b16 %v3470
    %v4793 = vunpack.c.l.b16 %v3471
    %v4794 = vunpack.c.h.b16 %v3471
    %v4795 = vunpack.c.l.b16 %v3472
    %v4796 = vunpack.c.h.b16 %v3472
    %v4797 = vunpack.c.l.b16 %v3473
    %v4798 = vunpack.c.h.b16 %v3473
    %v4799 = vunpack.c.l.b16 %v3474
    %v4800 = vunpack.c.h.b16 %v3474
    %v4801 = vunpack.c.l.b16 %v3475
    %v4802 = vunpack.c.h.b16 %v3475
    %v4803 = vunpack.c.l.b16 %v3476
    %v4804 = vunpack.c.h.b16 %v3476
    %v4805 = vunpack.c.l.b16 %v3477
    %v4806 = vunpack.c.h.b16 %v3477
    %v4807 = vunpack.c.l.b16 %v3478
    %v4808 = vunpack.c.h.b16 %v3478
    %v4809 = vunpack.c.l.b16 %v3479
    %v4810 = vunpack.c.h.b16 %v3479
    %v4811 = vunpack.c.l.b16 %v3480
    %v4812 = vunpack.c.h.b16 %v3480
    %v4813 = vunpack.c.l.b16 %v3481
    %v4814 = vunpack.c.h.b16 %v3481
    %v4815 = vunpack.c.l.b16 %v3482
    %v4816 = vunpack.c.h.b16 %v3482
    %v4817 = vunpack.c.l.b16 %v3483
    %v4818 = vunpack.c.h.b16 %v3483
    %v4819 = vunpack.c.l.b16 %v3484
    %v4820 = vunpack.c.h.b16 %v3484
    %v4821 = vunpack.c.l.b16 %v3485
    %v4822 = vunpack.c.h.b16 %v3485
    %v4823 = vunpack.c.l.b16 %v3486
    %v4824 = vunpack.c.h.b16 %v3486
    %v4825 = vunpack.c.l.b16 %v3487
    %v4826 = vunpack.c.h.b16 %v3487
    %v4827 = vunpack.c.l.b16 %v3488
    %v4828 = vunpack.c.h.b16 %v3488
    %v4829 = vunpack.c.l.b16 %v3489
    %v4830 = vunpack.c.h.b16 %v3489
    %v4831 = vunpack.c.l.b16 %v3490
    %v4832 = vunpack.c.h.b16 %v3490
    %v4833 = vunpack.c.l.b16 %v3491
    %v4834 = vunpack.c.h.b16 %v3491
    %v4835 = vunpack.c.l.b16 %v3492
    %v4836 = vunpack.c.h.b16 %v3492
    %v4837 = vunpack.c.l.b16 %v3493
    %v4838 = vunpack.c.h.b16 %v3493
    %v4839 = vunpack.c.l.b16 %v3494
    %v4840 = vunpack.c.h.b16 %v3494
    %v4841 = vunpack.c.l.b16 %v3495
    %v4842 = vunpack.c.h.b16 %v3495
    %v4843 = vunpack.c.l.b16 %v3496
    %v4844 = vunpack.c.h.b16 %v3496
    %v4845 = vunpack.c.l.b16 %v3497
    %v4846 = vunpack.c.h.b16 %v3497
    %v4847 = vunpack.c.l.b16 %v3498
    %v4848 = vunpack.c.h.b16 %v3498
    %v4849 = vunpack.c.l.b16 %v3499
    %v4850 = vunpack.c.h.b16 %v3499
    %v4851 = vunpack.c.l.b16 %v3500
    %v4852 = vunpack.c.h.b16 %v3500
    %v4853 = vunpack.c.l.b16 %v3501
    %v4854 = vunpack.c.h.b16 %v3501
    %v4855 = vunpack.c.l.b16 %v3502
    %v4856 = vunpack.c.h.b16 %v3502
    %v4857 = vunpack.c.l.b16 %v3503
    %v4858 = vunpack.c.h.b16 %v3503
    %v4859 = vunpack.c.l.b16 %v3504
    %v4860 = vunpack.c.h.b16 %v3504
    %v4861 = vunpack.c.l.b16 %v3505
    %v4862 = vunpack.c.h.b16 %v3505
    %v4863 = vunpack.c.l.b16 %v3506
    %v4864 = vunpack.c.h.b16 %v3506
    %v4865 = vunpack.c.l.b16 %v3507
    %v4866 = vunpack.c.h.b16 %v3507
    %v4867 = vunpack.c.l.b16 %v3508
    %v4868 = vunpack.c.h.b16 %v3508
    %v4869 = vunpack.c.l.b16 %v3509
    %v4870 = vunpack.c.h.b16 %v3509
    %v4871 = vunpack.c.l.b16 %v3510
    %v4872 = vunpack.c.h.b16 %v3510
    %v4873 = vunpack.c.l.b16 %v3511
    %v4874 = vunpack.c.h.b16 %v3511
    %v4875 = vunpack.c.l.b16 %v3512
    %v4876 = vunpack.c.h.b16 %v3512
    %v4877 = vunpack.c.l.b16 %v3513
    %v4878 = vunpack.c.h.b16 %v3513
    %v4879 = vunpack.c.l.b16 %v3514
    %v4880 = vunpack.c.h.b16 %v3514
    %v4881 = vunpack.c.l.b16 %v3515
    %v4882 = vunpack.c.h.b16 %v3515
    %v4883 = vunpack.c.l.b16 %v3516
    %v4884 = vunpack.c.h.b16 %v3516
    %v4885 = vunpack.c.l.b16 %v3517
    %v4886 = vunpack.c.h.b16 %v3517
    %v4887 = vunpack.c.l.b16 %v3518
    %v4888 = vunpack.c.h.b16 %v3518
    %v4889 = vunpack.c.l.b16 %v3519
    %v4890 = vunpack.c.h.b16 %v3519
    %v4891 = vunpack.c.l.b16 %v3520
    %v4892 = vunpack.c.h.b16 %v3520
    %v4893 = vunpack.c.l.b16 %v3521
    %v4894 = vunpack.c.h.b16 %v3521
    %v4895 = vunpack.c.l.b16 %v3522
    %v4896 = vunpack.c.h.b16 %v3522
    %v4897 = vunpack.c.l.b16 %v3523
    %v4898 = vunpack.c.h.b16 %v3523
    %v4899 = vunpack.c.l.b16 %v3524
    %v4900 = vunpack.c.h.b16 %v3524
    %v4901 = vunpack.c.l.b16 %v3525
    %v4902 = vunpack.c.h.b16 %v3525
    %v4903 = vunpack.c.l.b16 %v3526
    %v4904 = vunpack.c.h.b16 %v3526
    %v4905 = vunpack.c.l.b16 %v3527
    %v4906 = vunpack.c.h.b16 %v3527
    %v4907 = vunpack.c.l.b16 %v3528
    %v4908 = vunpack.c.h.b16 %v3528
    %v4909 = vunpack.c.l.b16 %v3529
    %v4910 = vunpack.c.h.b16 %v3529
    %v4911 = vunpack.c.l.b16 %v3530
    %v4912 = vunpack.c.h.b16 %v3530
    %v4913 = vunpack.c.l.b16 %v3531
    %v4914 = vunpack.c.h.b16 %v3531
    %v4915 = vunpack.c.l.b16 %v3532
    %v4916 = vunpack.c.h.b16 %v3532
    %v4917 = vunpack.c.l.b16 %v3533
    %v4918 = vunpack.c.h.b16 %v3533
    %v4919 = vunpack.c.l.b16 %v3534
    %v4920 = vunpack.c.h.b16 %v3534
    %v4921 = vunpack.c.l.b16 %v3535
    %v4922 = vunpack.c.h.b16 %v3535
    %v4923 = vunpack.c.l.b16 %v3536
    %v4924 = vunpack.c.h.b16 %v3536
    %v4925 = vunpack.c.l.b16 %v3537
    %v4926 = vunpack.c.h.b16 %v3537
    %v4927 = vunpack.c.l.b16 %v3538
    %v4928 = vunpack.c.h.b16 %v3538
    %v4929 = vunpack.c.l.b16 %v3539
    %v4930 = vunpack.c.h.b16 %v3539
    %v4931 = vunpack.c.l.b16 %v3540
    %v4932 = vunpack.c.h.b16 %v3540
    %v4933 = vunpack.c.l.b16 %v3541
    %v4934 = vunpack.c.h.b16 %v3541
    %v4935 = vunpack.c.l.b16 %v3542
    %v4936 = vunpack.c.h.b16 %v3542
    %v4937 = vunpack.c.l.b16 %v3543
    %v4938 = vunpack.c.h.b16 %v3543
    %v4939 = vunpack.c.l.b16 %v3544
    %v4940 = vunpack.c.h.b16 %v3544
    %v4941 = vunpack.c.l.b16 %v3545
    %v4942 = vunpack.c.h.b16 %v3545
    %v4943 = vunpack.c.l.b16 %v3546
    %v4944 = vunpack.c.h.b16 %v3546
    %v4945 = vunpack.c.l.b16 %v3547
    %v4946 = vunpack.c.h.b16 %v3547
    %v4947 = vunpack.c.l.b16 %v3548
    %v4948 = vunpack.c.h.b16 %v3548
    %v4949 = vunpack.c.l.b16 %v3549
    %v4950 = vunpack.c.h.b16 %v3549
    %v4951 = vunpack.c.l.b16 %v3550
    %v4952 = vunpack.c.h.b16 %v3550
    %v4953 = vunpack.c.l.b16 %v3551
    %v4954 = vunpack.c.h.b16 %v3551
    %v4955 = vunpack.c.l.b16 %v3552
    %v4956 = vunpack.c.h.b16 %v3552
    %v4957 = vunpack.c.l.b16 %v3553
    %v4958 = vunpack.c.h.b16 %v3553
    %v4959 = vunpack.c.l.b16 %v3554
    %v4960 = vunpack.c.h.b16 %v3554
    %v4961 = vunpack.c.l.b16 %v3555
    %v4962 = vunpack.c.h.b16 %v3555
    %v4963 = vunpack.c.l.b16 %v3556
    %v4964 = vunpack.c.h.b16 %v3556
    %v4965 = vunpack.c.l.b16 %v3557
    %v4966 = vunpack.c.h.b16 %v3557
    %v4967 = vunpack.c.l.b16 %v3558
    %v4968 = vunpack.c.h.b16 %v3558
    %v4969 = vunpack.c.l.b16 %v3559
    %v4970 = vunpack.c.h.b16 %v3559
    %v4971 = vunpack.c.l.b16 %v3560
    %v4972 = vunpack.c.h.b16 %v3560
    %v4973 = vunpack.c.l.b16 %v3561
    %v4974 = vunpack.c.h.b16 %v3561
    %v4975 = vunpack.c.l.b16 %v3562
    %v4976 = vunpack.c.h.b16 %v3562
    %v4977 = vunpack.c.l.b16 %v3563
    %v4978 = vunpack.c.h.b16 %v3563
    %v4979 = vunpack.c.l.b16 %v3564
    %v4980 = vunpack.c.h.b16 %v3564
    %v4981 = vunpack.c.l.b16 %v3565
    %v4982 = vunpack.c.h.b16 %v3565
    %v4983 = vunpack.c.l.b16 %v3566
    %v4984 = vunpack.c.h.b16 %v3566
    %v4985 = vunpack.c.l.b16 %v3567
    %v4986 = vunpack.c.h.b16 %v3567
    %v4987 = vunpack.c.l.b16 %v3568
    %v4988 = vunpack.c.h.b16 %v3568
    %v4989 = vunpack.c.l.b16 %v3569
    %v4990 = vunpack.c.h.b16 %v3569
    %v4991 = vunpack.c.l.b16 %v3570
    %v4992 = vunpack.c.h.b16 %v3570
    %v4993 = vunpack.c.l.b16 %v3571
    %v4994 = vunpack.c.h.b16 %v3571
    %v4995 = vunpack.c.l.b16 %v3572
    %v4996 = vunpack.c.h.b16 %v3572
    %v4997 = vunpack.c.l.b16 %v3573
    %v4998 = vunpack.c.h.b16 %v3573
    %v4999 = vunpack.c.l.b16 %v3574
    %v5000 = vunpack.c.h.b16 %v3574
    %v5001 = vunpack.c.l.b16 %v3575
    %v5002 = vunpack.c.h.b16 %v3575
    %v5003 = vunpack.c.l.b16 %v3576
    %v5004 = vunpack.c.h.b16 %v3576
    %v5005 = vunpack.c.l.b16 %v3577
    %v5006 = vunpack.c.h.b16 %v3577
    %v5007 = vunpack.c.l.b16 %v3578
    %v5008 = vunpack.c.h.b16 %v3578
    %v5009 = vunpack.c.l.b16 %v3579
    %v5010 = vunpack.c.h.b16 %v3579
    %v5011 = vunpack.c.l.b16 %v3580
    %v5012 = vunpack.c.h.b16 %v3580
    %v5013 = vunpack.c.l.b16 %v3581
    %v5014 = vunpack.c.h.b16 %v3581
    %v5015 = vunpack.c.l.b16 %v3582
    %v5016 = vunpack.c.h.b16 %v3582
    %v5017 = vunpack.c.l.b16 %v3583
    %v5018 = vunpack.c.h.b16 %v3583
    %v5019 = vunpack.c.l.b16 %v3584
    %v5020 = vunpack.c.h.b16 %v3584
    %v5021 = vunpack.c.l.b16 %v3585
    %v5022 = vunpack.c.h.b16 %v3585
    %v5023 = vunpack.c.l.b16 %v3586
    %v5024 = vunpack.c.h.b16 %v3586
    %v5025 = vunpack.c.l.b16 %v3587
    %v5026 = vunpack.c.h.b16 %v3587
    %v5027 = vunpack.c.l.b16 %v3588
    %v5028 = vunpack.c.h.b16 %v3588
    %v5029 = vunpack.c.l.b16 %v3589
    %v5030 = vunpack.c.h.b16 %v3589
    %v5031 = vunpack.c.l.b16 %v3590
    %v5032 = vunpack.c.h.b16 %v3590
    %v5033 = vunpack.c.l.b16 %v3591
    %v5034 = vunpack.c.h.b16 %v3591
    %v5035 = vunpack.c.l.b16 %v3592
    %v5036 = vunpack.c.h.b16 %v3592
    %v5037 = vunpack.c.l.b16 %v3593
    %v5038 = vunpack.c.h.b16 %v3593
    %v5039 = vunpack.c.l.b16 %v3594
    %v5040 = vunpack.c.h.b16 %v3594
    %v5041 = vunpack.c.l.b16 %v3595
    %v5042 = vunpack.c.h.b16 %v3595
    %v5043 = vunpack.c.l.b16 %v3596
    %v5044 = vunpack.c.h.b16 %v3596
    %v5045 = vunpack.c.l.b16 %v3597
    %v5046 = vunpack.c.h.b16 %v3597
    %v5047 = vunpack.c.l.b16 %v3598
    %v5048 = vunpack.c.h.b16 %v3598
    %v5049 = vunpack.c.l.b16 %v3599
    %v5050 = vunpack.c.h.b16 %v3599
    %v5051 = vunpack.c.l.b16 %v3600
    %v5052 = vunpack.c.h.b16 %v3600
    %v5053 = vunpack.c.l.b16 %v3601
    %v5054 = vunpack.c.h.b16 %v3601
    %v5055 = vunpack.c.l.b16 %v3602
    %v5056 = vunpack.c.h.b16 %v3602
    %v5057 = vunpack.c.l.b16 %v3603
    %v5058 = vunpack.c.h.b16 %v3603
    %v5059 = vunpack.c.l.b16 %v3604
    %v5060 = vunpack.c.h.b16 %v3604
    %v5061 = vunpack.c.l.b16 %v3605
    %v5062 = vunpack.c.h.b16 %v3605
    %v5063 = vunpack.c.l.b16 %v3606
    %v5064 = vunpack.c.h.b16 %v3606
    %v5065 = vunpack.c.l.b16 %v3607
    %v5066 = vunpack.c.h.b16 %v3607
    %v5067 = vunpack.c.l.b16 %v3608
    %v5068 = vunpack.c.h.b16 %v3608
    %v5069 = vunpack.c.l.b16 %v3609
    %v5070 = vunpack.c.h.b16 %v3609
    %v5071 = vunpack.c.l.b16 %v3610
    %v5072 = vunpack.c.h.b16 %v3610
    %v5073 = vunpack.c.l.b16 %v3611
    %v5074 = vunpack.c.h.b16 %v3611
    %v5075 = vunpack.c.l.b16 %v3612
    %v5076 = vunpack.c.h.b16 %v3612
    %v5077 = vunpack.c.l.b16 %v3613
    %v5078 = vunpack.c.h.b16 %v3613
    %v5079 = vunpack.c.l.b16 %v3614
    %v5080 = vunpack.c.h.b16 %v3614
    %v5081 = vunpack.c.l.b16 %v3615
    %v5082 = vunpack.c.h.b16 %v3615
    %v5083 = vunpack.c.l.b16 %v3616
    %v5084 = vunpack.c.h.b16 %v3616
    %v5085 = vunpack.c.l.b16 %v3617
    %v5086 = vunpack.c.h.b16 %v3617
    %v5087 = vunpack.c.l.b16 %v3618
    %v5088 = vunpack.c.h.b16 %v3618
    %v5089 = vunpack.c.l.b16 %v3619
    %v5090 = vunpack.c.h.b16 %v3619
    %v5091 = vunpack.c.l.b16 %v3620
    %v5092 = vunpack.c.h.b16 %v3620
    %v5093 = vunpack.c.l.b16 %v3621
    %v5094 = vunpack.c.h.b16 %v3621
    %v5095 = vunpack.c.l.b16 %v3622
    %v5096 = vunpack.c.h.b16 %v3622
    %v5097 = vunpack.c.l.b16 %v3623
    %v5098 = vunpack.c.h.b16 %v3623
    %v5099 = vunpack.c.l.b16 %v3624
    %v5100 = vunpack.c.h.b16 %v3624
    %v5101 = vunpack.c.l.b16 %v3625
    %v5102 = vunpack.c.h.b16 %v3625
    %v5103 = vunpack.c.l.b16 %v3626
    %v5104 = vunpack.c.h.b16 %v3626
    %v5105 = vunpack.c.l.b16 %v3627
    %v5106 = vunpack.c.h.b16 %v3627
    %v5107 = vunpack.c.l.b16 %v3628
    %v5108 = vunpack.c.h.b16 %v3628
    %v5109 = vunpack.c.l.b16 %v3629
    %v5110 = vunpack.c.h.b16 %v3629
    %v5111 = vunpack.c.l.b16 %v3630
    %v5112 = vunpack.c.h.b16 %v3630
    %v5113 = vunpack.c.l.b16 %v3631
    %v5114 = vunpack.c.h.b16 %v3631
    %v5115 = vunpack.c.l.b16 %v3632
    %v5116 = vunpack.c.h.b16 %v3632
    %v5117 = vunpack.c.l.b16 %v3633
    %v5118 = vunpack.c.h.b16 %v3633
    %v5119 = vunpack.c.l.b16 %v3634
    %v5120 = vunpack.c.h.b16 %v3634
    %v5121 = vunpack.c.l.b16 %v3635
    %v5122 = vunpack.c.h.b16 %v3635
    %v5123 = vunpack.c.l.b16 %v3636
    %v5124 = vunpack.c.h.b16 %v3636
    %v5125 = vunpack.c.l.b16 %v3637
    %v5126 = vunpack.c.h.b16 %v3637
    %v5127 = vunpack.c.l.b16 %v3638
    %v5128 = vunpack.c.h.b16 %v3638
    %v5129 = vunpack.c.l.b16 %v3639
    %v5130 = vunpack.c.h.b16 %v3639
    %v5131 = vunpack.c.l.b16 %v3640
    %v5132 = vunpack.c.h.b16 %v3640
    %v5133 = vunpack.c.l.b16 %v3641
    %v5134 = vunpack.c.h.b16 %v3641
    %v5135 = vunpack.c.l.b16 %v3642
    %v5136 = vunpack.c.h.b16 %v3642
    %v5137 = vunpack.c.l.b16 %v3643
    %v5138 = vunpack.c.h.b16 %v3643
    %v5139 = vunpack.c.l.b16 %v3644
    %v5140 = vunpack.c.h.b16 %v3644
    %v5141 = vunpack.c.l.b16 %v3645
    %v5142 = vunpack.c.h.b16 %v3645
    %v5143 = vunpack.c.l.b16 %v3646
    %v5144 = vunpack.c.h.b16 %v3646
    %v5145 = vunpack.c.l.b16 %v3647
    %v5146 = vunpack.c.h.b16 %v3647
    %v5147 = vunpack.c.l.b16 %v3648
    %v5148 = vunpack.c.h.b16 %v3648
    %v5149 = vunpack.c.l.b16 %v3649
    %v5150 = vunpack.c.h.b16 %v3649
    %v5151 = vunpack.c.l.b16 %v3650
    %v5152 = vunpack.c.h.b16 %v3650
    %v5153 = vunpack.c.l.b16 %v3651
    %v5154 = vunpack.c.h.b16 %v3651
    %v5155 = vunpack.c.l.b16 %v3652
    %v5156 = vunpack.c.h.b16 %v3652
    %v5157 = vunpack.c.l.b16 %v3653
    %v5158 = vunpack.c.h.b16 %v3653
    %v5159 = vunpack.c.l.b16 %v3654
    %v5160 = vunpack.c.h.b16 %v3654
    %v5161 = vunpack.c.l.b16 %v3655
    %v5162 = vunpack.c.h.b16 %v3655
    %v5163 = vunpack.c.l.b16 %v3656
    %v5164 = vunpack.c.h.b16 %v3656
    %v5165 = vunpack.c.l.b16 %v3657
    %v5166 = vunpack.c.h.b16 %v3657
    %v5167 = vunpack.c.l.b16 %v3658
    %v5168 = vunpack.c.h.b16 %v3658
    %v5169 = vunpack.c.l.b16 %v3659
    %v5170 = vunpack.c.h.b16 %v3659
    %v5171 = vunpack.c.l.b16 %v3660
    %v5172 = vunpack.c.h.b16 %v3660
    %v5173 = vunpack.c.l.b16 %v3661
    %v5174 = vunpack.c.h.b16 %v3661
    %v5175 = vunpack.c.l.b16 %v3662
    %v5176 = vunpack.c.h.b16 %v3662
    %v5177 = vunpack.c.l.b16 %v3663
    %v5178 = vunpack.c.h.b16 %v3663
    %v5179 = vunpack.c.l.b16 %v3664
    %v5180 = vunpack.c.h.b16 %v3664
    %v5181 = vunpack.c.l.b16 %v3665
    %v5182 = vunpack.c.h.b16 %v3665
    %v5183 = vunpack.c.l.b16 %v3666
    %v5184 = vunpack.c.h.b16 %v3666
    %v5185 = vunpack.c.l.b16 %v3667
    %v5186 = vunpack.c.h.b16 %v3667
    %v5187 = vunpack.c.l.b16 %v3668
    %v5188 = vunpack.c.h.b16 %v3668
    %v5189 = vunpack.c.l.b16 %v3669
    %v5190 = vunpack.c.h.b16 %v3669
    %v5191 = vunpack.c.l.b16 %v3670
    %v5192 = vunpack.c.h.b16 %v3670
    %v5193 = vunpack.c.l.b16 %v3671
    %v5194 = vunpack.c.h.b16 %v3671
    %v5195 = vunpack.c.l.b16 %v3672
    %v5196 = vunpack.c.h.b16 %v3672
    %v5197 = vunpack.c.l.b16 %v3673
    %v5198 = vunpack.c.h.b16 %v3673
    %v5199 = vunpack.c.l.b16 %v3674
    %v5200 = vunpack.c.h.b16 %v3674
    %v5201 = vunpack.c.l.b16 %v3675
    %v5202 = vunpack.c.h.b16 %v3675
    %v5203 = vunpack.c.l.b16 %v3676
    %v5204 = vunpack.c.h.b16 %v3676
    %v5205 = vunpack.c.l.b16 %v3677
    %v5206 = vunpack.c.h.b16 %v3677
    %v5207 = vunpack.c.l.b16 %v3678
    %v5208 = vunpack.c.h.b16 %v3678
    %v5209 = vunpack.c.l.b16 %v3679
    %v5210 = vunpack.c.h.b16 %v3679
    %v5211 = vunpack.c.l.b16 %v3680
    %v5212 = vunpack.c.h.b16 %v3680
    %v5213 = vunpack.c.l.b16 %v3681
    %v5214 = vunpack.c.h.b16 %v3681
    %v5215 = vunpack.c.l.b16 %v3682
    %v5216 = vunpack.c.h.b16 %v3682
    %v5217 = vunpack.c.l.b16 %v3683
    %v5218 = vunpack.c.h.b16 %v3683
    %v5219 = vunpack.c.l.b16 %v3684
    %v5220 = vunpack.c.h.b16 %v3684
    %v5221 = vunpack.c.l.b16 %v3685
    %v5222 = vunpack.c.h.b16 %v3685
    %v5223 = vunpack.c.l.b16 %v3686
    %v5224 = vunpack.c.h.b16 %v3686
    %v5225 = vunpack.c.l.b16 %v3687
    %v5226 = vunpack.c.h.b16 %v3687
    %v5227 = vunpack.c.l.b16 %v3688
    %v5228 = vunpack.c.h.b16 %v3688
    %v5229 = vunpack.c.l.b16 %v3689
    %v5230 = vunpack.c.h.b16 %v3689
    %v5231 = vunpack.c.l.b16 %v3690
    %v5232 = vunpack.c.h.b16 %v3690
    %v5233 = vunpack.c.l.b16 %v3691
    %v5234 = vunpack.c.h.b16 %v3691
    %v5235 = vunpack.c.l.b16 %v3692
    %v5236 = vunpack.c.h.b16 %v3692
    %v5237 = vunpack.c.l.b16 %v3693
    %v5238 = vunpack.c.h.b16 %v3693
    %v5239 = vunpack.c.l.b16 %v3694
    %v5240 = vunpack.c.h.b16 %v3694
    %v5241 = vunpack.c.l.b16 %v3695
    %v5242 = vunpack.c.h.b16 %v3695
    %v5243 = vunpack.c.l.b16 %v3696
    %v5244 = vunpack.c.h.b16 %v3696
    %v5245 = vunpack.c.l.b16 %v3697
    %v5246 = vunpack.c.h.b16 %v3697
    %v5247 = vunpack.c.l.b16 %v3698
    %v5248 = vunpack.c.h.b16 %v3698
    %v5249 = vunpack.c.l.b16 %v3699
    %v5250 = vunpack.c.h.b16 %v3699
    %v5251 = vunpack.c.l.b16 %v3700
    %v5252 = vunpack.c.h.b16 %v3700
    %v5253 = vunpack.c.l.b16 %v3701
    %v5254 = vunpack.c.h.b16 %v3701
    %v5255 = vunpack.c.l.b16 %v3702
    %v5256 = vunpack.c.h.b16 %v3702
    %v5257 = vunpack.c.l.b16 %v3703
    %v5258 = vunpack.c.h.b16 %v3703
    %v5259 = vunpack.c.l.b16 %v3704
    %v5260 = vunpack.c.h.b16 %v3704
    %v5261 = vunpack.c.l.b16 %v3705
    %v5262 = vunpack.c.h.b16 %v3705
    %v5263 = vunpack.c.l.b16 %v3706
    %v5264 = vunpack.c.h.b16 %v3706
    %v5265 = vunpack.c.l.b16 %v3707
    %v5266 = vunpack.c.h.b16 %v3707
    %v5267 = vunpack.c.l.b16 %v3708
    %v5268 = vunpack.c.h.b16 %v3708
    %v5269 = vunpack.c.l.b16 %v3709
    %v5270 = vunpack.c.h.b16 %v3709
    %v5271 = vunpack.c.l.b16 %v3710
    %v5272 = vunpack.c.h.b16 %v3710
    %v5273 = vunpack.c.l.b16 %v3711
    %v5274 = vunpack.c.h.b16 %v3711
    %v5275 = vunpack.c.l.b16 %v3712
    %v5276 = vunpack.c.h.b16 %v3712
    %v5277 = vunpack.c.l.b16 %v3713
    %v5278 = vunpack.c.h.b16 %v3713
    %v5279 = vunpack.c.l.b16 %v3714
    %v5280 = vunpack.c.h.b16 %v3714
    %v5281 = vunpack.c.l.b16 %v3715
    %v5282 = vunpack.c.h.b16 %v3715
    %v5283 = vunpack.c.l.b16 %v3716
    %v5284 = vunpack.c.h.b16 %v3716
    %v5285 = vunpack.c.l.b16 %v3717
    %v5286 = vunpack.c.h.b16 %v3717
    %v5287 = vunpack.c.l.b16 %v3718
    %v5288 = vunpack.c.h.b16 %v3718
    %v5289 = vunpack.c.l.b16 %v3719
    %v5290 = vunpack.c.h.b16 %v3719
    %v5291 = vunpack.c.l.b16 %v3720
    %v5292 = vunpack.c.h.b16 %v3720
    %v5293 = vunpack.c.l.b16 %v3721
    %v5294 = vunpack.c.h.b16 %v3721
    %v5295 = vunpack.c.l.b16 %v3722
    %v5296 = vunpack.c.h.b16 %v3722
    %v5297 = vunpack.c.l.b16 %v3723
    %v5298 = vunpack.c.h.b16 %v3723
    %v5299 = vunpack.c.l.b16 %v3724
    %v5300 = vunpack.c.h.b16 %v3724
    %v5301 = vunpack.c.l.b16 %v3725
    %v5302 = vunpack.c.h.b16 %v3725
    %v5303 = vunpack.c.l.b16 %v3726
    %v5304 = vunpack.c.h.b16 %v3726
    %v5305 = vpack.c.b16 %v4289, %v4281
    %v5306 = vpack.c.b16 %v4290, %v4282
    %v5307 = vpack.c.b16 %v4291, %v4283
    %v5308 = vpack.c.b16 %v4292, %v4284
    %v5309 = vpack.c.b16 %v4293, %v4285
    %v5310 = vpack.c.b16 %v4294, %v4286
    %v5311 = vpack.c.b16 %v4295, %v4287
    %v5312 = vpack.c.b16 %v4296, %v4288
    %v5313 = vpack.c.b16 %v4305, %v4297
    %v5314 = vpack.c.b16 %v4306, %v4298
    %v5315 = vpack.c.b16 %v4307, %v4299
    %v5316 = vpack.c.b16 %v4308, %v4300
    %v5317 = vpack.c.b16 %v4309, %v4301
    %v5318 = vpack.c.b16 %v4310, %v4302
    %v5319 = vpack.c.b16 %v4311, %v4303
    %v5320 = vpack.c.b16 %v4312, %v4304
    %v5321 = vpack.c.b16 %v4321, %v4313
    %v5322 = vpack.c.b16 %v4322, %v4314
    %v5323 = vpack.c.b16 %v4323, %v4315
    %v5324 = vpack.c.b16 %v4324, %v4316
    %v5325 = vpack.c.b16 %v4325, %v4317
    %v5326 = vpack.c.b16 %v4326, %v4318
    %v5327 = vpack.c.b16 %v4327, %v4319
    %v5328 = vpack.c.b16 %v4328, %v4320
    %v5329 = vpack.c.b16 %v4337, %v4329
    %v5330 = vpack.c.b16 %v4338, %v4330
    %v5331 = vpack.c.b16 %v4339, %v4331
    %v5332 = vpack.c.b16 %v4340, %v4332
    %v5333 = vpack.c.b16 %v4341, %v4333
    %v5334 = vpack.c.b16 %v4342, %v4334
    %v5335 = vpack.c.b16 %v4343, %v4335
    %v5336 = vpack.c.b16 %v4344, %v4336
    %v5337 = vpack.c.b16 %v4353, %v4345
    %v5338 = vpack.c.b16 %v4354, %v4346
    %v5339 = vpack.c.b16 %v4355, %v4347
    %v5340 = vpack.c.b16 %v4356, %v4348
    %v5341 = vpack.c.b16 %v4357, %v4349
    %v5342 = vpack.c.b16 %v4358, %v4350
    %v5343 = vpack.c.b16 %v4359, %v4351
    %v5344 = vpack.c.b16 %v4360, %v4352
    %v5345 = vpack.c.b16 %v4369, %v4361
    %v5346 = vpack.c.b16 %v4370, %v4362
    %v5347 = vpack.c.b16 %v4371, %v4363
    %v5348 = vpack.c.b16 %v4372, %v4364
    %v5349 = vpack.c.b16 %v4373, %v4365
    %v5350 = vpack.c.b16 %v4374, %v4366
    %v5351 = vpack.c.b16 %v4375, %v4367
    %v5352 = vpack.c.b16 %v4376, %v4368
    %v5353 = vpack.c.b16 %v4385, %v4377
    %v5354 = vpack.c.b16 %v4386, %v4378
    %v5355 = vpack.c.b16 %v4387, %v4379
    %v5356 = vpack.c.b16 %v4388, %v4380
    %v5357 = vpack.c.b16 %v4389, %v4381
    %v5358 = vpack.c.b16 %v4390, %v4382
    %v5359 = vpack.c.b16 %v4391, %v4383
    %v5360 = vpack.c.b16 %v4392, %v4384
    %v5361 = vpack.c.b16 %v4401, %v4393
    %v5362 = vpack.c.b16 %v4402, %v4394
    %v5363 = vpack.c.b16 %v4403, %v4395
    %v5364 = vpack.c.b16 %v4404, %v4396
    %v5365 = vpack.c.b16 %v4405, %v4397
    %v5366 = vpack.c.b16 %v4406, %v4398
    %v5367 = vpack.c.b16 %v4407, %v4399
    %v5368 = vpack.c.b16 %v4408, %v4400
    %v5369 = vpack.c.b16 %v4417, %v4409
    %v5370 = vpack.c.b16 %v4418, %v4410
    %v5371 = vpack.c.b16 %v4419, %v4411
    %v5372 = vpack.c.b16 %v4420, %v4412
    %v5373 = vpack.c.b16 %v4421, %v4413
    %v5374 = vpack.c.b16 %v4422, %v4414
    %v5375 = vpack.c.b16 %v4423, %v4415
    %v5376 = vpack.c.b16 %v4424, %v4416
    %v5377 = vpack.c.b16 %v4433, %v4425
    %v5378 = vpack.c.b16 %v4434, %v4426
    %v5379 = vpack.c.b16 %v4435, %v4427
    %v5380 = vpack.c.b16 %v4436, %v4428
    %v5381 = vpack.c.b16 %v4437, %v4429
    %v5382 = vpack.c.b16 %v4438, %v4430
    %v5383 = vpack.c.b16 %v4439, %v4431
    %v5384 = vpack.c.b16 %v4440, %v4432
    %v5385 = vpack.c.b16 %v4449, %v4441
    %v5386 = vpack.c.b16 %v4450, %v4442
    %v5387 = vpack.c.b16 %v4451, %v4443
    %v5388 = vpack.c.b16 %v4452, %v4444
    %v5389 = vpack.c.b16 %v4453, %v4445
    %v5390 = vpack.c.b16 %v4454, %v4446
    %v5391 = vpack.c.b16 %v4455, %v4447
    %v5392 = vpack.c.b16 %v4456, %v4448
    %v5393 = vpack.c.b16 %v4465, %v4457
    %v5394 = vpack.c.b16 %v4466, %v4458
    %v5395 = vpack.c.b16 %v4467, %v4459
    %v5396 = vpack.c.b16 %v4468, %v4460
    %v5397 = vpack.c.b16 %v4469, %v4461
    %v5398 = vpack.c.b16 %v4470, %v4462
    %v5399 = vpack.c.b16 %v4471, %v4463
    %v5400 = vpack.c.b16 %v4472, %v4464
    %v5401 = vpack.c.b16 %v4481, %v4473
    %v5402 = vpack.c.b16 %v4482, %v4474
    %v5403 = vpack.c.b16 %v4483, %v4475
    %v5404 = vpack.c.b16 %v4484, %v4476
    %v5405 = vpack.c.b16 %v4485, %v4477
    %v5406 = vpack.c.b16 %v4486, %v4478
    %v5407 = vpack.c.b16 %v4487, %v4479
    %v5408 = vpack.c.b16 %v4488, %v4480
    %v5409 = vpack.c.b16 %v4497, %v4489
    %v5410 = vpack.c.b16 %v4498, %v4490
    %v5411 = vpack.c.b16 %v4499, %v4491
    %v5412 = vpack.c.b16 %v4500, %v4492
    %v5413 = vpack.c.b16 %v4501, %v4493
    %v5414 = vpack.c.b16 %v4502, %v4494
    %v5415 = vpack.c.b16 %v4503, %v4495
    %v5416 = vpack.c.b16 %v4504, %v4496
    %v5417 = vpack.c.b16 %v4513, %v4505
    %v5418 = vpack.c.b16 %v4514, %v4506
    %v5419 = vpack.c.b16 %v4515, %v4507
    %v5420 = vpack.c.b16 %v4516, %v4508
    %v5421 = vpack.c.b16 %v4517, %v4509
    %v5422 = vpack.c.b16 %v4518, %v4510
    %v5423 = vpack.c.b16 %v4519, %v4511
    %v5424 = vpack.c.b16 %v4520, %v4512
    %v5425 = vpack.c.b16 %v4529, %v4521
    %v5426 = vpack.c.b16 %v4530, %v4522
    %v5427 = vpack.c.b16 %v4531, %v4523
    %v5428 = vpack.c.b16 %v4532, %v4524
    %v5429 = vpack.c.b16 %v4533, %v4525
    %v5430 = vpack.c.b16 %v4534, %v4526
    %v5431 = vpack.c.b16 %v4535, %v4527
    %v5432 = vpack.c.b16 %v4536, %v4528
    %v5433 = vpack.c.b16 %v4545, %v4537
    %v5434 = vpack.c.b16 %v4546, %v4538
    %v5435 = vpack.c.b16 %v4547, %v4539
    %v5436 = vpack.c.b16 %v4548, %v4540
    %v5437 = vpack.c.b16 %v4549, %v4541
    %v5438 = vpack.c.b16 %v4550, %v4542
    %v5439 = vpack.c.b16 %v4551, %v4543
    %v5440 = vpack.c.b16 %v4552, %v4544
    %v5441 = vpack.c.b16 %v4561, %v4553
    %v5442 = vpack.c.b16 %v4562, %v4554
    %v5443 = vpack.c.b16 %v4563, %v4555
    %v5444 = vpack.c.b16 %v4564, %v4556
    %v5445 = vpack.c.b16 %v4565, %v4557
    %v5446 = vpack.c.b16 %v4566, %v4558
    %v5447 = vpack.c.b16 %v4567, %v4559
    %v5448 = vpack.c.b16 %v4568, %v4560
    %v5449 = vpack.c.b16 %v4577, %v4569
    %v5450 = vpack.c.b16 %v4578, %v4570
    %v5451 = vpack.c.b16 %v4579, %v4571
    %v5452 = vpack.c.b16 %v4580, %v4572
    %v5453 = vpack.c.b16 %v4581, %v4573
    %v5454 = vpack.c.b16 %v4582, %v4574
    %v5455 = vpack.c.b16 %v4583, %v4575
    %v5456 = vpack.c.b16 %v4584, %v4576
    %v5457 = vpack.c.b16 %v4593, %v4585
    %v5458 = vpack.c.b16 %v4594, %v4586
    %v5459 = vpack.c.b16 %v4595, %v4587
    %v5460 = vpack.c.b16 %v4596, %v4588
    %v5461 = vpack.c.b16 %v4597, %v4589
    %v5462 = vpack.c.b16 %v4598, %v4590
    %v5463 = vpack.c.b16 %v4599, %v4591
    %v5464 = vpack.c.b16 %v4600, %v4592
    %v5465 = vpack.c.b16 %v4609, %v4601
    %v5466 = vpack.c.b16 %v4610, %v4602
    %v5467 = vpack.c.b16 %v4611, %v4603
    %v5468 = vpack.c.b16 %v4612, %v4604
    %v5469 = vpack.c.b16 %v4613, %v4605
    %v5470 = vpack.c.b16 %v4614, %v4606
    %v5471 = vpack.c.b16 %v4615, %v4607
    %v5472 = vpack.c.b16 %v4616, %v4608
    %v5473 = vpack.c.b16 %v4625, %v4617
    %v5474 = vpack.c.b16 %v4626, %v4618
    %v5475 = vpack.c.b16 %v4627, %v4619
    %v5476 = vpack.c.b16 %v4628, %v4620
    %v5477 = vpack.c.b16 %v4629, %v4621
    %v5478 = vpack.c.b16 %v4630, %v4622
    %v5479 = vpack.c.b16 %v4631, %v4623
    %v5480 = vpack.c.b16 %v4632, %v4624
    %v5481 = vpack.c.b16 %v4641, %v4633
    %v5482 = vpack.c.b16 %v4642, %v4634
    %v5483 = vpack.c.b16 %v4643, %v4635
    %v5484 = vpack.c.b16 %v4644, %v4636
    %v5485 = vpack.c.b16 %v4645, %v4637
    %v5486 = vpack.c.b16 %v4646, %v4638
    %v5487 = vpack.c.b16 %v4647, %v4639
    %v5488 = vpack.c.b16 %v4648, %v4640
    %v5489 = vpack.c.b16 %v4657, %v4649
    %v5490 = vpack.c.b16 %v4658, %v4650
    %v5491 = vpack.c.b16 %v4659, %v4651
    %v5492 = vpack.c.b16 %v4660, %v4652
    %v5493 = vpack.c.b16 %v4661, %v4653
    %v5494 = vpack.c.b16 %v4662, %v4654
    %v5495 = vpack.c.b16 %v4663, %v4655
    %v5496 = vpack.c.b16 %v4664, %v4656
    %v5497 = vpack.c.b16 %v4673, %v4665
    %v5498 = vpack.c.b16 %v4674, %v4666
    %v5499 = vpack.c.b16 %v4675, %v4667
    %v5500 = vpack.c.b16 %v4676, %v4668
    %v5501 = vpack.c.b16 %v4677, %v4669
    %v5502 = vpack.c.b16 %v4678, %v4670
    %v5503 = vpack.c.b16 %v4679, %v4671
    %v5504 = vpack.c.b16 %v4680, %v4672
    %v5505 = vpack.c.b16 %v4689, %v4681
    %v5506 = vpack.c.b16 %v4690, %v4682
    %v5507 = vpack.c.b16 %v4691, %v4683
    %v5508 = vpack.c.b16 %v4692, %v4684
    %v5509 = vpack.c.b16 %v4693, %v4685
    %v5510 = vpack.c.b16 %v4694, %v4686
    %v5511 = vpack.c.b16 %v4695, %v4687
    %v5512 = vpack.c.b16 %v4696, %v4688
    %v5513 = vpack.c.b16 %v4705, %v4697
    %v5514 = vpack.c.b16 %v4706, %v4698
    %v5515 = vpack.c.b16 %v4707, %v4699
    %v5516 = vpack.c.b16 %v4708, %v4700
    %v5517 = vpack.c.b16 %v4709, %v4701
    %v5518 = vpack.c.b16 %v4710, %v4702
    %v5519 = vpack.c.b16 %v4711, %v4703
    %v5520 = vpack.c.b16 %v4712, %v4704
    %v5521 = vpack.c.b16 %v4721, %v4713
    %v5522 = vpack.c.b16 %v4722, %v4714
    %v5523 = vpack.c.b16 %v4723, %v4715
    %v5524 = vpack.c.b16 %v4724, %v4716
    %v5525 = vpack.c.b16 %v4725, %v4717
    %v5526 = vpack.c.b16 %v4726, %v4718
    %v5527 = vpack.c.b16 %v4727, %v4719
    %v5528 = vpack.c.b16 %v4728, %v4720
    %v5529 = vpack.c.b16 %v4737, %v4729
    %v5530 = vpack.c.b16 %v4738, %v4730
    %v5531 = vpack.c.b16 %v4739, %v4731
    %v5532 = vpack.c.b16 %v4740, %v4732
    %v5533 = vpack.c.b16 %v4741, %v4733
    %v5534 = vpack.c.b16 %v4742, %v4734
    %v5535 = vpack.c.b16 %v4743, %v4735
    %v5536 = vpack.c.b16 %v4744, %v4736
    %v5537 = vpack.c.b16 %v4753, %v4745
    %v5538 = vpack.c.b16 %v4754, %v4746
    %v5539 = vpack.c.b16 %v4755, %v4747
    %v5540 = vpack.c.b16 %v4756, %v4748
    %v5541 = vpack.c.b16 %v4757, %v4749
    %v5542 = vpack.c.b16 %v4758, %v4750
    %v5543 = vpack.c.b16 %v4759, %v4751
    %v5544 = vpack.c.b16 %v4760, %v4752
    %v5545 = vpack.c.b16 %v4769, %v4761
    %v5546 = vpack.c.b16 %v4770, %v4762
    %v5547 = vpack.c.b16 %v4771, %v4763
    %v5548 = vpack.c.b16 %v4772, %v4764
    %v5549 = vpack.c.b16 %v4773, %v4765
    %v5550 = vpack.c.b16 %v4774, %v4766
    %v5551 = vpack.c.b16 %v4775, %v4767
    %v5552 = vpack.c.b16 %v4776, %v4768
    %v5553 = vpack.c.b16 %v4785, %v4777
    %v5554 = vpack.c.b16 %v4786, %v4778
    %v5555 = vpack.c.b16 %v4787, %v4779
    %v5556 = vpack.c.b16 %v4788, %v4780
    %v5557 = vpack.c.b16 %v4789, %v4781
    %v5558 = vpack.c.b16 %v4790, %v4782
    %v5559 = vpack.c.b16 %v4791, %v4783
    %v5560 = vpack.c.b16 %v4792, %v4784
    %v5561 = vpack.c.b16 %v4801, %v4793
    %v5562 = vpack.c.b16 %v4802, %v4794
    %v5563 = vpack.c.b16 %v4803, %v4795
    %v5564 = vpack.c.b16 %v4804, %v4796
    %v5565 = vpack.c.b16 %v4805, %v4797
    %v5566 = vpack.c.b16 %v4806, %v4798
    %v5567 = vpack.c.b16 %v4807, %v4799
    %v5568 = vpack.c.b16 %v4808, %v4800
    %v5569 = vpack.c.b16 %v4817, %v4809
    %v5570 = vpack.c.b16 %v4818, %v4810
    %v5571 = vpack.c.b16 %v4819, %v4811
    %v5572 = vpack.c.b16 %v4820, %v4812
    %v5573 = vpack.c.b16 %v4821, %v4813
    %v5574 = vpack.c.b16 %v4822, %v4814
    %v5575 = vpack.c.b16 %v4823, %v4815
    %v5576 = vpack.c.b16 %v4824, %v4816
    %v5577 = vpack.c.b16 %v4833, %v4825
    %v5578 = vpack.c.b16 %v4834, %v4826
    %v5579 = vpack.c.b16 %v4835, %v4827
    %v5580 = vpack.c.b16 %v4836, %v4828
    %v5581 = vpack.c.b16 %v4837, %v4829
    %v5582 = vpack.c.b16 %v4838, %v4830
    %v5583 = vpack.c.b16 %v4839, %v4831
    %v5584 = vpack.c.b16 %v4840, %v4832
    %v5585 = vpack.c.b16 %v4849, %v4841
    %v5586 = vpack.c.b16 %v4850, %v4842
    %v5587 = vpack.c.b16 %v4851, %v4843
    %v5588 = vpack.c.b16 %v4852, %v4844
    %v5589 = vpack.c.b16 %v4853, %v4845
    %v5590 = vpack.c.b16 %v4854, %v4846
    %v5591 = vpack.c.b16 %v4855, %v4847
    %v5592 = vpack.c.b16 %v4856, %v4848
    %v5593 = vpack.c.b16 %v4865, %v4857
    %v5594 = vpack.c.b16 %v4866, %v4858
    %v5595 = vpack.c.b16 %v4867, %v4859
    %v5596 = vpack.c.b16 %v4868, %v4860
    %v5597 = vpack.c.b16 %v4869, %v4861
    %v5598 = vpack.c.b16 %v4870, %v4862
    %v5599 = vpack.c.b16 %v4871, %v4863
    %v5600 = vpack.c.b16 %v4872, %v4864
    %v5601 = vpack.c.b16 %v4881, %v4873
    %v5602 = vpack.c.b16 %v4882, %v4874
    %v5603 = vpack.c.b16 %v4883, %v4875
    %v5604 = vpack.c.b16 %v4884, %v4876
    %v5605 = vpack.c.b16 %v4885, %v4877
    %v5606 = vpack.c.b16 %v4886, %v4878
    %v5607 = vpack.c.b16 %v4887, %v4879
    %v5608 = vpack.c.b16 %v4888, %v4880
    %v5609 = vpack.c.b16 %v4897, %v4889
    %v5610 = vpack.c.b16 %v4898, %v4890
    %v5611 = vpack.c.b16 %v4899, %v4891
    %v5612 = vpack.c.b16 %v4900, %v4892
    %v5613 = vpack.c.b16 %v4901, %v4893
    %v5614 = vpack.c.b16 %v4902, %v4894
    %v5615 = vpack.c.b16 %v4903, %v4895
    %v5616 = vpack.c.b16 %v4904, %v4896
    %v5617 = vpack.c.b16 %v4913, %v4905
    %v5618 = vpack.c.b16 %v4914, %v4906
    %v5619 = vpack.c.b16 %v4915, %v4907
    %v5620 = vpack.c.b16 %v4916, %v4908
    %v5621 = vpack.c.b16 %v4917, %v4909
    %v5622 = vpack.c.b16 %v4918, %v4910
    %v5623 = vpack.c.b16 %v4919, %v4911
    %v5624 = vpack.c.b16 %v4920, %v4912
    %v5625 = vpack.c.b16 %v4929, %v4921
    %v5626 = vpack.c.b16 %v4930, %v4922
    %v5627 = vpack.c.b16 %v4931, %v4923
    %v5628 = vpack.c.b16 %v4932, %v4924
    %v5629 = vpack.c.b16 %v4933, %v4925
    %v5630 = vpack.c.b16 %v4934, %v4926
    %v5631 = vpack.c.b16 %v4935, %v4927
    %v5632 = vpack.c.b16 %v4936, %v4928
    %v5633 = vpack.c.b16 %v4945, %v4937
    %v5634 = vpack.c.b16 %v4946, %v4938
    %v5635 = vpack.c.b16 %v4947, %v4939
    %v5636 = vpack.c.b16 %v4948, %v4940
    %v5637 = vpack.c.b16 %v4949, %v4941
    %v5638 = vpack.c.b16 %v4950, %v4942
    %v5639 = vpack.c.b16 %v4951, %v4943
    %v5640 = vpack.c.b16 %v4952, %v4944
    %v5641 = vpack.c.b16 %v4961, %v4953
    %v5642 = vpack.c.b16 %v4962, %v4954
    %v5643 = vpack.c.b16 %v4963, %v4955
    %v5644 = vpack.c.b16 %v4964, %v4956
    %v5645 = vpack.c.b16 %v4965, %v4957
    %v5646 = vpack.c.b16 %v4966, %v4958
    %v5647 = vpack.c.b16 %v4967, %v4959
    %v5648 = vpack.c.b16 %v4968, %v4960
    %v5649 = vpack.c.b16 %v4977, %v4969
    %v5650 = vpack.c.b16 %v4978, %v4970
    %v5651 = vpack.c.b16 %v4979, %v4971
    %v5652 = vpack.c.b16 %v4980, %v4972
    %v5653 = vpack.c.b16 %v4981, %v4973
    %v5654 = vpack.c.b16 %v4982, %v4974
    %v5655 = vpack.c.b16 %v4983, %v4975
    %v5656 = vpack.c.b16 %v4984, %v4976
    %v5657 = vpack.c.b16 %v4993, %v4985
    %v5658 = vpack.c.b16 %v4994, %v4986
    %v5659 = vpack.c.b16 %v4995, %v4987
    %v5660 = vpack.c.b16 %v4996, %v4988
    %v5661 = vpack.c.b16 %v4997, %v4989
    %v5662 = vpack.c.b16 %v4998, %v4990
    %v5663 = vpack.c.b16 %v4999, %v4991
    %v5664 = vpack.c.b16 %v5000, %v4992
    %v5665 = vpack.c.b16 %v5009, %v5001
    %v5666 = vpack.c.b16 %v5010, %v5002
    %v5667 = vpack.c.b16 %v5011, %v5003
    %v5668 = vpack.c.b16 %v5012, %v5004
    %v5669 = vpack.c.b16 %v5013, %v5005
    %v5670 = vpack.c.b16 %v5014, %v5006
    %v5671 = vpack.c.b16 %v5015, %v5007
    %v5672 = vpack.c.b16 %v5016, %v5008
    %v5673 = vpack.c.b16 %v5025, %v5017
    %v5674 = vpack.c.b16 %v5026, %v5018
    %v5675 = vpack.c.b16 %v5027, %v5019
    %v5676 = vpack.c.b16 %v5028, %v5020
    %v5677 = vpack.c.b16 %v5029, %v5021
    %v5678 = vpack.c.b16 %v5030, %v5022
    %v5679 = vpack.c.b16 %v5031, %v5023
    %v5680 = vpack.c.b16 %v5032, %v5024
    %v5681 = vpack.c.b16 %v5041, %v5033
    %v5682 = vpack.c.b16 %v5042, %v5034
    %v5683 = vpack.c.b16 %v5043, %v5035
    %v5684 = vpack.c.b16 %v5044, %v5036
    %v5685 = vpack.c.b16 %v5045, %v5037
    %v5686 = vpack.c.b16 %v5046, %v5038
    %v5687 = vpack.c.b16 %v5047, %v5039
    %v5688 = vpack.c.b16 %v5048, %v5040
    %v5689 = vpack.c.b16 %v5057, %v5049
    %v5690 = vpack.c.b16 %v5058, %v5050
    %v5691 = vpack.c.b16 %v5059, %v5051
    %v5692 = vpack.c.b16 %v5060, %v5052
    %v5693 = vpack.c.b16 %v5061, %v5053
    %v5694 = vpack.c.b16 %v5062, %v5054
    %v5695 = vpack.c.b16 %v5063, %v5055
    %v5696 = vpack.c.b16 %v5064, %v5056
    %v5697 = vpack.c.b16 %v5073, %v5065
    %v5698 = vpack.c.b16 %v5074, %v5066
    %v5699 = vpack.c.b16 %v5075, %v5067
    %v5700 = vpack.c.b16 %v5076, %v5068
    %v5701 = vpack.c.b16 %v5077, %v5069
    %v5702 = vpack.c.b16 %v5078, %v5070
    %v5703 = vpack.c.b16 %v5079, %v5071
    %v5704 = vpack.c.b16 %v5080, %v5072
    %v5705 = vpack.c.b16 %v5089, %v5081
    %v5706 = vpack.c.b16 %v5090, %v5082
    %v5707 = vpack.c.b16 %v5091, %v5083
    %v5708 = vpack.c.b16 %v5092, %v5084
    %v5709 = vpack.c.b16 %v5093, %v5085
    %v5710 = vpack.c.b16 %v5094, %v5086
    %v5711 = vpack.c.b16 %v5095, %v5087
    %v5712 = vpack.c.b16 %v5096, %v5088
    %v5713 = vpack.c.b16 %v5105, %v5097
    %v5714 = vpack.c.b16 %v5106, %v5098
    %v5715 = vpack.c.b16 %v5107, %v5099
    %v5716 = vpack.c.b16 %v5108, %v5100
    %v5717 = vpack.c.b16 %v5109, %v5101
    %v5718 = vpack.c.b16 %v5110, %v5102
    %v5719 = vpack.c.b16 %v5111, %v5103
    %v5720 = vpack.c.b16 %v5112, %v5104
    %v5721 = vpack.c.b16 %v5121, %v5113
    %v5722 = vpack.c.b16 %v5122, %v5114
    %v5723 = vpack.c.b16 %v5123, %v5115
    %v5724 = vpack.c.b16 %v5124, %v5116
    %v5725 = vpack.c.b16 %v5125, %v5117
    %v5726 = vpack.c.b16 %v5126, %v5118
    %v5727 = vpack.c.b16 %v5127, %v5119
    %v5728 = vpack.c.b16 %v5128, %v5120
    %v5729 = vpack.c.b16 %v5137, %v5129
    %v5730 = vpack.c.b16 %v5138, %v5130
    %v5731 = vpack.c.b16 %v5139, %v5131
    %v5732 = vpack.c.b16 %v5140, %v5132
    %v5733 = vpack.c.b16 %v5141, %v5133
    %v5734 = vpack.c.b16 %v5142, %v5134
    %v5735 = vpack.c.b16 %v5143, %v5135
    %v5736 = vpack.c.b16 %v5144, %v5136
    %v5737 = vpack.c.b16 %v5153, %v5145
    %v5738 = vpack.c.b16 %v5154, %v5146
    %v5739 = vpack.c.b16 %v5155, %v5147
    %v5740 = vpack.c.b16 %v5156, %v5148
    %v5741 = vpack.c.b16 %v5157, %v5149
    %v5742 = vpack.c.b16 %v5158, %v5150
    %v5743 = vpack.c.b16 %v5159, %v5151
    %v5744 = vpack.c.b16 %v5160, %v5152
    %v5745 = vpack.c.b16 %v5169, %v5161
    %v5746 = vpack.c.b16 %v5170, %v5162
    %v5747 = vpack.c.b16 %v5171, %v5163
    %v5748 = vpack.c.b16 %v5172, %v5164
    %v5749 = vpack.c.b16 %v5173, %v5165
    %v5750 = vpack.c.b16 %v5174, %v5166
    %v5751 = vpack.c.b16 %v5175, %v5167
    %v5752 = vpack.c.b16 %v5176, %v5168
    %v5753 = vpack.c.b16 %v5185, %v5177
    %v5754 = vpack.c.b16 %v5186, %v5178
    %v5755 = vpack.c.b16 %v5187, %v5179
    %v5756 = vpack.c.b16 %v5188, %v5180
    %v5757 = vpack.c.b16 %v5189, %v5181
    %v5758 = vpack.c.b16 %v5190, %v5182
    %v5759 = vpack.c.b16 %v5191, %v5183
    %v5760 = vpack.c.b16 %v5192, %v5184
    %v5761 = vpack.c.b16 %v5201, %v5193
    %v5762 = vpack.c.b16 %v5202, %v5194
    %v5763 = vpack.c.b16 %v5203, %v5195
    %v5764 = vpack.c.b16 %v5204, %v5196
    %v5765 = vpack.c.b16 %v5205, %v5197
    %v5766 = vpack.c.b16 %v5206, %v5198
    %v5767 = vpack.c.b16 %v5207, %v5199
    %v5768 = vpack.c.b16 %v5208, %v5200
    %v5769 = vpack.c.b16 %v5217, %v5209
    %v5770 = vpack.c.b16 %v5218, %v5210
    %v5771 = vpack.c.b16 %v5219, %v5211
    %v5772 = vpack.c.b16 %v5220, %v5212
    %v5773 = vpack.c.b16 %v5221, %v5213
    %v5774 = vpack.c.b16 %v5222, %v5214
    %v5775 = vpack.c.b16 %v5223, %v5215
    %v5776 = vpack.c.b16 %v5224, %v5216
    %v5777 = vpack.c.b16 %v5233, %v5225
    %v5778 = vpack.c.b16 %v5234, %v5226
    %v5779 = vpack.c.b16 %v5235, %v5227
    %v5780 = vpack.c.b16 %v5236, %v5228
    %v5781 = vpack.c.b16 %v5237, %v5229
    %v5782 = vpack.c.b16 %v5238, %v5230
    %v5783 = vpack.c.b16 %v5239, %v5231
    %v5784 = vpack.c.b16 %v5240, %v5232
    %v5785 = vpack.c.b16 %v5249, %v5241
    %v5786 = vpack.c.b16 %v5250, %v5242
    %v5787 = vpack.c.b16 %v5251, %v5243
    %v5788 = vpack.c.b16 %v5252, %v5244
    %v5789 = vpack.c.b16 %v5253, %v5245
    %v5790 = vpack.c.b16 %v5254, %v5246
    %v5791 = vpack.c.b16 %v5255, %v5247
    %v5792 = vpack.c.b16 %v5256, %v5248
    %v5793 = vpack.c.b16 %v5265, %v5257
    %v5794 = vpack.c.b16 %v5266, %v5258
    %v5795 = vpack.c.b16 %v5267, %v5259
    %v5796 = vpack.c.b16 %v5268, %v5260
    %v5797 = vpack.c.b16 %v5269, %v5261
    %v5798 = vpack.c.b16 %v5270, %v5262
    %v5799 = vpack.c.b16 %v5271, %v5263
    %v5800 = vpack.c.b16 %v5272, %v5264
    %v5801 = vpack.c.b16 %v5281, %v5273
    %v5802 = vpack.c.b16 %v5282, %v5274
    %v5803 = vpack.c.b16 %v5283, %v5275
    %v5804 = vpack.c.b16 %v5284, %v5276
    %v5805 = vpack.c.b16 %v5285, %v5277
    %v5806 = vpack.c.b16 %v5286, %v5278
    %v5807 = vpack.c.b16 %v5287, %v5279
    %v5808 = vpack.c.b16 %v5288, %v5280
    %v5809 = vpack.c.b16 %v5297, %v5289
    %v5810 = vpack.c.b16 %v5298, %v5290
    %v5811 = vpack.c.b16 %v5299, %v5291
    %v5812 = vpack.c.b16 %v5300, %v5292
    %v5813 = vpack.c.b16 %v5301, %v5293
    %v5814 = vpack.c.b16 %v5302, %v5294
    %v5815 = vpack.c.b16 %v5303, %v5295
    %v5816 = vpack.c.b16 %v5304, %v5296
    %6329 = vmatprep.subr.bf16.mxu0 %v5306
    %6330 = vmatpush1.bf16.msra.mxu0 %v5305
    %6331 = vmatprep.subr.bf16.mxu0 %v5314
    %6332 = vmatpush1.bf16.msra.mxu0 %v5313
    %6333 = vmatprep.subr.bf16.mxu0 %v5322
    %6334 = vmatpush1.bf16.msra.mxu0 %v5321
    %6335 = vmatprep.subr.bf16.mxu0 %v5330
    %6336 = vmatpush1.bf16.msra.mxu0 %v5329
    %6337 = vmatprep.subr.bf16.mxu0 %v5338
    %6338 = vmatpush1.bf16.msra.mxu0 %v5337
    %6339 = vmatprep.subr.bf16.mxu0 %v5346
    %6340 = vmatpush1.bf16.msra.mxu0 %v5345
    %6341 = vmatprep.subr.bf16.mxu0 %v5354
    %6342 = vmatpush1.bf16.msra.mxu0 %v5353
    %6343 = vmatprep.subr.bf16.mxu0 %v5362
    %6344 = vmatpush1.bf16.msra.mxu0 %v5361
    %6345 = vmatprep.subr.bf16.mxu0 %v5370
    %6346 = vmatpush1.bf16.msra.mxu0 %v5369
    %6347 = vmatprep.subr.bf16.mxu0 %v5378
    %6348 = vmatpush1.bf16.msra.mxu0 %v5377
    %6349 = vmatprep.subr.bf16.mxu0 %v5386
    %6350 = vmatpush1.bf16.msra.mxu0 %v5385
    %6351 = vmatprep.subr.bf16.mxu0 %v5394
    %6352 = vmatpush1.bf16.msra.mxu0 %v5393
    %6353 = vmatprep.subr.bf16.mxu0 %v5402
    %6354 = vmatpush1.bf16.msra.mxu0 %v5401
    %6355 = vmatprep.subr.bf16.mxu0 %v5410
    %6356 = vmatpush1.bf16.msra.mxu0 %v5409
    %6357 = vmatprep.subr.bf16.mxu0 %v5418
    %6358 = vmatpush1.bf16.msra.mxu0 %v5417
    %6359 = vmatprep.subr.bf16.mxu0 %v5426
    %6360 = vmatpush1.bf16.msra.mxu0 %v5425
    %6361 = vmatprep.mubr.bf16.mxu0 %v3208
    %6362 = vmatmul.mubr.bf16.gmra.mrb[0].mxu0 %v3207
    %v6363 = vpop.f32.mrb[0].mxu0
    %v6364 = vadd.f32 %v3732, %v6363
    %v6365 = vpop.f32.mrb[0].mxu0
    %v6366 = vadd.f32 %v3736, %v6365
    %v6367 = vpop.f32.mrb[0].mxu0
    %v6368 = vpop.f32.mrb[0].mxu0
    %6369 = vdwg.mxu0
    %6370 = vmatprep.subr.bf16.mxu0 %v5434
    %6371 = vmatpush1.bf16.msra.mxu0 %v5433
    %6372 = vmatprep.subr.bf16.mxu0 %v5442
    %6373 = vmatpush1.bf16.msra.mxu0 %v5441
    %6374 = vmatprep.subr.bf16.mxu0 %v5450
    %6375 = vmatpush1.bf16.msra.mxu0 %v5449
    %6376 = vmatprep.subr.bf16.mxu0 %v5458
    %6377 = vmatpush1.bf16.msra.mxu0 %v5457
    %6378 = vmatprep.subr.bf16.mxu0 %v5466
    %6379 = vmatpush1.bf16.msra.mxu0 %v5465
    %6380 = vmatprep.subr.bf16.mxu0 %v5474
    %6381 = vmatpush1.bf16.msra.mxu0 %v5473
    %6382 = vmatprep.subr.bf16.mxu0 %v5482
    %6383 = vmatpush1.bf16.msra.mxu0 %v5481
    %6384 = vmatprep.subr.bf16.mxu0 %v5490
    %6385 = vmatpush1.bf16.msra.mxu0 %v5489
    %6386 = vmatprep.subr.bf16.mxu0 %v5498
    %6387 = vmatpush1.bf16.msra.mxu0 %v5497
    %6388 = vmatprep.subr.bf16.mxu0 %v5506
    %6389 = vmatpush1.bf16.msra.mxu0 %v5505
    %6390 = vmatprep.subr.bf16.mxu0 %v5514
    %6391 = vmatpush1.bf16.msra.mxu0 %v5513
    %6392 = vmatprep.subr.bf16.mxu0 %v5522
    %6393 = vmatpush1.bf16.msra.mxu0 %v5521
    %6394 = vmatprep.subr.bf16.mxu0 %v5530
    %6395 = vmatpush1.bf16.msra.mxu0 %v5529
    %6396 = vmatprep.subr.bf16.mxu0 %v5538
    %6397 = vmatpush1.bf16.msra.mxu0 %v5537
    %6398 = vmatprep.subr.bf16.mxu0 %v5546
    %6399 = vmatpush1.bf16.msra.mxu0 %v5545
    %6400 = vmatprep.subr.bf16.mxu0 %v5554
    %6401 = vmatpush1.bf16.msra.mxu0 %v5553
    %6402 = vmatprep.mubr.bf16.mxu0 %v3210
    %6403 = vmatmul.mubr.bf16.gmra.mrb[0].mxu0 %v3209
    %v6404 = vpop.f32.mrb[0].mxu0
    %v6405 = vadd.f32 %v6364, %v6404
    %v6406 = vpop.f32.mrb[0].mxu0
    %v6407 = vadd.f32 %v6366, %v6406
    %v6408 = vpop.f32.mrb[0].mxu0
    %v6409 = vpop.f32.mrb[0].mxu0
    %6410 = vdwg.mxu0
    %6411 = vmatprep.subr.bf16.mxu0 %v5562
    %6412 = vmatpush1.bf16.msra.mxu0 %v5561
    %6413 = vmatprep.subr.bf16.mxu0 %v5570
    %6414 = vmatpush1.bf16.msra.mxu0 %v5569
    %6415 = vmatprep.subr.bf16.mxu0 %v5578
    %6416 = vmatpush1.bf16.msra.mxu0 %v5577
    %6417 = vmatprep.subr.bf16.mxu0 %v5586
    %6418 = vmatpush1.bf16.msra.mxu0 %v5585
    %6419 = vmatprep.subr.bf16.mxu0 %v5594
    %6420 = vmatpush1.bf16.msra.mxu0 %v5593
    %6421 = vmatprep.subr.bf16.mxu0 %v5602
    %6422 = vmatpush1.bf16.msra.mxu0 %v5601
    %6423 = vmatprep.subr.bf16.mxu0 %v5610
    %6424 = vmatpush1.bf16.msra.mxu0 %v5609
    %6425 = vmatprep.subr.bf16.mxu0 %v5618
    %6426 = vmatpush1.bf16.msra.mxu0 %v5617
    %6427 = vmatprep.subr.bf16.mxu0 %v5626
    %6428 = vmatpush1.bf16.msra.mxu0 %v5625
    %6429 = vmatprep.subr.bf16.mxu0 %v5634
    %6430 = vmatpush1.bf16.msra.mxu0 %v5633
    %6431 = vmatprep.subr.bf16.mxu0 %v5642
    %6432 = vmatpush1.bf16.msra.mxu0 %v5641
    %6433 = vmatprep.subr.bf16.mxu0 %v5650
    %6434 = vmatpush1.bf16.msra.mxu0 %v5649
    %6435 = vmatprep.subr.bf16.mxu0 %v5658
    %6436 = vmatpush1.bf16.msra.mxu0 %v5657
    %6437 = vmatprep.subr.bf16.mxu0 %v5666
    %6438 = vmatpush1.bf16.msra.mxu0 %v5665
    %6439 = vmatprep.subr.bf16.mxu0 %v5674
    %6440 = vmatpush1.bf16.msra.mxu0 %v5673
    %6441 = vmatprep.subr.bf16.mxu0 %v5682
    %6442 = vmatpush1.bf16.msra.mxu0 %v5681
    %6443 = vmatprep.mubr.bf16.mxu0 %v3212
    %6444 = vmatmul.mubr.bf16.gmra.mrb[0].mxu0 %v3211
    %v6445 = vpop.f32.mrb[0].mxu0
    %v6446 = vadd.f32 %v6405, %v6445
    %v6447 = vpop.f32.mrb[0].mxu0
    %v6448 = vadd.f32 %v6407, %v6447
    %v6449 = vpop.f32.mrb[0].mxu0
    %v6450 = vpop.f32.mrb[0].mxu0
    %6451 = vdwg.mxu0
    %6452 = vmatprep.subr.bf16.mxu0 %v5690
    %6453 = vmatpush1.bf16.msra.mxu0 %v5689
    %6454 = vmatprep.subr.bf16.mxu0 %v5698
    %6455 = vmatpush1.bf16.msra.mxu0 %v5697
    %6456 = vmatprep.subr.bf16.mxu0 %v5706
    %6457 = vmatpush1.bf16.msra.mxu0 %v5705
    %6458 = vmatprep.subr.bf16.mxu0 %v5714
    %6459 = vmatpush1.bf16.msra.mxu0 %v5713
    %6460 = vmatprep.subr.bf16.mxu0 %v5722
    %6461 = vmatpush1.bf16.msra.mxu0 %v5721
    %6462 = vmatprep.subr.bf16.mxu0 %v5730
    %6463 = vmatpush1.bf16.msra.mxu0 %v5729
    %6464 = vmatprep.subr.bf16.mxu0 %v5738
    %6465 = vmatpush1.bf16.msra.mxu0 %v5737
    %6466 = vmatprep.subr.bf16.mxu0 %v5746
    %6467 = vmatpush1.bf16.msra.mxu0 %v5745
    %6468 = vmatprep.subr.bf16.mxu0 %v5754
    %6469 = vmatpush1.bf16.msra.mxu0 %v5753
    %6470 = vmatprep.subr.bf16.mxu0 %v5762
    %6471 = vmatpush1.bf16.msra.mxu0 %v5761
    %6472 = vmatprep.subr.bf16.mxu0 %v5770
    %6473 = vmatpush1.bf16.msra.mxu0 %v5769
    %6474 = vmatprep.subr.bf16.mxu0 %v5778
    %6475 = vmatpush1.bf16.msra.mxu0 %v5777
    %6476 = vmatprep.subr.bf16.mxu0 %v5786
    %6477 = vmatpush1.bf16.msra.mxu0 %v5785
    %6478 = vmatprep.subr.bf16.mxu0 %v5794
    %6479 = vmatpush1.bf16.msra.mxu0 %v5793
    %6480 = vmatprep.subr.bf16.mxu0 %v5802
    %6481 = vmatpush1.bf16.msra.mxu0 %v5801
    %6482 = vmatprep.subr.bf16.mxu0 %v5810
    %6483 = vmatpush1.bf16.msra.mxu0 %v5809
    %6484 = vmatprep.mubr.bf16.mxu0 %v3214
    %6485 = vmatmul.mubr.bf16.gmra.mrb[0].mxu0 %v3213
    %v6486 = vpop.f32.mrb[0].mxu0
    %v6487 = vadd.f32 %v6446, %v6486
    %v6488 = vpop.f32.mrb[0].mxu0
    %v6489 = vadd.f32 %v6448, %v6488
    %v6490 = vpop.f32.mrb[0].mxu0
    %v6491 = vpop.f32.mrb[0].mxu0
    %6492 = vdwg.mxu0
    %6493 = vmatprep.subr.bf16.mxu0 %v5308
    %6494 = vmatpush1.bf16.msra.mxu0 %v5307
    %6495 = vmatprep.subr.bf16.mxu0 %v5316
    %6496 = vmatpush1.bf16.msra.mxu0 %v5315
    %6497 = vmatprep.subr.bf16.mxu0 %v5324
    %6498 = vmatpush1.bf16.msra.mxu0 %v5323
    %6499 = vmatprep.subr.bf16.mxu0 %v5332
    %6500 = vmatpush1.bf16.msra.mxu0 %v5331
    %6501 = vmatprep.subr.bf16.mxu0 %v5340
    %6502 = vmatpush1.bf16.msra.mxu0 %v5339
    %6503 = vmatprep.subr.bf16.mxu0 %v5348
    %6504 = vmatpush1.bf16.msra.mxu0 %v5347
    %6505 = vmatprep.subr.bf16.mxu0 %v5356
    %6506 = vmatpush1.bf16.msra.mxu0 %v5355
    %6507 = vmatprep.subr.bf16.mxu0 %v5364
    %6508 = vmatpush1.bf16.msra.mxu0 %v5363
    %6509 = vmatprep.subr.bf16.mxu0 %v5372
    %6510 = vmatpush1.bf16.msra.mxu0 %v5371
    %6511 = vmatprep.subr.bf16.mxu0 %v5380
    %6512 = vmatpush1.bf16.msra.mxu0 %v5379
    %6513 = vmatprep.subr.bf16.mxu0 %v5388
    %6514 = vmatpush1.bf16.msra.mxu0 %v5387
    %6515 = vmatprep.subr.bf16.mxu0 %v5396
    %6516 = vmatpush1.bf16.msra.mxu0 %v5395
    %6517 = vmatprep.subr.bf16.mxu0 %v5404
    %6518 = vmatpush1.bf16.msra.mxu0 %v5403
    %6519 = vmatprep.subr.bf16.mxu0 %v5412
    %6520 = vmatpush1.bf16.msra.mxu0 %v5411
    %6521 = vmatprep.subr.bf16.mxu0 %v5420
    %6522 = vmatpush1.bf16.msra.mxu0 %v5419
    %6523 = vmatprep.subr.bf16.mxu0 %v5428
    %6524 = vmatpush1.bf16.msra.mxu0 %v5427
    %6525 = vmatprep.mubr.bf16.mxu0 %v3208
    %6526 = vmatmul.mubr.bf16.gmra.mrb[0].mxu0 %v3207
    %v6527 = vpop.f32.mrb[0].mxu0
    %v6528 = vadd.f32 %v3740, %v6527
    %v6529 = vpop.f32.mrb[0].mxu0
    %v6530 = vadd.f32 %v3744, %v6529
    %v6531 = vpop.f32.mrb[0].mxu0
    %v6532 = vpop.f32.mrb[0].mxu0
    %6533 = vdwg.mxu0
    %6534 = vmatprep.subr.bf16.mxu0 %v5436
    %6535 = vmatpush1.bf16.msra.mxu0 %v5435
    %6536 = vmatprep.subr.bf16.mxu0 %v5444
    %6537 = vmatpush1.bf16.msra.mxu0 %v5443
    %6538 = vmatprep.subr.bf16.mxu0 %v5452
    %6539 = vmatpush1.bf16.msra.mxu0 %v5451
    %6540 = vmatprep.subr.bf16.mxu0 %v5460
    %6541 = vmatpush1.bf16.msra.mxu0 %v5459
    %6542 = vmatprep.subr.bf16.mxu0 %v5468
    %6543 = vmatpush1.bf16.msra.mxu0 %v5467
    %6544 = vmatprep.subr.bf16.mxu0 %v5476
    %6545 = vmatpush1.bf16.msra.mxu0 %v5475
    %6546 = vmatprep.subr.bf16.mxu0 %v5484
    %6547 = vmatpush1.bf16.msra.mxu0 %v5483
    %6548 = vmatprep.subr.bf16.mxu0 %v5492
    %6549 = vmatpush1.bf16.msra.mxu0 %v5491
    %6550 = vmatprep.subr.bf16.mxu0 %v5500
    %6551 = vmatpush1.bf16.msra.mxu0 %v5499
    %6552 = vmatprep.subr.bf16.mxu0 %v5508
    %6553 = vmatpush1.bf16.msra.mxu0 %v5507
    %6554 = vmatprep.subr.bf16.mxu0 %v5516
    %6555 = vmatpush1.bf16.msra.mxu0 %v5515
    %6556 = vmatprep.subr.bf16.mxu0 %v5524
    %6557 = vmatpush1.bf16.msra.mxu0 %v5523
    %6558 = vmatprep.subr.bf16.mxu0 %v5532
    %6559 = vmatpush1.bf16.msra.mxu0 %v5531
    %6560 = vmatprep.subr.bf16.mxu0 %v5540
    %6561 = vmatpush1.bf16.msra.mxu0 %v5539
    %6562 = vmatprep.subr.bf16.mxu0 %v5548
    %6563 = vmatpush1.bf16.msra.mxu0 %v5547
    %6564 = vmatprep.subr.bf16.mxu0 %v5556
    %6565 = vmatpush1.bf16.msra.mxu0 %v5555
    %6566 = vmatprep.mubr.bf16.mxu0 %v3210
    %6567 = vmatmul.mubr.bf16.gmra.mrb[0].mxu0 %v3209
    %v6568 = vpop.f32.mrb[0].mxu0
    %v6569 = vadd.f32 %v6528, %v6568
    %v6570 = vpop.f32.mrb[0].mxu0
    %v6571 = vadd.f32 %v6530, %v6570
    %v6572 = vpop.f32.mrb[0].mxu0
    %v6573 = vpop.f32.mrb[0].mxu0
    %6574 = vdwg.mxu0
    %6575 = vmatprep.subr.bf16.mxu0 %v5564
    %6576 = vmatpush1.bf16.msra.mxu0 %v5563
    %6577 = vmatprep.subr.bf16.mxu0 %v5572
    %6578 = vmatpush1.bf16.msra.mxu0 %v5571
    %6579 = vmatprep.subr.bf16.mxu0 %v5580
    %6580 = vmatpush1.bf16.msra.mxu0 %v5579
    %6581 = vmatprep.subr.bf16.mxu0 %v5588
    %6582 = vmatpush1.bf16.msra.mxu0 %v5587
    %6583 = vmatprep.subr.bf16.mxu0 %v5596
    %6584 = vmatpush1.bf16.msra.mxu0 %v5595
    %6585 = vmatprep.subr.bf16.mxu0 %v5604
    %6586 = vmatpush1.bf16.msra.mxu0 %v5603
    %6587 = vmatprep.subr.bf16.mxu0 %v5612
    %6588 = vmatpush1.bf16.msra.mxu0 %v5611
    %6589 = vmatprep.subr.bf16.mxu0 %v5620
    %6590 = vmatpush1.bf16.msra.mxu0 %v5619
    %6591 = vmatprep.subr.bf16.mxu0 %v5628
    %6592 = vmatpush1.bf16.msra.mxu0 %v5627
    %6593 = vmatprep.subr.bf16.mxu0 %v5636
    %6594 = vmatpush1.bf16.msra.mxu0 %v5635
    %6595 = vmatprep.subr.bf16.mxu0 %v5644
    %6596 = vmatpush1.bf16.msra.mxu0 %v5643
    %6597 = vmatprep.subr.bf16.mxu0 %v5652
    %6598 = vmatpush1.bf16.msra.mxu0 %v5651
    %6599 = vmatprep.subr.bf16.mxu0 %v5660
    %6600 = vmatpush1.bf16.msra.mxu0 %v5659
    %6601 = vmatprep.subr.bf16.mxu0 %v5668
    %6602 = vmatpush1.bf16.msra.mxu0 %v5667
    %6603 = vmatprep.subr.bf16.mxu0 %v5676
    %6604 = vmatpush1.bf16.msra.mxu0 %v5675
    %6605 = vmatprep.subr.bf16.mxu0 %v5684
    %6606 = vmatpush1.bf16.msra.mxu0 %v5683
    %6607 = vmatprep.mubr.bf16.mxu0 %v3212
    %6608 = vmatmul.mubr.bf16.gmra.mrb[0].mxu0 %v3211
    %v6609 = vpop.f32.mrb[0].mxu0
    %v6610 = vadd.f32 %v6569, %v6609
    %v6611 = vpop.f32.mrb[0].mxu0
    %v6612 = vadd.f32 %v6571, %v6611
    %v6613 = vpop.f32.mrb[0].mxu0
    %v6614 = vpop.f32.mrb[0].mxu0
    %6615 = vdwg.mxu0
    %6616 = vmatprep.subr.bf16.mxu0 %v5692
    %6617 = vmatpush1.bf16.msra.mxu0 %v5691
    %6618 = vmatprep.subr.bf16.mxu0 %v5700
    %6619 = vmatpush1.bf16.msra.mxu0 %v5699
    %6620 = vmatprep.subr.bf16.mxu0 %v5708
    %6621 = vmatpush1.bf16.msra.mxu0 %v5707
    %6622 = vmatprep.subr.bf16.mxu0 %v5716
    %6623 = vmatpush1.bf16.msra.mxu0 %v5715
    %6624 = vmatprep.subr.bf16.mxu0 %v5724
    %6625 = vmatpush1.bf16.msra.mxu0 %v5723
    %6626 = vmatprep.subr.bf16.mxu0 %v5732
    %6627 = vmatpush1.bf16.msra.mxu0 %v5731
    %6628 = vmatprep.subr.bf16.mxu0 %v5740
    %6629 = vmatpush1.bf16.msra.mxu0 %v5739
    %6630 = vmatprep.subr.bf16.mxu0 %v5748
    %6631 = vmatpush1.bf16.msra.mxu0 %v5747
    %6632 = vmatprep.subr.bf16.mxu0 %v5756
    %6633 = vmatpush1.bf16.msra.mxu0 %v5755
    %6634 = vmatprep.subr.bf16.mxu0 %v5764
    %6635 = vmatpush1.bf16.msra.mxu0 %v5763
    %6636 = vmatprep.subr.bf16.mxu0 %v5772
    %6637 = vmatpush1.bf16.msra.mxu0 %v5771
    %6638 = vmatprep.subr.bf16.mxu0 %v5780
    %6639 = vmatpush1.bf16.msra.mxu0 %v5779
    %6640 = vmatprep.subr.bf16.mxu0 %v5788
    %6641 = vmatpush1.bf16.msra.mxu0 %v5787
    %6642 = vmatprep.subr.bf16.mxu0 %v5796
    %6643 = vmatpush1.bf16.msra.mxu0 %v5795
    %6644 = vmatprep.subr.bf16.mxu0 %v5804
    %6645 = vmatpush1.bf16.msra.mxu0 %v5803
    %6646 = vmatprep.subr.bf16.mxu0 %v5812
    %6647 = vmatpush1.bf16.msra.mxu0 %v5811
    %6648 = vmatprep.mubr.bf16.mxu0 %v3214
    %6649 = vmatmul.mubr.bf16.gmra.mrb[0].mxu0 %v3213
    %v6650 = vpop.f32.mrb[0].mxu0
    %v6651 = vadd.f32 %v6610, %v6650
    %v6652 = vpop.f32.mrb[0].mxu0
    %v6653 = vadd.f32 %v6612, %v6652
    %v6654 = vpop.f32.mrb[0].mxu0
    %v6655 = vpop.f32.mrb[0].mxu0
    %6656 = vdwg.mxu0
    %6657 = vmatprep.subr.bf16.mxu0 %v5310
    %6658 = vmatpush1.bf16.msra.mxu0 %v5309
    %6659 = vmatprep.subr.bf16.mxu0 %v5318
    %6660 = vmatpush1.bf16.msra.mxu0 %v5317
    %6661 = vmatprep.subr.bf16.mxu0 %v5326
    %6662 = vmatpush1.bf16.msra.mxu0 %v5325
    %6663 = vmatprep.subr.bf16.mxu0 %v5334
    %6664 = vmatpush1.bf16.msra.mxu0 %v5333
    %6665 = vmatprep.subr.bf16.mxu0 %v5342
    %6666 = vmatpush1.bf16.msra.mxu0 %v5341
    %6667 = vmatprep.subr.bf16.mxu0 %v5350
    %6668 = vmatpush1.bf16.msra.mxu0 %v5349
    %6669 = vmatprep.subr.bf16.mxu0 %v5358
    %6670 = vmatpush1.bf16.msra.mxu0 %v5357
    %6671 = vmatprep.subr.bf16.mxu0 %v5366
    %6672 = vmatpush1.bf16.msra.mxu0 %v5365
    %6673 = vmatprep.subr.bf16.mxu0 %v5374
    %6674 = vmatpush1.bf16.msra.mxu0 %v5373
    %6675 = vmatprep.subr.bf16.mxu0 %v5382
    %6676 = vmatpush1.bf16.msra.mxu0 %v5381
    %6677 = vmatprep.subr.bf16.mxu0 %v5390
    %6678 = vmatpush1.bf16.msra.mxu0 %v5389
    %6679 = vmatprep.subr.bf16.mxu0 %v5398
    %6680 = vmatpush1.bf16.msra.mxu0 %v5397
    %6681 = vmatprep.subr.bf16.mxu0 %v5406
    %6682 = vmatpush1.bf16.msra.mxu0 %v5405
    %6683 = vmatprep.subr.bf16.mxu0 %v5414
    %6684 = vmatpush1.bf16.msra.mxu0 %v5413
    %6685 = vmatprep.subr.bf16.mxu0 %v5422
    %6686 = vmatpush1.bf16.msra.mxu0 %v5421
    %6687 = vmatprep.subr.bf16.mxu0 %v5430
    %6688 = vmatpush1.bf16.msra.mxu0 %v5429
    %6689 = vmatprep.mubr.bf16.mxu0 %v3208
    %6690 = vmatmul.mubr.bf16.gmra.mrb[0].mxu0 %v3207
    %v6691 = vpop.f32.mrb[0].mxu0
    %v6692 = vadd.f32 %v3748, %v6691
    %v6693 = vpop.f32.mrb[0].mxu0
    %v6694 = vadd.f32 %v3752, %v6693
    %v6695 = vpop.f32.mrb[0].mxu0
    %v6696 = vpop.f32.mrb[0].mxu0
    %6697 = vdwg.mxu0
    %6698 = vmatprep.subr.bf16.mxu0 %v5438
    %6699 = vmatpush1.bf16.msra.mxu0 %v5437
    %6700 = vmatprep.subr.bf16.mxu0 %v5446
    %6701 = vmatpush1.bf16.msra.mxu0 %v5445
    %6702 = vmatprep.subr.bf16.mxu0 %v5454
    %6703 = vmatpush1.bf16.msra.mxu0 %v5453
    %6704 = vmatprep.subr.bf16.mxu0 %v5462
    %6705 = vmatpush1.bf16.msra.mxu0 %v5461
    %6706 = vmatprep.subr.bf16.mxu0 %v5470
    %6707 = vmatpush1.bf16.msra.mxu0 %v5469
    %6708 = vmatprep.subr.bf16.mxu0 %v5478
    %6709 = vmatpush1.bf16.msra.mxu0 %v5477
    %6710 = vmatprep.subr.bf16.mxu0 %v5486
    %6711 = vmatpush1.bf16.msra.mxu0 %v5485
    %6712 = vmatprep.subr.bf16.mxu0 %v5494
    %6713 = vmatpush1.bf16.msra.mxu0 %v5493
    %6714 = vmatprep.subr.bf16.mxu0 %v5502
    %6715 = vmatpush1.bf16.msra.mxu0 %v5501
    %6716 = vmatprep.subr.bf16.mxu0 %v5510
    %6717 = vmatpush1.bf16.msra.mxu0 %v5509
    %6718 = vmatprep.subr.bf16.mxu0 %v5518
    %6719 = vmatpush1.bf16.msra.mxu0 %v5517
    %6720 = vmatprep.subr.bf16.mxu0 %v5526
    %6721 = vmatpush1.bf16.msra.mxu0 %v5525
    %6722 = vmatprep.subr.bf16.mxu0 %v5534
    %6723 = vmatpush1.bf16.msra.mxu0 %v5533
    %6724 = vmatprep.subr.bf16.mxu0 %v5542
    %6725 = vmatpush1.bf16.msra.mxu0 %v5541
    %6726 = vmatprep.subr.bf16.mxu0 %v5550
    %6727 = vmatpush1.bf16.msra.mxu0 %v5549
    %6728 = vmatprep.subr.bf16.mxu0 %v5558
    %6729 = vmatpush1.bf16.msra.mxu0 %v5557
    %6730 = vmatprep.mubr.bf16.mxu0 %v3210
    %6731 = vmatmul.mubr.bf16.gmra.mrb[0].mxu0 %v3209
    %v6732 = vpop.f32.mrb[0].mxu0
    %v6733 = vadd.f32 %v6692, %v6732
    %v6734 = vpop.f32.mrb[0].mxu0
    %v6735 = vadd.f32 %v6694, %v6734
    %v6736 = vpop.f32.mrb[0].mxu0
    %v6737 = vpop.f32.mrb[0].mxu0
    %6738 = vdwg.mxu0
    %6739 = vmatprep.subr.bf16.mxu0 %v5566
    %6740 = vmatpush1.bf16.msra.mxu0 %v5565
    %6741 = vmatprep.subr.bf16.mxu0 %v5574
    %6742 = vmatpush1.bf16.msra.mxu0 %v5573
    %6743 = vmatprep.subr.bf16.mxu0 %v5582
    %6744 = vmatpush1.bf16.msra.mxu0 %v5581
    %6745 = vmatprep.subr.bf16.mxu0 %v5590
    %6746 = vmatpush1.bf16.msra.mxu0 %v5589
    %6747 = vmatprep.subr.bf16.mxu0 %v5598
    %6748 = vmatpush1.bf16.msra.mxu0 %v5597
    %6749 = vmatprep.subr.bf16.mxu0 %v5606
    %6750 = vmatpush1.bf16.msra.mxu0 %v5605
    %6751 = vmatprep.subr.bf16.mxu0 %v5614
    %6752 = vmatpush1.bf16.msra.mxu0 %v5613
    %6753 = vmatprep.subr.bf16.mxu0 %v5622
    %6754 = vmatpush1.bf16.msra.mxu0 %v5621
    %6755 = vmatprep.subr.bf16.mxu0 %v5630
    %6756 = vmatpush1.bf16.msra.mxu0 %v5629
    %6757 = vmatprep.subr.bf16.mxu0 %v5638
    %6758 = vmatpush1.bf16.msra.mxu0 %v5637
    %6759 = vmatprep.subr.bf16.mxu0 %v5646
    %6760 = vmatpush1.bf16.msra.mxu0 %v5645
    %6761 = vmatprep.subr.bf16.mxu0 %v5654
    %6762 = vmatpush1.bf16.msra.mxu0 %v5653
    %6763 = vmatprep.subr.bf16.mxu0 %v5662
    %6764 = vmatpush1.bf16.msra.mxu0 %v5661
    %6765 = vmatprep.subr.bf16.mxu0 %v5670
    %6766 = vmatpush1.bf16.msra.mxu0 %v5669
    %6767 = vmatprep.subr.bf16.mxu0 %v5678
    %6768 = vmatpush1.bf16.msra.mxu0 %v5677
    %6769 = vmatprep.subr.bf16.mxu0 %v5686
    %6770 = vmatpush1.bf16.msra.mxu0 %v5685
    %6771 = vmatprep.mubr.bf16.mxu0 %v3212
    %6772 = vmatmul.mubr.bf16.gmra.mrb[0].mxu0 %v3211
    %v6773 = vpop.f32.mrb[0].mxu0
    %v6774 = vadd.f32 %v6733, %v6773
    %v6775 = vpop.f32.mrb[0].mxu0
    %v6776 = vadd.f32 %v6735, %v6775
    %v6777 = vpop.f32.mrb[0].mxu0
    %v6778 = vpop.f32.mrb[0].mxu0
    %6779 = vdwg.mxu0
    %6780 = vmatprep.subr.bf16.mxu0 %v5694
    %6781 = vmatpush1.bf16.msra.mxu0 %v5693
    %6782 = vmatprep.subr.bf16.mxu0 %v5702
    %6783 = vmatpush1.bf16.msra.mxu0 %v5701
    %6784 = vmatprep.subr.bf16.mxu0 %v5710
    %6785 = vmatpush1.bf16.msra.mxu0 %v5709
    %6786 = vmatprep.subr.bf16.mxu0 %v5718
    %6787 = vmatpush1.bf16.msra.mxu0 %v5717
    %6788 = vmatprep.subr.bf16.mxu0 %v5726
    %6789 = vmatpush1.bf16.msra.mxu0 %v5725
    %6790 = vmatprep.subr.bf16.mxu0 %v5734
    %6791 = vmatpush1.bf16.msra.mxu0 %v5733
    %6792 = vmatprep.subr.bf16.mxu0 %v5742
    %6793 = vmatpush1.bf16.msra.mxu0 %v5741
    %6794 = vmatprep.subr.bf16.mxu0 %v5750
    %6795 = vmatpush1.bf16.msra.mxu0 %v5749
    %6796 = vmatprep.subr.bf16.mxu0 %v5758
    %6797 = vmatpush1.bf16.msra.mxu0 %v5757
    %6798 = vmatprep.subr.bf16.mxu0 %v5766
    %6799 = vmatpush1.bf16.msra.mxu0 %v5765
    %6800 = vmatprep.subr.bf16.mxu0 %v5774
    %6801 = vmatpush1.bf16.msra.mxu0 %v5773
    %6802 = vmatprep.subr.bf16.mxu0 %v5782
    %6803 = vmatpush1.bf16.msra.mxu0 %v5781
    %6804 = vmatprep.subr.bf16.mxu0 %v5790
    %6805 = vmatpush1.bf16.msra.mxu0 %v5789
    %6806 = vmatprep.subr.bf16.mxu0 %v5798
    %6807 = vmatpush1.bf16.msra.mxu0 %v5797
    %6808 = vmatprep.subr.bf16.mxu0 %v5806
    %6809 = vmatpush1.bf16.msra.mxu0 %v5805
    %6810 = vmatprep.subr.bf16.mxu0 %v5814
    %6811 = vmatpush1.bf16.msra.mxu0 %v5813
    %6812 = vmatprep.mubr.bf16.mxu0 %v3214
    %6813 = vmatmul.mubr.bf16.gmra.mrb[0].mxu0 %v3213
    %v6814 = vpop.f32.mrb[0].mxu0
    %v6815 = vadd.f32 %v6774, %v6814
    %v6816 = vpop.f32.mrb[0].mxu0
    %v6817 = vadd.f32 %v6776, %v6816
    %v6818 = vpop.f32.mrb[0].mxu0
    %v6819 = vpop.f32.mrb[0].mxu0
    %6820 = vdwg.mxu0
    %6821 = vmatprep.subr.bf16.mxu0 %v5312
    %6822 = vmatpush1.bf16.msra.mxu0 %v5311
    %6823 = vmatprep.subr.bf16.mxu0 %v5320
    %6824 = vmatpush1.bf16.msra.mxu0 %v5319
    %6825 = vmatprep.subr.bf16.mxu0 %v5328
    %6826 = vmatpush1.bf16.msra.mxu0 %v5327
    %6827 = vmatprep.subr.bf16.mxu0 %v5336
    %6828 = vmatpush1.bf16.msra.mxu0 %v5335
    %6829 = vmatprep.subr.bf16.mxu0 %v5344
    %6830 = vmatpush1.bf16.msra.mxu0 %v5343
    %6831 = vmatprep.subr.bf16.mxu0 %v5352
    %6832 = vmatpush1.bf16.msra.mxu0 %v5351
    %6833 = vmatprep.subr.bf16.mxu0 %v5360
    %6834 = vmatpush1.bf16.msra.mxu0 %v5359
    %6835 = vmatprep.subr.bf16.mxu0 %v5368
    %6836 = vmatpush1.bf16.msra.mxu0 %v5367
    %6837 = vmatprep.subr.bf16.mxu0 %v5376
    %6838 = vmatpush1.bf16.msra.mxu0 %v5375
    %6839 = vmatprep.subr.bf16.mxu0 %v5384
    %6840 = vmatpush1.bf16.msra.mxu0 %v5383
    %6841 = vmatprep.subr.bf16.mxu0 %v5392
    %6842 = vmatpush1.bf16.msra.mxu0 %v5391
    %6843 = vmatprep.subr.bf16.mxu0 %v5400
    %6844 = vmatpush1.bf16.msra.mxu0 %v5399
    %6845 = vmatprep.subr.bf16.mxu0 %v5408
    %6846 = vmatpush1.bf16.msra.mxu0 %v5407
    %6847 = vmatprep.subr.bf16.mxu0 %v5416
    %6848 = vmatpush1.bf16.msra.mxu0 %v5415
    %6849 = vmatprep.subr.bf16.mxu0 %v5424
    %6850 = vmatpush1.bf16.msra.mxu0 %v5423
    %6851 = vmatprep.subr.bf16.mxu0 %v5432
    %6852 = vmatpush1.bf16.msra.mxu0 %v5431
    %6853 = vmatprep.mubr.bf16.mxu0 %v3208
    %6854 = vmatmul.mubr.bf16.gmra.mrb[0].mxu0 %v3207
    %v6855 = vpop.f32.mrb[0].mxu0
    %v6856 = vadd.f32 %v3756, %v6855
    %v6857 = vpop.f32.mrb[0].mxu0
    %v6858 = vadd.f32 %v3760, %v6857
    %v6859 = vpop.f32.mrb[0].mxu0
    %v6860 = vpop.f32.mrb[0].mxu0
    %6861 = vdwg.mxu0
    %6862 = vmatprep.subr.bf16.mxu0 %v5440
    %6863 = vmatpush1.bf16.msra.mxu0 %v5439
    %6864 = vmatprep.subr.bf16.mxu0 %v5448
    %6865 = vmatpush1.bf16.msra.mxu0 %v5447
    %6866 = vmatprep.subr.bf16.mxu0 %v5456
    %6867 = vmatpush1.bf16.msra.mxu0 %v5455
    %6868 = vmatprep.subr.bf16.mxu0 %v5464
    %6869 = vmatpush1.bf16.msra.mxu0 %v5463
    %6870 = vmatprep.subr.bf16.mxu0 %v5472
    %6871 = vmatpush1.bf16.msra.mxu0 %v5471
    %6872 = vmatprep.subr.bf16.mxu0 %v5480
    %6873 = vmatpush1.bf16.msra.mxu0 %v5479
    %6874 = vmatprep.subr.bf16.mxu0 %v5488
    %6875 = vmatpush1.bf16.msra.mxu0 %v5487
    %6876 = vmatprep.subr.bf16.mxu0 %v5496
    %6877 = vmatpush1.bf16.msra.mxu0 %v5495
    %6878 = vmatprep.subr.bf16.mxu0 %v5504
    %6879 = vmatpush1.bf16.msra.mxu0 %v5503
    %6880 = vmatprep.subr.bf16.mxu0 %v5512
    %6881 = vmatpush1.bf16.msra.mxu0 %v5511
    %6882 = vmatprep.subr.bf16.mxu0 %v5520
    %6883 = vmatpush1.bf16.msra.mxu0 %v5519
    %6884 = vmatprep.subr.bf16.mxu0 %v5528
    %6885 = vmatpush1.bf16.msra.mxu0 %v5527
    %6886 = vmatprep.subr.bf16.mxu0 %v5536
    %6887 = vmatpush1.bf16.msra.mxu0 %v5535
    %6888 = vmatprep.subr.bf16.mxu0 %v5544
    %6889 = vmatpush1.bf16.msra.mxu0 %v5543
    %6890 = vmatprep.subr.bf16.mxu0 %v5552
    %6891 = vmatpush1.bf16.msra.mxu0 %v5551
    %6892 = vmatprep.subr.bf16.mxu0 %v5560
    %6893 = vmatpush1.bf16.msra.mxu0 %v5559
    %6894 = vmatprep.mubr.bf16.mxu0 %v3210
    %6895 = vmatmul.mubr.bf16.gmra.mrb[0].mxu0 %v3209
    %v6896 = vpop.f32.mrb[0].mxu0
    %v6897 = vadd.f32 %v6856, %v6896
    %v6898 = vpop.f32.mrb[0].mxu0
    %v6899 = vadd.f32 %v6858, %v6898
    %v6900 = vpop.f32.mrb[0].mxu0
    %v6901 = vpop.f32.mrb[0].mxu0
    %6902 = vdwg.mxu0
    %6903 = vmatprep.subr.bf16.mxu0 %v5568
    %6904 = vmatpush1.bf16.msra.mxu0 %v5567
    %6905 = vmatprep.subr.bf16.mxu0 %v5576
    %6906 = vmatpush1.bf16.msra.mxu0 %v5575
    %6907 = vmatprep.subr.bf16.mxu0 %v5584
    %6908 = vmatpush1.bf16.msra.mxu0 %v5583
    %6909 = vmatprep.subr.bf16.mxu0 %v5592
    %6910 = vmatpush1.bf16.msra.mxu0 %v5591
    %6911 = vmatprep.subr.bf16.mxu0 %v5600
    %6912 = vmatpush1.bf16.msra.mxu0 %v5599
    %6913 = vmatprep.subr.bf16.mxu0 %v5608
    %6914 = vmatpush1.bf16.msra.mxu0 %v5607
    %6915 = vmatprep.subr.bf16.mxu0 %v5616
    %6916 = vmatpush1.bf16.msra.mxu0 %v5615
    %6917 = vmatprep.subr.bf16.mxu0 %v5624
    %6918 = vmatpush1.bf16.msra.mxu0 %v5623
    %6919 = vmatprep.subr.bf16.mxu0 %v5632
    %6920 = vmatpush1.bf16.msra.mxu0 %v5631
    %6921 = vmatprep.subr.bf16.mxu0 %v5640
    %6922 = vmatpush1.bf16.msra.mxu0 %v5639
    %6923 = vmatprep.subr.bf16.mxu0 %v5648
    %6924 = vmatpush1.bf16.msra.mxu0 %v5647
    %6925 = vmatprep.subr.bf16.mxu0 %v5656
    %6926 = vmatpush1.bf16.msra.mxu0 %v5655
    %6927 = vmatprep.subr.bf16.mxu0 %v5664
    %6928 = vmatpush1.bf16.msra.mxu0 %v5663
    %6929 = vmatprep.subr.bf16.mxu0 %v5672
    %6930 = vmatpush1.bf16.msra.mxu0 %v5671
    %6931 = vmatprep.subr.bf16.mxu0 %v5680
    %6932 = vmatpush1.bf16.msra.mxu0 %v5679
    %6933 = vmatprep.subr.bf16.mxu0 %v5688
    %6934 = vmatpush1.bf16.msra.mxu0 %v5687
    %6935 = vmatprep.mubr.bf16.mxu0 %v3212
    %6936 = vmatmul.mubr.bf16.gmra.mrb[0].mxu0 %v3211
    %v6937 = vpop.f32.mrb[0].mxu0
    %v6938 = vadd.f32 %v6897, %v6937
    %v6939 = vpop.f32.mrb[0].mxu0
    %v6940 = vadd.f32 %v6899, %v6939
    %v6941 = vpop.f32.mrb[0].mxu0
    %v6942 = vpop.f32.mrb[0].mxu0
    %6943 = vdwg.mxu0
    %6944 = vmatprep.subr.bf16.mxu0 %v5696
    %6945 = vmatpush1.bf16.msra.mxu0 %v5695
    %6946 = vmatprep.subr.bf16.mxu0 %v5704
    %6947 = vmatpush1.bf16.msra.mxu0 %v5703
    %6948 = vmatprep.subr.bf16.mxu0 %v5712
    %6949 = vmatpush1.bf16.msra.mxu0 %v5711
    %6950 = vmatprep.subr.bf16.mxu0 %v5720
    %6951 = vmatpush1.bf16.msra.mxu0 %v5719
    %6952 = vmatprep.subr.bf16.mxu0 %v5728
    %6953 = vmatpush1.bf16.msra.mxu0 %v5727
    %6954 = vmatprep.subr.bf16.mxu0 %v5736
    %6955 = vmatpush1.bf16.msra.mxu0 %v5735
    %6956 = vmatprep.subr.bf16.mxu0 %v5744
    %6957 = vmatpush1.bf16.msra.mxu0 %v5743
    %6958 = vmatprep.subr.bf16.mxu0 %v5752
    %6959 = vmatpush1.bf16.msra.mxu0 %v5751
    %6960 = vmatprep.subr.bf16.mxu0 %v5760
    %6961 = vmatpush1.bf16.msra.mxu0 %v5759
    %6962 = vmatprep.subr.bf16.mxu0 %v5768
    %6963 = vmatpush1.bf16.msra.mxu0 %v5767
    %6964 = vmatprep.subr.bf16.mxu0 %v5776
    %6965 = vmatpush1.bf16.msra.mxu0 %v5775
    %6966 = vmatprep.subr.bf16.mxu0 %v5784
    %6967 = vmatpush1.bf16.msra.mxu0 %v5783
    %6968 = vmatprep.subr.bf16.mxu0 %v5792
    %6969 = vmatpush1.bf16.msra.mxu0 %v5791
    %6970 = vmatprep.subr.bf16.mxu0 %v5800
    %6971 = vmatpush1.bf16.msra.mxu0 %v5799
    %6972 = vmatprep.subr.bf16.mxu0 %v5808
    %6973 = vmatpush1.bf16.msra.mxu0 %v5807
    %6974 = vmatprep.subr.bf16.mxu0 %v5816
    %6975 = vmatpush1.bf16.msra.mxu0 %v5815
    %6976 = vmatprep.mubr.bf16.mxu0 %v3214
    %6977 = vmatmul.mubr.bf16.gmra.mrb[0].mxu0 %v3213
    %v6978 = vpop.f32.mrb[0].mxu0
    %v6979 = vadd.f32 %v6938, %v6978
    %v6980 = vpop.f32.mrb[0].mxu0
    %v6981 = vadd.f32 %v6940, %v6980
    %v6982 = vpop.f32.mrb[0].mxu0
    %v6983 = vpop.f32.mrb[0].mxu0
    %6984 = vdwg.mxu0
    %v6985 = vrot.slane %v6487, 4
    %v6986 = vadd.f32 %v6487, %v6985
    %v6987 = vrot.slane %v6986, 2
    %v6988 = vadd.f32 %v6986, %v6987
    %v6989 = vrot.slane %v6988, 1
    %v6990 = vadd.f32 %v6988, %v6989
    %v6991 = vrot.slane %v6489, 4
    %v6992 = vadd.f32 %v6489, %v6991
    %v6993 = vrot.slane %v6992, 2
    %v6994 = vadd.f32 %v6992, %v6993
    %v6995 = vrot.slane %v6994, 1
    %v6996 = vadd.f32 %v6994, %v6995
    %v6997 = vrot.slane %v6651, 4
    %v6998 = vadd.f32 %v6651, %v6997
    %v6999 = vrot.slane %v6998, 2
    %v7000 = vadd.f32 %v6998, %v6999
    %v7001 = vrot.slane %v7000, 1
    %v7002 = vadd.f32 %v7000, %v7001
    %v7003 = vrot.slane %v6653, 4
    %v7004 = vadd.f32 %v6653, %v7003
    %v7005 = vrot.slane %v7004, 2
    %v7006 = vadd.f32 %v7004, %v7005
    %v7007 = vrot.slane %v7006, 1
    %v7008 = vadd.f32 %v7006, %v7007
    %v7009 = vrot.slane %v6815, 4
    %v7010 = vadd.f32 %v6815, %v7009
    %v7011 = vrot.slane %v7010, 2
    %v7012 = vadd.f32 %v7010, %v7011
    %v7013 = vrot.slane %v7012, 1
    %v7014 = vadd.f32 %v7012, %v7013
    %v7015 = vrot.slane %v6817, 4
    %v7016 = vadd.f32 %v6817, %v7015
    %v7017 = vrot.slane %v7016, 2
    %v7018 = vadd.f32 %v7016, %v7017
    %v7019 = vrot.slane %v7018, 1
    %v7020 = vadd.f32 %v7018, %v7019
    %v7021 = vrot.slane %v6979, 4
    %v7022 = vadd.f32 %v6979, %v7021
    %v7023 = vrot.slane %v7022, 2
    %v7024 = vadd.f32 %v7022, %v7023
    %v7025 = vrot.slane %v7024, 1
    %v7026 = vadd.f32 %v7024, %v7025
    %v7027 = vrot.slane %v6981, 4
    %v7028 = vadd.f32 %v6981, %v7027
    %v7029 = vrot.slane %v7028, 2
    %v7030 = vadd.f32 %v7028, %v7029
    %v7031 = vrot.slane %v7030, 1
    %v7032 = vadd.f32 %v7030, %v7031
    %v7033 = vmul.f32 %v6990, 0.125
    %v7034 = vmul.f32 %v6996, 0.125
    %v7035 = vmul.f32 %v7002, 0.125
    %v7036 = vmul.f32 %v7008, 0.125
    %v7037 = vmul.f32 %v7014, 0.125
    %v7038 = vmul.f32 %v7020, 0.125
    %v7039 = vmul.f32 %v7026, 0.125
    %v7040 = vmul.f32 %v7032, 0.125
    %v7041 = vmul.f32 %v6487, %v6487
    %v7042 = vmul.f32 %v6489, %v6489
    %v7043 = vmul.f32 %v6651, %v6651
    %v7044 = vmul.f32 %v6653, %v6653
    %v7045 = vmul.f32 %v6815, %v6815
    %v7046 = vmul.f32 %v6817, %v6817
    %v7047 = vmul.f32 %v6979, %v6979
    %v7048 = vmul.f32 %v6981, %v6981
    %v7049 = vrot.slane %v7041, 4
    %v7050 = vadd.f32 %v7041, %v7049
    %v7051 = vrot.slane %v7050, 2
    %v7052 = vadd.f32 %v7050, %v7051
    %v7053 = vrot.slane %v7052, 1
    %v7054 = vadd.f32 %v7052, %v7053
    %v7055 = vrot.slane %v7042, 4
    %v7056 = vadd.f32 %v7042, %v7055
    %v7057 = vrot.slane %v7056, 2
    %v7058 = vadd.f32 %v7056, %v7057
    %v7059 = vrot.slane %v7058, 1
    %v7060 = vadd.f32 %v7058, %v7059
    %v7061 = vrot.slane %v7043, 4
    %v7062 = vadd.f32 %v7043, %v7061
    %v7063 = vrot.slane %v7062, 2
    %v7064 = vadd.f32 %v7062, %v7063
    %v7065 = vrot.slane %v7064, 1
    %v7066 = vadd.f32 %v7064, %v7065
    %v7067 = vrot.slane %v7044, 4
    %v7068 = vadd.f32 %v7044, %v7067
    %v7069 = vrot.slane %v7068, 2
    %v7070 = vadd.f32 %v7068, %v7069
    %v7071 = vrot.slane %v7070, 1
    %v7072 = vadd.f32 %v7070, %v7071
    %v7073 = vrot.slane %v7045, 4
    %v7074 = vadd.f32 %v7045, %v7073
    %v7075 = vrot.slane %v7074, 2
    %v7076 = vadd.f32 %v7074, %v7075
    %v7077 = vrot.slane %v7076, 1
    %v7078 = vadd.f32 %v7076, %v7077
    %v7079 = vrot.slane %v7046, 4
    %v7080 = vadd.f32 %v7046, %v7079
    %v7081 = vrot.slane %v7080, 2
    %v7082 = vadd.f32 %v7080, %v7081
    %v7083 = vrot.slane %v7082, 1
    %v7084 = vadd.f32 %v7082, %v7083
    %v7085 = vrot.slane %v7047, 4
    %v7086 = vadd.f32 %v7047, %v7085
    %v7087 = vrot.slane %v7086, 2
    %v7088 = vadd.f32 %v7086, %v7087
    %v7089 = vrot.slane %v7088, 1
    %v7090 = vadd.f32 %v7088, %v7089
    %v7091 = vrot.slane %v7048, 4
    %v7092 = vadd.f32 %v7048, %v7091
    %v7093 = vrot.slane %v7092, 2
    %v7094 = vadd.f32 %v7092, %v7093
    %v7095 = vrot.slane %v7094, 1
    %v7096 = vadd.f32 %v7094, %v7095
    %v7097 = vmul.f32 %v7054, 0.125
    %v7098 = vmul.f32 %v7060, 0.125
    %v7099 = vmul.f32 %v7066, 0.125
    %v7100 = vmul.f32 %v7072, 0.125
    %v7101 = vmul.f32 %v7078, 0.125
    %v7102 = vmul.f32 %v7084, 0.125
    %v7103 = vmul.f32 %v7090, 0.125
    %v7104 = vmul.f32 %v7096, 0.125
    %v7105 = vmul.f32 %v7033, %v7033
    %v7106 = vmul.f32 %v7034, %v7034
    %v7107 = vmul.f32 %v7035, %v7035
    %v7108 = vmul.f32 %v7036, %v7036
    %v7109 = vmul.f32 %v7037, %v7037
    %v7110 = vmul.f32 %v7038, %v7038
    %v7111 = vmul.f32 %v7039, %v7039
    %v7112 = vmul.f32 %v7040, %v7040
    %v7113 = vsub.f32 %v7097, %v7105
    %v7114 = vsub.f32 %v7098, %v7106
    %v7115 = vsub.f32 %v7099, %v7107
    %v7116 = vsub.f32 %v7100, %v7108
    %v7117 = vsub.f32 %v7101, %v7109
    %v7118 = vsub.f32 %v7102, %v7110
    %v7119 = vsub.f32 %v7103, %v7111
    %v7120 = vsub.f32 %v7104, %v7112
    %v7121 = vmax.f32 %v7113, 0.0
    %v7122 = vmax.f32 %v7114, 0.0
    %v7123 = vmax.f32 %v7115, 0.0
    %v7124 = vmax.f32 %v7116, 0.0
    %v7125 = vmax.f32 %v7117, 0.0
    %v7126 = vmax.f32 %v7118, 0.0
    %v7127 = vmax.f32 %v7119, 0.0
    %v7128 = vmax.f32 %v7120, 0.0
    %v7129 = vadd.f32 %v7121, 1e-05
    %v7130 = vadd.f32 %v7122, 1e-05
    %v7131 = vadd.f32 %v7123, 1e-05
    %v7132 = vadd.f32 %v7124, 1e-05
    %v7133 = vadd.f32 %v7125, 1e-05
    %v7134 = vadd.f32 %v7126, 1e-05
    %v7135 = vadd.f32 %v7127, 1e-05
    %v7136 = vadd.f32 %v7128, 1e-05
    %v7137 = vrsqrt.pop %v7129
    %v7138 = vrsqrt.pop %v7130
    %v7139 = vrsqrt.pop %v7131
    %v7140 = vrsqrt.pop %v7132
    %v7141 = vrsqrt.pop %v7133
    %v7142 = vrsqrt.pop %v7134
    %v7143 = vrsqrt.pop %v7135
    %v7144 = vrsqrt.pop %v7136
    %v7145 = vsub.f32 %v6487, %v7033
    %v7146 = vsub.f32 %v6489, %v7034
    %v7147 = vsub.f32 %v6651, %v7035
    %v7148 = vsub.f32 %v6653, %v7036
    %v7149 = vsub.f32 %v6815, %v7037
    %v7150 = vsub.f32 %v6817, %v7038
    %v7151 = vsub.f32 %v6979, %v7039
    %v7152 = vsub.f32 %v6981, %v7040
    %v7153 = vmul.f32 %v7145, %v7137
    %v7154 = vmul.f32 %v7146, %v7138
    %v7155 = vmul.f32 %v7147, %v7139
    %v7156 = vmul.f32 %v7148, %v7140
    %v7157 = vmul.f32 %v7149, %v7141
    %v7158 = vmul.f32 %v7150, %v7142
    %v7159 = vmul.f32 %v7151, %v7143
    %v7160 = vmul.f32 %v7152, %v7144
    %vm7161 = vcmp.gt.f32.partialorder %v7153, 0.0
    %vm7162 = vcmp.gt.f32.partialorder %v7154, 0.0
    %vm7163 = vcmp.gt.f32.partialorder %v7155, 0.0
    %vm7164 = vcmp.gt.f32.partialorder %v7156, 0.0
    %vm7165 = vcmp.gt.f32.partialorder %v7157, 0.0
    %vm7166 = vcmp.gt.f32.partialorder %v7158, 0.0
    %vm7167 = vcmp.gt.f32.partialorder %v7159, 0.0
    %vm7168 = vcmp.gt.f32.partialorder %v7160, 0.0
    %v7169 = vmul.f32 %v7153, 0.2
    %v7170 = vmul.f32 %v7154, 0.2
    %v7171 = vmul.f32 %v7155, 0.2
    %v7172 = vmul.f32 %v7156, 0.2
    %v7173 = vmul.f32 %v7157, 0.2
    %v7174 = vmul.f32 %v7158, 0.2
    %v7175 = vmul.f32 %v7159, 0.2
    %v7176 = vmul.f32 %v7160, 0.2
    %v7177 = vsel %vm7161, %v7153, %v7169
    %v7178 = vsel %vm7162, %v7154, %v7170
    %v7179 = vsel %vm7163, %v7155, %v7171
    %v7180 = vsel %vm7164, %v7156, %v7172
    %v7181 = vsel %vm7165, %v7157, %v7173
    %v7182 = vsel %vm7166, %v7158, %v7174
    %v7183 = vsel %vm7167, %v7159, %v7175
    %v7184 = vsel %vm7168, %v7160, %v7176
    %v7185 = vpack.c.bf16 %v7177, %v7177
    %v7186 = vpack.c.bf16 %v7178, %v7178
    %v7187 = vpack.c.bf16 %v7179, %v7179
    %v7188 = vpack.c.bf16 %v7180, %v7180
    %v7189 = vpack.c.bf16 %v7181, %v7181
    %v7190 = vpack.c.bf16 %v7182, %v7182
    %v7191 = vpack.c.bf16 %v7183, %v7183
    %v7192 = vpack.c.bf16 %v7184, %v7184
    %v7193 = vld [vmem:[#allocation11] sm:$0xf]
    %v7194 = vld [vmem:[#allocation11 + $0x4] sm:$0xf]
    %v7195 = vld [vmem:[#allocation11 + $0x8] sm:$0xf]
    %v7196 = vld [vmem:[#allocation11 + $0xc] sm:$0xf]
    %v7197 = vld [vmem:[#allocation11 + $0x10] sm:$0xf]
    %v7198 = vld [vmem:[#allocation11 + $0x14] sm:$0xf]
    %v7199 = vld [vmem:[#allocation11 + $0x18] sm:$0xf]
    %v7200 = vld [vmem:[#allocation11 + $0x1c] sm:$0xf]
    %v7201 = vld [vmem:[#allocation11 + $0x20] sm:$0xf]
    %v7202 = vld [vmem:[#allocation11 + $0x24] sm:$0xf]
    %v7203 = vld [vmem:[#allocation11 + $0x28] sm:$0xf]
    %v7204 = vld [vmem:[#allocation11 + $0x2c] sm:$0xf]
    %v7205 = vld [vmem:[#allocation11 + $0x30] sm:$0xf]
    %v7206 = vld [vmem:[#allocation11 + $0x34] sm:$0xf]
    %v7207 = vld [vmem:[#allocation11 + $0x38] sm:$0xf]
    %v7208 = vld [vmem:[#allocation11 + $0x3c] sm:$0xf]
    %v7209 = vld [vmem:[#allocation11 + $0x40] sm:$0xf]
    %v7210 = vld [vmem:[#allocation11 + $0x44] sm:$0xf]
    %v7211 = vld [vmem:[#allocation11 + $0x48] sm:$0xf]
    %v7212 = vld [vmem:[#allocation11 + $0x4c] sm:$0xf]
    %v7213 = vld [vmem:[#allocation11 + $0x50] sm:$0xf]
    %v7214 = vld [vmem:[#allocation11 + $0x54] sm:$0xf]
    %v7215 = vld [vmem:[#allocation11 + $0x58] sm:$0xf]
    %v7216 = vld [vmem:[#allocation11 + $0x5c] sm:$0xf]
    %v7217 = vld [vmem:[#allocation11 + $0x60] sm:$0xf]
    %v7218 = vld [vmem:[#allocation11 + $0x64] sm:$0xf]
    %v7219 = vld [vmem:[#allocation11 + $0x68] sm:$0xf]
    %v7220 = vld [vmem:[#allocation11 + $0x6c] sm:$0xf]
    %v7221 = vld [vmem:[#allocation11 + $0x70] sm:$0xf]
    %v7222 = vld [vmem:[#allocation11 + $0x74] sm:$0xf]
    %v7223 = vld [vmem:[#allocation11 + $0x78] sm:$0xf]
    %v7224 = vld [vmem:[#allocation11 + $0x7c] sm:$0xf]
    %v7225 = vld [vmem:[#allocation11 + $0x80] sm:$0xf]
    %v7226 = vld [vmem:[#allocation11 + $0x84] sm:$0xf]
    %v7227 = vld [vmem:[#allocation11 + $0x88] sm:$0xf]
    %v7228 = vld [vmem:[#allocation11 + $0x8c] sm:$0xf]
    %v7229 = vld [vmem:[#allocation11 + $0x90] sm:$0xf]
    %v7230 = vld [vmem:[#allocation11 + $0x94] sm:$0xf]
    %v7231 = vld [vmem:[#allocation11 + $0x98] sm:$0xf]
    %v7232 = vld [vmem:[#allocation11 + $0x9c] sm:$0xf]
    %v7233 = vld [vmem:[#allocation11 + $0xa0] sm:$0xf]
    %v7234 = vld [vmem:[#allocation11 + $0xa4] sm:$0xf]
    %v7235 = vld [vmem:[#allocation11 + $0xa8] sm:$0xf]
    %v7236 = vld [vmem:[#allocation11 + $0xac] sm:$0xf]
    %v7237 = vld [vmem:[#allocation11 + $0xb0] sm:$0xf]
    %v7238 = vld [vmem:[#allocation11 + $0xb4] sm:$0xf]
    %v7239 = vld [vmem:[#allocation11 + $0xb8] sm:$0xf]
    %v7240 = vld [vmem:[#allocation11 + $0xbc] sm:$0xf]
    %v7241 = vld [vmem:[#allocation11 + $0xc0] sm:$0xf]
    %v7242 = vld [vmem:[#allocation11 + $0xc4] sm:$0xf]
    %v7243 = vld [vmem:[#allocation11 + $0xc8] sm:$0xf]
    %v7244 = vld [vmem:[#allocation11 + $0xcc] sm:$0xf]
    %v7245 = vld [vmem:[#allocation11 + $0xd0] sm:$0xf]
    %v7246 = vld [vmem:[#allocation11 + $0xd4] sm:$0xf]
    %v7247 = vld [vmem:[#allocation11 + $0xd8] sm:$0xf]
    %v7248 = vld [vmem:[#allocation11 + $0xdc] sm:$0xf]
    %v7249 = vld [vmem:[#allocation11 + $0xe0] sm:$0xf]
    %v7250 = vld [vmem:[#allocation11 + $0xe4] sm:$0xf]
    %v7251 = vld [vmem:[#allocation11 + $0xe8] sm:$0xf]
    %v7252 = vld [vmem:[#allocation11 + $0xec] sm:$0xf]
    %v7253 = vld [vmem:[#allocation11 + $0xf0] sm:$0xf]
    %v7254 = vld [vmem:[#allocation11 + $0xf4] sm:$0xf]
    %v7255 = vld [vmem:[#allocation11 + $0xf8] sm:$0xf]
    %v7256 = vld [vmem:[#allocation11 + $0xfc] sm:$0xf]
    %v7257 = vld [vmem:[#allocation11 + $0x100] sm:$0xf]
    %v7258 = vld [vmem:[#allocation11 + $0x104] sm:$0xf]
    %v7259 = vld [vmem:[#allocation11 + $0x108] sm:$0xf]
    %v7260 = vld [vmem:[#allocation11 + $0x10c] sm:$0xf]
    %v7261 = vld [vmem:[#allocation11 + $0x110] sm:$0xf]
    %v7262 = vld [vmem:[#allocation11 + $0x114] sm:$0xf]
    %v7263 = vld [vmem:[#allocation11 + $0x118] sm:$0xf]
    %v7264 = vld [vmem:[#allocation11 + $0x11c] sm:$0xf]
    %v7265 = vld [vmem:[#allocation11 + $0x120] sm:$0xf]
    %v7266 = vld [vmem:[#allocation11 + $0x124] sm:$0xf]
    %v7267 = vld [vmem:[#allocation11 + $0x128] sm:$0xf]
    %v7268 = vld [vmem:[#allocation11 + $0x12c] sm:$0xf]
    %v7269 = vld [vmem:[#allocation11 + $0x130] sm:$0xf]
    %v7270 = vld [vmem:[#allocation11 + $0x134] sm:$0xf]
    %v7271 = vld [vmem:[#allocation11 + $0x138] sm:$0xf]
    %v7272 = vld [vmem:[#allocation11 + $0x13c] sm:$0xf]
    %v7273 = vld [vmem:[#allocation11 + $0x140] sm:$0xf]
    %v7274 = vld [vmem:[#allocation11 + $0x144] sm:$0xf]
    %v7275 = vld [vmem:[#allocation11 + $0x148] sm:$0xf]
    %v7276 = vld [vmem:[#allocation11 + $0x14c] sm:$0xf]
    %v7277 = vld [vmem:[#allocation11 + $0x150] sm:$0xf]
    %v7278 = vld [vmem:[#allocation11 + $0x154] sm:$0xf]
    %v7279 = vld [vmem:[#allocation11 + $0x158] sm:$0xf]
    %v7280 = vld [vmem:[#allocation11 + $0x15c] sm:$0xf]
    %v7281 = vld [vmem:[#allocation11 + $0x160] sm:$0xf]
    %v7282 = vld [vmem:[#allocation11 + $0x164] sm:$0xf]
    %v7283 = vld [vmem:[#allocation11 + $0x168] sm:$0xf]
    %v7284 = vld [vmem:[#allocation11 + $0x16c] sm:$0xf]
    %v7285 = vld [vmem:[#allocation11 + $0x170] sm:$0xf]
    %v7286 = vld [vmem:[#allocation11 + $0x174] sm:$0xf]
    %v7287 = vld [vmem:[#allocation11 + $0x178] sm:$0xf]
    %v7288 = vld [vmem:[#allocation11 + $0x17c] sm:$0xf]
    %v7289 = vld [vmem:[#allocation11 + $0x180] sm:$0xf]
    %v7290 = vld [vmem:[#allocation11 + $0x184] sm:$0xf]
    %v7291 = vld [vmem:[#allocation11 + $0x188] sm:$0xf]
    %v7292 = vld [vmem:[#allocation11 + $0x18c] sm:$0xf]
    %v7293 = vld [vmem:[#allocation11 + $0x190] sm:$0xf]
    %v7294 = vld [vmem:[#allocation11 + $0x194] sm:$0xf]
    %v7295 = vld [vmem:[#allocation11 + $0x198] sm:$0xf]
    %v7296 = vld [vmem:[#allocation11 + $0x19c] sm:$0xf]
    %v7297 = vld [vmem:[#allocation11 + $0x1a0] sm:$0xf]
    %v7298 = vld [vmem:[#allocation11 + $0x1a4] sm:$0xf]
    %v7299 = vld [vmem:[#allocation11 + $0x1a8] sm:$0xf]
    %v7300 = vld [vmem:[#allocation11 + $0x1ac] sm:$0xf]
    %v7301 = vld [vmem:[#allocation11 + $0x1b0] sm:$0xf]
    %v7302 = vld [vmem:[#allocation11 + $0x1b4] sm:$0xf]
    %v7303 = vld [vmem:[#allocation11 + $0x1b8] sm:$0xf]
    %v7304 = vld [vmem:[#allocation11 + $0x1bc] sm:$0xf]
    %v7305 = vld [vmem:[#allocation11 + $0x1c0] sm:$0xf]
    %v7306 = vld [vmem:[#allocation11 + $0x1c4] sm:$0xf]
    %v7307 = vld [vmem:[#allocation11 + $0x1c8] sm:$0xf]
    %v7308 = vld [vmem:[#allocation11 + $0x1cc] sm:$0xf]
    %v7309 = vld [vmem:[#allocation11 + $0x1d0] sm:$0xf]
    %v7310 = vld [vmem:[#allocation11 + $0x1d4] sm:$0xf]
    %v7311 = vld [vmem:[#allocation11 + $0x1d8] sm:$0xf]
    %v7312 = vld [vmem:[#allocation11 + $0x1dc] sm:$0xf]
    %v7313 = vld [vmem:[#allocation11 + $0x1e0] sm:$0xf]
    %v7314 = vld [vmem:[#allocation11 + $0x1e4] sm:$0xf]
    %v7315 = vld [vmem:[#allocation11 + $0x1e8] sm:$0xf]
    %v7316 = vld [vmem:[#allocation11 + $0x1ec] sm:$0xf]
    %v7317 = vld [vmem:[#allocation11 + $0x1f0] sm:$0xf]
    %v7318 = vld [vmem:[#allocation11 + $0x1f4] sm:$0xf]
    %v7319 = vld [vmem:[#allocation11 + $0x1f8] sm:$0xf]
    %v7320 = vld [vmem:[#allocation11 + $0x1fc] sm:$0xf]
    %v7321 = vld [vmem:[#allocation13] sm:$0x1]
    %v7323 = vlaneseq
    %v7324 = vshrl.u32 %v7323, 7
    %v7325 = vsub.s32 0, %v7324
    %v7326 = vrot.slane %v7321, %v7325
    %v7456 = vunpack.c.l.b16 %v7193
    %v7457 = vunpack.c.l.b16 %v7194
    %v7458 = vunpack.c.l.b16 %v7195
    %v7459 = vunpack.c.l.b16 %v7196
    %v7460 = vunpack.c.l.b16 %v7197
    %v7461 = vunpack.c.l.b16 %v7198
    %v7462 = vunpack.c.l.b16 %v7199
    %v7463 = vunpack.c.l.b16 %v7200
    %v7464 = vunpack.c.l.b16 %v7201
    %v7465 = vunpack.c.l.b16 %v7202
    %v7466 = vunpack.c.l.b16 %v7203
    %v7467 = vunpack.c.l.b16 %v7204
    %v7468 = vunpack.c.l.b16 %v7205
    %v7469 = vunpack.c.l.b16 %v7206
    %v7470 = vunpack.c.l.b16 %v7207
    %v7471 = vunpack.c.l.b16 %v7208
    %v7472 = vunpack.c.l.b16 %v7209
    %v7473 = vunpack.c.l.b16 %v7210
    %v7474 = vunpack.c.l.b16 %v7211
    %v7475 = vunpack.c.l.b16 %v7212
    %v7476 = vunpack.c.l.b16 %v7213
    %v7477 = vunpack.c.l.b16 %v7214
    %v7478 = vunpack.c.l.b16 %v7215
    %v7479 = vunpack.c.l.b16 %v7216
    %v7480 = vunpack.c.l.b16 %v7217
    %v7481 = vunpack.c.l.b16 %v7218
    %v7482 = vunpack.c.l.b16 %v7219
    %v7483 = vunpack.c.l.b16 %v7220
    %v7484 = vunpack.c.l.b16 %v7221
    %v7485 = vunpack.c.l.b16 %v7222
    %v7486 = vunpack.c.l.b16 %v7223
    %v7487 = vunpack.c.l.b16 %v7224
    %v7488 = vunpack.c.l.b16 %v7225
    %v7489 = vunpack.c.l.b16 %v7226
    %v7490 = vunpack.c.l.b16 %v7227
    %v7491 = vunpack.c.l.b16 %v7228
    %v7492 = vunpack.c.l.b16 %v7229
    %v7493 = vunpack.c.l.b16 %v7230
    %v7494 = vunpack.c.l.b16 %v7231
    %v7495 = vunpack.c.l.b16 %v7232
    %v7496 = vunpack.c.l.b16 %v7233
    %v7497 = vunpack.c.l.b16 %v7234
    %v7498 = vunpack.c.l.b16 %v7235
    %v7499 = vunpack.c.l.b16 %v7236
    %v7500 = vunpack.c.l.b16 %v7237
    %v7501 = vunpack.c.l.b16 %v7238
    %v7502 = vunpack.c.l.b16 %v7239
    %v7503 = vunpack.c.l.b16 %v7240
    %v7504 = vunpack.c.l.b16 %v7241
    %v7505 = vunpack.c.l.b16 %v7242
    %v7506 = vunpack.c.l.b16 %v7243
    %v7507 = vunpack.c.l.b16 %v7244
    %v7508 = vunpack.c.l.b16 %v7245
    %v7509 = vunpack.c.l.b16 %v7246
    %v7510 = vunpack.c.l.b16 %v7247
    %v7511 = vunpack.c.l.b16 %v7248
    %v7512 = vunpack.c.l.b16 %v7249
    %v7513 = vunpack.c.l.b16 %v7250
    %v7514 = vunpack.c.l.b16 %v7251
    %v7515 = vunpack.c.l.b16 %v7252
    %v7516 = vunpack.c.l.b16 %v7253
    %v7517 = vunpack.c.l.b16 %v7254
    %v7518 = vunpack.c.l.b16 %v7255
    %v7519 = vunpack.c.l.b16 %v7256
    %v7520 = vunpack.c.l.b16 %v7257
    %v7521 = vunpack.c.l.b16 %v7258
    %v7522 = vunpack.c.l.b16 %v7259
    %v7523 = vunpack.c.l.b16 %v7260
    %v7524 = vunpack.c.l.b16 %v7261
    %v7525 = vunpack.c.l.b16 %v7262
    %v7526 = vunpack.c.l.b16 %v7263
    %v7527 = vunpack.c.l.b16 %v7264
    %v7528 = vunpack.c.l.b16 %v7265
    %v7529 = vunpack.c.l.b16 %v7266
    %v7530 = vunpack.c.l.b16 %v7267
    %v7531 = vunpack.c.l.b16 %v7268
    %v7532 = vunpack.c.l.b16 %v7269
    %v7533 = vunpack.c.l.b16 %v7270
    %v7534 = vunpack.c.l.b16 %v7271
    %v7535 = vunpack.c.l.b16 %v7272
    %v7536 = vunpack.c.l.b16 %v7273
    %v7537 = vunpack.c.l.b16 %v7274
    %v7538 = vunpack.c.l.b16 %v7275
    %v7539 = vunpack.c.l.b16 %v7276
    %v7540 = vunpack.c.l.b16 %v7277
    %v7541 = vunpack.c.l.b16 %v7278
    %v7542 = vunpack.c.l.b16 %v7279
    %v7543 = vunpack.c.l.b16 %v7280
    %v7544 = vunpack.c.l.b16 %v7281
    %v7545 = vunpack.c.l.b16 %v7282
    %v7546 = vunpack.c.l.b16 %v7283
    %v7547 = vunpack.c.l.b16 %v7284
    %v7548 = vunpack.c.l.b16 %v7285
    %v7549 = vunpack.c.l.b16 %v7286
    %v7550 = vunpack.c.l.b16 %v7287
    %v7551 = vunpack.c.l.b16 %v7288
    %v7552 = vunpack.c.l.b16 %v7289
    %v7553 = vunpack.c.l.b16 %v7290
    %v7554 = vunpack.c.l.b16 %v7291
    %v7555 = vunpack.c.l.b16 %v7292
    %v7556 = vunpack.c.l.b16 %v7293
    %v7557 = vunpack.c.l.b16 %v7294
    %v7558 = vunpack.c.l.b16 %v7295
    %v7559 = vunpack.c.l.b16 %v7296
    %v7560 = vunpack.c.l.b16 %v7297
    %v7561 = vunpack.c.l.b16 %v7298
    %v7562 = vunpack.c.l.b16 %v7299
    %v7563 = vunpack.c.l.b16 %v7300
    %v7564 = vunpack.c.l.b16 %v7301
    %v7565 = vunpack.c.l.b16 %v7302
    %v7566 = vunpack.c.l.b16 %v7303
    %v7567 = vunpack.c.l.b16 %v7304
    %v7568 = vunpack.c.l.b16 %v7305
    %v7569 = vunpack.c.l.b16 %v7306
    %v7570 = vunpack.c.l.b16 %v7307
    %v7571 = vunpack.c.l.b16 %v7308
    %v7572 = vunpack.c.l.b16 %v7309
    %v7573 = vunpack.c.l.b16 %v7310
    %v7574 = vunpack.c.l.b16 %v7311
    %v7575 = vunpack.c.l.b16 %v7312
    %v7576 = vunpack.c.l.b16 %v7313
    %v7577 = vunpack.c.l.b16 %v7314
    %v7578 = vunpack.c.l.b16 %v7315
    %v7579 = vunpack.c.l.b16 %v7316
    %v7580 = vunpack.c.l.b16 %v7317
    %v7581 = vunpack.c.l.b16 %v7318
    %v7582 = vunpack.c.l.b16 %v7319
    %v7583 = vunpack.c.l.b16 %v7320
    %v7584 = vpack.c.b16 %v7457, %v7456
    %v7585 = vpack.c.b16 %v7459, %v7458
    %v7586 = vpack.c.b16 %v7461, %v7460
    %v7587 = vpack.c.b16 %v7463, %v7462
    %v7588 = vpack.c.b16 %v7465, %v7464
    %v7589 = vpack.c.b16 %v7467, %v7466
    %v7590 = vpack.c.b16 %v7469, %v7468
    %v7591 = vpack.c.b16 %v7471, %v7470
    %v7592 = vpack.c.b16 %v7473, %v7472
    %v7593 = vpack.c.b16 %v7475, %v7474
    %v7594 = vpack.c.b16 %v7477, %v7476
    %v7595 = vpack.c.b16 %v7479, %v7478
    %v7596 = vpack.c.b16 %v7481, %v7480
    %v7597 = vpack.c.b16 %v7483, %v7482
    %v7598 = vpack.c.b16 %v7485, %v7484
    %v7599 = vpack.c.b16 %v7487, %v7486
    %v7600 = vpack.c.b16 %v7489, %v7488
    %v7601 = vpack.c.b16 %v7491, %v7490
    %v7602 = vpack.c.b16 %v7493, %v7492
    %v7603 = vpack.c.b16 %v7495, %v7494
    %v7604 = vpack.c.b16 %v7497, %v7496
    %v7605 = vpack.c.b16 %v7499, %v7498
    %v7606 = vpack.c.b16 %v7501, %v7500
    %v7607 = vpack.c.b16 %v7503, %v7502
    %v7608 = vpack.c.b16 %v7505, %v7504
    %v7609 = vpack.c.b16 %v7507, %v7506
    %v7610 = vpack.c.b16 %v7509, %v7508
    %v7611 = vpack.c.b16 %v7511, %v7510
    %v7612 = vpack.c.b16 %v7513, %v7512
    %v7613 = vpack.c.b16 %v7515, %v7514
    %v7614 = vpack.c.b16 %v7517, %v7516
    %v7615 = vpack.c.b16 %v7519, %v7518
    %v7616 = vpack.c.b16 %v7521, %v7520
    %v7617 = vpack.c.b16 %v7523, %v7522
    %v7618 = vpack.c.b16 %v7525, %v7524
    %v7619 = vpack.c.b16 %v7527, %v7526
    %v7620 = vpack.c.b16 %v7529, %v7528
    %v7621 = vpack.c.b16 %v7531, %v7530
    %v7622 = vpack.c.b16 %v7533, %v7532
    %v7623 = vpack.c.b16 %v7535, %v7534
    %v7624 = vpack.c.b16 %v7537, %v7536
    %v7625 = vpack.c.b16 %v7539, %v7538
    %v7626 = vpack.c.b16 %v7541, %v7540
    %v7627 = vpack.c.b16 %v7543, %v7542
    %v7628 = vpack.c.b16 %v7545, %v7544
    %v7629 = vpack.c.b16 %v7547, %v7546
    %v7630 = vpack.c.b16 %v7549, %v7548
    %v7631 = vpack.c.b16 %v7551, %v7550
    %v7632 = vpack.c.b16 %v7553, %v7552
    %v7633 = vpack.c.b16 %v7555, %v7554
    %v7634 = vpack.c.b16 %v7557, %v7556
    %v7635 = vpack.c.b16 %v7559, %v7558
    %v7636 = vpack.c.b16 %v7561, %v7560
    %v7637 = vpack.c.b16 %v7563, %v7562
    %v7638 = vpack.c.b16 %v7565, %v7564
    %v7639 = vpack.c.b16 %v7567, %v7566
    %v7640 = vpack.c.b16 %v7569, %v7568
    %v7641 = vpack.c.b16 %v7571, %v7570
    %v7642 = vpack.c.b16 %v7573, %v7572
    %v7643 = vpack.c.b16 %v7575, %v7574
    %v7644 = vpack.c.b16 %v7577, %v7576
    %v7645 = vpack.c.b16 %v7579, %v7578
    %v7646 = vpack.c.b16 %v7581, %v7580
    %v7647 = vpack.c.b16 %v7583, %v7582
    %7712 = vmatprep.subr.bf16.mxu0 0
    %7713 = vmatpush1.bf16.msra.mxu0 %v7584
    %7714 = vmatprep.subr.bf16.mxu0 0
    %7715 = vmatpush1.bf16.msra.mxu0 %v7585
    %7716 = vmatprep.subr.bf16.mxu0 0
    %7717 = vmatpush1.bf16.msra.mxu0 %v7586
    %7718 = vmatprep.subr.bf16.mxu0 0
    %7719 = vmatpush1.bf16.msra.mxu0 %v7587
    %7720 = vmatprep.subr.bf16.mxu0 0
    %7721 = vmatpush1.bf16.msra.mxu0 %v7588
    %7722 = vmatprep.subr.bf16.mxu0 0
    %7723 = vmatpush1.bf16.msra.mxu0 %v7589
    %7724 = vmatprep.subr.bf16.mxu0 0
    %7725 = vmatpush1.bf16.msra.mxu0 %v7590
    %7726 = vmatprep.subr.bf16.mxu0 0
    %7727 = vmatpush1.bf16.msra.mxu0 %v7591
    %7728 = vmatprep.subr.bf16.mxu0 0
    %7729 = vmatpush1.bf16.msra.mxu0 %v7592
    %7730 = vmatprep.subr.bf16.mxu0 0
    %7731 = vmatpush1.bf16.msra.mxu0 %v7593
    %7732 = vmatprep.subr.bf16.mxu0 0
    %7733 = vmatpush1.bf16.msra.mxu0 %v7594
    %7734 = vmatprep.subr.bf16.mxu0 0
    %7735 = vmatpush1.bf16.msra.mxu0 %v7595
    %7736 = vmatprep.subr.bf16.mxu0 0
    %7737 = vmatpush1.bf16.msra.mxu0 %v7596
    %7738 = vmatprep.subr.bf16.mxu0 0
    %7739 = vmatpush1.bf16.msra.mxu0 %v7597
    %7740 = vmatprep.subr.bf16.mxu0 0
    %7741 = vmatpush1.bf16.msra.mxu0 %v7598
    %7742 = vmatprep.subr.bf16.mxu0 0
    %7743 = vmatpush1.bf16.msra.mxu0 %v7599
    %7744 = vmatprep.mubr.bf16.mxu0 %v7186
    %7745 = vmatmul.mubr.bf16.gmra.mrb[0].mxu0 %v7185
    %v7746 = vpop.f32.mrb[0].mxu0
    %v7747 = vadd.f32 %v7326, %v7746
    %v7748 = vpop.f32.mrb[0].mxu0
    %v7749 = vpop.f32.mrb[0].mxu0
    %v7750 = vpop.f32.mrb[0].mxu0
    %7751 = vdwg.mxu0
    %7752 = vmatprep.subr.bf16.mxu0 0
    %7753 = vmatpush1.bf16.msra.mxu0 %v7600
    %7754 = vmatprep.subr.bf16.mxu0 0
    %7755 = vmatpush1.bf16.msra.mxu0 %v7601
    %7756 = vmatprep.subr.bf16.mxu0 0
    %7757 = vmatpush1.bf16.msra.mxu0 %v7602
    %7758 = vmatprep.subr.bf16.mxu0 0
    %7759 = vmatpush1.bf16.msra.mxu0 %v7603
    %7760 = vmatprep.subr.bf16.mxu0 0
    %7761 = vmatpush1.bf16.msra.mxu0 %v7604
    %7762 = vmatprep.subr.bf16.mxu0 0
    %7763 = vmatpush1.bf16.msra.mxu0 %v7605
    %7764 = vmatprep.subr.bf16.mxu0 0
    %7765 = vmatpush1.bf16.msra.mxu0 %v7606
    %7766 = vmatprep.subr.bf16.mxu0 0
    %7767 = vmatpush1.bf16.msra.mxu0 %v7607
    %7768 = vmatprep.subr.bf16.mxu0 0
    %7769 = vmatpush1.bf16.msra.mxu0 %v7608
    %7770 = vmatprep.subr.bf16.mxu0 0
    %7771 = vmatpush1.bf16.msra.mxu0 %v7609
    %7772 = vmatprep.subr.bf16.mxu0 0
    %7773 = vmatpush1.bf16.msra.mxu0 %v7610
    %7774 = vmatprep.subr.bf16.mxu0 0
    %7775 = vmatpush1.bf16.msra.mxu0 %v7611
    %7776 = vmatprep.subr.bf16.mxu0 0
    %7777 = vmatpush1.bf16.msra.mxu0 %v7612
    %7778 = vmatprep.subr.bf16.mxu0 0
    %7779 = vmatpush1.bf16.msra.mxu0 %v7613
    %7780 = vmatprep.subr.bf16.mxu0 0
    %7781 = vmatpush1.bf16.msra.mxu0 %v7614
    %7782 = vmatprep.subr.bf16.mxu0 0
    %7783 = vmatpush1.bf16.msra.mxu0 %v7615
    %7784 = vmatprep.mubr.bf16.mxu0 %v7188
    %7785 = vmatmul.mubr.bf16.gmra.mrb[0].mxu0 %v7187
    %v7786 = vpop.f32.mrb[0].mxu0
    %v7787 = vadd.f32 %v7747, %v7786
    %v7788 = vpop.f32.mrb[0].mxu0
    %v7789 = vpop.f32.mrb[0].mxu0
    %v7790 = vpop.f32.mrb[0].mxu0
    %7791 = vdwg.mxu0
    %7792 = vmatprep.subr.bf16.mxu0 0
    %7793 = vmatpush1.bf16.msra.mxu0 %v7616
    %7794 = vmatprep.subr.bf16.mxu0 0
    %7795 = vmatpush1.bf16.msra.mxu0 %v7617
    %7796 = vmatprep.subr.bf16.mxu0 0
    %7797 = vmatpush1.bf16.msra.mxu0 %v7618
    %7798 = vmatprep.subr.bf16.mxu0 0
    %7799 = vmatpush1.bf16.msra.mxu0 %v7619
    %7800 = vmatprep.subr.bf16.mxu0 0
    %7801 = vmatpush1.bf16.msra.mxu0 %v7620
    %7802 = vmatprep.subr.bf16.mxu0 0
    %7803 = vmatpush1.bf16.msra.mxu0 %v7621
    %7804 = vmatprep.subr.bf16.mxu0 0
    %7805 = vmatpush1.bf16.msra.mxu0 %v7622
    %7806 = vmatprep.subr.bf16.mxu0 0
    %7807 = vmatpush1.bf16.msra.mxu0 %v7623
    %7808 = vmatprep.subr.bf16.mxu0 0
    %7809 = vmatpush1.bf16.msra.mxu0 %v7624
    %7810 = vmatprep.subr.bf16.mxu0 0
    %7811 = vmatpush1.bf16.msra.mxu0 %v7625
    %7812 = vmatprep.subr.bf16.mxu0 0
    %7813 = vmatpush1.bf16.msra.mxu0 %v7626
    %7814 = vmatprep.subr.bf16.mxu0 0
    %7815 = vmatpush1.bf16.msra.mxu0 %v7627
    %7816 = vmatprep.subr.bf16.mxu0 0
    %7817 = vmatpush1.bf16.msra.mxu0 %v7628
    %7818 = vmatprep.subr.bf16.mxu0 0
    %7819 = vmatpush1.bf16.msra.mxu0 %v7629
    %7820 = vmatprep.subr.bf16.mxu0 0
    %7821 = vmatpush1.bf16.msra.mxu0 %v7630
    %7822 = vmatprep.subr.bf16.mxu0 0
    %7823 = vmatpush1.bf16.msra.mxu0 %v7631
    %7824 = vmatprep.mubr.bf16.mxu0 %v7190
    %7825 = vmatmul.mubr.bf16.gmra.mrb[0].mxu0 %v7189
    %v7826 = vpop.f32.mrb[0].mxu0
    %v7827 = vadd.f32 %v7787, %v7826
    %v7828 = vpop.f32.mrb[0].mxu0
    %v7829 = vpop.f32.mrb[0].mxu0
    %v7830 = vpop.f32.mrb[0].mxu0
    %7831 = vdwg.mxu0
    %7832 = vmatprep.subr.bf16.mxu0 0
    %7833 = vmatpush1.bf16.msra.mxu0 %v7632
    %7834 = vmatprep.subr.bf16.mxu0 0
    %7835 = vmatpush1.bf16.msra.mxu0 %v7633
    %7836 = vmatprep.subr.bf16.mxu0 0
    %7837 = vmatpush1.bf16.msra.mxu0 %v7634
    %7838 = vmatprep.subr.bf16.mxu0 0
    %7839 = vmatpush1.bf16.msra.mxu0 %v7635
    %7840 = vmatprep.subr.bf16.mxu0 0
    %7841 = vmatpush1.bf16.msra.mxu0 %v7636
    %7842 = vmatprep.subr.bf16.mxu0 0
    %7843 = vmatpush1.bf16.msra.mxu0 %v7637
    %7844 = vmatprep.subr.bf16.mxu0 0
    %7845 = vmatpush1.bf16.msra.mxu0 %v7638
    %7846 = vmatprep.subr.bf16.mxu0 0
    %7847 = vmatpush1.bf16.msra.mxu0 %v7639
    %7848 = vmatprep.subr.bf16.mxu0 0
    %7849 = vmatpush1.bf16.msra.mxu0 %v7640
    %7850 = vmatprep.subr.bf16.mxu0 0
    %7851 = vmatpush1.bf16.msra.mxu0 %v7641
    %7852 = vmatprep.subr.bf16.mxu0 0
    %7853 = vmatpush1.bf16.msra.mxu0 %v7642
    %7854 = vmatprep.subr.bf16.mxu0 0
    %7855 = vmatpush1.bf16.msra.mxu0 %v7643
    %7856 = vmatprep.subr.bf16.mxu0 0
    %7857 = vmatpush1.bf16.msra.mxu0 %v7644
    %7858 = vmatprep.subr.bf16.mxu0 0
    %7859 = vmatpush1.bf16.msra.mxu0 %v7645
    %7860 = vmatprep.subr.bf16.mxu0 0
    %7861 = vmatpush1.bf16.msra.mxu0 %v7646
    %7862 = vmatprep.subr.bf16.mxu0 0
    %7863 = vmatpush1.bf16.msra.mxu0 %v7647
    %7864 = vmatprep.mubr.bf16.mxu0 %v7192
    %7865 = vmatmul.mubr.bf16.gmra.mrb[0].mxu0 %v7191
    %v7866 = vpop.f32.mrb[0].mxu0
    %v7867 = vadd.f32 %v7827, %v7866
    %v7868 = vpop.f32.mrb[0].mxu0
    %v7869 = vpop.f32.mrb[0].mxu0
    %v7870 = vpop.f32.mrb[0].mxu0
    %7871 = vdwg.mxu0
    %v7872 = vxor.u32 %v7867, 2147483648
    %v7873 = vmul.f32 %v7872, 1.442695
    %v7874 = vpow.pop %v7873
    %v7875 = vadd.f32 %v7874, 1.0
    %v7876 = vrcp.pop %v7875
    %v7877 = vmul.f32 1.0, %v7876
    %7878 = vst [vmem:[#allocation14] sm:$0xff] %v7877
    // Predicated region
    $region58: #{tpu_custom_call.1} parent=1 // pred_check
      _
    $region59: #{tpu_custom_call.1} parent=1 // pred_check_branch
      %7880 = sbr.rel (0) target = $region61
    $region60: #{tpu_custom_call.1} parent=1 // pred_region
      %s7882 = ssub.s32 128, 128
      %7883 = vsyncadd [#allocation4], %s7882
      %s7885 = sshll.u32 [#allocation14], 4
      %s7886 = int_to_ptr.vmem [resolvable:$true] %s7885
      %7888 = dma.vmem_to_hbm [thread:$0]  %s7886, 128, %s7, [#allocation4]
    $region61: #{tpu_custom_call.1} parent=1 // pred_fallthru
      _
    // Predicated region
    $region62: #{tpu_custom_call.1} parent=1 // pred_check
      _
    $region63: #{tpu_custom_call.1} parent=1 // pred_check_branch
      %7890 = sbr.rel (0) target = $region65
    $region64: #{tpu_custom_call.1} parent=1 // pred_region
      %7891 = dma.done [#allocation4], 128
    $region65: #{tpu_custom_call.1} parent=1 // pred_fallthru
      _
    %7892 = vsyncpa [#allocation3], 1
    %7893 = vsyncpa [#allocation6], 1
    %7894 = vsyncpa [#allocation9], 1
    %7895 = vsyncpa [#allocation12], 1
    %7896 = vsyncpa [#allocation4], 1

</llo_original>
